<compile_context>
chip_gen: v6e
topology: v6e:2x2x1
jax: 0.10.0
libtpu: 0.0.40
codegen_flags: <defaults>
</compile_context>

<pallas_src>
import functools

import jax
import jax.numpy as jnp
import numpy as np
from jax.experimental import pallas as pl
from jax.experimental.pallas import tpu as pltpu

BN_EPS = 1e-5
LANE = 128
VMEM_LIMIT = 48 * 1024 * 1024   # <= reviewer's v7x ceiling; ample on v5e/v6e


# ---------------------------------------------------------------------------
# Fused per-image kernel: conv1+bn1+relu -> conv2+bn2 -> shortcut -> add+relu
# ---------------------------------------------------------------------------
def _fused_block_kernel(ph_ref, w1_ref, b1_ref, w2_ref, b2_ref, *rest,
                        stride, wrow, w_out, m, has_proj):
    if has_proj:
        ws_ref, bs_ref, o_ref, o1_ref = rest
    else:
        o_ref, o1_ref = rest

    def conv3x3(load_tap, w_ref):
        # 9-tap in-kernel accumulation (f32) -- replaces the XLA im2col.
        acc = None
        for dy in range(3):
            for dx in range(3):
                t = dy * 3 + dx
                part = jnp.dot(load_tap(dy, dx), w_ref[t],
                               preferred_element_type=jnp.float32)
                acc = part if acc is None else acc + part
        return acc

    # ---- conv1 (bn1 scale pre-folded into w1) + bias + ReLU ----------------
    def x_tap(dy, dx):
        p = (dy % stride) * stride + (dx % stride)          # phase slab
        off = (dy // stride) * wrow + (dx // stride)         # flattened offset
        return ph_ref[p, pl.ds(off, m), :]

    out1 = jnp.maximum(conv3x3(x_tap, w1_ref) + b1_ref[...], 0.0)

    # Zero the junk columns (flattened x >= w_out): they land exactly in the
    # halo ring of the conv2 buffer, which must stay zero.
    col = jax.lax.broadcasted_iota(jnp.int32, (m, 1), 0) % wrow
    out1 = jnp.where(col < w_out, out1, 0.0).astype(jnp.bfloat16)

    # Stage out1 into a zero-padded VMEM buffer (1-pixel halo).  The halo
    # buffer shares the flattened row stride `wrow`, so the whole valid region
    # is one constant-offset block store; out1 never leaves VMEM.
    o1_ref[...] = jnp.zeros_like(o1_ref)
    o1_ref[pl.ds(wrow + 1, m), :] = out1

    # ---- conv2 (bn2 scale pre-folded into w2) -------------------------------
    def o1_tap(dy, dx):
        return o1_ref[pl.ds(dy * wrow + dx, m), :]

    acc = conv3x3(o1_tap, w2_ref) + b2_ref[...]

    # ---- shortcut ------------------------------------------------------------
    # x[y*stride, x*stride] lives in phase ((1%s)*s + 1%s) at flattened offset
    # (1//s)*(wrow+1): the residual source needs no extra DMA at all.
    p_sc = (1 % stride) * stride + (1 % stride)
    off_sc = (1 // stride) * (wrow + 1)
    res_in = ph_ref[p_sc, pl.ds(off_sc, m), :]
    if has_proj:      # 1x1 strided conv + bn (scale folded into ws)
        acc = acc + jnp.dot(res_in, ws_ref[...],
                            preferred_element_type=jnp.float32) + bs_ref[...]
    else:             # identity shortcut: plain bf16 residual add
        acc = acc + res_in.astype(jnp.float32)

    o_ref[...] = jnp.maximum(acc, 0.0).astype(o_ref.dtype)


def _fused_block(phases, w1, b1, w2, b2, ws, bs, *, stride, h_out, w_out, cp,
                 out_dtype=jnp.bfloat16):
    n, n_phases, s_flat, cin_p = phases.shape
    wrow = w_out + 2
    m = h_out * wrow
    has_proj = ws is not None

    kernel = functools.partial(_fused_block_kernel, stride=stride, wrow=wrow,
                               w_out=w_out, m=m, has_proj=has_proj)

    in_specs = [
        # per-image phase slabs: the only per-step input DMA
        pl.BlockSpec((None, n_phases, s_flat, cin_p), lambda b: (b, 0, 0, 0)),
        # grid-invariant operands: constant index_map -> DMA'd once
        pl.BlockSpec((9, cin_p, cp), lambda b: (0, 0, 0)),
        pl.BlockSpec((1, cp), lambda b: (0, 0)),
        pl.BlockSpec((9, cp, cp), lambda b: (0, 0, 0)),
        pl.BlockSpec((1, cp), lambda b: (0, 0)),
    ]
    args = [phases, w1, b1, w2, b2]
    if has_proj:
        in_specs += [pl.BlockSpec((cin_p, cp), lambda b: (0, 0)),
                     pl.BlockSpec((1, cp), lambda b: (0, 0))]
        args += [ws, bs]

    return pl.pallas_call(
        kernel,
        out_shape=jax.ShapeDtypeStruct((n, m, cp), out_dtype),
        grid=(n,),
        in_specs=in_specs,
        out_specs=pl.BlockSpec((None, m, cp), lambda b: (b, 0, 0)),
        scratch_shapes=[pltpu.VMEM((s_flat, cp), jnp.bfloat16)],  # out1 halo buf
        compiler_params=pltpu.CompilerParams(
            dimension_semantics=("parallel",),
            vmem_limit_bytes=VMEM_LIMIT),
    )(*args)


# ---------------------------------------------------------------------------
# Glue (plain JAX): phase-slab construction, BN folding, weight re-layout
# ---------------------------------------------------------------------------
def _round_up(x, mult):
    return (x + mult - 1) // mult * mult


def _fold_bn(gamma, beta, mean, var):
    scale = gamma / jnp.sqrt(var + BN_EPS)
    bias = beta - mean * scale
    return scale, bias


def _conv3x3_taps(w_oihw, scale, cin_p, cout_p):
    # (Cout, Cin, 3, 3) * scale[co]  ->  (9, cin_p, cout_p) bf16, tap t = dy*3+dx
    w = jnp.transpose(w_oihw, (2, 3, 1, 0)) * scale[None, None, None, :]  # f32
    w = jnp.pad(w, ((0, 0), (0, 0),
                    (0, cin_p - w.shape[2]), (0, cout_p - w.shape[3])))
    return w.reshape(9, cin_p, cout_p).astype(jnp.bfloat16)


def _conv1x1_mat(w_oihw, scale, cin_p, cout_p):
    w = w_oihw[:, :, 0, 0].T * scale[None, :]                              # f32
    w = jnp.pad(w, ((0, cin_p - w.shape[0]), (0, cout_p - w.shape[1])))
    return w.astype(jnp.bfloat16)


def _bias_row(bias, cout_p):
    return jnp.pad(bias, (0, cout_p - bias.shape[0])).reshape(1, cout_p) \
              .astype(jnp.float32)


@functools.partial(jax.jit, static_argnames=("stride",))
def resnet_basic_block_forward(x_nhwc, params, stride):
    n, h, w, cin = x_nhwc.shape
    planes = params["w1"].shape[0]
    h_out = (h - 1) // stride + 1
    w_out = (w - 1) // stride + 1
    wrow = w_out + 2            # flattened row stride (1-pixel halo)
    hrow = h_out + 3            # 1 top pad + 1 bottom pad + 1 slack row
    s_flat = hrow * wrow
    cin_p = _round_up(cin, LANE)
    cp = _round_up(planes, LANE)        # lane-dense output channel axis

    # ---- stride-phase slabs (~1x the input bytes; replaces im2col) ----------
    x_bf16 = x_nhwc.astype(jnp.bfloat16)
    if stride == 1:
        xp = jnp.pad(x_bf16, ((0, 0), (1, 2), (1, 1), (0, cin_p - cin)))
        phases = xp.reshape(n, 1, s_flat, cin_p)
    else:
        xp = jnp.pad(x_bf16, ((0, 0), (1, 1), (1, 1), (0, cin_p - cin)))
        phs = []
        for py in range(stride):
            for px in range(stride):
                ph = xp[:, py::stride, px::stride, :]
                ph = jnp.pad(ph, ((0, 0), (0, hrow - ph.shape[1]),
                                  (0, wrow - ph.shape[2]), (0, 0)))
                phs.append(ph)
        phases = jnp.stack(phs, axis=1).reshape(n, stride * stride, s_flat, cin_p)

    # ---- fold BN scale into the conv weights (f32 fold, then bf16 cast) -----
    s1, b1 = _fold_bn(*params["bn1"])
    s2, b2 = _fold_bn(*params["bn2"])
    w1 = _conv3x3_taps(params["w1"], s1, cin_p, cp)
    w2 = _conv3x3_taps(params["w2"], s2, cp, cp)
    b1 = _bias_row(b1, cp)
    b2 = _bias_row(b2, cp)
    if "ws" in params:          # projection shortcut: 1x1 (strided) conv + bn
        ss, bs_ = _fold_bn(*params["bns"])
        ws = _conv1x1_mat(params["ws"], ss, cin_p, cp)
        bs_ = _bias_row(bs_, cp)
    else:                       # identity shortcut
        ws, bs_ = None, None

    out = _fused_block(phases, w1, b1, w2, b2, ws, bs_,
                       stride=stride, h_out=h_out, w_out=w_out, cp=cp)

    # Test-only glue: a real network would keep the padded, bf16, lane-dense
    # layout for the next block instead of slicing back to (N, H, W, planes).
    return out.reshape(n, h_out, wrow, cp)[:, :, :w_out, :planes]


# ---------------------------------------------------------------------------
# Reference (plain JAX, no Pallas) for numerical validation
# ---------------------------------------------------------------------------
def reference_forward(x_nhwc, params, stride):
    def conv(x, w_oihw, s, pad):
        w = jnp.transpose(w_oihw, (2, 3, 1, 0))  # OIHW -> HWIO
        return jax.lax.conv_general_dilated(
            x, w, (s, s), [(pad, pad), (pad, pad)],
            dimension_numbers=("NHWC", "HWIO", "NHWC"))

    def bn(x, g, b, mu, var):
        return (x - mu) / jnp.sqrt(var + BN_EPS) * g + b

    out = jax.nn.relu(bn(conv(x_nhwc, params["w1"], stride, 1), *params["bn1"]))
    out = bn(conv(out, params["w2"], 1, 1), *params["bn2"])
    if "ws" in params:
        sc = bn(conv(x_nhwc, params["ws"], stride, 0), *params["bns"])
    else:
        sc = x_nhwc
    return jax.nn.relu(out + sc)


# ---------------------------------------------------------------------------
# Deterministic parameter init (shapes from Resnet_basic_block.__init__)
# ---------------------------------------------------------------------------
def init_params(key, in_planes, planes, stride):
    ks = jax.random.split(key, 6)

    def bn_params(k, c):
        k1, k2, k3, k4 = jax.random.split(k, 4)
        gamma = 1.0 + 0.1 * jax.random.normal(k1, (c,), jnp.float32)
        beta = 0.1 * jax.random.normal(k2, (c,), jnp.float32)
        mean = 0.1 * jax.random.normal(k3, (c,), jnp.float32)
        var = jax.random.uniform(k4, (c,), jnp.float32, 0.5, 1.5)
        return (gamma, beta, mean, var)

    params = {
        "w1": 0.2 * jax.random.normal(ks[0], (planes, in_planes, 3, 3), jnp.float32),
        "bn1": bn_params(ks[1], planes),
        "w2": 0.2 * jax.random.normal(ks[2], (planes, planes, 3, 3), jnp.float32),
        "bn2": bn_params(ks[3], planes),
    }
    if stride != 1 or in_planes != planes:  # expansion = 1
        params["ws"] = 0.2 * jax.random.normal(ks[4], (planes, in_planes, 1, 1),
                                               jnp.float32)
        params["bns"] = bn_params(ks[5], planes)
    return params


if __name__ == "__main__":
    configs = [
        # (N, Cin, H, W, planes, stride)
        (2, 4, 16, 16, 8, 1),   # projection shortcut (in_planes != planes)
        (2, 8, 8, 8, 8, 1),     # identity shortcut
        (2, 4, 16, 16, 8, 2),   # strided projection shortcut
    ]
    key = jax.random.PRNGKey(0)
    for (n, cin, h, w, planes, stride) in configs:
        key, kx, kp = jax.random.split(key, 3)
        x_nhwc = jax.random.normal(kx, (n, h, w, cin), jnp.float32)
        params = init_params(kp, cin, planes, stride)

        out = jax.block_until_ready(
            resnet_basic_block_forward(x_nhwc, params, stride=stride))
        ref = jax.block_until_ready(reference_forward(x_nhwc, params, stride))

        assert out.shape == ref.shape
        # bf16 matmul operands / bf16 output (f32 accumulate) vs f32 reference
        out_f32 = np.asarray(out.astype(jnp.float32))
        np.testing.assert_allclose(out_f32, np.asarray(ref),
                                   rtol=5e-2, atol=1e-1)
    print("KERNEL_OK")
</pallas_src>

<mosaic_0001>
module attributes {stable_mosaic.version = 11 : i64} {
  func.func @_fused_block_kernel(%arg0: i32, %arg1: memref<1x1x342x128xbf16, #tpu.memory_space<vmem>>, %arg2: memref<9x128x128xbf16, #tpu.memory_space<vmem>>, %arg3: memref<1x128xf32, #tpu.memory_space<vmem>>, %arg4: memref<9x128x128xbf16, #tpu.memory_space<vmem>>, %arg5: memref<1x128xf32, #tpu.memory_space<vmem>>, %arg6: memref<128x128xbf16, #tpu.memory_space<vmem>>, %arg7: memref<1x128xf32, #tpu.memory_space<vmem>>, %arg8: memref<1x288x128xbf16, #tpu.memory_space<vmem>>, %arg9: memref<342x128xbf16, #tpu.memory_space<vmem>>) attributes {dimension_semantics = [#tpu.dimension_semantics<parallel>], iteration_bounds = array<i64: 2>, scalar_prefetch = 0 : i64, scratch_operands = 1 : i64, tpu.core_type = #tpu.core_type<tc>, window_params = [{transform_indices = @transform_0, window_bounds = array<i64: 1, 1, 342, 128>}, {pipeline_mode = #tpu.pipeline_mode<synchronous>, transform_indices = @transform_1, window_bounds = array<i64: 9, 128, 128>}, {pipeline_mode = #tpu.pipeline_mode<synchronous>, transform_indices = @transform_2, window_bounds = array<i64: 1, 128>}, {pipeline_mode = #tpu.pipeline_mode<synchronous>, transform_indices = @transform_3, window_bounds = array<i64: 9, 128, 128>}, {pipeline_mode = #tpu.pipeline_mode<synchronous>, transform_indices = @transform_4, window_bounds = array<i64: 1, 128>}, {pipeline_mode = #tpu.pipeline_mode<synchronous>, transform_indices = @transform_5, window_bounds = array<i64: 128, 128>}, {pipeline_mode = #tpu.pipeline_mode<synchronous>, transform_indices = @transform_6, window_bounds = array<i64: 1, 128>}, {transform_indices = @transform_7, window_bounds = array<i64: 1, 288, 128>}]} {
    %c0 = arith.constant 0 : index
    %c0_0 = arith.constant 0 : index
    %c0_1 = arith.constant 0 : index
    %c0_2 = arith.constant 0 : index
    %0 = vector.load %arg1[%c0, %c0_0, %c0_1, %c0_2] : memref<1x1x342x128xbf16, #tpu.memory_space<vmem>>, vector<1x1x288x128xbf16>
    %1 = vector.shape_cast %0 : vector<1x1x288x128xbf16> to vector<288x128xbf16>
    %c0_3 = arith.constant 0 : index
    %c0_4 = arith.constant 0 : index
    %c0_5 = arith.constant 0 : index
    %2 = vector.load %arg2[%c0_3, %c0_4, %c0_5] : memref<9x128x128xbf16, #tpu.memory_space<vmem>>, vector<1x128x128xbf16>
    %3 = vector.shape_cast %2 : vector<1x128x128xbf16> to vector<128x128xbf16>
    %cst = arith.constant dense<0.000000e+00> : vector<288x128xf32>
    %4 = tpu.matmul %1, %3, %cst {dimension_numbers = #tpu.dot_dimension_numbers<[1], [0], [0], [1], [0, 0, 1, 1], [], []>} : vector<288x128xbf16>, vector<128x128xbf16>, vector<288x128xf32> -> vector<288x128xf32>
    %c0_6 = arith.constant 0 : index
    %c0_7 = arith.constant 0 : index
    %c1 = arith.constant 1 : index
    %c0_8 = arith.constant 0 : index
    %5 = vector.load %arg1[%c0_6, %c0_7, %c1, %c0_8] : memref<1x1x342x128xbf16, #tpu.memory_space<vmem>>, vector<1x1x288x128xbf16>
    %6 = vector.shape_cast %5 : vector<1x1x288x128xbf16> to vector<288x128xbf16>
    %c1_9 = arith.constant 1 : index
    %c0_10 = arith.constant 0 : index
    %c0_11 = arith.constant 0 : index
    %7 = vector.load %arg2[%c1_9, %c0_10, %c0_11] : memref<9x128x128xbf16, #tpu.memory_space<vmem>>, vector<1x128x128xbf16>
    %8 = vector.shape_cast %7 : vector<1x128x128xbf16> to vector<128x128xbf16>
    %cst_12 = arith.constant dense<0.000000e+00> : vector<288x128xf32>
    %9 = tpu.matmul %6, %8, %cst_12 {dimension_numbers = #tpu.dot_dimension_numbers<[1], [0], [0], [1], [0, 0, 1, 1], [], []>} : vector<288x128xbf16>, vector<128x128xbf16>, vector<288x128xf32> -> vector<288x128xf32>
    %10 = arith.addf %4, %9 : vector<288x128xf32>
    %c0_13 = arith.constant 0 : index
    %c0_14 = arith.constant 0 : index
    %c2 = arith.constant 2 : index
    %c0_15 = arith.constant 0 : index
    %11 = vector.load %arg1[%c0_13, %c0_14, %c2, %c0_15] : memref<1x1x342x128xbf16, #tpu.memory_space<vmem>>, vector<1x1x288x128xbf16>
    %12 = vector.shape_cast %11 : vector<1x1x288x128xbf16> to vector<288x128xbf16>
    %c2_16 = arith.constant 2 : index
    %c0_17 = arith.constant 0 : index
    %c0_18 = arith.constant 0 : index
    %13 = vector.load %arg2[%c2_16, %c0_17, %c0_18] : memref<9x128x128xbf16, #tpu.memory_space<vmem>>, vector<1x128x128xbf16>
    %14 = vector.shape_cast %13 : vector<1x128x128xbf16> to vector<128x128xbf16>
    %cst_19 = arith.constant dense<0.000000e+00> : vector<288x128xf32>
    %15 = tpu.matmul %12, %14, %cst_19 {dimension_numbers = #tpu.dot_dimension_numbers<[1], [0], [0], [1], [0, 0, 1, 1], [], []>} : vector<288x128xbf16>, vector<128x128xbf16>, vector<288x128xf32> -> vector<288x128xf32>
    %16 = arith.addf %10, %15 : vector<288x128xf32>
    %c0_20 = arith.constant 0 : index
    %c0_21 = arith.constant 0 : index
    %c18 = arith.constant 18 : index
    %c0_22 = arith.constant 0 : index
    %17 = vector.load %arg1[%c0_20, %c0_21, %c18, %c0_22] : memref<1x1x342x128xbf16, #tpu.memory_space<vmem>>, vector<1x1x288x128xbf16>
    %18 = vector.shape_cast %17 : vector<1x1x288x128xbf16> to vector<288x128xbf16>
    %c3 = arith.constant 3 : index
    %c0_23 = arith.constant 0 : index
    %c0_24 = arith.constant 0 : index
    %19 = vector.load %arg2[%c3, %c0_23, %c0_24] : memref<9x128x128xbf16, #tpu.memory_space<vmem>>, vector<1x128x128xbf16>
    %20 = vector.shape_cast %19 : vector<1x128x128xbf16> to vector<128x128xbf16>
    %cst_25 = arith.constant dense<0.000000e+00> : vector<288x128xf32>
    %21 = tpu.matmul %18, %20, %cst_25 {dimension_numbers = #tpu.dot_dimension_numbers<[1], [0], [0], [1], [0, 0, 1, 1], [], []>} : vector<288x128xbf16>, vector<128x128xbf16>, vector<288x128xf32> -> vector<288x128xf32>
    %22 = arith.addf %16, %21 : vector<288x128xf32>
    %c0_26 = arith.constant 0 : index
    %c0_27 = arith.constant 0 : index
    %c19 = arith.constant 19 : index
    %c0_28 = arith.constant 0 : index
    %23 = vector.load %arg1[%c0_26, %c0_27, %c19, %c0_28] : memref<1x1x342x128xbf16, #tpu.memory_space<vmem>>, vector<1x1x288x128xbf16>
    %24 = vector.shape_cast %23 : vector<1x1x288x128xbf16> to vector<288x128xbf16>
    %c4 = arith.constant 4 : index
    %c0_29 = arith.constant 0 : index
    %c0_30 = arith.constant 0 : index
    %25 = vector.load %arg2[%c4, %c0_29, %c0_30] : memref<9x128x128xbf16, #tpu.memory_space<vmem>>, vector<1x128x128xbf16>
    %26 = vector.shape_cast %25 : vector<1x128x128xbf16> to vector<128x128xbf16>
    %cst_31 = arith.constant dense<0.000000e+00> : vector<288x128xf32>
    %27 = tpu.matmul %24, %26, %cst_31 {dimension_numbers = #tpu.dot_dimension_numbers<[1], [0], [0], [1], [0, 0, 1, 1], [], []>} : vector<288x128xbf16>, vector<128x128xbf16>, vector<288x128xf32> -> vector<288x128xf32>
    %28 = arith.addf %22, %27 : vector<288x128xf32>
    %c0_32 = arith.constant 0 : index
    %c0_33 = arith.constant 0 : index
    %c20 = arith.constant 20 : index
    %c0_34 = arith.constant 0 : index
    %29 = vector.load %arg1[%c0_32, %c0_33, %c20, %c0_34] : memref<1x1x342x128xbf16, #tpu.memory_space<vmem>>, vector<1x1x288x128xbf16>
    %30 = vector.shape_cast %29 : vector<1x1x288x128xbf16> to vector<288x128xbf16>
    %c5 = arith.constant 5 : index
    %c0_35 = arith.constant 0 : index
    %c0_36 = arith.constant 0 : index
    %31 = vector.load %arg2[%c5, %c0_35, %c0_36] : memref<9x128x128xbf16, #tpu.memory_space<vmem>>, vector<1x128x128xbf16>
    %32 = vector.shape_cast %31 : vector<1x128x128xbf16> to vector<128x128xbf16>
    %cst_37 = arith.constant dense<0.000000e+00> : vector<288x128xf32>
    %33 = tpu.matmul %30, %32, %cst_37 {dimension_numbers = #tpu.dot_dimension_numbers<[1], [0], [0], [1], [0, 0, 1, 1], [], []>} : vector<288x128xbf16>, vector<128x128xbf16>, vector<288x128xf32> -> vector<288x128xf32>
    %34 = arith.addf %28, %33 : vector<288x128xf32>
    %c0_38 = arith.constant 0 : index
    %c0_39 = arith.constant 0 : index
    %c36 = arith.constant 36 : index
    %c0_40 = arith.constant 0 : index
    %35 = vector.load %arg1[%c0_38, %c0_39, %c36, %c0_40] : memref<1x1x342x128xbf16, #tpu.memory_space<vmem>>, vector<1x1x288x128xbf16>
    %36 = vector.shape_cast %35 : vector<1x1x288x128xbf16> to vector<288x128xbf16>
    %c6 = arith.constant 6 : index
    %c0_41 = arith.constant 0 : index
    %c0_42 = arith.constant 0 : index
    %37 = vector.load %arg2[%c6, %c0_41, %c0_42] : memref<9x128x128xbf16, #tpu.memory_space<vmem>>, vector<1x128x128xbf16>
    %38 = vector.shape_cast %37 : vector<1x128x128xbf16> to vector<128x128xbf16>
    %cst_43 = arith.constant dense<0.000000e+00> : vector<288x128xf32>
    %39 = tpu.matmul %36, %38, %cst_43 {dimension_numbers = #tpu.dot_dimension_numbers<[1], [0], [0], [1], [0, 0, 1, 1], [], []>} : vector<288x128xbf16>, vector<128x128xbf16>, vector<288x128xf32> -> vector<288x128xf32>
    %40 = arith.addf %34, %39 : vector<288x128xf32>
    %c0_44 = arith.constant 0 : index
    %c0_45 = arith.constant 0 : index
    %c37 = arith.constant 37 : index
    %c0_46 = arith.constant 0 : index
    %41 = vector.load %arg1[%c0_44, %c0_45, %c37, %c0_46] : memref<1x1x342x128xbf16, #tpu.memory_space<vmem>>, vector<1x1x288x128xbf16>
    %42 = vector.shape_cast %41 : vector<1x1x288x128xbf16> to vector<288x128xbf16>
    %c7 = arith.constant 7 : index
    %c0_47 = arith.constant 0 : index
    %c0_48 = arith.constant 0 : index
    %43 = vector.load %arg2[%c7, %c0_47, %c0_48] : memref<9x128x128xbf16, #tpu.memory_space<vmem>>, vector<1x128x128xbf16>
    %44 = vector.shape_cast %43 : vector<1x128x128xbf16> to vector<128x128xbf16>
    %cst_49 = arith.constant dense<0.000000e+00> : vector<288x128xf32>
    %45 = tpu.matmul %42, %44, %cst_49 {dimension_numbers = #tpu.dot_dimension_numbers<[1], [0], [0], [1], [0, 0, 1, 1], [], []>} : vector<288x128xbf16>, vector<128x128xbf16>, vector<288x128xf32> -> vector<288x128xf32>
    %46 = arith.addf %40, %45 : vector<288x128xf32>
    %c0_50 = arith.constant 0 : index
    %c0_51 = arith.constant 0 : index
    %c38 = arith.constant 38 : index
    %c0_52 = arith.constant 0 : index
    %47 = vector.load %arg1[%c0_50, %c0_51, %c38, %c0_52] : memref<1x1x342x128xbf16, #tpu.memory_space<vmem>>, vector<1x1x288x128xbf16>
    %48 = vector.shape_cast %47 : vector<1x1x288x128xbf16> to vector<288x128xbf16>
    %c8 = arith.constant 8 : index
    %c0_53 = arith.constant 0 : index
    %c0_54 = arith.constant 0 : index
    %49 = vector.load %arg2[%c8, %c0_53, %c0_54] : memref<9x128x128xbf16, #tpu.memory_space<vmem>>, vector<1x128x128xbf16>
    %50 = vector.shape_cast %49 : vector<1x128x128xbf16> to vector<128x128xbf16>
    %cst_55 = arith.constant dense<0.000000e+00> : vector<288x128xf32>
    %51 = tpu.matmul %48, %50, %cst_55 {dimension_numbers = #tpu.dot_dimension_numbers<[1], [0], [0], [1], [0, 0, 1, 1], [], []>} : vector<288x128xbf16>, vector<128x128xbf16>, vector<288x128xf32> -> vector<288x128xf32>
    %52 = arith.addf %46, %51 : vector<288x128xf32>
    %c0_56 = arith.constant 0 : index
    %c0_57 = arith.constant 0 : index
    %53 = vector.load %arg3[%c0_56, %c0_57] : memref<1x128xf32, #tpu.memory_space<vmem>>, vector<1x128xf32>
    %54 = vector.broadcast %53 : vector<1x128xf32> to vector<288x128xf32>
    %55 = arith.addf %52, %54 : vector<288x128xf32>
    %cst_58 = arith.constant 0.000000e+00 : f32
    %56 = vector.broadcast %cst_58 : f32 to vector<288x128xf32>
    %57 = arith.maximumf %55, %56 : vector<288x128xf32>
    %58 = tpu.iota {dimensions = array<i32: 0>} : vector<288x1xi32>
    %c18_i32 = arith.constant 18 : i32
    %c0_i32 = arith.constant 0 : i32
    %59 = arith.cmpi eq, %c18_i32, %c0_i32 : i32
    %c1_i32 = arith.constant 1 : i32
    %60 = arith.select %59, %c1_i32, %c18_i32 : i32
    %61 = vector.broadcast %60 : i32 to vector<288x1xi32>
    %62 = arith.remsi %58, %61 : vector<288x1xi32>
    %c0_i32_59 = arith.constant 0 : i32
    %63 = vector.broadcast %c0_i32_59 : i32 to vector<288x1xi32>
    %64 = arith.cmpi ne, %62, %63 : vector<288x1xi32>
    %c0_i32_60 = arith.constant 0 : i32
    %65 = vector.broadcast %c0_i32_60 : i32 to vector<288x1xi32>
    %66 = arith.cmpi slt, %62, %65 : vector<288x1xi32>
    %c0_i32_61 = arith.constant 0 : i32
    %67 = arith.cmpi slt, %60, %c0_i32_61 : i32
    %68 = vector.broadcast %67 : i1 to vector<288x1xi1>
    %69 = vector.broadcast %68 : vector<288x1xi1> to vector<288x1xi1>
    %70 = arith.xori %66, %69 : vector<288x1xi1>
    %71 = arith.andi %70, %64 : vector<288x1xi1>
    %72 = vector.broadcast %60 : i32 to vector<288x1xi32>
    %73 = arith.addi %62, %72 : vector<288x1xi32>
    %74 = arith.select %71, %73, %62 : vector<288x1xi1>, vector<288x1xi32>
    %c16_i32 = arith.constant 16 : i32
    %75 = vector.broadcast %c16_i32 : i32 to vector<288x1xi32>
    %76 = arith.cmpi slt, %74, %75 : vector<288x1xi32>
    %cst_62 = arith.constant 0.000000e+00 : f32
    %77 = vector.shape_cast %76 : vector<288x1xi1> to vector<288x1xi1>
    %78 = vector.broadcast %77 : vector<288x1xi1> to vector<288x128xi1>
    %79 = vector.broadcast %cst_62 : f32 to vector<288x128xf32>
    %80 = arith.select %78, %57, %79 : vector<288x128xi1>, vector<288x128xf32>
    %81 = arith.truncf %80 : vector<288x128xf32> to vector<288x128xbf16>
    %cst_63 = arith.constant 0.000000e+00 : bf16
    %82 = vector.broadcast %cst_63 : bf16 to vector<342x128xbf16>
    %c0_64 = arith.constant 0 : index
    %c0_65 = arith.constant 0 : index
    %83 = vector.load %arg9[%c0_64, %c0_65] : memref<342x128xbf16, #tpu.memory_space<vmem>>, vector<342x128xbf16>
    tpu.vector_store %arg9[%c0_64, %c0_65], %82 {strides = array<i32>} : memref<342x128xbf16, #tpu.memory_space<vmem>>, vector<342x128xbf16>,
    %c19_66 = arith.constant 19 : index
    %c0_67 = arith.constant 0 : index
    %84 = vector.load %arg9[%c19_66, %c0_67] : memref<342x128xbf16, #tpu.memory_space<vmem>>, vector<288x128xbf16>
    tpu.vector_store %arg9[%c19_66, %c0_67], %81 {strides = array<i32>} : memref<342x128xbf16, #tpu.memory_space<vmem>>, vector<288x128xbf16>,
    %c0_68 = arith.constant 0 : index
    %c0_69 = arith.constant 0 : index
    %85 = vector.load %arg9[%c0_68, %c0_69] : memref<342x128xbf16, #tpu.memory_space<vmem>>, vector<288x128xbf16>
    %c0_70 = arith.constant 0 : index
    %c0_71 = arith.constant 0 : index
    %c0_72 = arith.constant 0 : index
    %86 = vector.load %arg4[%c0_70, %c0_71, %c0_72] : memref<9x128x128xbf16, #tpu.memory_space<vmem>>, vector<1x128x128xbf16>
    %87 = vector.shape_cast %86 : vector<1x128x128xbf16> to vector<128x128xbf16>
    %cst_73 = arith.constant dense<0.000000e+00> : vector<288x128xf32>
    %88 = tpu.matmul %85, %87, %cst_73 {dimension_numbers = #tpu.dot_dimension_numbers<[1], [0], [0], [1], [0, 0, 1, 1], [], []>} : vector<288x128xbf16>, vector<128x128xbf16>, vector<288x128xf32> -> vector<288x128xf32>
    %c1_74 = arith.constant 1 : index
    %c0_75 = arith.constant 0 : index
    %89 = vector.load %arg9[%c1_74, %c0_75] : memref<342x128xbf16, #tpu.memory_space<vmem>>, vector<288x128xbf16>
    %c1_76 = arith.constant 1 : index
    %c0_77 = arith.constant 0 : index
    %c0_78 = arith.constant 0 : index
    %90 = vector.load %arg4[%c1_76, %c0_77, %c0_78] : memref<9x128x128xbf16, #tpu.memory_space<vmem>>, vector<1x128x128xbf16>
    %91 = vector.shape_cast %90 : vector<1x128x128xbf16> to vector<128x128xbf16>
    %cst_79 = arith.constant dense<0.000000e+00> : vector<288x128xf32>
    %92 = tpu.matmul %89, %91, %cst_79 {dimension_numbers = #tpu.dot_dimension_numbers<[1], [0], [0], [1], [0, 0, 1, 1], [], []>} : vector<288x128xbf16>, vector<128x128xbf16>, vector<288x128xf32> -> vector<288x128xf32>
    %93 = arith.addf %88, %92 : vector<288x128xf32>
    %c2_80 = arith.constant 2 : index
    %c0_81 = arith.constant 0 : index
    %94 = vector.load %arg9[%c2_80, %c0_81] : memref<342x128xbf16, #tpu.memory_space<vmem>>, vector<288x128xbf16>
    %c2_82 = arith.constant 2 : index
    %c0_83 = arith.constant 0 : index
    %c0_84 = arith.constant 0 : index
    %95 = vector.load %arg4[%c2_82, %c0_83, %c0_84] : memref<9x128x128xbf16, #tpu.memory_space<vmem>>, vector<1x128x128xbf16>
    %96 = vector.shape_cast %95 : vector<1x128x128xbf16> to vector<128x128xbf16>
    %cst_85 = arith.constant dense<0.000000e+00> : vector<288x128xf32>
    %97 = tpu.matmul %94, %96, %cst_85 {dimension_numbers = #tpu.dot_dimension_numbers<[1], [0], [0], [1], [0, 0, 1, 1], [], []>} : vector<288x128xbf16>, vector<128x128xbf16>, vector<288x128xf32> -> vector<288x128xf32>
    %98 = arith.addf %93, %97 : vector<288x128xf32>
    %c18_86 = arith.constant 18 : index
    %c0_87 = arith.constant 0 : index
    %99 = vector.load %arg9[%c18_86, %c0_87] : memref<342x128xbf16, #tpu.memory_space<vmem>>, vector<288x128xbf16>
    %c3_88 = arith.constant 3 : index
    %c0_89 = arith.constant 0 : index
    %c0_90 = arith.constant 0 : index
    %100 = vector.load %arg4[%c3_88, %c0_89, %c0_90] : memref<9x128x128xbf16, #tpu.memory_space<vmem>>, vector<1x128x128xbf16>
    %101 = vector.shape_cast %100 : vector<1x128x128xbf16> to vector<128x128xbf16>
    %cst_91 = arith.constant dense<0.000000e+00> : vector<288x128xf32>
    %102 = tpu.matmul %99, %101, %cst_91 {dimension_numbers = #tpu.dot_dimension_numbers<[1], [0], [0], [1], [0, 0, 1, 1], [], []>} : vector<288x128xbf16>, vector<128x128xbf16>, vector<288x128xf32> -> vector<288x128xf32>
    %103 = arith.addf %98, %102 : vector<288x128xf32>
    %c19_92 = arith.constant 19 : index
    %c0_93 = arith.constant 0 : index
    %104 = vector.load %arg9[%c19_92, %c0_93] : memref<342x128xbf16, #tpu.memory_space<vmem>>, vector<288x128xbf16>
    %c4_94 = arith.constant 4 : index
    %c0_95 = arith.constant 0 : index
    %c0_96 = arith.constant 0 : index
    %105 = vector.load %arg4[%c4_94, %c0_95, %c0_96] : memref<9x128x128xbf16, #tpu.memory_space<vmem>>, vector<1x128x128xbf16>
    %106 = vector.shape_cast %105 : vector<1x128x128xbf16> to vector<128x128xbf16>
    %cst_97 = arith.constant dense<0.000000e+00> : vector<288x128xf32>
    %107 = tpu.matmul %104, %106, %cst_97 {dimension_numbers = #tpu.dot_dimension_numbers<[1], [0], [0], [1], [0, 0, 1, 1], [], []>} : vector<288x128xbf16>, vector<128x128xbf16>, vector<288x128xf32> -> vector<288x128xf32>
    %108 = arith.addf %103, %107 : vector<288x128xf32>
    %c20_98 = arith.constant 20 : index
    %c0_99 = arith.constant 0 : index
    %109 = vector.load %arg9[%c20_98, %c0_99] : memref<342x128xbf16, #tpu.memory_space<vmem>>, vector<288x128xbf16>
    %c5_100 = arith.constant 5 : index
    %c0_101 = arith.constant 0 : index
    %c0_102 = arith.constant 0 : index
    %110 = vector.load %arg4[%c5_100, %c0_101, %c0_102] : memref<9x128x128xbf16, #tpu.memory_space<vmem>>, vector<1x128x128xbf16>
    %111 = vector.shape_cast %110 : vector<1x128x128xbf16> to vector<128x128xbf16>
    %cst_103 = arith.constant dense<0.000000e+00> : vector<288x128xf32>
    %112 = tpu.matmul %109, %111, %cst_103 {dimension_numbers = #tpu.dot_dimension_numbers<[1], [0], [0], [1], [0, 0, 1, 1], [], []>} : vector<288x128xbf16>, vector<128x128xbf16>, vector<288x128xf32> -> vector<288x128xf32>
    %113 = arith.addf %108, %112 : vector<288x128xf32>
    %c36_104 = arith.constant 36 : index
    %c0_105 = arith.constant 0 : index
    %114 = vector.load %arg9[%c36_104, %c0_105] : memref<342x128xbf16, #tpu.memory_space<vmem>>, vector<288x128xbf16>
    %c6_106 = arith.constant 6 : index
    %c0_107 = arith.constant 0 : index
    %c0_108 = arith.constant 0 : index
    %115 = vector.load %arg4[%c6_106, %c0_107, %c0_108] : memref<9x128x128xbf16, #tpu.memory_space<vmem>>, vector<1x128x128xbf16>
    %116 = vector.shape_cast %115 : vector<1x128x128xbf16> to vector<128x128xbf16>
    %cst_109 = arith.constant dense<0.000000e+00> : vector<288x128xf32>
    %117 = tpu.matmul %114, %116, %cst_109 {dimension_numbers = #tpu.dot_dimension_numbers<[1], [0], [0], [1], [0, 0, 1, 1], [], []>} : vector<288x128xbf16>, vector<128x128xbf16>, vector<288x128xf32> -> vector<288x128xf32>
    %118 = arith.addf %113, %117 : vector<288x128xf32>
    %c37_110 = arith.constant 37 : index
    %c0_111 = arith.constant 0 : index
    %119 = vector.load %arg9[%c37_110, %c0_111] : memref<342x128xbf16, #tpu.memory_space<vmem>>, vector<288x128xbf16>
    %c7_112 = arith.constant 7 : index
    %c0_113 = arith.constant 0 : index
    %c0_114 = arith.constant 0 : index
    %120 = vector.load %arg4[%c7_112, %c0_113, %c0_114] : memref<9x128x128xbf16, #tpu.memory_space<vmem>>, vector<1x128x128xbf16>
    %121 = vector.shape_cast %120 : vector<1x128x128xbf16> to vector<128x128xbf16>
    %cst_115 = arith.constant dense<0.000000e+00> : vector<288x128xf32>
    %122 = tpu.matmul %119, %121, %cst_115 {dimension_numbers = #tpu.dot_dimension_numbers<[1], [0], [0], [1], [0, 0, 1, 1], [], []>} : vector<288x128xbf16>, vector<128x128xbf16>, vector<288x128xf32> -> vector<288x128xf32>
    %123 = arith.addf %118, %122 : vector<288x128xf32>
    %c38_116 = arith.constant 38 : index
    %c0_117 = arith.constant 0 : index
    %124 = vector.load %arg9[%c38_116, %c0_117] : memref<342x128xbf16, #tpu.memory_space<vmem>>, vector<288x128xbf16>
    %c8_118 = arith.constant 8 : index
    %c0_119 = arith.constant 0 : index
    %c0_120 = arith.constant 0 : index
    %125 = vector.load %arg4[%c8_118, %c0_119, %c0_120] : memref<9x128x128xbf16, #tpu.memory_space<vmem>>, vector<1x128x128xbf16>
    %126 = vector.shape_cast %125 : vector<1x128x128xbf16> to vector<128x128xbf16>
    %cst_121 = arith.constant dense<0.000000e+00> : vector<288x128xf32>
    %127 = tpu.matmul %124, %126, %cst_121 {dimension_numbers = #tpu.dot_dimension_numbers<[1], [0], [0], [1], [0, 0, 1, 1], [], []>} : vector<288x128xbf16>, vector<128x128xbf16>, vector<288x128xf32> -> vector<288x128xf32>
    %128 = arith.addf %123, %127 : vector<288x128xf32>
    %c0_122 = arith.constant 0 : index
    %c0_123 = arith.constant 0 : index
    %129 = vector.load %arg5[%c0_122, %c0_123] : memref<1x128xf32, #tpu.memory_space<vmem>>, vector<1x128xf32>
    %130 = vector.broadcast %129 : vector<1x128xf32> to vector<288x128xf32>
    %131 = arith.addf %128, %130 : vector<288x128xf32>
    %c0_124 = arith.constant 0 : index
    %c0_125 = arith.constant 0 : index
    %c19_126 = arith.constant 19 : index
    %c0_127 = arith.constant 0 : index
    %132 = vector.load %arg1[%c0_124, %c0_125, %c19_126, %c0_127] : memref<1x1x342x128xbf16, #tpu.memory_space<vmem>>, vector<1x1x288x128xbf16>
    %133 = vector.shape_cast %132 : vector<1x1x288x128xbf16> to vector<288x128xbf16>
    %c0_128 = arith.constant 0 : index
    %c0_129 = arith.constant 0 : index
    %134 = vector.load %arg6[%c0_128, %c0_129] : memref<128x128xbf16, #tpu.memory_space<vmem>>, vector<128x128xbf16>
    %cst_130 = arith.constant dense<0.000000e+00> : vector<288x128xf32>
    %135 = tpu.matmul %133, %134, %cst_130 {dimension_numbers = #tpu.dot_dimension_numbers<[1], [0], [0], [1], [0, 0, 1, 1], [], []>} : vector<288x128xbf16>, vector<128x128xbf16>, vector<288x128xf32> -> vector<288x128xf32>
    %136 = arith.addf %131, %135 : vector<288x128xf32>
    %c0_131 = arith.constant 0 : index
    %c0_132 = arith.constant 0 : index
    %137 = vector.load %arg7[%c0_131, %c0_132] : memref<1x128xf32, #tpu.memory_space<vmem>>, vector<1x128xf32>
    %138 = vector.broadcast %137 : vector<1x128xf32> to vector<288x128xf32>
    %139 = arith.addf %136, %138 : vector<288x128xf32>
    %cst_133 = arith.constant 0.000000e+00 : f32
    %140 = vector.broadcast %cst_133 : f32 to vector<288x128xf32>
    %141 = arith.maximumf %139, %140 : vector<288x128xf32>
    %142 = arith.truncf %141 : vector<288x128xf32> to vector<288x128xbf16>
    %c0_134 = arith.constant 0 : index
    %c0_135 = arith.constant 0 : index
    %c0_136 = arith.constant 0 : index
    %143 = vector.load %arg8[%c0_134, %c0_135, %c0_136] : memref<1x288x128xbf16, #tpu.memory_space<vmem>>, vector<1x288x128xbf16>
    %144 = vector.shape_cast %143 : vector<1x288x128xbf16> to vector<288x128xbf16>
    %145 = vector.shape_cast %142 : vector<288x128xbf16> to vector<1x288x128xbf16>
    tpu.vector_store %arg8[%c0_134, %c0_135, %c0_136], %145 {strides = array<i32>} : memref<1x288x128xbf16, #tpu.memory_space<vmem>>, vector<1x288x128xbf16>,
    return
  }
  func.func @transform_0(%arg0: i32) -> (i32, i32, i32, i32) {
    %c0_i32 = arith.constant 0 : i32
    %c0_i32_0 = arith.constant 0 : i32
    %c0_i32_1 = arith.constant 0 : i32
    %c0_i32_2 = arith.constant 0 : i32
    return %arg0, %c0_i32, %c0_i32_0, %c0_i32_1 : i32, i32, i32, i32
  }
  func.func @transform_1(%arg0: i32) -> (i32, i32, i32) {
    %c0_i32 = arith.constant 0 : i32
    %c0_i32_0 = arith.constant 0 : i32
    %c0_i32_1 = arith.constant 0 : i32
    %c0_i32_2 = arith.constant 0 : i32
    return %c0_i32, %c0_i32_0, %c0_i32_1 : i32, i32, i32
  }
  func.func @transform_2(%arg0: i32) -> (i32, i32) {
    %c0_i32 = arith.constant 0 : i32
    %c0_i32_0 = arith.constant 0 : i32
    %c0_i32_1 = arith.constant 0 : i32
    return %c0_i32, %c0_i32_0 : i32, i32
  }
  func.func @transform_3(%arg0: i32) -> (i32, i32, i32) {
    %c0_i32 = arith.constant 0 : i32
    %c0_i32_0 = arith.constant 0 : i32
    %c0_i32_1 = arith.constant 0 : i32
    %c0_i32_2 = arith.constant 0 : i32
    return %c0_i32, %c0_i32_0, %c0_i32_1 : i32, i32, i32
  }
  func.func @transform_4(%arg0: i32) -> (i32, i32) {
    %c0_i32 = arith.constant 0 : i32
    %c0_i32_0 = arith.constant 0 : i32
    %c0_i32_1 = arith.constant 0 : i32
    return %c0_i32, %c0_i32_0 : i32, i32
  }
  func.func @transform_5(%arg0: i32) -> (i32, i32) {
    %c0_i32 = arith.constant 0 : i32
    %c0_i32_0 = arith.constant 0 : i32
    %c0_i32_1 = arith.constant 0 : i32
    return %c0_i32, %c0_i32_0 : i32, i32
  }
  func.func @transform_6(%arg0: i32) -> (i32, i32) {
    %c0_i32 = arith.constant 0 : i32
    %c0_i32_0 = arith.constant 0 : i32
    %c0_i32_1 = arith.constant 0 : i32
    return %c0_i32, %c0_i32_0 : i32, i32
  }
  func.func @transform_7(%arg0: i32) -> (i32, i32, i32) {
    %c0_i32 = arith.constant 0 : i32
    %c0_i32_0 = arith.constant 0 : i32
    %c0_i32_1 = arith.constant 0 : i32
    return %arg0, %c0_i32, %c0_i32_0 : i32, i32, i32
  }
}

</mosaic_0001>

<llo_original>
// kernel: resnet_basic_block_forward.1
$region0: #{resnet_basic_block_forward.1}
  #allocation0 [shape = 'u32[]', space=smem, size = 0x4, offset = 0x4, fixed_abs, tag = 'smem constant byte address 0x4 - core index']
  #allocation1 [shape = 'u32[144,128]{1,0:T(1,128)}', space=vmem, size = 0x12000, scoped, tag = 'internal scratch']
  #allocation2 [shape = 'bf16[342,128]{1,0:T(8,128)(2,1)}', space=vmem, size = 0x15800, scoped, tag = 'scratch operand']
  %s0 = inlined_call_operand.vmem [shape: bf16[2,1,342,128], index: 0, kind: input, shape index: {}]
  %s1 = inlined_call_operand.vmem [shape: bf16[9,128,128], index: 1, kind: input, shape index: {}]
  %s2 = inlined_call_operand.vmem [shape: f32[1,128], index: 2, kind: input, shape index: {}]
  %s3 = inlined_call_operand.vmem [shape: bf16[9,128,128], index: 3, kind: input, shape index: {}]
  %s4 = inlined_call_operand.vmem [shape: f32[1,128], index: 4, kind: input, shape index: {}]
  %s5 = inlined_call_operand.vmem [shape: bf16[128,128], index: 5, kind: input, shape index: {}]
  %s6 = inlined_call_operand.vmem [shape: f32[1,128], index: 6, kind: input, shape index: {}]
  %s7 = inlined_call_operand.vmem [shape: bf16[2,288,128], index: 7, kind: output, shape index: {}]
  %s8 = sld [smem:[#allocation0]]
  $region61: #{resnet_basic_block_forward.1} parent=0
    _
  %s10 = ssub.s32 1, %s8
  %s11 = scalar_select 0, %s10, %s8
  loop: start=0, step=1, limit=4
  $region2: #{resnet_basic_block_forward.1} parent=0 // loop_pre_header
    _
  $region3: #{resnet_basic_block_forward.1} parent=0 // loop_header
    %s13 = sphi 0, %s17
    %p14 = scmp.ge.s32.totalorder %s13, 4
    %s23 = sphi 0, %s25
    %s26 = sphi 0, %s23
    %s27 = sphi 0, %s26
    %s43 = sphi 0, %s27
    %s47 = sphi 0, %s47
    %s49 = sphi 0, %s47
    %s50 = sphi 0, %s49
    %s64 = sphi 0, %s50
    %s68 = sphi 0, %s68
    %s70 = sphi 0, %s68
    %s71 = sphi 0, %s70
    %s85 = sphi 0, %s71
    %s89 = sphi 0, %s89
    %s91 = sphi 0, %s89
    %s92 = sphi 0, %s91
    %s106 = sphi 0, %s92
    %s110 = sphi 0, %s110
    %s112 = sphi 0, %s110
    %s113 = sphi 0, %s112
    %s127 = sphi 0, %s113
    %s131 = sphi 0, %s131
    %s133 = sphi 0, %s131
    %s134 = sphi 0, %s133
    %s148 = sphi 0, %s134
    %s152 = sphi 0, %s152
    %s154 = sphi 0, %s152
    %s155 = sphi 0, %s154
    %s169 = sphi 0, %s155
    %s175 = sphi 0, %s177
    %s178 = sphi 0, %s175
    %s179 = sphi 0, %s178
    %s195 = sphi 0, %s179
  $region4: #{resnet_basic_block_forward.1} parent=0 // loop_header_branch
    %16 = sbr.rel (%p14) target = $region8
  $region5: #{resnet_basic_block_forward.1} parent=0 // loop_body
    %s18 = ssub.s32 %s13, 1
    %s19 = ssub.s32 %s13, 2
    %s20 = sadd.s32 %s13, 1
    %s21 = ssub.s32 %s13, %s20
    %p22 = scmp.eq.s32.totalorder %s21, 0
    %s24 = sadd.s32 %s23, 1
    %s25 = scalar_select %p22, %s23, %s24
    %p28 = pneg %p22
    %p29 = scmp.eq.s32.totalorder %s13, 1
    %p30 = por %p28, %p29
    %p31 = scmp.ne.s32.totalorder %s23, %s26
    %p32 = scmp.eq.s32.totalorder %s13, 0
    %p33 = por %p31, %p32
    %p34 = scmp.ne.s32.totalorder %s23, %s26
    %p35 = scmp.eq.s32.totalorder %s18, 1
    %p36 = por %p34, %p35
    %p37 = scmp.ne.s32.totalorder %s26, %s27
    %p38 = scmp.eq.s32.totalorder %s18, 0
    %p39 = por %p37, %p38
    %p40 = scmp.ne.s32.totalorder %s26, %s27
    %p41 = scmp.eq.s32.totalorder %s19, 1
    %p42 = por %p40, %p41
    %p44 = scmp.ne.s32.totalorder %s27, %s43
    %p45 = scmp.eq.s32.totalorder %s19, 0
    %p46 = por %p44, %p45
    %s48 = sadd.s32 %s47, 1
    %p51 = scmp.eq.s32.totalorder %s13, 1
    %p52 = scmp.ne.s32.totalorder %s47, %s49
    %p53 = scmp.eq.s32.totalorder %s13, 0
    %p54 = por %p52, %p53
    %p55 = scmp.ne.s32.totalorder %s47, %s49
    %p56 = scmp.eq.s32.totalorder %s18, 1
    %p57 = por %p55, %p56
    %p58 = scmp.ne.s32.totalorder %s49, %s50
    %p59 = scmp.eq.s32.totalorder %s18, 0
    %p60 = por %p58, %p59
    %p61 = scmp.ne.s32.totalorder %s49, %s50
    %p62 = scmp.eq.s32.totalorder %s19, 1
    %p63 = por %p61, %p62
    %p65 = scmp.ne.s32.totalorder %s50, %s64
    %p66 = scmp.eq.s32.totalorder %s19, 0
    %p67 = por %p65, %p66
    %s69 = sadd.s32 %s68, 1
    %p72 = scmp.eq.s32.totalorder %s13, 1
    %p73 = scmp.ne.s32.totalorder %s68, %s70
    %p74 = scmp.eq.s32.totalorder %s13, 0
    %p75 = por %p73, %p74
    %p76 = scmp.ne.s32.totalorder %s68, %s70
    %p77 = scmp.eq.s32.totalorder %s18, 1
    %p78 = por %p76, %p77
    %p79 = scmp.ne.s32.totalorder %s70, %s71
    %p80 = scmp.eq.s32.totalorder %s18, 0
    %p81 = por %p79, %p80
    %p82 = scmp.ne.s32.totalorder %s70, %s71
    %p83 = scmp.eq.s32.totalorder %s19, 1
    %p84 = por %p82, %p83
    %p86 = scmp.ne.s32.totalorder %s71, %s85
    %p87 = scmp.eq.s32.totalorder %s19, 0
    %p88 = por %p86, %p87
    %s90 = sadd.s32 %s89, 1
    %p93 = scmp.eq.s32.totalorder %s13, 1
    %p94 = scmp.ne.s32.totalorder %s89, %s91
    %p95 = scmp.eq.s32.totalorder %s13, 0
    %p96 = por %p94, %p95
    %p97 = scmp.ne.s32.totalorder %s89, %s91
    %p98 = scmp.eq.s32.totalorder %s18, 1
    %p99 = por %p97, %p98
    %p100 = scmp.ne.s32.totalorder %s91, %s92
    %p101 = scmp.eq.s32.totalorder %s18, 0
    %p102 = por %p100, %p101
    %p103 = scmp.ne.s32.totalorder %s91, %s92
    %p104 = scmp.eq.s32.totalorder %s19, 1
    %p105 = por %p103, %p104
    %p107 = scmp.ne.s32.totalorder %s92, %s106
    %p108 = scmp.eq.s32.totalorder %s19, 0
    %p109 = por %p107, %p108
    %s111 = sadd.s32 %s110, 1
    %p114 = scmp.eq.s32.totalorder %s13, 1
    %p115 = scmp.ne.s32.totalorder %s110, %s112
    %p116 = scmp.eq.s32.totalorder %s13, 0
    %p117 = por %p115, %p116
    %p118 = scmp.ne.s32.totalorder %s110, %s112
    %p119 = scmp.eq.s32.totalorder %s18, 1
    %p120 = por %p118, %p119
    %p121 = scmp.ne.s32.totalorder %s112, %s113
    %p122 = scmp.eq.s32.totalorder %s18, 0
    %p123 = por %p121, %p122
    %p124 = scmp.ne.s32.totalorder %s112, %s113
    %p125 = scmp.eq.s32.totalorder %s19, 1
    %p126 = por %p124, %p125
    %p128 = scmp.ne.s32.totalorder %s113, %s127
    %p129 = scmp.eq.s32.totalorder %s19, 0
    %p130 = por %p128, %p129
    %s132 = sadd.s32 %s131, 1
    %p135 = scmp.eq.s32.totalorder %s13, 1
    %p136 = scmp.ne.s32.totalorder %s131, %s133
    %p137 = scmp.eq.s32.totalorder %s13, 0
    %p138 = por %p136, %p137
    %p139 = scmp.ne.s32.totalorder %s131, %s133
    %p140 = scmp.eq.s32.totalorder %s18, 1
    %p141 = por %p139, %p140
    %p142 = scmp.ne.s32.totalorder %s133, %s134
    %p143 = scmp.eq.s32.totalorder %s18, 0
    %p144 = por %p142, %p143
    %p145 = scmp.ne.s32.totalorder %s133, %s134
    %p146 = scmp.eq.s32.totalorder %s19, 1
    %p147 = por %p145, %p146
    %p149 = scmp.ne.s32.totalorder %s134, %s148
    %p150 = scmp.eq.s32.totalorder %s19, 0
    %p151 = por %p149, %p150
    %s153 = sadd.s32 %s152, 1
    %p156 = scmp.eq.s32.totalorder %s13, 1
    %p157 = scmp.ne.s32.totalorder %s152, %s154
    %p158 = scmp.eq.s32.totalorder %s13, 0
    %p159 = por %p157, %p158
    %p160 = scmp.ne.s32.totalorder %s152, %s154
    %p161 = scmp.eq.s32.totalorder %s18, 1
    %p162 = por %p160, %p161
    %p163 = scmp.ne.s32.totalorder %s154, %s155
    %p164 = scmp.eq.s32.totalorder %s18, 0
    %p165 = por %p163, %p164
    %p166 = scmp.ne.s32.totalorder %s154, %s155
    %p167 = scmp.eq.s32.totalorder %s19, 1
    %p168 = por %p166, %p167
    %p170 = scmp.ne.s32.totalorder %s155, %s169
    %p171 = scmp.eq.s32.totalorder %s19, 0
    %p172 = por %p170, %p171
    %s173 = ssub.s32 %s13, %s20
    %p174 = scmp.eq.s32.totalorder %s173, 0
    %s176 = sadd.s32 %s175, 1
    %s177 = scalar_select %p174, %s175, %s176
    %p180 = pneg %p174
    %p181 = scmp.eq.s32.totalorder %s13, 1
    %p182 = por %p180, %p181
    %p183 = scmp.ne.s32.totalorder %s175, %s178
    %p184 = scmp.eq.s32.totalorder %s13, 0
    %p185 = por %p183, %p184
    %p186 = scmp.ne.s32.totalorder %s175, %s178
    %p187 = scmp.eq.s32.totalorder %s18, 1
    %p188 = por %p186, %p187
    %p189 = scmp.ne.s32.totalorder %s178, %s179
    %p190 = scmp.eq.s32.totalorder %s18, 0
    %p191 = por %p189, %p190
    %p192 = scmp.ne.s32.totalorder %s178, %s179
    %p193 = scmp.eq.s32.totalorder %s19, 1
    %p194 = por %p192, %p193
    %p196 = scmp.ne.s32.totalorder %s179, %s195
    %p197 = scmp.eq.s32.totalorder %s19, 0
    %p198 = por %p196, %p197
    %p199 = scmp.le.s32.totalorder 1, %s13
    %p200 = scmp.lt.s32.totalorder %s13, 3
    %p201 = pnand %p199, %p200
    %p202 = pneg %p201
    // Predicated region
    $region9: #{resnet_basic_block_forward.1} parent=5 // pred_check
      _
    $region10: #{resnet_basic_block_forward.1} parent=5 // pred_check_branch
      %204 = sbr.rel (%p201) target = $region12
    $region11: #{resnet_basic_block_forward.1} parent=5 // pred_region
      %s205 = ssub.s32 %s13, 1
      // Predicated region
      $region13: #{resnet_basic_block_forward.1} parent=11 // pred_check
        %p206 = pneg %p60
      $region14: #{resnet_basic_block_forward.1} parent=11 // pred_check_branch
        %208 = sbr.rel (%p206) target = $region16
      $region15: #{resnet_basic_block_forward.1} parent=11 // pred_region
        _
      $region16: #{resnet_basic_block_forward.1} parent=11 // pred_fallthru
        _
      // Predicated region
      $region17: #{resnet_basic_block_forward.1} parent=11 // pred_check
        %p209 = pneg %p81
      $region18: #{resnet_basic_block_forward.1} parent=11 // pred_check_branch
        %211 = sbr.rel (%p209) target = $region20
      $region19: #{resnet_basic_block_forward.1} parent=11 // pred_region
        _
      $region20: #{resnet_basic_block_forward.1} parent=11 // pred_fallthru
        _
      // Predicated region
      $region21: #{resnet_basic_block_forward.1} parent=11 // pred_check
        %p212 = pneg %p102
      $region22: #{resnet_basic_block_forward.1} parent=11 // pred_check_branch
        %214 = sbr.rel (%p212) target = $region24
      $region23: #{resnet_basic_block_forward.1} parent=11 // pred_region
        _
      $region24: #{resnet_basic_block_forward.1} parent=11 // pred_fallthru
        _
      // Predicated region
      $region25: #{resnet_basic_block_forward.1} parent=11 // pred_check
        %p215 = pneg %p123
      $region26: #{resnet_basic_block_forward.1} parent=11 // pred_check_branch
        %217 = sbr.rel (%p215) target = $region28
      $region27: #{resnet_basic_block_forward.1} parent=11 // pred_region
        _
      $region28: #{resnet_basic_block_forward.1} parent=11 // pred_fallthru
        _
      // Predicated region
      $region29: #{resnet_basic_block_forward.1} parent=11 // pred_check
        %p218 = pneg %p144
      $region30: #{resnet_basic_block_forward.1} parent=11 // pred_check_branch
        %220 = sbr.rel (%p218) target = $region32
      $region31: #{resnet_basic_block_forward.1} parent=11 // pred_region
        _
      $region32: #{resnet_basic_block_forward.1} parent=11 // pred_fallthru
        _
      // Predicated region
      $region33: #{resnet_basic_block_forward.1} parent=11 // pred_check
        %p221 = pneg %p165
      $region34: #{resnet_basic_block_forward.1} parent=11 // pred_check_branch
        %223 = sbr.rel (%p221) target = $region36
      $region35: #{resnet_basic_block_forward.1} parent=11 // pred_region
        _
      $region36: #{resnet_basic_block_forward.1} parent=11 // pred_fallthru
        _
    $region12: #{resnet_basic_block_forward.1} parent=5 // pred_fallthru
      _
    %p224 = scmp.lt.s32.totalorder %s13, 2
    // Predicated region
    $region37: #{resnet_basic_block_forward.1} parent=5 // pred_check
      %p225 = pneg %p224
    $region38: #{resnet_basic_block_forward.1} parent=5 // pred_check_branch
      %227 = sbr.rel (%p225) target = $region40
    $region39: #{resnet_basic_block_forward.1} parent=5 // pred_region
      // Predicated region
      $region41: #{resnet_basic_block_forward.1} parent=39 // pred_check
        %p228 = pneg %p33
      $region42: #{resnet_basic_block_forward.1} parent=39 // pred_check_branch
        %230 = sbr.rel (%p228) target = $region44
      $region43: #{resnet_basic_block_forward.1} parent=39 // pred_region
        %p231 = scmp.lt.s32.totalorder %s13, 1
        %s232 = scalar_select %p231, %s13, 1
        %s233 = smul.addr %s232, 43
        %s234 = smul.addr %s233, 4
        %s235 = scalar_lea.vmem %s0, %s234
      $region44: #{resnet_basic_block_forward.1} parent=39 // pred_fallthru
        _
    $region40: #{resnet_basic_block_forward.1} parent=5 // pred_fallthru
      _
    %p236 = scmp.le.s32.totalorder 1, %s13
    %p237 = scmp.lt.s32.totalorder %s13, 3
    %p238 = pnand %p236, %p237
    %p239 = pneg %p238
    // Predicated region
    $region45: #{resnet_basic_block_forward.1} parent=5 // pred_check
      _
    $region46: #{resnet_basic_block_forward.1} parent=5 // pred_check_branch
      %241 = sbr.rel (%p238) target = $region48
    $region47: #{resnet_basic_block_forward.1} parent=5 // pred_region
      %s242 = ssub.s32 %s13, 1
      %p243 = scmp.lt.s32.totalorder %s18, 1
      %s244 = scalar_select %p243, %s18, 1
      %s245 = smul.addr %s244, 43
      %s246 = smul.addr %s245, 4
      %s247 = scalar_lea.vmem %s0, %s246
      %p248 = pneg %p39
      %p249 = pneg %p36
      %p250 = pneg %p60
      %p251 = pneg %p57
      %p252 = pneg %p81
      %p253 = pneg %p78
      %p254 = pneg %p102
      %p255 = pneg %p99
      %p256 = pneg %p123
      %p257 = pneg %p120
      %p258 = pneg %p144
      %p259 = pneg %p141
      %p260 = pneg %p165
      %p261 = pneg %p162
      %p262 = pneg %p191
      %p263 = pneg %p188
      %p264 = scmp.lt.s32.totalorder %s18, 1
      %s265 = scalar_select %p264, %s18, 1
      %s266 = smul.addr %s265, 36
      %s267 = smul.addr %s266, 4
      %s268 = scalar_lea.vmem %s7, %s267
      %p269 = scmp.lt.s32.totalorder %s18, 1
      %s270 = scalar_select %p269, %s18, 1
      %s271 = smul.addr %s270, 43
      %s272 = smul.addr %s271, 4
      %s273 = scalar_lea.vmem %s0, %s272
      %p274 = scmp.lt.s32.totalorder %s18, 1
      %s275 = scalar_select %p274, %s18, 1
      %s276 = smul.addr %s275, 36
      %s277 = smul.addr %s276, 4
      %s278 = scalar_lea.vmem %s7, %s277
      %v280 = vld [vmem:[%s273] sm:$0xf]
      %v281 = vld [vmem:[%s273 + $0x4] sm:$0xf]
      %v282 = vld [vmem:[%s273 + $0x8] sm:$0xf]
      %v283 = vld [vmem:[%s273 + $0xc] sm:$0xf]
      %v284 = vld [vmem:[%s273 + $0x10] sm:$0xf]
      %v285 = vld [vmem:[%s273 + $0x14] sm:$0xf]
      %v286 = vld [vmem:[%s273 + $0x18] sm:$0xf]
      %v287 = vld [vmem:[%s273 + $0x1c] sm:$0xf]
      %v288 = vld [vmem:[%s273 + $0x20] sm:$0xf]
      %v289 = vld [vmem:[%s273 + $0x24] sm:$0xf]
      %v290 = vld [vmem:[%s273 + $0x28] sm:$0xf]
      %v291 = vld [vmem:[%s273 + $0x2c] sm:$0xf]
      %v292 = vld [vmem:[%s273 + $0x30] sm:$0xf]
      %v293 = vld [vmem:[%s273 + $0x34] sm:$0xf]
      %v294 = vld [vmem:[%s273 + $0x38] sm:$0xf]
      %v295 = vld [vmem:[%s273 + $0x3c] sm:$0xf]
      %v296 = vld [vmem:[%s273 + $0x40] sm:$0xf]
      %v297 = vld [vmem:[%s273 + $0x44] sm:$0xf]
      %v298 = vld [vmem:[%s273 + $0x48] sm:$0xf]
      %v299 = vld [vmem:[%s273 + $0x4c] sm:$0xf]
      %v300 = vld [vmem:[%s273 + $0x50] sm:$0xf]
      %v301 = vld [vmem:[%s273 + $0x54] sm:$0xf]
      %v302 = vld [vmem:[%s273 + $0x58] sm:$0xf]
      %v303 = vld [vmem:[%s273 + $0x5c] sm:$0xf]
      %v304 = vld [vmem:[%s273 + $0x60] sm:$0xf]
      %v305 = vld [vmem:[%s273 + $0x64] sm:$0xf]
      %v306 = vld [vmem:[%s273 + $0x68] sm:$0xf]
      %v307 = vld [vmem:[%s273 + $0x6c] sm:$0xf]
      %v308 = vld [vmem:[%s273 + $0x70] sm:$0xf]
      %v309 = vld [vmem:[%s273 + $0x74] sm:$0xf]
      %v310 = vld [vmem:[%s273 + $0x78] sm:$0xf]
      %v311 = vld [vmem:[%s273 + $0x7c] sm:$0xf]
      %v312 = vld [vmem:[%s273 + $0x80] sm:$0xf]
      %v313 = vld [vmem:[%s273 + $0x84] sm:$0xf]
      %v314 = vld [vmem:[%s273 + $0x88] sm:$0xf]
      %v315 = vld [vmem:[%s273 + $0x8c] sm:$0xf]
      %v316 = vld [vmem:[%s1] sm:$0xf]
      %v317 = vld [vmem:[%s1 + $0x4] sm:$0xf]
      %v318 = vld [vmem:[%s1 + $0x8] sm:$0xf]
      %v319 = vld [vmem:[%s1 + $0xc] sm:$0xf]
      %v320 = vld [vmem:[%s1 + $0x10] sm:$0xf]
      %v321 = vld [vmem:[%s1 + $0x14] sm:$0xf]
      %v322 = vld [vmem:[%s1 + $0x18] sm:$0xf]
      %v323 = vld [vmem:[%s1 + $0x1c] sm:$0xf]
      %v324 = vld [vmem:[%s1 + $0x20] sm:$0xf]
      %v325 = vld [vmem:[%s1 + $0x24] sm:$0xf]
      %v326 = vld [vmem:[%s1 + $0x28] sm:$0xf]
      %v327 = vld [vmem:[%s1 + $0x2c] sm:$0xf]
      %v328 = vld [vmem:[%s1 + $0x30] sm:$0xf]
      %v329 = vld [vmem:[%s1 + $0x34] sm:$0xf]
      %v330 = vld [vmem:[%s1 + $0x38] sm:$0xf]
      %v331 = vld [vmem:[%s1 + $0x3c] sm:$0xf]
      %v332 = vld [vmem:[%s273 + $0x90] sm:$0x1]
      %s333 = scalar_lea.vmem %s1, 64
      %v334 = vld [vmem:[%s333] sm:$0xf]
      %v335 = vld [vmem:[%s333 + $0x4] sm:$0xf]
      %v336 = vld [vmem:[%s333 + $0x8] sm:$0xf]
      %v337 = vld [vmem:[%s333 + $0xc] sm:$0xf]
      %v338 = vld [vmem:[%s333 + $0x10] sm:$0xf]
      %v339 = vld [vmem:[%s333 + $0x14] sm:$0xf]
      %v340 = vld [vmem:[%s333 + $0x18] sm:$0xf]
      %v341 = vld [vmem:[%s333 + $0x1c] sm:$0xf]
      %v342 = vld [vmem:[%s333 + $0x20] sm:$0xf]
      %v343 = vld [vmem:[%s333 + $0x24] sm:$0xf]
      %v344 = vld [vmem:[%s333 + $0x28] sm:$0xf]
      %v345 = vld [vmem:[%s333 + $0x2c] sm:$0xf]
      %v346 = vld [vmem:[%s333 + $0x30] sm:$0xf]
      %v347 = vld [vmem:[%s333 + $0x34] sm:$0xf]
      %v348 = vld [vmem:[%s333 + $0x38] sm:$0xf]
      %v349 = vld [vmem:[%s333 + $0x3c] sm:$0xf]
      %v387 = vunpack.c.l.b16 %v280
      %v388 = vunpack.c.l.b16 %v281
      %v389 = vunpack.c.l.b16 %v282
      %v390 = vunpack.c.l.b16 %v283
      %v391 = vunpack.c.l.b16 %v284
      %v392 = vunpack.c.l.b16 %v285
      %v393 = vunpack.c.l.b16 %v286
      %v394 = vunpack.c.l.b16 %v287
      %v395 = vunpack.c.l.b16 %v288
      %v396 = vunpack.c.l.b16 %v289
      %v397 = vunpack.c.l.b16 %v290
      %v398 = vunpack.c.l.b16 %v291
      %v399 = vunpack.c.l.b16 %v292
      %v400 = vunpack.c.l.b16 %v293
      %v401 = vunpack.c.l.b16 %v294
      %v402 = vunpack.c.l.b16 %v295
      %v403 = vunpack.c.l.b16 %v296
      %v404 = vunpack.c.l.b16 %v297
      %v405 = vunpack.c.l.b16 %v298
      %v406 = vunpack.c.l.b16 %v299
      %v407 = vunpack.c.l.b16 %v300
      %v408 = vunpack.c.l.b16 %v301
      %v409 = vunpack.c.l.b16 %v302
      %v410 = vunpack.c.l.b16 %v303
      %v411 = vunpack.c.l.b16 %v304
      %v412 = vunpack.c.l.b16 %v305
      %v413 = vunpack.c.l.b16 %v306
      %v414 = vunpack.c.l.b16 %v307
      %v415 = vunpack.c.l.b16 %v308
      %v416 = vunpack.c.l.b16 %v309
      %v417 = vunpack.c.l.b16 %v310
      %v418 = vunpack.c.l.b16 %v311
      %v419 = vunpack.c.l.b16 %v312
      %v420 = vunpack.c.l.b16 %v313
      %v421 = vunpack.c.l.b16 %v314
      %v422 = vunpack.c.l.b16 %v315
      %v423 = vunpack.c.l.b16 %v332
      %v424 = vpack.c.b16 %v388, %v387
      %v425 = vpack.c.b16 %v390, %v389
      %v426 = vpack.c.b16 %v392, %v391
      %v427 = vpack.c.b16 %v394, %v393
      %v428 = vpack.c.b16 %v396, %v395
      %v429 = vpack.c.b16 %v398, %v397
      %v430 = vpack.c.b16 %v400, %v399
      %v431 = vpack.c.b16 %v402, %v401
      %v432 = vpack.c.b16 %v404, %v403
      %v433 = vpack.c.b16 %v406, %v405
      %v434 = vpack.c.b16 %v408, %v407
      %v435 = vpack.c.b16 %v410, %v409
      %v436 = vpack.c.b16 %v412, %v411
      %v437 = vpack.c.b16 %v414, %v413
      %v438 = vpack.c.b16 %v416, %v415
      %v439 = vpack.c.b16 %v418, %v417
      %v440 = vpack.c.b16 %v420, %v419
      %v441 = vpack.c.b16 %v422, %v421
      %v442 = vpack.c.b16 %v423, %v423
      %vm443 = vsmask.f32 7424
      %v445 = vshrl.u32 %v424, 16
      %v447 = vshll.u32 %v424, 16
      %v449 = vrot.slane %v447, 1
      %v450 = vor.u32 %v445, %v449
      %v452 = vshll.u32 %v425, 16
      %v454 = vrot.slane %v452, 1
      %v455 = vsel %vm443, %v450, %v454
      %v456 = vshrl.u32 %v425, 16
      %v458 = vor.u32 %v456, %v454
      %v460 = vshll.u32 %v426, 16
      %v462 = vrot.slane %v460, 1
      %v463 = vsel %vm443, %v458, %v462
      %v464 = vshrl.u32 %v426, 16
      %v466 = vor.u32 %v464, %v462
      %v468 = vshll.u32 %v427, 16
      %v470 = vrot.slane %v468, 1
      %v471 = vsel %vm443, %v466, %v470
      %v472 = vshrl.u32 %v427, 16
      %v474 = vor.u32 %v472, %v470
      %v476 = vshll.u32 %v428, 16
      %v478 = vrot.slane %v476, 1
      %v479 = vsel %vm443, %v474, %v478
      %v480 = vshrl.u32 %v428, 16
      %v482 = vor.u32 %v480, %v478
      %v484 = vshll.u32 %v429, 16
      %v486 = vrot.slane %v484, 1
      %v487 = vsel %vm443, %v482, %v486
      %v488 = vshrl.u32 %v429, 16
      %v490 = vor.u32 %v488, %v486
      %v492 = vshll.u32 %v430, 16
      %v494 = vrot.slane %v492, 1
      %v495 = vsel %vm443, %v490, %v494
      %v496 = vshrl.u32 %v430, 16
      %v498 = vor.u32 %v496, %v494
      %v500 = vshll.u32 %v431, 16
      %v502 = vrot.slane %v500, 1
      %v503 = vsel %vm443, %v498, %v502
      %v504 = vshrl.u32 %v431, 16
      %v506 = vor.u32 %v504, %v502
      %v508 = vshll.u32 %v432, 16
      %v510 = vrot.slane %v508, 1
      %v511 = vsel %vm443, %v506, %v510
      %v512 = vshrl.u32 %v432, 16
      %v514 = vor.u32 %v512, %v510
      %v516 = vshll.u32 %v433, 16
      %v518 = vrot.slane %v516, 1
      %v519 = vsel %vm443, %v514, %v518
      %v520 = vshrl.u32 %v433, 16
      %v522 = vor.u32 %v520, %v518
      %v524 = vshll.u32 %v434, 16
      %v526 = vrot.slane %v524, 1
      %v527 = vsel %vm443, %v522, %v526
      %v528 = vshrl.u32 %v434, 16
      %v530 = vor.u32 %v528, %v526
      %v532 = vshll.u32 %v435, 16
      %v534 = vrot.slane %v532, 1
      %v535 = vsel %vm443, %v530, %v534
      %v536 = vshrl.u32 %v435, 16
      %v538 = vor.u32 %v536, %v534
      %v540 = vshll.u32 %v436, 16
      %v542 = vrot.slane %v540, 1
      %v543 = vsel %vm443, %v538, %v542
      %v544 = vshrl.u32 %v436, 16
      %v546 = vor.u32 %v544, %v542
      %v548 = vshll.u32 %v437, 16
      %v550 = vrot.slane %v548, 1
      %v551 = vsel %vm443, %v546, %v550
      %v552 = vshrl.u32 %v437, 16
      %v554 = vor.u32 %v552, %v550
      %v556 = vshll.u32 %v438, 16
      %v558 = vrot.slane %v556, 1
      %v559 = vsel %vm443, %v554, %v558
      %v560 = vshrl.u32 %v438, 16
      %v562 = vor.u32 %v560, %v558
      %v564 = vshll.u32 %v439, 16
      %v566 = vrot.slane %v564, 1
      %v567 = vsel %vm443, %v562, %v566
      %v568 = vshrl.u32 %v439, 16
      %v570 = vor.u32 %v568, %v566
      %v572 = vshll.u32 %v440, 16
      %v574 = vrot.slane %v572, 1
      %v575 = vsel %vm443, %v570, %v574
      %v576 = vshrl.u32 %v440, 16
      %v578 = vor.u32 %v576, %v574
      %v580 = vshll.u32 %v441, 16
      %v582 = vrot.slane %v580, 1
      %v583 = vsel %vm443, %v578, %v582
      %v584 = vshrl.u32 %v441, 16
      %v586 = vor.u32 %v584, %v582
      %v588 = vshll.u32 %v442, 16
      %v590 = vrot.slane %v588, 1
      %v591 = vsel %vm443, %v586, %v590
      %v626 = vunpack.c.l.b16 %v334
      %v627 = vunpack.c.l.b16 %v335
      %v628 = vunpack.c.l.b16 %v336
      %v629 = vunpack.c.l.b16 %v337
      %v630 = vunpack.c.l.b16 %v338
      %v631 = vunpack.c.l.b16 %v339
      %v632 = vunpack.c.l.b16 %v340
      %v633 = vunpack.c.l.b16 %v341
      %v634 = vunpack.c.l.b16 %v342
      %v635 = vunpack.c.l.b16 %v343
      %v636 = vunpack.c.l.b16 %v344
      %v637 = vunpack.c.l.b16 %v345
      %v638 = vunpack.c.l.b16 %v346
      %v639 = vunpack.c.l.b16 %v347
      %v640 = vunpack.c.l.b16 %v348
      %v641 = vunpack.c.l.b16 %v349
      %v642 = vpack.c.b16 %v627, %v626
      %v643 = vpack.c.b16 %v629, %v628
      %v644 = vpack.c.b16 %v631, %v630
      %v645 = vpack.c.b16 %v633, %v632
      %v646 = vpack.c.b16 %v635, %v634
      %v647 = vpack.c.b16 %v637, %v636
      %v648 = vpack.c.b16 %v639, %v638
      %v649 = vpack.c.b16 %v641, %v640
      %658 = vmatprep.subr.bf16.mxu0 0
      %659 = vmatpush1.bf16.msra.mxu0 %v649
      %660 = vmatprep.subr.bf16.mxu0 0
      %661 = vmatpush1.bf16.msra.mxu0 %v648
      %662 = vmatprep.subr.bf16.mxu0 0
      %663 = vmatpush1.bf16.msra.mxu0 %v647
      %664 = vmatprep.subr.bf16.mxu0 0
      %665 = vmatpush1.bf16.msra.mxu0 %v646
      %666 = vmatprep.subr.bf16.mxu0 0
      %667 = vmatpush1.bf16.msra.mxu0 %v645
      %668 = vmatprep.subr.bf16.mxu0 0
      %669 = vmatpush1.bf16.msra.mxu0 %v644
      %670 = vmatprep.subr.bf16.mxu0 0
      %671 = vmatpush1.bf16.msra.mxu0 %v643
      %672 = vmatprep.subr.bf16.mxu0 0
      %673 = vmatpush1.bf16.msra.mxu0 %v642
      %674 = vmatprep.subr.bf16.mxu0 0
      %675 = vmatpush2.bf16.msra.mxu0 0
      %676 = vmatprep.subr.bf16.mxu0 0
      %677 = vmatpush2.bf16.msra.mxu0 0
      %678 = vmatprep.subr.bf16.mxu0 0
      %679 = vmatpush2.bf16.msra.mxu0 0
      %680 = vmatprep.subr.bf16.mxu0 0
      %681 = vmatpush2.bf16.msra.mxu0 0
      %682 = vmatprep.subr.bf16.mxu0 0
      %683 = vmatpush2.bf16.msra.mxu0 0
      %684 = vmatprep.subr.bf16.mxu0 0
      %685 = vmatpush2.bf16.msra.mxu0 0
      %686 = vmatprep.subr.bf16.mxu0 0
      %687 = vmatpush2.bf16.msra.mxu0 0
      %688 = vmatprep.subr.bf16.mxu0 0
      %689 = vmatpush2.bf16.msra.mxu0 0
      %690 = vmatprep.mubr.bf16.mxu0 0
      %691 = vmatmul.mubr.bf16.gmra.mxu0 %v455
      %v692 = vpop.f32.mrf.mxu0
      %v693 = vadd.f32 0.0, %v692
      %v694 = vpop.f32.mrf.mxu0
      %v695 = vpop.f32.mrf.mxu0
      %v696 = vadd.f32 0.0, %v695
      %v697 = vpop.f32.mrf.mxu0
      %698 = vmatprep.mubr.bf16.mxu0 0
      %699 = vmatmul.mubr.bf16.gmra.mxu0 %v463
      %v700 = vpop.f32.mrf.mxu0
      %v701 = vadd.f32 0.0, %v700
      %v702 = vpop.f32.mrf.mxu0
      %v703 = vpop.f32.mrf.mxu0
      %v704 = vadd.f32 0.0, %v703
      %v705 = vpop.f32.mrf.mxu0
      %706 = vmatprep.mubr.bf16.mxu0 0
      %707 = vmatmul.mubr.bf16.gmra.mxu0 %v471
      %v708 = vpop.f32.mrf.mxu0
      %v709 = vadd.f32 0.0, %v708
      %v710 = vpop.f32.mrf.mxu0
      %v711 = vpop.f32.mrf.mxu0
      %v712 = vadd.f32 0.0, %v711
      %v713 = vpop.f32.mrf.mxu0
      %714 = vmatprep.mubr.bf16.mxu0 0
      %715 = vmatmul.mubr.bf16.gmra.mxu0 %v479
      %v716 = vpop.f32.mrf.mxu0
      %v717 = vadd.f32 0.0, %v716
      %v718 = vpop.f32.mrf.mxu0
      %v719 = vpop.f32.mrf.mxu0
      %v720 = vadd.f32 0.0, %v719
      %v721 = vpop.f32.mrf.mxu0
      %722 = vmatprep.mubr.bf16.mxu0 0
      %723 = vmatmul.mubr.bf16.gmra.mxu0 %v487
      %v724 = vpop.f32.mrf.mxu0
      %v725 = vadd.f32 0.0, %v724
      %v726 = vpop.f32.mrf.mxu0
      %v727 = vpop.f32.mrf.mxu0
      %v728 = vadd.f32 0.0, %v727
      %v729 = vpop.f32.mrf.mxu0
      %730 = vmatprep.mubr.bf16.mxu0 0
      %731 = vmatmul.mubr.bf16.gmra.mxu0 %v495
      %v732 = vpop.f32.mrf.mxu0
      %v733 = vadd.f32 0.0, %v732
      %v734 = vpop.f32.mrf.mxu0
      %v735 = vpop.f32.mrf.mxu0
      %v736 = vadd.f32 0.0, %v735
      %v737 = vpop.f32.mrf.mxu0
      %738 = vmatprep.mubr.bf16.mxu0 0
      %739 = vmatmul.mubr.bf16.gmra.mxu0 %v503
      %v740 = vpop.f32.mrf.mxu0
      %v741 = vadd.f32 0.0, %v740
      %v742 = vpop.f32.mrf.mxu0
      %v743 = vpop.f32.mrf.mxu0
      %v744 = vadd.f32 0.0, %v743
      %v745 = vpop.f32.mrf.mxu0
      %746 = vmatprep.mubr.bf16.mxu0 0
      %747 = vmatmul.mubr.bf16.gmra.mxu0 %v511
      %v748 = vpop.f32.mrf.mxu0
      %v749 = vadd.f32 0.0, %v748
      %v750 = vpop.f32.mrf.mxu0
      %v751 = vpop.f32.mrf.mxu0
      %v752 = vadd.f32 0.0, %v751
      %v753 = vpop.f32.mrf.mxu0
      %754 = vmatprep.mubr.bf16.mxu0 0
      %755 = vmatmul.mubr.bf16.gmra.mxu0 %v519
      %v756 = vpop.f32.mrf.mxu0
      %v757 = vadd.f32 0.0, %v756
      %v758 = vpop.f32.mrf.mxu0
      %v759 = vpop.f32.mrf.mxu0
      %v760 = vadd.f32 0.0, %v759
      %v761 = vpop.f32.mrf.mxu0
      %762 = vmatprep.mubr.bf16.mxu0 0
      %763 = vmatmul.mubr.bf16.gmra.mxu0 %v527
      %v764 = vpop.f32.mrf.mxu0
      %v765 = vadd.f32 0.0, %v764
      %v766 = vpop.f32.mrf.mxu0
      %v767 = vpop.f32.mrf.mxu0
      %v768 = vadd.f32 0.0, %v767
      %v769 = vpop.f32.mrf.mxu0
      %770 = vmatprep.mubr.bf16.mxu0 0
      %771 = vmatmul.mubr.bf16.gmra.mxu0 %v535
      %v772 = vpop.f32.mrf.mxu0
      %v773 = vadd.f32 0.0, %v772
      %v774 = vpop.f32.mrf.mxu0
      %v775 = vpop.f32.mrf.mxu0
      %v776 = vadd.f32 0.0, %v775
      %v777 = vpop.f32.mrf.mxu0
      %778 = vmatprep.mubr.bf16.mxu0 0
      %779 = vmatmul.mubr.bf16.gmra.mxu0 %v543
      %v780 = vpop.f32.mrf.mxu0
      %v781 = vadd.f32 0.0, %v780
      %v782 = vpop.f32.mrf.mxu0
      %v783 = vpop.f32.mrf.mxu0
      %v784 = vadd.f32 0.0, %v783
      %v785 = vpop.f32.mrf.mxu0
      %786 = vmatprep.mubr.bf16.mxu0 0
      %787 = vmatmul.mubr.bf16.gmra.mxu0 %v551
      %v788 = vpop.f32.mrf.mxu0
      %v789 = vadd.f32 0.0, %v788
      %v790 = vpop.f32.mrf.mxu0
      %v791 = vpop.f32.mrf.mxu0
      %v792 = vadd.f32 0.0, %v791
      %v793 = vpop.f32.mrf.mxu0
      %794 = vmatprep.mubr.bf16.mxu0 0
      %795 = vmatmul.mubr.bf16.gmra.mxu0 %v559
      %v796 = vpop.f32.mrf.mxu0
      %v797 = vadd.f32 0.0, %v796
      %v798 = vpop.f32.mrf.mxu0
      %v799 = vpop.f32.mrf.mxu0
      %v800 = vadd.f32 0.0, %v799
      %v801 = vpop.f32.mrf.mxu0
      %802 = vmatprep.mubr.bf16.mxu0 0
      %803 = vmatmul.mubr.bf16.gmra.mxu0 %v567
      %v804 = vpop.f32.mrf.mxu0
      %v805 = vadd.f32 0.0, %v804
      %v806 = vpop.f32.mrf.mxu0
      %v807 = vpop.f32.mrf.mxu0
      %v808 = vadd.f32 0.0, %v807
      %v809 = vpop.f32.mrf.mxu0
      %810 = vmatprep.mubr.bf16.mxu0 0
      %811 = vmatmul.mubr.bf16.gmra.mxu0 %v575
      %v812 = vpop.f32.mrf.mxu0
      %v813 = vadd.f32 0.0, %v812
      %v814 = vpop.f32.mrf.mxu0
      %v815 = vpop.f32.mrf.mxu0
      %v816 = vadd.f32 0.0, %v815
      %v817 = vpop.f32.mrf.mxu0
      %818 = vmatprep.mubr.bf16.mxu0 0
      %819 = vmatmul.mubr.bf16.gmra.mxu0 %v583
      %v820 = vpop.f32.mrf.mxu0
      %v821 = vadd.f32 0.0, %v820
      %v822 = vpop.f32.mrf.mxu0
      %v823 = vpop.f32.mrf.mxu0
      %v824 = vadd.f32 0.0, %v823
      %v825 = vpop.f32.mrf.mxu0
      %826 = vmatprep.mubr.bf16.mxu0 0
      %827 = vmatmul.mubr.bf16.gmra.mxu0 %v591
      %v828 = vpop.f32.mrf.mxu0
      %v829 = vadd.f32 0.0, %v828
      %v830 = vpop.f32.mrf.mxu0
      %v831 = vpop.f32.mrf.mxu0
      %v832 = vadd.f32 0.0, %v831
      %v833 = vpop.f32.mrf.mxu0
      %834 = vdwg.mxu0
      %v869 = vunpack.c.l.b16 %v316
      %v870 = vunpack.c.l.b16 %v317
      %v871 = vunpack.c.l.b16 %v318
      %v872 = vunpack.c.l.b16 %v319
      %v873 = vunpack.c.l.b16 %v320
      %v874 = vunpack.c.l.b16 %v321
      %v875 = vunpack.c.l.b16 %v322
      %v876 = vunpack.c.l.b16 %v323
      %v877 = vunpack.c.l.b16 %v324
      %v878 = vunpack.c.l.b16 %v325
      %v879 = vunpack.c.l.b16 %v326
      %v880 = vunpack.c.l.b16 %v327
      %v881 = vunpack.c.l.b16 %v328
      %v882 = vunpack.c.l.b16 %v329
      %v883 = vunpack.c.l.b16 %v330
      %v884 = vunpack.c.l.b16 %v331
      %v885 = vpack.c.b16 %v870, %v869
      %v886 = vpack.c.b16 %v872, %v871
      %v887 = vpack.c.b16 %v874, %v873
      %v888 = vpack.c.b16 %v876, %v875
      %v889 = vpack.c.b16 %v878, %v877
      %v890 = vpack.c.b16 %v880, %v879
      %v891 = vpack.c.b16 %v882, %v881
      %v892 = vpack.c.b16 %v884, %v883
      %901 = vmatprep.subr.bf16.mxu0 0
      %902 = vmatpush1.bf16.msra.mxu0 %v892
      %903 = vmatprep.subr.bf16.mxu0 0
      %904 = vmatpush1.bf16.msra.mxu0 %v891
      %905 = vmatprep.subr.bf16.mxu0 0
      %906 = vmatpush1.bf16.msra.mxu0 %v890
      %907 = vmatprep.subr.bf16.mxu0 0
      %908 = vmatpush1.bf16.msra.mxu0 %v889
      %909 = vmatprep.subr.bf16.mxu0 0
      %910 = vmatpush1.bf16.msra.mxu0 %v888
      %911 = vmatprep.subr.bf16.mxu0 0
      %912 = vmatpush1.bf16.msra.mxu0 %v887
      %913 = vmatprep.subr.bf16.mxu0 0
      %914 = vmatpush1.bf16.msra.mxu0 %v886
      %915 = vmatprep.subr.bf16.mxu0 0
      %916 = vmatpush1.bf16.msra.mxu0 %v885
      %917 = vmatprep.subr.bf16.mxu0 0
      %918 = vmatpush2.bf16.msra.mxu0 0
      %919 = vmatprep.subr.bf16.mxu0 0
      %920 = vmatpush2.bf16.msra.mxu0 0
      %921 = vmatprep.subr.bf16.mxu0 0
      %922 = vmatpush2.bf16.msra.mxu0 0
      %923 = vmatprep.subr.bf16.mxu0 0
      %924 = vmatpush2.bf16.msra.mxu0 0
      %925 = vmatprep.subr.bf16.mxu0 0
      %926 = vmatpush2.bf16.msra.mxu0 0
      %927 = vmatprep.subr.bf16.mxu0 0
      %928 = vmatpush2.bf16.msra.mxu0 0
      %929 = vmatprep.subr.bf16.mxu0 0
      %930 = vmatpush2.bf16.msra.mxu0 0
      %931 = vmatprep.subr.bf16.mxu0 0
      %932 = vmatpush2.bf16.msra.mxu0 0
      %933 = vmatprep.mubr.bf16.mxu0 0
      %934 = vmatmul.mubr.bf16.gmra.mxu0 %v424
      %v935 = vpop.f32.mrf.mxu0
      %v936 = vadd.f32 %v693, %v935
      %v937 = vpop.f32.mrf.mxu0
      %v938 = vpop.f32.mrf.mxu0
      %v939 = vadd.f32 %v696, %v938
      %v940 = vpop.f32.mrf.mxu0
      %941 = vmatprep.mubr.bf16.mxu0 0
      %942 = vmatmul.mubr.bf16.gmra.mxu0 %v425
      %v943 = vpop.f32.mrf.mxu0
      %v944 = vadd.f32 %v701, %v943
      %v945 = vpop.f32.mrf.mxu0
      %v946 = vpop.f32.mrf.mxu0
      %v947 = vadd.f32 %v704, %v946
      %v948 = vpop.f32.mrf.mxu0
      %949 = vmatprep.mubr.bf16.mxu0 0
      %950 = vmatmul.mubr.bf16.gmra.mxu0 %v426
      %v951 = vpop.f32.mrf.mxu0
      %v952 = vadd.f32 %v709, %v951
      %v953 = vpop.f32.mrf.mxu0
      %v954 = vpop.f32.mrf.mxu0
      %v955 = vadd.f32 %v712, %v954
      %v956 = vpop.f32.mrf.mxu0
      %957 = vmatprep.mubr.bf16.mxu0 0
      %958 = vmatmul.mubr.bf16.gmra.mxu0 %v427
      %v959 = vpop.f32.mrf.mxu0
      %v960 = vadd.f32 %v717, %v959
      %v961 = vpop.f32.mrf.mxu0
      %v962 = vpop.f32.mrf.mxu0
      %v963 = vadd.f32 %v720, %v962
      %v964 = vpop.f32.mrf.mxu0
      %965 = vmatprep.mubr.bf16.mxu0 0
      %966 = vmatmul.mubr.bf16.gmra.mxu0 %v428
      %v967 = vpop.f32.mrf.mxu0
      %v968 = vadd.f32 %v725, %v967
      %v969 = vpop.f32.mrf.mxu0
      %v970 = vpop.f32.mrf.mxu0
      %v971 = vadd.f32 %v728, %v970
      %v972 = vpop.f32.mrf.mxu0
      %973 = vmatprep.mubr.bf16.mxu0 0
      %974 = vmatmul.mubr.bf16.gmra.mxu0 %v429
      %v975 = vpop.f32.mrf.mxu0
      %v976 = vadd.f32 %v733, %v975
      %v977 = vpop.f32.mrf.mxu0
      %v978 = vpop.f32.mrf.mxu0
      %v979 = vadd.f32 %v736, %v978
      %v980 = vpop.f32.mrf.mxu0
      %981 = vmatprep.mubr.bf16.mxu0 0
      %982 = vmatmul.mubr.bf16.gmra.mxu0 %v430
      %v983 = vpop.f32.mrf.mxu0
      %v984 = vadd.f32 %v741, %v983
      %v985 = vpop.f32.mrf.mxu0
      %v986 = vpop.f32.mrf.mxu0
      %v987 = vadd.f32 %v744, %v986
      %v988 = vpop.f32.mrf.mxu0
      %989 = vmatprep.mubr.bf16.mxu0 0
      %990 = vmatmul.mubr.bf16.gmra.mxu0 %v431
      %v991 = vpop.f32.mrf.mxu0
      %v992 = vadd.f32 %v749, %v991
      %v993 = vpop.f32.mrf.mxu0
      %v994 = vpop.f32.mrf.mxu0
      %v995 = vadd.f32 %v752, %v994
      %v996 = vpop.f32.mrf.mxu0
      %997 = vmatprep.mubr.bf16.mxu0 0
      %998 = vmatmul.mubr.bf16.gmra.mxu0 %v432
      %v999 = vpop.f32.mrf.mxu0
      %v1000 = vadd.f32 %v757, %v999
      %v1001 = vpop.f32.mrf.mxu0
      %v1002 = vpop.f32.mrf.mxu0
      %v1003 = vadd.f32 %v760, %v1002
      %v1004 = vpop.f32.mrf.mxu0
      %1005 = vmatprep.mubr.bf16.mxu0 0
      %1006 = vmatmul.mubr.bf16.gmra.mxu0 %v433
      %v1007 = vpop.f32.mrf.mxu0
      %v1008 = vadd.f32 %v765, %v1007
      %v1009 = vpop.f32.mrf.mxu0
      %v1010 = vpop.f32.mrf.mxu0
      %v1011 = vadd.f32 %v768, %v1010
      %v1012 = vpop.f32.mrf.mxu0
      %1013 = vmatprep.mubr.bf16.mxu0 0
      %1014 = vmatmul.mubr.bf16.gmra.mxu0 %v434
      %v1015 = vpop.f32.mrf.mxu0
      %v1016 = vadd.f32 %v773, %v1015
      %v1017 = vpop.f32.mrf.mxu0
      %v1018 = vpop.f32.mrf.mxu0
      %v1019 = vadd.f32 %v776, %v1018
      %v1020 = vpop.f32.mrf.mxu0
      %1021 = vmatprep.mubr.bf16.mxu0 0
      %1022 = vmatmul.mubr.bf16.gmra.mxu0 %v435
      %v1023 = vpop.f32.mrf.mxu0
      %v1024 = vadd.f32 %v781, %v1023
      %v1025 = vpop.f32.mrf.mxu0
      %v1026 = vpop.f32.mrf.mxu0
      %v1027 = vadd.f32 %v784, %v1026
      %v1028 = vpop.f32.mrf.mxu0
      %1029 = vmatprep.mubr.bf16.mxu0 0
      %1030 = vmatmul.mubr.bf16.gmra.mxu0 %v436
      %v1031 = vpop.f32.mrf.mxu0
      %v1032 = vadd.f32 %v789, %v1031
      %v1033 = vpop.f32.mrf.mxu0
      %v1034 = vpop.f32.mrf.mxu0
      %v1035 = vadd.f32 %v792, %v1034
      %v1036 = vpop.f32.mrf.mxu0
      %1037 = vmatprep.mubr.bf16.mxu0 0
      %1038 = vmatmul.mubr.bf16.gmra.mxu0 %v437
      %v1039 = vpop.f32.mrf.mxu0
      %v1040 = vadd.f32 %v797, %v1039
      %v1041 = vpop.f32.mrf.mxu0
      %v1042 = vpop.f32.mrf.mxu0
      %v1043 = vadd.f32 %v800, %v1042
      %v1044 = vpop.f32.mrf.mxu0
      %1045 = vmatprep.mubr.bf16.mxu0 0
      %1046 = vmatmul.mubr.bf16.gmra.mxu0 %v438
      %v1047 = vpop.f32.mrf.mxu0
      %v1048 = vadd.f32 %v805, %v1047
      %v1049 = vpop.f32.mrf.mxu0
      %v1050 = vpop.f32.mrf.mxu0
      %v1051 = vadd.f32 %v808, %v1050
      %v1052 = vpop.f32.mrf.mxu0
      %1053 = vmatprep.mubr.bf16.mxu0 0
      %1054 = vmatmul.mubr.bf16.gmra.mxu0 %v439
      %v1055 = vpop.f32.mrf.mxu0
      %v1056 = vadd.f32 %v813, %v1055
      %v1057 = vpop.f32.mrf.mxu0
      %v1058 = vpop.f32.mrf.mxu0
      %v1059 = vadd.f32 %v816, %v1058
      %v1060 = vpop.f32.mrf.mxu0
      %1061 = vmatprep.mubr.bf16.mxu0 0
      %1062 = vmatmul.mubr.bf16.gmra.mxu0 %v440
      %v1063 = vpop.f32.mrf.mxu0
      %v1064 = vadd.f32 %v821, %v1063
      %v1065 = vpop.f32.mrf.mxu0
      %v1066 = vpop.f32.mrf.mxu0
      %v1067 = vadd.f32 %v824, %v1066
      %v1068 = vpop.f32.mrf.mxu0
      %1069 = vmatprep.mubr.bf16.mxu0 0
      %1070 = vmatmul.mubr.bf16.gmra.mxu0 %v441
      %v1071 = vpop.f32.mrf.mxu0
      %v1072 = vadd.f32 %v829, %v1071
      %v1073 = vpop.f32.mrf.mxu0
      %v1074 = vpop.f32.mrf.mxu0
      %v1075 = vadd.f32 %v832, %v1074
      %v1076 = vpop.f32.mrf.mxu0
      %1077 = vdwg.mxu0
      %v1078 = vld [vmem:[%s273] sm:$0xe]
      %s1079 = scalar_lea.vmem %s1, 128
      %v1080 = vld [vmem:[%s1079] sm:$0xf]
      %v1081 = vld [vmem:[%s1079 + $0x4] sm:$0xf]
      %v1082 = vld [vmem:[%s1079 + $0x8] sm:$0xf]
      %v1083 = vld [vmem:[%s1079 + $0xc] sm:$0xf]
      %v1084 = vld [vmem:[%s1079 + $0x10] sm:$0xf]
      %v1085 = vld [vmem:[%s1079 + $0x14] sm:$0xf]
      %v1086 = vld [vmem:[%s1079 + $0x18] sm:$0xf]
      %v1087 = vld [vmem:[%s1079 + $0x1c] sm:$0xf]
      %v1088 = vld [vmem:[%s1079 + $0x20] sm:$0xf]
      %v1089 = vld [vmem:[%s1079 + $0x24] sm:$0xf]
      %v1090 = vld [vmem:[%s1079 + $0x28] sm:$0xf]
      %v1091 = vld [vmem:[%s1079 + $0x2c] sm:$0xf]
      %v1092 = vld [vmem:[%s1079 + $0x30] sm:$0xf]
      %v1093 = vld [vmem:[%s1079 + $0x34] sm:$0xf]
      %v1094 = vld [vmem:[%s1079 + $0x38] sm:$0xf]
      %v1095 = vld [vmem:[%s1079 + $0x3c] sm:$0xf]
      %v1097 = vunpack.c.l.b16 %v1078
      %v1098 = vpack.c.b16 %v388, %v1097
      %vm1099 = vcmask 1046528
      %v1100 = vrot.slane %v1098, 1
      %v1101 = vrot.slane %v425, 1
      %v1102 = vsel %vm1099, %v1100, %v1101
      %v1103 = vrot.slane %v426, 1
      %v1104 = vsel %vm1099, %v1101, %v1103
      %v1105 = vrot.slane %v427, 1
      %v1106 = vsel %vm1099, %v1103, %v1105
      %v1107 = vrot.slane %v428, 1
      %v1108 = vsel %vm1099, %v1105, %v1107
      %v1109 = vrot.slane %v429, 1
      %v1110 = vsel %vm1099, %v1107, %v1109
      %v1111 = vrot.slane %v430, 1
      %v1112 = vsel %vm1099, %v1109, %v1111
      %v1113 = vrot.slane %v431, 1
      %v1114 = vsel %vm1099, %v1111, %v1113
      %v1115 = vrot.slane %v432, 1
      %v1116 = vsel %vm1099, %v1113, %v1115
      %v1117 = vrot.slane %v433, 1
      %v1118 = vsel %vm1099, %v1115, %v1117
      %v1119 = vrot.slane %v434, 1
      %v1120 = vsel %vm1099, %v1117, %v1119
      %v1121 = vrot.slane %v435, 1
      %v1122 = vsel %vm1099, %v1119, %v1121
      %v1123 = vrot.slane %v436, 1
      %v1124 = vsel %vm1099, %v1121, %v1123
      %v1125 = vrot.slane %v437, 1
      %v1126 = vsel %vm1099, %v1123, %v1125
      %v1127 = vrot.slane %v438, 1
      %v1128 = vsel %vm1099, %v1125, %v1127
      %v1129 = vrot.slane %v439, 1
      %v1130 = vsel %vm1099, %v1127, %v1129
      %v1131 = vrot.slane %v440, 1
      %v1132 = vsel %vm1099, %v1129, %v1131
      %v1133 = vrot.slane %v441, 1
      %v1134 = vsel %vm1099, %v1131, %v1133
      %v1135 = vrot.slane %v442, 1
      %v1136 = vsel %vm1099, %v1133, %v1135
      %v1171 = vunpack.c.l.b16 %v1080
      %v1172 = vunpack.c.l.b16 %v1081
      %v1173 = vunpack.c.l.b16 %v1082
      %v1174 = vunpack.c.l.b16 %v1083
      %v1175 = vunpack.c.l.b16 %v1084
      %v1176 = vunpack.c.l.b16 %v1085
      %v1177 = vunpack.c.l.b16 %v1086
      %v1178 = vunpack.c.l.b16 %v1087
      %v1179 = vunpack.c.l.b16 %v1088
      %v1180 = vunpack.c.l.b16 %v1089
      %v1181 = vunpack.c.l.b16 %v1090
      %v1182 = vunpack.c.l.b16 %v1091
      %v1183 = vunpack.c.l.b16 %v1092
      %v1184 = vunpack.c.l.b16 %v1093
      %v1185 = vunpack.c.l.b16 %v1094
      %v1186 = vunpack.c.l.b16 %v1095
      %v1187 = vpack.c.b16 %v1172, %v1171
      %v1188 = vpack.c.b16 %v1174, %v1173
      %v1189 = vpack.c.b16 %v1176, %v1175
      %v1190 = vpack.c.b16 %v1178, %v1177
      %v1191 = vpack.c.b16 %v1180, %v1179
      %v1192 = vpack.c.b16 %v1182, %v1181
      %v1193 = vpack.c.b16 %v1184, %v1183
      %v1194 = vpack.c.b16 %v1186, %v1185
      %1203 = vmatprep.subr.bf16.mxu0 0
      %1204 = vmatpush1.bf16.msra.mxu0 %v1194
      %1205 = vmatprep.subr.bf16.mxu0 0
      %1206 = vmatpush1.bf16.msra.mxu0 %v1193
      %1207 = vmatprep.subr.bf16.mxu0 0
      %1208 = vmatpush1.bf16.msra.mxu0 %v1192
      %1209 = vmatprep.subr.bf16.mxu0 0
      %1210 = vmatpush1.bf16.msra.mxu0 %v1191
      %1211 = vmatprep.subr.bf16.mxu0 0
      %1212 = vmatpush1.bf16.msra.mxu0 %v1190
      %1213 = vmatprep.subr.bf16.mxu0 0
      %1214 = vmatpush1.bf16.msra.mxu0 %v1189
      %1215 = vmatprep.subr.bf16.mxu0 0
      %1216 = vmatpush1.bf16.msra.mxu0 %v1188
      %1217 = vmatprep.subr.bf16.mxu0 0
      %1218 = vmatpush1.bf16.msra.mxu0 %v1187
      %1219 = vmatprep.subr.bf16.mxu0 0
      %1220 = vmatpush2.bf16.msra.mxu0 0
      %1221 = vmatprep.subr.bf16.mxu0 0
      %1222 = vmatpush2.bf16.msra.mxu0 0
      %1223 = vmatprep.subr.bf16.mxu0 0
      %1224 = vmatpush2.bf16.msra.mxu0 0
      %1225 = vmatprep.subr.bf16.mxu0 0
      %1226 = vmatpush2.bf16.msra.mxu0 0
      %1227 = vmatprep.subr.bf16.mxu0 0
      %1228 = vmatpush2.bf16.msra.mxu0 0
      %1229 = vmatprep.subr.bf16.mxu0 0
      %1230 = vmatpush2.bf16.msra.mxu0 0
      %1231 = vmatprep.subr.bf16.mxu0 0
      %1232 = vmatpush2.bf16.msra.mxu0 0
      %1233 = vmatprep.subr.bf16.mxu0 0
      %1234 = vmatpush2.bf16.msra.mxu0 0
      %1235 = vmatprep.mubr.bf16.mxu0 0
      %1236 = vmatmul.mubr.bf16.gmra.mxu0 %v1102
      %v1237 = vpop.f32.mrf.mxu0
      %v1238 = vadd.f32 0.0, %v1237
      %v1239 = vpop.f32.mrf.mxu0
      %v1240 = vpop.f32.mrf.mxu0
      %v1241 = vadd.f32 0.0, %v1240
      %v1242 = vpop.f32.mrf.mxu0
      %1243 = vmatprep.mubr.bf16.mxu0 0
      %1244 = vmatmul.mubr.bf16.gmra.mxu0 %v1104
      %v1245 = vpop.f32.mrf.mxu0
      %v1246 = vadd.f32 0.0, %v1245
      %v1247 = vpop.f32.mrf.mxu0
      %v1248 = vpop.f32.mrf.mxu0
      %v1249 = vadd.f32 0.0, %v1248
      %v1250 = vpop.f32.mrf.mxu0
      %1251 = vmatprep.mubr.bf16.mxu0 0
      %1252 = vmatmul.mubr.bf16.gmra.mxu0 %v1106
      %v1253 = vpop.f32.mrf.mxu0
      %v1254 = vadd.f32 0.0, %v1253
      %v1255 = vpop.f32.mrf.mxu0
      %v1256 = vpop.f32.mrf.mxu0
      %v1257 = vadd.f32 0.0, %v1256
      %v1258 = vpop.f32.mrf.mxu0
      %1259 = vmatprep.mubr.bf16.mxu0 0
      %1260 = vmatmul.mubr.bf16.gmra.mxu0 %v1108
      %v1261 = vpop.f32.mrf.mxu0
      %v1262 = vadd.f32 0.0, %v1261
      %v1263 = vpop.f32.mrf.mxu0
      %v1264 = vpop.f32.mrf.mxu0
      %v1265 = vadd.f32 0.0, %v1264
      %v1266 = vpop.f32.mrf.mxu0
      %1267 = vmatprep.mubr.bf16.mxu0 0
      %1268 = vmatmul.mubr.bf16.gmra.mxu0 %v1110
      %v1269 = vpop.f32.mrf.mxu0
      %v1270 = vadd.f32 0.0, %v1269
      %v1271 = vpop.f32.mrf.mxu0
      %v1272 = vpop.f32.mrf.mxu0
      %v1273 = vadd.f32 0.0, %v1272
      %v1274 = vpop.f32.mrf.mxu0
      %1275 = vmatprep.mubr.bf16.mxu0 0
      %1276 = vmatmul.mubr.bf16.gmra.mxu0 %v1112
      %v1277 = vpop.f32.mrf.mxu0
      %v1278 = vadd.f32 0.0, %v1277
      %v1279 = vpop.f32.mrf.mxu0
      %v1280 = vpop.f32.mrf.mxu0
      %v1281 = vadd.f32 0.0, %v1280
      %v1282 = vpop.f32.mrf.mxu0
      %1283 = vmatprep.mubr.bf16.mxu0 0
      %1284 = vmatmul.mubr.bf16.gmra.mxu0 %v1114
      %v1285 = vpop.f32.mrf.mxu0
      %v1286 = vadd.f32 0.0, %v1285
      %v1287 = vpop.f32.mrf.mxu0
      %v1288 = vpop.f32.mrf.mxu0
      %v1289 = vadd.f32 0.0, %v1288
      %v1290 = vpop.f32.mrf.mxu0
      %1291 = vmatprep.mubr.bf16.mxu0 0
      %1292 = vmatmul.mubr.bf16.gmra.mxu0 %v1116
      %v1293 = vpop.f32.mrf.mxu0
      %v1294 = vadd.f32 0.0, %v1293
      %v1295 = vpop.f32.mrf.mxu0
      %v1296 = vpop.f32.mrf.mxu0
      %v1297 = vadd.f32 0.0, %v1296
      %v1298 = vpop.f32.mrf.mxu0
      %1299 = vmatprep.mubr.bf16.mxu0 0
      %1300 = vmatmul.mubr.bf16.gmra.mxu0 %v1118
      %v1301 = vpop.f32.mrf.mxu0
      %v1302 = vadd.f32 0.0, %v1301
      %v1303 = vpop.f32.mrf.mxu0
      %v1304 = vpop.f32.mrf.mxu0
      %v1305 = vadd.f32 0.0, %v1304
      %v1306 = vpop.f32.mrf.mxu0
      %1307 = vmatprep.mubr.bf16.mxu0 0
      %1308 = vmatmul.mubr.bf16.gmra.mxu0 %v1120
      %v1309 = vpop.f32.mrf.mxu0
      %v1310 = vadd.f32 0.0, %v1309
      %v1311 = vpop.f32.mrf.mxu0
      %v1312 = vpop.f32.mrf.mxu0
      %v1313 = vadd.f32 0.0, %v1312
      %v1314 = vpop.f32.mrf.mxu0
      %1315 = vmatprep.mubr.bf16.mxu0 0
      %1316 = vmatmul.mubr.bf16.gmra.mxu0 %v1122
      %v1317 = vpop.f32.mrf.mxu0
      %v1318 = vadd.f32 0.0, %v1317
      %v1319 = vpop.f32.mrf.mxu0
      %v1320 = vpop.f32.mrf.mxu0
      %v1321 = vadd.f32 0.0, %v1320
      %v1322 = vpop.f32.mrf.mxu0
      %1323 = vmatprep.mubr.bf16.mxu0 0
      %1324 = vmatmul.mubr.bf16.gmra.mxu0 %v1124
      %v1325 = vpop.f32.mrf.mxu0
      %v1326 = vadd.f32 0.0, %v1325
      %v1327 = vpop.f32.mrf.mxu0
      %v1328 = vpop.f32.mrf.mxu0
      %v1329 = vadd.f32 0.0, %v1328
      %v1330 = vpop.f32.mrf.mxu0
      %1331 = vmatprep.mubr.bf16.mxu0 0
      %1332 = vmatmul.mubr.bf16.gmra.mxu0 %v1126
      %v1333 = vpop.f32.mrf.mxu0
      %v1334 = vadd.f32 0.0, %v1333
      %v1335 = vpop.f32.mrf.mxu0
      %v1336 = vpop.f32.mrf.mxu0
      %v1337 = vadd.f32 0.0, %v1336
      %v1338 = vpop.f32.mrf.mxu0
      %1339 = vmatprep.mubr.bf16.mxu0 0
      %1340 = vmatmul.mubr.bf16.gmra.mxu0 %v1128
      %v1341 = vpop.f32.mrf.mxu0
      %v1342 = vadd.f32 0.0, %v1341
      %v1343 = vpop.f32.mrf.mxu0
      %v1344 = vpop.f32.mrf.mxu0
      %v1345 = vadd.f32 0.0, %v1344
      %v1346 = vpop.f32.mrf.mxu0
      %1347 = vmatprep.mubr.bf16.mxu0 0
      %1348 = vmatmul.mubr.bf16.gmra.mxu0 %v1130
      %v1349 = vpop.f32.mrf.mxu0
      %v1350 = vadd.f32 0.0, %v1349
      %v1351 = vpop.f32.mrf.mxu0
      %v1352 = vpop.f32.mrf.mxu0
      %v1353 = vadd.f32 0.0, %v1352
      %v1354 = vpop.f32.mrf.mxu0
      %1355 = vmatprep.mubr.bf16.mxu0 0
      %1356 = vmatmul.mubr.bf16.gmra.mxu0 %v1132
      %v1357 = vpop.f32.mrf.mxu0
      %v1358 = vadd.f32 0.0, %v1357
      %v1359 = vpop.f32.mrf.mxu0
      %v1360 = vpop.f32.mrf.mxu0
      %v1361 = vadd.f32 0.0, %v1360
      %v1362 = vpop.f32.mrf.mxu0
      %1363 = vmatprep.mubr.bf16.mxu0 0
      %1364 = vmatmul.mubr.bf16.gmra.mxu0 %v1134
      %v1365 = vpop.f32.mrf.mxu0
      %v1366 = vadd.f32 0.0, %v1365
      %v1367 = vpop.f32.mrf.mxu0
      %v1368 = vpop.f32.mrf.mxu0
      %v1369 = vadd.f32 0.0, %v1368
      %v1370 = vpop.f32.mrf.mxu0
      %1371 = vmatprep.mubr.bf16.mxu0 0
      %1372 = vmatmul.mubr.bf16.gmra.mxu0 %v1136
      %v1373 = vpop.f32.mrf.mxu0
      %v1374 = vadd.f32 0.0, %v1373
      %v1375 = vpop.f32.mrf.mxu0
      %v1376 = vpop.f32.mrf.mxu0
      %v1377 = vadd.f32 0.0, %v1376
      %v1378 = vpop.f32.mrf.mxu0
      %1379 = vdwg.mxu0
      %v1380 = vadd.f32 %v936, %v1238
      %v1381 = vadd.f32 %v939, %v1241
      %v1382 = vadd.f32 %v944, %v1246
      %v1383 = vadd.f32 %v947, %v1249
      %v1384 = vadd.f32 %v952, %v1254
      %v1385 = vadd.f32 %v955, %v1257
      %v1386 = vadd.f32 %v960, %v1262
      %v1387 = vadd.f32 %v963, %v1265
      %v1388 = vadd.f32 %v968, %v1270
      %v1389 = vadd.f32 %v971, %v1273
      %v1390 = vadd.f32 %v976, %v1278
      %v1391 = vadd.f32 %v979, %v1281
      %v1392 = vadd.f32 %v984, %v1286
      %v1393 = vadd.f32 %v987, %v1289
      %v1394 = vadd.f32 %v992, %v1294
      %v1395 = vadd.f32 %v995, %v1297
      %v1396 = vadd.f32 %v1000, %v1302
      %v1397 = vadd.f32 %v1003, %v1305
      %v1398 = vadd.f32 %v1008, %v1310
      %v1399 = vadd.f32 %v1011, %v1313
      %v1400 = vadd.f32 %v1016, %v1318
      %v1401 = vadd.f32 %v1019, %v1321
      %v1402 = vadd.f32 %v1024, %v1326
      %v1403 = vadd.f32 %v1027, %v1329
      %v1404 = vadd.f32 %v1032, %v1334
      %v1405 = vadd.f32 %v1035, %v1337
      %v1406 = vadd.f32 %v1040, %v1342
      %v1407 = vadd.f32 %v1043, %v1345
      %v1408 = vadd.f32 %v1048, %v1350
      %v1409 = vadd.f32 %v1051, %v1353
      %v1410 = vadd.f32 %v1056, %v1358
      %v1411 = vadd.f32 %v1059, %v1361
      %v1412 = vadd.f32 %v1064, %v1366
      %v1413 = vadd.f32 %v1067, %v1369
      %v1414 = vadd.f32 %v1072, %v1374
      %v1415 = vadd.f32 %v1075, %v1377
      %v1416 = vld [vmem:[%s273 + $0x8] sm:$0xe]
      %v1417 = vld [vmem:[%s273 + $0xc] sm:$0xf]
      %v1418 = vld [vmem:[%s273 + $0x10] sm:$0xf]
      %v1419 = vld [vmem:[%s273 + $0x14] sm:$0xf]
      %v1420 = vld [vmem:[%s273 + $0x18] sm:$0xf]
      %v1421 = vld [vmem:[%s273 + $0x1c] sm:$0xf]
      %v1422 = vld [vmem:[%s273 + $0x20] sm:$0xf]
      %v1423 = vld [vmem:[%s273 + $0x24] sm:$0xf]
      %v1424 = vld [vmem:[%s273 + $0x28] sm:$0xf]
      %v1425 = vld [vmem:[%s273 + $0x2c] sm:$0xf]
      %v1426 = vld [vmem:[%s273 + $0x30] sm:$0xf]
      %v1427 = vld [vmem:[%s273 + $0x34] sm:$0xf]
      %v1428 = vld [vmem:[%s273 + $0x38] sm:$0xf]
      %v1429 = vld [vmem:[%s273 + $0x3c] sm:$0xf]
      %v1430 = vld [vmem:[%s273 + $0x40] sm:$0xf]
      %v1431 = vld [vmem:[%s273 + $0x44] sm:$0xf]
      %v1432 = vld [vmem:[%s273 + $0x48] sm:$0xf]
      %v1433 = vld [vmem:[%s273 + $0x4c] sm:$0xf]
      %v1434 = vld [vmem:[%s273 + $0x50] sm:$0xf]
      %v1435 = vld [vmem:[%s273 + $0x54] sm:$0xf]
      %v1436 = vld [vmem:[%s273 + $0x58] sm:$0xf]
      %v1437 = vld [vmem:[%s273 + $0x5c] sm:$0xf]
      %v1438 = vld [vmem:[%s273 + $0x60] sm:$0xf]
      %v1439 = vld [vmem:[%s273 + $0x64] sm:$0xf]
      %v1440 = vld [vmem:[%s273 + $0x68] sm:$0xf]
      %v1441 = vld [vmem:[%s273 + $0x6c] sm:$0xf]
      %v1442 = vld [vmem:[%s273 + $0x70] sm:$0xf]
      %v1443 = vld [vmem:[%s273 + $0x74] sm:$0xf]
      %v1444 = vld [vmem:[%s273 + $0x78] sm:$0xf]
      %v1445 = vld [vmem:[%s273 + $0x7c] sm:$0xf]
      %v1446 = vld [vmem:[%s273 + $0x80] sm:$0xf]
      %v1447 = vld [vmem:[%s273 + $0x84] sm:$0xf]
      %v1448 = vld [vmem:[%s273 + $0x88] sm:$0xf]
      %v1449 = vld [vmem:[%s273 + $0x8c] sm:$0xf]
      %v1450 = vld [vmem:[%s273 + $0x90] sm:$0xf]
      %v1451 = vld [vmem:[%s273 + $0x94] sm:$0xf]
      %v1452 = vld [vmem:[%s273 + $0x98] sm:$0x1]
      %s1453 = scalar_lea.vmem %s1, 192
      %v1454 = vld [vmem:[%s1453] sm:$0xf]
      %v1455 = vld [vmem:[%s1453 + $0x4] sm:$0xf]
      %v1456 = vld [vmem:[%s1453 + $0x8] sm:$0xf]
      %v1457 = vld [vmem:[%s1453 + $0xc] sm:$0xf]
      %v1458 = vld [vmem:[%s1453 + $0x10] sm:$0xf]
      %v1459 = vld [vmem:[%s1453 + $0x14] sm:$0xf]
      %v1460 = vld [vmem:[%s1453 + $0x18] sm:$0xf]
      %v1461 = vld [vmem:[%s1453 + $0x1c] sm:$0xf]
      %v1462 = vld [vmem:[%s1453 + $0x20] sm:$0xf]
      %v1463 = vld [vmem:[%s1453 + $0x24] sm:$0xf]
      %v1464 = vld [vmem:[%s1453 + $0x28] sm:$0xf]
      %v1465 = vld [vmem:[%s1453 + $0x2c] sm:$0xf]
      %v1466 = vld [vmem:[%s1453 + $0x30] sm:$0xf]
      %v1467 = vld [vmem:[%s1453 + $0x34] sm:$0xf]
      %v1468 = vld [vmem:[%s1453 + $0x38] sm:$0xf]
      %v1469 = vld [vmem:[%s1453 + $0x3c] sm:$0xf]
      %v1507 = vunpack.c.l.b16 %v1416
      %v1508 = vunpack.c.l.b16 %v1417
      %v1509 = vunpack.c.l.b16 %v1418
      %v1510 = vunpack.c.l.b16 %v1419
      %v1511 = vunpack.c.l.b16 %v1420
      %v1512 = vunpack.c.l.b16 %v1421
      %v1513 = vunpack.c.l.b16 %v1422
      %v1514 = vunpack.c.l.b16 %v1423
      %v1515 = vunpack.c.l.b16 %v1424
      %v1516 = vunpack.c.l.b16 %v1425
      %v1517 = vunpack.c.l.b16 %v1426
      %v1518 = vunpack.c.l.b16 %v1427
      %v1519 = vunpack.c.l.b16 %v1428
      %v1520 = vunpack.c.l.b16 %v1429
      %v1521 = vunpack.c.l.b16 %v1430
      %v1522 = vunpack.c.l.b16 %v1431
      %v1523 = vunpack.c.l.b16 %v1432
      %v1524 = vunpack.c.l.b16 %v1433
      %v1525 = vunpack.c.l.b16 %v1434
      %v1526 = vunpack.c.l.b16 %v1435
      %v1527 = vunpack.c.l.b16 %v1436
      %v1528 = vunpack.c.l.b16 %v1437
      %v1529 = vunpack.c.l.b16 %v1438
      %v1530 = vunpack.c.l.b16 %v1439
      %v1531 = vunpack.c.l.b16 %v1440
      %v1532 = vunpack.c.l.b16 %v1441
      %v1533 = vunpack.c.l.b16 %v1442
      %v1534 = vunpack.c.l.b16 %v1443
      %v1535 = vunpack.c.l.b16 %v1444
      %v1536 = vunpack.c.l.b16 %v1445
      %v1537 = vunpack.c.l.b16 %v1446
      %v1538 = vunpack.c.l.b16 %v1447
      %v1539 = vunpack.c.l.b16 %v1448
      %v1540 = vunpack.c.l.b16 %v1449
      %v1541 = vunpack.c.l.b16 %v1450
      %v1542 = vunpack.c.l.b16 %v1451
      %v1543 = vunpack.c.l.b16 %v1452
      %v1544 = vpack.c.b16 %v1508, %v1507
      %v1545 = vpack.c.b16 %v1510, %v1509
      %v1546 = vpack.c.b16 %v1512, %v1511
      %v1547 = vpack.c.b16 %v1514, %v1513
      %v1548 = vpack.c.b16 %v1516, %v1515
      %v1549 = vpack.c.b16 %v1518, %v1517
      %v1550 = vpack.c.b16 %v1520, %v1519
      %v1551 = vpack.c.b16 %v1522, %v1521
      %v1552 = vpack.c.b16 %v1524, %v1523
      %v1553 = vpack.c.b16 %v1526, %v1525
      %v1554 = vpack.c.b16 %v1528, %v1527
      %v1555 = vpack.c.b16 %v1530, %v1529
      %v1556 = vpack.c.b16 %v1532, %v1531
      %v1557 = vpack.c.b16 %v1534, %v1533
      %v1558 = vpack.c.b16 %v1536, %v1535
      %v1559 = vpack.c.b16 %v1538, %v1537
      %v1560 = vpack.c.b16 %v1540, %v1539
      %v1561 = vpack.c.b16 %v1542, %v1541
      %v1562 = vpack.c.b16 %v1543, %v1543
      %v1563 = vrot.slane %v1544, 1
      %v1564 = vrot.slane %v1545, 1
      %v1565 = vsel %vm1099, %v1563, %v1564
      %v1566 = vrot.slane %v1546, 1
      %v1567 = vsel %vm1099, %v1564, %v1566
      %v1568 = vrot.slane %v1547, 1
      %v1569 = vsel %vm1099, %v1566, %v1568
      %v1570 = vrot.slane %v1548, 1
      %v1571 = vsel %vm1099, %v1568, %v1570
      %v1572 = vrot.slane %v1549, 1
      %v1573 = vsel %vm1099, %v1570, %v1572
      %v1574 = vrot.slane %v1550, 1
      %v1575 = vsel %vm1099, %v1572, %v1574
      %v1576 = vrot.slane %v1551, 1
      %v1577 = vsel %vm1099, %v1574, %v1576
      %v1578 = vrot.slane %v1552, 1
      %v1579 = vsel %vm1099, %v1576, %v1578
      %v1580 = vrot.slane %v1553, 1
      %v1581 = vsel %vm1099, %v1578, %v1580
      %v1582 = vrot.slane %v1554, 1
      %v1583 = vsel %vm1099, %v1580, %v1582
      %v1584 = vrot.slane %v1555, 1
      %v1585 = vsel %vm1099, %v1582, %v1584
      %v1586 = vrot.slane %v1556, 1
      %v1587 = vsel %vm1099, %v1584, %v1586
      %v1588 = vrot.slane %v1557, 1
      %v1589 = vsel %vm1099, %v1586, %v1588
      %v1590 = vrot.slane %v1558, 1
      %v1591 = vsel %vm1099, %v1588, %v1590
      %v1592 = vrot.slane %v1559, 1
      %v1593 = vsel %vm1099, %v1590, %v1592
      %v1594 = vrot.slane %v1560, 1
      %v1595 = vsel %vm1099, %v1592, %v1594
      %v1596 = vrot.slane %v1561, 1
      %v1597 = vsel %vm1099, %v1594, %v1596
      %v1598 = vrot.slane %v1562, 1
      %v1599 = vsel %vm1099, %v1596, %v1598
      %v1634 = vunpack.c.l.b16 %v1454
      %v1635 = vunpack.c.l.b16 %v1455
      %v1636 = vunpack.c.l.b16 %v1456
      %v1637 = vunpack.c.l.b16 %v1457
      %v1638 = vunpack.c.l.b16 %v1458
      %v1639 = vunpack.c.l.b16 %v1459
      %v1640 = vunpack.c.l.b16 %v1460
      %v1641 = vunpack.c.l.b16 %v1461
      %v1642 = vunpack.c.l.b16 %v1462
      %v1643 = vunpack.c.l.b16 %v1463
      %v1644 = vunpack.c.l.b16 %v1464
      %v1645 = vunpack.c.l.b16 %v1465
      %v1646 = vunpack.c.l.b16 %v1466
      %v1647 = vunpack.c.l.b16 %v1467
      %v1648 = vunpack.c.l.b16 %v1468
      %v1649 = vunpack.c.l.b16 %v1469
      %v1650 = vpack.c.b16 %v1635, %v1634
      %v1651 = vpack.c.b16 %v1637, %v1636
      %v1652 = vpack.c.b16 %v1639, %v1638
      %v1653 = vpack.c.b16 %v1641, %v1640
      %v1654 = vpack.c.b16 %v1643, %v1642
      %v1655 = vpack.c.b16 %v1645, %v1644
      %v1656 = vpack.c.b16 %v1647, %v1646
      %v1657 = vpack.c.b16 %v1649, %v1648
      %1666 = vmatprep.subr.bf16.mxu0 0
      %1667 = vmatpush1.bf16.msra.mxu0 %v1657
      %1668 = vmatprep.subr.bf16.mxu0 0
      %1669 = vmatpush1.bf16.msra.mxu0 %v1656
      %1670 = vmatprep.subr.bf16.mxu0 0
      %1671 = vmatpush1.bf16.msra.mxu0 %v1655
      %1672 = vmatprep.subr.bf16.mxu0 0
      %1673 = vmatpush1.bf16.msra.mxu0 %v1654
      %1674 = vmatprep.subr.bf16.mxu0 0
      %1675 = vmatpush1.bf16.msra.mxu0 %v1653
      %1676 = vmatprep.subr.bf16.mxu0 0
      %1677 = vmatpush1.bf16.msra.mxu0 %v1652
      %1678 = vmatprep.subr.bf16.mxu0 0
      %1679 = vmatpush1.bf16.msra.mxu0 %v1651
      %1680 = vmatprep.subr.bf16.mxu0 0
      %1681 = vmatpush1.bf16.msra.mxu0 %v1650
      %1682 = vmatprep.subr.bf16.mxu0 0
      %1683 = vmatpush2.bf16.msra.mxu0 0
      %1684 = vmatprep.subr.bf16.mxu0 0
      %1685 = vmatpush2.bf16.msra.mxu0 0
      %1686 = vmatprep.subr.bf16.mxu0 0
      %1687 = vmatpush2.bf16.msra.mxu0 0
      %1688 = vmatprep.subr.bf16.mxu0 0
      %1689 = vmatpush2.bf16.msra.mxu0 0
      %1690 = vmatprep.subr.bf16.mxu0 0
      %1691 = vmatpush2.bf16.msra.mxu0 0
      %1692 = vmatprep.subr.bf16.mxu0 0
      %1693 = vmatpush2.bf16.msra.mxu0 0
      %1694 = vmatprep.subr.bf16.mxu0 0
      %1695 = vmatpush2.bf16.msra.mxu0 0
      %1696 = vmatprep.subr.bf16.mxu0 0
      %1697 = vmatpush2.bf16.msra.mxu0 0
      %1698 = vmatprep.mubr.bf16.mxu0 0
      %1699 = vmatmul.mubr.bf16.gmra.mxu0 %v1565
      %v1700 = vpop.f32.mrf.mxu0
      %v1701 = vadd.f32 0.0, %v1700
      %v1702 = vpop.f32.mrf.mxu0
      %v1703 = vpop.f32.mrf.mxu0
      %v1704 = vadd.f32 0.0, %v1703
      %v1705 = vpop.f32.mrf.mxu0
      %1706 = vmatprep.mubr.bf16.mxu0 0
      %1707 = vmatmul.mubr.bf16.gmra.mxu0 %v1567
      %v1708 = vpop.f32.mrf.mxu0
      %v1709 = vadd.f32 0.0, %v1708
      %v1710 = vpop.f32.mrf.mxu0
      %v1711 = vpop.f32.mrf.mxu0
      %v1712 = vadd.f32 0.0, %v1711
      %v1713 = vpop.f32.mrf.mxu0
      %1714 = vmatprep.mubr.bf16.mxu0 0
      %1715 = vmatmul.mubr.bf16.gmra.mxu0 %v1569
      %v1716 = vpop.f32.mrf.mxu0
      %v1717 = vadd.f32 0.0, %v1716
      %v1718 = vpop.f32.mrf.mxu0
      %v1719 = vpop.f32.mrf.mxu0
      %v1720 = vadd.f32 0.0, %v1719
      %v1721 = vpop.f32.mrf.mxu0
      %1722 = vmatprep.mubr.bf16.mxu0 0
      %1723 = vmatmul.mubr.bf16.gmra.mxu0 %v1571
      %v1724 = vpop.f32.mrf.mxu0
      %v1725 = vadd.f32 0.0, %v1724
      %v1726 = vpop.f32.mrf.mxu0
      %v1727 = vpop.f32.mrf.mxu0
      %v1728 = vadd.f32 0.0, %v1727
      %v1729 = vpop.f32.mrf.mxu0
      %1730 = vmatprep.mubr.bf16.mxu0 0
      %1731 = vmatmul.mubr.bf16.gmra.mxu0 %v1573
      %v1732 = vpop.f32.mrf.mxu0
      %v1733 = vadd.f32 0.0, %v1732
      %v1734 = vpop.f32.mrf.mxu0
      %v1735 = vpop.f32.mrf.mxu0
      %v1736 = vadd.f32 0.0, %v1735
      %v1737 = vpop.f32.mrf.mxu0
      %1738 = vmatprep.mubr.bf16.mxu0 0
      %1739 = vmatmul.mubr.bf16.gmra.mxu0 %v1575
      %v1740 = vpop.f32.mrf.mxu0
      %v1741 = vadd.f32 0.0, %v1740
      %v1742 = vpop.f32.mrf.mxu0
      %v1743 = vpop.f32.mrf.mxu0
      %v1744 = vadd.f32 0.0, %v1743
      %v1745 = vpop.f32.mrf.mxu0
      %1746 = vmatprep.mubr.bf16.mxu0 0
      %1747 = vmatmul.mubr.bf16.gmra.mxu0 %v1577
      %v1748 = vpop.f32.mrf.mxu0
      %v1749 = vadd.f32 0.0, %v1748
      %v1750 = vpop.f32.mrf.mxu0
      %v1751 = vpop.f32.mrf.mxu0
      %v1752 = vadd.f32 0.0, %v1751
      %v1753 = vpop.f32.mrf.mxu0
      %1754 = vmatprep.mubr.bf16.mxu0 0
      %1755 = vmatmul.mubr.bf16.gmra.mxu0 %v1579
      %v1756 = vpop.f32.mrf.mxu0
      %v1757 = vadd.f32 0.0, %v1756
      %v1758 = vpop.f32.mrf.mxu0
      %v1759 = vpop.f32.mrf.mxu0
      %v1760 = vadd.f32 0.0, %v1759
      %v1761 = vpop.f32.mrf.mxu0
      %1762 = vmatprep.mubr.bf16.mxu0 0
      %1763 = vmatmul.mubr.bf16.gmra.mxu0 %v1581
      %v1764 = vpop.f32.mrf.mxu0
      %v1765 = vadd.f32 0.0, %v1764
      %v1766 = vpop.f32.mrf.mxu0
      %v1767 = vpop.f32.mrf.mxu0
      %v1768 = vadd.f32 0.0, %v1767
      %v1769 = vpop.f32.mrf.mxu0
      %1770 = vmatprep.mubr.bf16.mxu0 0
      %1771 = vmatmul.mubr.bf16.gmra.mxu0 %v1583
      %v1772 = vpop.f32.mrf.mxu0
      %v1773 = vadd.f32 0.0, %v1772
      %v1774 = vpop.f32.mrf.mxu0
      %v1775 = vpop.f32.mrf.mxu0
      %v1776 = vadd.f32 0.0, %v1775
      %v1777 = vpop.f32.mrf.mxu0
      %1778 = vmatprep.mubr.bf16.mxu0 0
      %1779 = vmatmul.mubr.bf16.gmra.mxu0 %v1585
      %v1780 = vpop.f32.mrf.mxu0
      %v1781 = vadd.f32 0.0, %v1780
      %v1782 = vpop.f32.mrf.mxu0
      %v1783 = vpop.f32.mrf.mxu0
      %v1784 = vadd.f32 0.0, %v1783
      %v1785 = vpop.f32.mrf.mxu0
      %1786 = vmatprep.mubr.bf16.mxu0 0
      %1787 = vmatmul.mubr.bf16.gmra.mxu0 %v1587
      %v1788 = vpop.f32.mrf.mxu0
      %v1789 = vadd.f32 0.0, %v1788
      %v1790 = vpop.f32.mrf.mxu0
      %v1791 = vpop.f32.mrf.mxu0
      %v1792 = vadd.f32 0.0, %v1791
      %v1793 = vpop.f32.mrf.mxu0
      %1794 = vmatprep.mubr.bf16.mxu0 0
      %1795 = vmatmul.mubr.bf16.gmra.mxu0 %v1589
      %v1796 = vpop.f32.mrf.mxu0
      %v1797 = vadd.f32 0.0, %v1796
      %v1798 = vpop.f32.mrf.mxu0
      %v1799 = vpop.f32.mrf.mxu0
      %v1800 = vadd.f32 0.0, %v1799
      %v1801 = vpop.f32.mrf.mxu0
      %1802 = vmatprep.mubr.bf16.mxu0 0
      %1803 = vmatmul.mubr.bf16.gmra.mxu0 %v1591
      %v1804 = vpop.f32.mrf.mxu0
      %v1805 = vadd.f32 0.0, %v1804
      %v1806 = vpop.f32.mrf.mxu0
      %v1807 = vpop.f32.mrf.mxu0
      %v1808 = vadd.f32 0.0, %v1807
      %v1809 = vpop.f32.mrf.mxu0
      %1810 = vmatprep.mubr.bf16.mxu0 0
      %1811 = vmatmul.mubr.bf16.gmra.mxu0 %v1593
      %v1812 = vpop.f32.mrf.mxu0
      %v1813 = vadd.f32 0.0, %v1812
      %v1814 = vpop.f32.mrf.mxu0
      %v1815 = vpop.f32.mrf.mxu0
      %v1816 = vadd.f32 0.0, %v1815
      %v1817 = vpop.f32.mrf.mxu0
      %1818 = vmatprep.mubr.bf16.mxu0 0
      %1819 = vmatmul.mubr.bf16.gmra.mxu0 %v1595
      %v1820 = vpop.f32.mrf.mxu0
      %v1821 = vadd.f32 0.0, %v1820
      %v1822 = vpop.f32.mrf.mxu0
      %v1823 = vpop.f32.mrf.mxu0
      %v1824 = vadd.f32 0.0, %v1823
      %v1825 = vpop.f32.mrf.mxu0
      %1826 = vmatprep.mubr.bf16.mxu0 0
      %1827 = vmatmul.mubr.bf16.gmra.mxu0 %v1597
      %v1828 = vpop.f32.mrf.mxu0
      %v1829 = vadd.f32 0.0, %v1828
      %v1830 = vpop.f32.mrf.mxu0
      %v1831 = vpop.f32.mrf.mxu0
      %v1832 = vadd.f32 0.0, %v1831
      %v1833 = vpop.f32.mrf.mxu0
      %1834 = vmatprep.mubr.bf16.mxu0 0
      %1835 = vmatmul.mubr.bf16.gmra.mxu0 %v1599
      %v1836 = vpop.f32.mrf.mxu0
      %v1837 = vadd.f32 0.0, %v1836
      %v1838 = vpop.f32.mrf.mxu0
      %v1839 = vpop.f32.mrf.mxu0
      %v1840 = vadd.f32 0.0, %v1839
      %v1841 = vpop.f32.mrf.mxu0
      %1842 = vdwg.mxu0
      %v1843 = vadd.f32 %v1380, %v1701
      %v1844 = vadd.f32 %v1381, %v1704
      %v1845 = vadd.f32 %v1382, %v1709
      %v1846 = vadd.f32 %v1383, %v1712
      %v1847 = vadd.f32 %v1384, %v1717
      %v1848 = vadd.f32 %v1385, %v1720
      %v1849 = vadd.f32 %v1386, %v1725
      %v1850 = vadd.f32 %v1387, %v1728
      %v1851 = vadd.f32 %v1388, %v1733
      %v1852 = vadd.f32 %v1389, %v1736
      %v1853 = vadd.f32 %v1390, %v1741
      %v1854 = vadd.f32 %v1391, %v1744
      %v1855 = vadd.f32 %v1392, %v1749
      %v1856 = vadd.f32 %v1393, %v1752
      %v1857 = vadd.f32 %v1394, %v1757
      %v1858 = vadd.f32 %v1395, %v1760
      %v1859 = vadd.f32 %v1396, %v1765
      %v1860 = vadd.f32 %v1397, %v1768
      %v1861 = vadd.f32 %v1398, %v1773
      %v1862 = vadd.f32 %v1399, %v1776
      %v1863 = vadd.f32 %v1400, %v1781
      %v1864 = vadd.f32 %v1401, %v1784
      %v1865 = vadd.f32 %v1402, %v1789
      %v1866 = vadd.f32 %v1403, %v1792
      %v1867 = vadd.f32 %v1404, %v1797
      %v1868 = vadd.f32 %v1405, %v1800
      %v1869 = vadd.f32 %v1406, %v1805
      %v1870 = vadd.f32 %v1407, %v1808
      %v1871 = vadd.f32 %v1408, %v1813
      %v1872 = vadd.f32 %v1409, %v1816
      %v1873 = vadd.f32 %v1410, %v1821
      %v1874 = vadd.f32 %v1411, %v1824
      %v1875 = vadd.f32 %v1412, %v1829
      %v1876 = vadd.f32 %v1413, %v1832
      %v1877 = vadd.f32 %v1414, %v1837
      %v1878 = vadd.f32 %v1415, %v1840
      %v1879 = vld [vmem:[%s273 + $0x98] sm:$0x3]
      %s1880 = scalar_lea.vmem %s1, 256
      %v1881 = vld [vmem:[%s1880] sm:$0xf]
      %v1882 = vld [vmem:[%s1880 + $0x4] sm:$0xf]
      %v1883 = vld [vmem:[%s1880 + $0x8] sm:$0xf]
      %v1884 = vld [vmem:[%s1880 + $0xc] sm:$0xf]
      %v1885 = vld [vmem:[%s1880 + $0x10] sm:$0xf]
      %v1886 = vld [vmem:[%s1880 + $0x14] sm:$0xf]
      %v1887 = vld [vmem:[%s1880 + $0x18] sm:$0xf]
      %v1888 = vld [vmem:[%s1880 + $0x1c] sm:$0xf]
      %v1889 = vld [vmem:[%s1880 + $0x20] sm:$0xf]
      %v1890 = vld [vmem:[%s1880 + $0x24] sm:$0xf]
      %v1891 = vld [vmem:[%s1880 + $0x28] sm:$0xf]
      %v1892 = vld [vmem:[%s1880 + $0x2c] sm:$0xf]
      %v1893 = vld [vmem:[%s1880 + $0x30] sm:$0xf]
      %v1894 = vld [vmem:[%s1880 + $0x34] sm:$0xf]
      %v1895 = vld [vmem:[%s1880 + $0x38] sm:$0xf]
      %v1896 = vld [vmem:[%s1880 + $0x3c] sm:$0xf]
      %v1898 = vunpack.c.l.b16 %v1879
      %v1899 = vpack.c.b16 %v1898, %v1898
      %vm1900 = vsmask.f32 6400
      %v1902 = vshrl.u32 %v1544, 16
      %v1904 = vrot.slane %v1902, 1
      %v1905 = vshll.u32 %v1544, 16
      %v1907 = vrot.slane %v1905, 2
      %v1908 = vor.u32 %v1904, %v1907
      %v1910 = vshrl.u32 %v1545, 16
      %v1912 = vrot.slane %v1910, 1
      %v1913 = vshll.u32 %v1545, 16
      %v1915 = vrot.slane %v1913, 2
      %v1916 = vor.u32 %v1912, %v1915
      %v1917 = vsel %vm1900, %v1908, %v1916
      %v1919 = vshrl.u32 %v1546, 16
      %v1921 = vrot.slane %v1919, 1
      %v1922 = vshll.u32 %v1546, 16
      %v1924 = vrot.slane %v1922, 2
      %v1925 = vor.u32 %v1921, %v1924
      %v1926 = vsel %vm1900, %v1916, %v1925
      %v1928 = vshrl.u32 %v1547, 16
      %v1930 = vrot.slane %v1928, 1
      %v1931 = vshll.u32 %v1547, 16
      %v1933 = vrot.slane %v1931, 2
      %v1934 = vor.u32 %v1930, %v1933
      %v1935 = vsel %vm1900, %v1925, %v1934
      %v1937 = vshrl.u32 %v1548, 16
      %v1939 = vrot.slane %v1937, 1
      %v1940 = vshll.u32 %v1548, 16
      %v1942 = vrot.slane %v1940, 2
      %v1943 = vor.u32 %v1939, %v1942
      %v1944 = vsel %vm1900, %v1934, %v1943
      %v1946 = vshrl.u32 %v1549, 16
      %v1948 = vrot.slane %v1946, 1
      %v1949 = vshll.u32 %v1549, 16
      %v1951 = vrot.slane %v1949, 2
      %v1952 = vor.u32 %v1948, %v1951
      %v1953 = vsel %vm1900, %v1943, %v1952
      %v1955 = vshrl.u32 %v1550, 16
      %v1957 = vrot.slane %v1955, 1
      %v1958 = vshll.u32 %v1550, 16
      %v1960 = vrot.slane %v1958, 2
      %v1961 = vor.u32 %v1957, %v1960
      %v1962 = vsel %vm1900, %v1952, %v1961
      %v1964 = vshrl.u32 %v1551, 16
      %v1966 = vrot.slane %v1964, 1
      %v1967 = vshll.u32 %v1551, 16
      %v1969 = vrot.slane %v1967, 2
      %v1970 = vor.u32 %v1966, %v1969
      %v1971 = vsel %vm1900, %v1961, %v1970
      %v1973 = vshrl.u32 %v1552, 16
      %v1975 = vrot.slane %v1973, 1
      %v1976 = vshll.u32 %v1552, 16
      %v1978 = vrot.slane %v1976, 2
      %v1979 = vor.u32 %v1975, %v1978
      %v1980 = vsel %vm1900, %v1970, %v1979
      %v1982 = vshrl.u32 %v1553, 16
      %v1984 = vrot.slane %v1982, 1
      %v1985 = vshll.u32 %v1553, 16
      %v1987 = vrot.slane %v1985, 2
      %v1988 = vor.u32 %v1984, %v1987
      %v1989 = vsel %vm1900, %v1979, %v1988
      %v1991 = vshrl.u32 %v1554, 16
      %v1993 = vrot.slane %v1991, 1
      %v1994 = vshll.u32 %v1554, 16
      %v1996 = vrot.slane %v1994, 2
      %v1997 = vor.u32 %v1993, %v1996
      %v1998 = vsel %vm1900, %v1988, %v1997
      %v2000 = vshrl.u32 %v1555, 16
      %v2002 = vrot.slane %v2000, 1
      %v2003 = vshll.u32 %v1555, 16
      %v2005 = vrot.slane %v2003, 2
      %v2006 = vor.u32 %v2002, %v2005
      %v2007 = vsel %vm1900, %v1997, %v2006
      %v2009 = vshrl.u32 %v1556, 16
      %v2011 = vrot.slane %v2009, 1
      %v2012 = vshll.u32 %v1556, 16
      %v2014 = vrot.slane %v2012, 2
      %v2015 = vor.u32 %v2011, %v2014
      %v2016 = vsel %vm1900, %v2006, %v2015
      %v2018 = vshrl.u32 %v1557, 16
      %v2020 = vrot.slane %v2018, 1
      %v2021 = vshll.u32 %v1557, 16
      %v2023 = vrot.slane %v2021, 2
      %v2024 = vor.u32 %v2020, %v2023
      %v2025 = vsel %vm1900, %v2015, %v2024
      %v2027 = vshrl.u32 %v1558, 16
      %v2029 = vrot.slane %v2027, 1
      %v2030 = vshll.u32 %v1558, 16
      %v2032 = vrot.slane %v2030, 2
      %v2033 = vor.u32 %v2029, %v2032
      %v2034 = vsel %vm1900, %v2024, %v2033
      %v2036 = vshrl.u32 %v1559, 16
      %v2038 = vrot.slane %v2036, 1
      %v2039 = vshll.u32 %v1559, 16
      %v2041 = vrot.slane %v2039, 2
      %v2042 = vor.u32 %v2038, %v2041
      %v2043 = vsel %vm1900, %v2033, %v2042
      %v2045 = vshrl.u32 %v1560, 16
      %v2047 = vrot.slane %v2045, 1
      %v2048 = vshll.u32 %v1560, 16
      %v2050 = vrot.slane %v2048, 2
      %v2051 = vor.u32 %v2047, %v2050
      %v2052 = vsel %vm1900, %v2042, %v2051
      %v2054 = vshrl.u32 %v1561, 16
      %v2056 = vrot.slane %v2054, 1
      %v2057 = vshll.u32 %v1561, 16
      %v2059 = vrot.slane %v2057, 2
      %v2060 = vor.u32 %v2056, %v2059
      %v2061 = vsel %vm1900, %v2051, %v2060
      %v2063 = vshrl.u32 %v1899, 16
      %v2065 = vrot.slane %v2063, 1
      %v2066 = vshll.u32 %v1899, 16
      %v2068 = vrot.slane %v2066, 2
      %v2069 = vor.u32 %v2065, %v2068
      %v2070 = vsel %vm1900, %v2060, %v2069
      %v2105 = vunpack.c.l.b16 %v1881
      %v2106 = vunpack.c.l.b16 %v1882
      %v2107 = vunpack.c.l.b16 %v1883
      %v2108 = vunpack.c.l.b16 %v1884
      %v2109 = vunpack.c.l.b16 %v1885
      %v2110 = vunpack.c.l.b16 %v1886
      %v2111 = vunpack.c.l.b16 %v1887
      %v2112 = vunpack.c.l.b16 %v1888
      %v2113 = vunpack.c.l.b16 %v1889
      %v2114 = vunpack.c.l.b16 %v1890
      %v2115 = vunpack.c.l.b16 %v1891
      %v2116 = vunpack.c.l.b16 %v1892
      %v2117 = vunpack.c.l.b16 %v1893
      %v2118 = vunpack.c.l.b16 %v1894
      %v2119 = vunpack.c.l.b16 %v1895
      %v2120 = vunpack.c.l.b16 %v1896
      %v2121 = vpack.c.b16 %v2106, %v2105
      %v2122 = vpack.c.b16 %v2108, %v2107
      %v2123 = vpack.c.b16 %v2110, %v2109
      %v2124 = vpack.c.b16 %v2112, %v2111
      %v2125 = vpack.c.b16 %v2114, %v2113
      %v2126 = vpack.c.b16 %v2116, %v2115
      %v2127 = vpack.c.b16 %v2118, %v2117
      %v2128 = vpack.c.b16 %v2120, %v2119
      %2137 = vmatprep.subr.bf16.mxu0 0
      %2138 = vmatpush1.bf16.msra.mxu0 %v2128
      %2139 = vmatprep.subr.bf16.mxu0 0
      %2140 = vmatpush1.bf16.msra.mxu0 %v2127
      %2141 = vmatprep.subr.bf16.mxu0 0
      %2142 = vmatpush1.bf16.msra.mxu0 %v2126
      %2143 = vmatprep.subr.bf16.mxu0 0
      %2144 = vmatpush1.bf16.msra.mxu0 %v2125
      %2145 = vmatprep.subr.bf16.mxu0 0
      %2146 = vmatpush1.bf16.msra.mxu0 %v2124
      %2147 = vmatprep.subr.bf16.mxu0 0
      %2148 = vmatpush1.bf16.msra.mxu0 %v2123
      %2149 = vmatprep.subr.bf16.mxu0 0
      %2150 = vmatpush1.bf16.msra.mxu0 %v2122
      %2151 = vmatprep.subr.bf16.mxu0 0
      %2152 = vmatpush1.bf16.msra.mxu0 %v2121
      %2153 = vmatprep.subr.bf16.mxu0 0
      %2154 = vmatpush2.bf16.msra.mxu0 0
      %2155 = vmatprep.subr.bf16.mxu0 0
      %2156 = vmatpush2.bf16.msra.mxu0 0
      %2157 = vmatprep.subr.bf16.mxu0 0
      %2158 = vmatpush2.bf16.msra.mxu0 0
      %2159 = vmatprep.subr.bf16.mxu0 0
      %2160 = vmatpush2.bf16.msra.mxu0 0
      %2161 = vmatprep.subr.bf16.mxu0 0
      %2162 = vmatpush2.bf16.msra.mxu0 0
      %2163 = vmatprep.subr.bf16.mxu0 0
      %2164 = vmatpush2.bf16.msra.mxu0 0
      %2165 = vmatprep.subr.bf16.mxu0 0
      %2166 = vmatpush2.bf16.msra.mxu0 0
      %2167 = vmatprep.subr.bf16.mxu0 0
      %2168 = vmatpush2.bf16.msra.mxu0 0
      %2169 = vmatprep.mubr.bf16.mxu0 0
      %2170 = vmatmul.mubr.bf16.gmra.mxu0 %v1917
      %v2171 = vpop.f32.mrf.mxu0
      %v2172 = vadd.f32 0.0, %v2171
      %v2173 = vpop.f32.mrf.mxu0
      %v2174 = vpop.f32.mrf.mxu0
      %v2175 = vadd.f32 0.0, %v2174
      %v2176 = vpop.f32.mrf.mxu0
      %2177 = vmatprep.mubr.bf16.mxu0 0
      %2178 = vmatmul.mubr.bf16.gmra.mxu0 %v1926
      %v2179 = vpop.f32.mrf.mxu0
      %v2180 = vadd.f32 0.0, %v2179
      %v2181 = vpop.f32.mrf.mxu0
      %v2182 = vpop.f32.mrf.mxu0
      %v2183 = vadd.f32 0.0, %v2182
      %v2184 = vpop.f32.mrf.mxu0
      %2185 = vmatprep.mubr.bf16.mxu0 0
      %2186 = vmatmul.mubr.bf16.gmra.mxu0 %v1935
      %v2187 = vpop.f32.mrf.mxu0
      %v2188 = vadd.f32 0.0, %v2187
      %v2189 = vpop.f32.mrf.mxu0
      %v2190 = vpop.f32.mrf.mxu0
      %v2191 = vadd.f32 0.0, %v2190
      %v2192 = vpop.f32.mrf.mxu0
      %2193 = vmatprep.mubr.bf16.mxu0 0
      %2194 = vmatmul.mubr.bf16.gmra.mxu0 %v1944
      %v2195 = vpop.f32.mrf.mxu0
      %v2196 = vadd.f32 0.0, %v2195
      %v2197 = vpop.f32.mrf.mxu0
      %v2198 = vpop.f32.mrf.mxu0
      %v2199 = vadd.f32 0.0, %v2198
      %v2200 = vpop.f32.mrf.mxu0
      %2201 = vmatprep.mubr.bf16.mxu0 0
      %2202 = vmatmul.mubr.bf16.gmra.mxu0 %v1953
      %v2203 = vpop.f32.mrf.mxu0
      %v2204 = vadd.f32 0.0, %v2203
      %v2205 = vpop.f32.mrf.mxu0
      %v2206 = vpop.f32.mrf.mxu0
      %v2207 = vadd.f32 0.0, %v2206
      %v2208 = vpop.f32.mrf.mxu0
      %2209 = vmatprep.mubr.bf16.mxu0 0
      %2210 = vmatmul.mubr.bf16.gmra.mxu0 %v1962
      %v2211 = vpop.f32.mrf.mxu0
      %v2212 = vadd.f32 0.0, %v2211
      %v2213 = vpop.f32.mrf.mxu0
      %v2214 = vpop.f32.mrf.mxu0
      %v2215 = vadd.f32 0.0, %v2214
      %v2216 = vpop.f32.mrf.mxu0
      %2217 = vmatprep.mubr.bf16.mxu0 0
      %2218 = vmatmul.mubr.bf16.gmra.mxu0 %v1971
      %v2219 = vpop.f32.mrf.mxu0
      %v2220 = vadd.f32 0.0, %v2219
      %v2221 = vpop.f32.mrf.mxu0
      %v2222 = vpop.f32.mrf.mxu0
      %v2223 = vadd.f32 0.0, %v2222
      %v2224 = vpop.f32.mrf.mxu0
      %2225 = vmatprep.mubr.bf16.mxu0 0
      %2226 = vmatmul.mubr.bf16.gmra.mxu0 %v1980
      %v2227 = vpop.f32.mrf.mxu0
      %v2228 = vadd.f32 0.0, %v2227
      %v2229 = vpop.f32.mrf.mxu0
      %v2230 = vpop.f32.mrf.mxu0
      %v2231 = vadd.f32 0.0, %v2230
      %v2232 = vpop.f32.mrf.mxu0
      %2233 = vmatprep.mubr.bf16.mxu0 0
      %2234 = vmatmul.mubr.bf16.gmra.mxu0 %v1989
      %v2235 = vpop.f32.mrf.mxu0
      %v2236 = vadd.f32 0.0, %v2235
      %v2237 = vpop.f32.mrf.mxu0
      %v2238 = vpop.f32.mrf.mxu0
      %v2239 = vadd.f32 0.0, %v2238
      %v2240 = vpop.f32.mrf.mxu0
      %2241 = vmatprep.mubr.bf16.mxu0 0
      %2242 = vmatmul.mubr.bf16.gmra.mxu0 %v1998
      %v2243 = vpop.f32.mrf.mxu0
      %v2244 = vadd.f32 0.0, %v2243
      %v2245 = vpop.f32.mrf.mxu0
      %v2246 = vpop.f32.mrf.mxu0
      %v2247 = vadd.f32 0.0, %v2246
      %v2248 = vpop.f32.mrf.mxu0
      %2249 = vmatprep.mubr.bf16.mxu0 0
      %2250 = vmatmul.mubr.bf16.gmra.mxu0 %v2007
      %v2251 = vpop.f32.mrf.mxu0
      %v2252 = vadd.f32 0.0, %v2251
      %v2253 = vpop.f32.mrf.mxu0
      %v2254 = vpop.f32.mrf.mxu0
      %v2255 = vadd.f32 0.0, %v2254
      %v2256 = vpop.f32.mrf.mxu0
      %2257 = vmatprep.mubr.bf16.mxu0 0
      %2258 = vmatmul.mubr.bf16.gmra.mxu0 %v2016
      %v2259 = vpop.f32.mrf.mxu0
      %v2260 = vadd.f32 0.0, %v2259
      %v2261 = vpop.f32.mrf.mxu0
      %v2262 = vpop.f32.mrf.mxu0
      %v2263 = vadd.f32 0.0, %v2262
      %v2264 = vpop.f32.mrf.mxu0
      %2265 = vmatprep.mubr.bf16.mxu0 0
      %2266 = vmatmul.mubr.bf16.gmra.mxu0 %v2025
      %v2267 = vpop.f32.mrf.mxu0
      %v2268 = vadd.f32 0.0, %v2267
      %v2269 = vpop.f32.mrf.mxu0
      %v2270 = vpop.f32.mrf.mxu0
      %v2271 = vadd.f32 0.0, %v2270
      %v2272 = vpop.f32.mrf.mxu0
      %2273 = vmatprep.mubr.bf16.mxu0 0
      %2274 = vmatmul.mubr.bf16.gmra.mxu0 %v2034
      %v2275 = vpop.f32.mrf.mxu0
      %v2276 = vadd.f32 0.0, %v2275
      %v2277 = vpop.f32.mrf.mxu0
      %v2278 = vpop.f32.mrf.mxu0
      %v2279 = vadd.f32 0.0, %v2278
      %v2280 = vpop.f32.mrf.mxu0
      %2281 = vmatprep.mubr.bf16.mxu0 0
      %2282 = vmatmul.mubr.bf16.gmra.mxu0 %v2043
      %v2283 = vpop.f32.mrf.mxu0
      %v2284 = vadd.f32 0.0, %v2283
      %v2285 = vpop.f32.mrf.mxu0
      %v2286 = vpop.f32.mrf.mxu0
      %v2287 = vadd.f32 0.0, %v2286
      %v2288 = vpop.f32.mrf.mxu0
      %2289 = vmatprep.mubr.bf16.mxu0 0
      %2290 = vmatmul.mubr.bf16.gmra.mxu0 %v2052
      %v2291 = vpop.f32.mrf.mxu0
      %v2292 = vadd.f32 0.0, %v2291
      %v2293 = vpop.f32.mrf.mxu0
      %v2294 = vpop.f32.mrf.mxu0
      %v2295 = vadd.f32 0.0, %v2294
      %v2296 = vpop.f32.mrf.mxu0
      %2297 = vmatprep.mubr.bf16.mxu0 0
      %2298 = vmatmul.mubr.bf16.gmra.mxu0 %v2061
      %v2299 = vpop.f32.mrf.mxu0
      %v2300 = vadd.f32 0.0, %v2299
      %v2301 = vpop.f32.mrf.mxu0
      %v2302 = vpop.f32.mrf.mxu0
      %v2303 = vadd.f32 0.0, %v2302
      %v2304 = vpop.f32.mrf.mxu0
      %2305 = vmatprep.mubr.bf16.mxu0 0
      %2306 = vmatmul.mubr.bf16.gmra.mxu0 %v2070
      %v2307 = vpop.f32.mrf.mxu0
      %v2308 = vadd.f32 0.0, %v2307
      %v2309 = vpop.f32.mrf.mxu0
      %v2310 = vpop.f32.mrf.mxu0
      %v2311 = vadd.f32 0.0, %v2310
      %v2312 = vpop.f32.mrf.mxu0
      %2313 = vdwg.mxu0
      %v2314 = vadd.f32 %v1843, %v2172
      %v2315 = vadd.f32 %v1844, %v2175
      %v2316 = vadd.f32 %v1845, %v2180
      %v2317 = vadd.f32 %v1846, %v2183
      %v2318 = vadd.f32 %v1847, %v2188
      %v2319 = vadd.f32 %v1848, %v2191
      %v2320 = vadd.f32 %v1849, %v2196
      %v2321 = vadd.f32 %v1850, %v2199
      %v2322 = vadd.f32 %v1851, %v2204
      %v2323 = vadd.f32 %v1852, %v2207
      %v2324 = vadd.f32 %v1853, %v2212
      %v2325 = vadd.f32 %v1854, %v2215
      %v2326 = vadd.f32 %v1855, %v2220
      %v2327 = vadd.f32 %v1856, %v2223
      %v2328 = vadd.f32 %v1857, %v2228
      %v2329 = vadd.f32 %v1858, %v2231
      %v2330 = vadd.f32 %v1859, %v2236
      %v2331 = vadd.f32 %v1860, %v2239
      %v2332 = vadd.f32 %v1861, %v2244
      %v2333 = vadd.f32 %v1862, %v2247
      %v2334 = vadd.f32 %v1863, %v2252
      %v2335 = vadd.f32 %v1864, %v2255
      %v2336 = vadd.f32 %v1865, %v2260
      %v2337 = vadd.f32 %v1866, %v2263
      %v2338 = vadd.f32 %v1867, %v2268
      %v2339 = vadd.f32 %v1868, %v2271
      %v2340 = vadd.f32 %v1869, %v2276
      %v2341 = vadd.f32 %v1870, %v2279
      %v2342 = vadd.f32 %v1871, %v2284
      %v2343 = vadd.f32 %v1872, %v2287
      %v2344 = vadd.f32 %v1873, %v2292
      %v2345 = vadd.f32 %v1874, %v2295
      %v2346 = vadd.f32 %v1875, %v2300
      %v2347 = vadd.f32 %v1876, %v2303
      %v2348 = vadd.f32 %v1877, %v2308
      %v2349 = vadd.f32 %v1878, %v2311
      %v2350 = vld [vmem:[%s273 + $0x8] sm:$0xc]
      %s2351 = scalar_lea.vmem %s1, 320
      %v2352 = vld [vmem:[%s2351] sm:$0xf]
      %v2353 = vld [vmem:[%s2351 + $0x4] sm:$0xf]
      %v2354 = vld [vmem:[%s2351 + $0x8] sm:$0xf]
      %v2355 = vld [vmem:[%s2351 + $0xc] sm:$0xf]
      %v2356 = vld [vmem:[%s2351 + $0x10] sm:$0xf]
      %v2357 = vld [vmem:[%s2351 + $0x14] sm:$0xf]
      %v2358 = vld [vmem:[%s2351 + $0x18] sm:$0xf]
      %v2359 = vld [vmem:[%s2351 + $0x1c] sm:$0xf]
      %v2360 = vld [vmem:[%s2351 + $0x20] sm:$0xf]
      %v2361 = vld [vmem:[%s2351 + $0x24] sm:$0xf]
      %v2362 = vld [vmem:[%s2351 + $0x28] sm:$0xf]
      %v2363 = vld [vmem:[%s2351 + $0x2c] sm:$0xf]
      %v2364 = vld [vmem:[%s2351 + $0x30] sm:$0xf]
      %v2365 = vld [vmem:[%s2351 + $0x34] sm:$0xf]
      %v2366 = vld [vmem:[%s2351 + $0x38] sm:$0xf]
      %v2367 = vld [vmem:[%s2351 + $0x3c] sm:$0xf]
      %v2369 = vunpack.c.l.b16 %v2350
      %v2370 = vpack.c.b16 %v1508, %v2369
      %vm2371 = vcmask 1045504
      %v2372 = vrot.slane %v2370, 2
      %v2373 = vrot.slane %v1545, 2
      %v2374 = vsel %vm2371, %v2372, %v2373
      %v2375 = vrot.slane %v1546, 2
      %v2376 = vsel %vm2371, %v2373, %v2375
      %v2377 = vrot.slane %v1547, 2
      %v2378 = vsel %vm2371, %v2375, %v2377
      %v2379 = vrot.slane %v1548, 2
      %v2380 = vsel %vm2371, %v2377, %v2379
      %v2381 = vrot.slane %v1549, 2
      %v2382 = vsel %vm2371, %v2379, %v2381
      %v2383 = vrot.slane %v1550, 2
      %v2384 = vsel %vm2371, %v2381, %v2383
      %v2385 = vrot.slane %v1551, 2
      %v2386 = vsel %vm2371, %v2383, %v2385
      %v2387 = vrot.slane %v1552, 2
      %v2388 = vsel %vm2371, %v2385, %v2387
      %v2389 = vrot.slane %v1553, 2
      %v2390 = vsel %vm2371, %v2387, %v2389
      %v2391 = vrot.slane %v1554, 2
      %v2392 = vsel %vm2371, %v2389, %v2391
      %v2393 = vrot.slane %v1555, 2
      %v2394 = vsel %vm2371, %v2391, %v2393
      %v2395 = vrot.slane %v1556, 2
      %v2396 = vsel %vm2371, %v2393, %v2395
      %v2397 = vrot.slane %v1557, 2
      %v2398 = vsel %vm2371, %v2395, %v2397
      %v2399 = vrot.slane %v1558, 2
      %v2400 = vsel %vm2371, %v2397, %v2399
      %v2401 = vrot.slane %v1559, 2
      %v2402 = vsel %vm2371, %v2399, %v2401
      %v2403 = vrot.slane %v1560, 2
      %v2404 = vsel %vm2371, %v2401, %v2403
      %v2405 = vrot.slane %v1561, 2
      %v2406 = vsel %vm2371, %v2403, %v2405
      %v2407 = vrot.slane %v1899, 2
      %v2408 = vsel %vm2371, %v2405, %v2407
      %v2443 = vunpack.c.l.b16 %v2352
      %v2444 = vunpack.c.l.b16 %v2353
      %v2445 = vunpack.c.l.b16 %v2354
      %v2446 = vunpack.c.l.b16 %v2355
      %v2447 = vunpack.c.l.b16 %v2356
      %v2448 = vunpack.c.l.b16 %v2357
      %v2449 = vunpack.c.l.b16 %v2358
      %v2450 = vunpack.c.l.b16 %v2359
      %v2451 = vunpack.c.l.b16 %v2360
      %v2452 = vunpack.c.l.b16 %v2361
      %v2453 = vunpack.c.l.b16 %v2362
      %v2454 = vunpack.c.l.b16 %v2363
      %v2455 = vunpack.c.l.b16 %v2364
      %v2456 = vunpack.c.l.b16 %v2365
      %v2457 = vunpack.c.l.b16 %v2366
      %v2458 = vunpack.c.l.b16 %v2367
      %v2459 = vpack.c.b16 %v2444, %v2443
      %v2460 = vpack.c.b16 %v2446, %v2445
      %v2461 = vpack.c.b16 %v2448, %v2447
      %v2462 = vpack.c.b16 %v2450, %v2449
      %v2463 = vpack.c.b16 %v2452, %v2451
      %v2464 = vpack.c.b16 %v2454, %v2453
      %v2465 = vpack.c.b16 %v2456, %v2455
      %v2466 = vpack.c.b16 %v2458, %v2457
      %2475 = vmatprep.subr.bf16.mxu0 0
      %2476 = vmatpush1.bf16.msra.mxu0 %v2466
      %2477 = vmatprep.subr.bf16.mxu0 0
      %2478 = vmatpush1.bf16.msra.mxu0 %v2465
      %2479 = vmatprep.subr.bf16.mxu0 0
      %2480 = vmatpush1.bf16.msra.mxu0 %v2464
      %2481 = vmatprep.subr.bf16.mxu0 0
      %2482 = vmatpush1.bf16.msra.mxu0 %v2463
      %2483 = vmatprep.subr.bf16.mxu0 0
      %2484 = vmatpush1.bf16.msra.mxu0 %v2462
      %2485 = vmatprep.subr.bf16.mxu0 0
      %2486 = vmatpush1.bf16.msra.mxu0 %v2461
      %2487 = vmatprep.subr.bf16.mxu0 0
      %2488 = vmatpush1.bf16.msra.mxu0 %v2460
      %2489 = vmatprep.subr.bf16.mxu0 0
      %2490 = vmatpush1.bf16.msra.mxu0 %v2459
      %2491 = vmatprep.subr.bf16.mxu0 0
      %2492 = vmatpush2.bf16.msra.mxu0 0
      %2493 = vmatprep.subr.bf16.mxu0 0
      %2494 = vmatpush2.bf16.msra.mxu0 0
      %2495 = vmatprep.subr.bf16.mxu0 0
      %2496 = vmatpush2.bf16.msra.mxu0 0
      %2497 = vmatprep.subr.bf16.mxu0 0
      %2498 = vmatpush2.bf16.msra.mxu0 0
      %2499 = vmatprep.subr.bf16.mxu0 0
      %2500 = vmatpush2.bf16.msra.mxu0 0
      %2501 = vmatprep.subr.bf16.mxu0 0
      %2502 = vmatpush2.bf16.msra.mxu0 0
      %2503 = vmatprep.subr.bf16.mxu0 0
      %2504 = vmatpush2.bf16.msra.mxu0 0
      %2505 = vmatprep.subr.bf16.mxu0 0
      %2506 = vmatpush2.bf16.msra.mxu0 0
      %2507 = vmatprep.mubr.bf16.mxu0 0
      %2508 = vmatmul.mubr.bf16.gmra.mxu0 %v2374
      %v2509 = vpop.f32.mrf.mxu0
      %v2510 = vadd.f32 0.0, %v2509
      %v2511 = vpop.f32.mrf.mxu0
      %v2512 = vpop.f32.mrf.mxu0
      %v2513 = vadd.f32 0.0, %v2512
      %v2514 = vpop.f32.mrf.mxu0
      %2515 = vmatprep.mubr.bf16.mxu0 0
      %2516 = vmatmul.mubr.bf16.gmra.mxu0 %v2376
      %v2517 = vpop.f32.mrf.mxu0
      %v2518 = vadd.f32 0.0, %v2517
      %v2519 = vpop.f32.mrf.mxu0
      %v2520 = vpop.f32.mrf.mxu0
      %v2521 = vadd.f32 0.0, %v2520
      %v2522 = vpop.f32.mrf.mxu0
      %2523 = vmatprep.mubr.bf16.mxu0 0
      %2524 = vmatmul.mubr.bf16.gmra.mxu0 %v2378
      %v2525 = vpop.f32.mrf.mxu0
      %v2526 = vadd.f32 0.0, %v2525
      %v2527 = vpop.f32.mrf.mxu0
      %v2528 = vpop.f32.mrf.mxu0
      %v2529 = vadd.f32 0.0, %v2528
      %v2530 = vpop.f32.mrf.mxu0
      %2531 = vmatprep.mubr.bf16.mxu0 0
      %2532 = vmatmul.mubr.bf16.gmra.mxu0 %v2380
      %v2533 = vpop.f32.mrf.mxu0
      %v2534 = vadd.f32 0.0, %v2533
      %v2535 = vpop.f32.mrf.mxu0
      %v2536 = vpop.f32.mrf.mxu0
      %v2537 = vadd.f32 0.0, %v2536
      %v2538 = vpop.f32.mrf.mxu0
      %2539 = vmatprep.mubr.bf16.mxu0 0
      %2540 = vmatmul.mubr.bf16.gmra.mxu0 %v2382
      %v2541 = vpop.f32.mrf.mxu0
      %v2542 = vadd.f32 0.0, %v2541
      %v2543 = vpop.f32.mrf.mxu0
      %v2544 = vpop.f32.mrf.mxu0
      %v2545 = vadd.f32 0.0, %v2544
      %v2546 = vpop.f32.mrf.mxu0
      %2547 = vmatprep.mubr.bf16.mxu0 0
      %2548 = vmatmul.mubr.bf16.gmra.mxu0 %v2384
      %v2549 = vpop.f32.mrf.mxu0
      %v2550 = vadd.f32 0.0, %v2549
      %v2551 = vpop.f32.mrf.mxu0
      %v2552 = vpop.f32.mrf.mxu0
      %v2553 = vadd.f32 0.0, %v2552
      %v2554 = vpop.f32.mrf.mxu0
      %2555 = vmatprep.mubr.bf16.mxu0 0
      %2556 = vmatmul.mubr.bf16.gmra.mxu0 %v2386
      %v2557 = vpop.f32.mrf.mxu0
      %v2558 = vadd.f32 0.0, %v2557
      %v2559 = vpop.f32.mrf.mxu0
      %v2560 = vpop.f32.mrf.mxu0
      %v2561 = vadd.f32 0.0, %v2560
      %v2562 = vpop.f32.mrf.mxu0
      %2563 = vmatprep.mubr.bf16.mxu0 0
      %2564 = vmatmul.mubr.bf16.gmra.mxu0 %v2388
      %v2565 = vpop.f32.mrf.mxu0
      %v2566 = vadd.f32 0.0, %v2565
      %v2567 = vpop.f32.mrf.mxu0
      %v2568 = vpop.f32.mrf.mxu0
      %v2569 = vadd.f32 0.0, %v2568
      %v2570 = vpop.f32.mrf.mxu0
      %2571 = vmatprep.mubr.bf16.mxu0 0
      %2572 = vmatmul.mubr.bf16.gmra.mxu0 %v2390
      %v2573 = vpop.f32.mrf.mxu0
      %v2574 = vadd.f32 0.0, %v2573
      %v2575 = vpop.f32.mrf.mxu0
      %v2576 = vpop.f32.mrf.mxu0
      %v2577 = vadd.f32 0.0, %v2576
      %v2578 = vpop.f32.mrf.mxu0
      %2579 = vmatprep.mubr.bf16.mxu0 0
      %2580 = vmatmul.mubr.bf16.gmra.mxu0 %v2392
      %v2581 = vpop.f32.mrf.mxu0
      %v2582 = vadd.f32 0.0, %v2581
      %v2583 = vpop.f32.mrf.mxu0
      %v2584 = vpop.f32.mrf.mxu0
      %v2585 = vadd.f32 0.0, %v2584
      %v2586 = vpop.f32.mrf.mxu0
      %2587 = vmatprep.mubr.bf16.mxu0 0
      %2588 = vmatmul.mubr.bf16.gmra.mxu0 %v2394
      %v2589 = vpop.f32.mrf.mxu0
      %v2590 = vadd.f32 0.0, %v2589
      %v2591 = vpop.f32.mrf.mxu0
      %v2592 = vpop.f32.mrf.mxu0
      %v2593 = vadd.f32 0.0, %v2592
      %v2594 = vpop.f32.mrf.mxu0
      %2595 = vmatprep.mubr.bf16.mxu0 0
      %2596 = vmatmul.mubr.bf16.gmra.mxu0 %v2396
      %v2597 = vpop.f32.mrf.mxu0
      %v2598 = vadd.f32 0.0, %v2597
      %v2599 = vpop.f32.mrf.mxu0
      %v2600 = vpop.f32.mrf.mxu0
      %v2601 = vadd.f32 0.0, %v2600
      %v2602 = vpop.f32.mrf.mxu0
      %2603 = vmatprep.mubr.bf16.mxu0 0
      %2604 = vmatmul.mubr.bf16.gmra.mxu0 %v2398
      %v2605 = vpop.f32.mrf.mxu0
      %v2606 = vadd.f32 0.0, %v2605
      %v2607 = vpop.f32.mrf.mxu0
      %v2608 = vpop.f32.mrf.mxu0
      %v2609 = vadd.f32 0.0, %v2608
      %v2610 = vpop.f32.mrf.mxu0
      %2611 = vmatprep.mubr.bf16.mxu0 0
      %2612 = vmatmul.mubr.bf16.gmra.mxu0 %v2400
      %v2613 = vpop.f32.mrf.mxu0
      %v2614 = vadd.f32 0.0, %v2613
      %v2615 = vpop.f32.mrf.mxu0
      %v2616 = vpop.f32.mrf.mxu0
      %v2617 = vadd.f32 0.0, %v2616
      %v2618 = vpop.f32.mrf.mxu0
      %2619 = vmatprep.mubr.bf16.mxu0 0
      %2620 = vmatmul.mubr.bf16.gmra.mxu0 %v2402
      %v2621 = vpop.f32.mrf.mxu0
      %v2622 = vadd.f32 0.0, %v2621
      %v2623 = vpop.f32.mrf.mxu0
      %v2624 = vpop.f32.mrf.mxu0
      %v2625 = vadd.f32 0.0, %v2624
      %v2626 = vpop.f32.mrf.mxu0
      %2627 = vmatprep.mubr.bf16.mxu0 0
      %2628 = vmatmul.mubr.bf16.gmra.mxu0 %v2404
      %v2629 = vpop.f32.mrf.mxu0
      %v2630 = vadd.f32 0.0, %v2629
      %v2631 = vpop.f32.mrf.mxu0
      %v2632 = vpop.f32.mrf.mxu0
      %v2633 = vadd.f32 0.0, %v2632
      %v2634 = vpop.f32.mrf.mxu0
      %2635 = vmatprep.mubr.bf16.mxu0 0
      %2636 = vmatmul.mubr.bf16.gmra.mxu0 %v2406
      %v2637 = vpop.f32.mrf.mxu0
      %v2638 = vadd.f32 0.0, %v2637
      %v2639 = vpop.f32.mrf.mxu0
      %v2640 = vpop.f32.mrf.mxu0
      %v2641 = vadd.f32 0.0, %v2640
      %v2642 = vpop.f32.mrf.mxu0
      %2643 = vmatprep.mubr.bf16.mxu0 0
      %2644 = vmatmul.mubr.bf16.gmra.mxu0 %v2408
      %v2645 = vpop.f32.mrf.mxu0
      %v2646 = vadd.f32 0.0, %v2645
      %v2647 = vpop.f32.mrf.mxu0
      %v2648 = vpop.f32.mrf.mxu0
      %v2649 = vadd.f32 0.0, %v2648
      %v2650 = vpop.f32.mrf.mxu0
      %2651 = vdwg.mxu0
      %v2652 = vadd.f32 %v2314, %v2510
      %v2653 = vadd.f32 %v2315, %v2513
      %v2654 = vadd.f32 %v2316, %v2518
      %v2655 = vadd.f32 %v2317, %v2521
      %v2656 = vadd.f32 %v2318, %v2526
      %v2657 = vadd.f32 %v2319, %v2529
      %v2658 = vadd.f32 %v2320, %v2534
      %v2659 = vadd.f32 %v2321, %v2537
      %v2660 = vadd.f32 %v2322, %v2542
      %v2661 = vadd.f32 %v2323, %v2545
      %v2662 = vadd.f32 %v2324, %v2550
      %v2663 = vadd.f32 %v2325, %v2553
      %v2664 = vadd.f32 %v2326, %v2558
      %v2665 = vadd.f32 %v2327, %v2561
      %v2666 = vadd.f32 %v2328, %v2566
      %v2667 = vadd.f32 %v2329, %v2569
      %v2668 = vadd.f32 %v2330, %v2574
      %v2669 = vadd.f32 %v2331, %v2577
      %v2670 = vadd.f32 %v2332, %v2582
      %v2671 = vadd.f32 %v2333, %v2585
      %v2672 = vadd.f32 %v2334, %v2590
      %v2673 = vadd.f32 %v2335, %v2593
      %v2674 = vadd.f32 %v2336, %v2598
      %v2675 = vadd.f32 %v2337, %v2601
      %v2676 = vadd.f32 %v2338, %v2606
      %v2677 = vadd.f32 %v2339, %v2609
      %v2678 = vadd.f32 %v2340, %v2614
      %v2679 = vadd.f32 %v2341, %v2617
      %v2680 = vadd.f32 %v2342, %v2622
      %v2681 = vadd.f32 %v2343, %v2625
      %v2682 = vadd.f32 %v2344, %v2630
      %v2683 = vadd.f32 %v2345, %v2633
      %v2684 = vadd.f32 %v2346, %v2638
      %v2685 = vadd.f32 %v2347, %v2641
      %v2686 = vadd.f32 %v2348, %v2646
      %v2687 = vadd.f32 %v2349, %v2649
      %v2688 = vld [vmem:[%s273 + $0x10] sm:$0xc]
      %v2689 = vld [vmem:[%s273 + $0x14] sm:$0xf]
      %v2690 = vld [vmem:[%s273 + $0x18] sm:$0xf]
      %v2691 = vld [vmem:[%s273 + $0x1c] sm:$0xf]
      %v2692 = vld [vmem:[%s273 + $0x20] sm:$0xf]
      %v2693 = vld [vmem:[%s273 + $0x24] sm:$0xf]
      %v2694 = vld [vmem:[%s273 + $0x28] sm:$0xf]
      %v2695 = vld [vmem:[%s273 + $0x2c] sm:$0xf]
      %v2696 = vld [vmem:[%s273 + $0x30] sm:$0xf]
      %v2697 = vld [vmem:[%s273 + $0x34] sm:$0xf]
      %v2698 = vld [vmem:[%s273 + $0x38] sm:$0xf]
      %v2699 = vld [vmem:[%s273 + $0x3c] sm:$0xf]
      %v2700 = vld [vmem:[%s273 + $0x40] sm:$0xf]
      %v2701 = vld [vmem:[%s273 + $0x44] sm:$0xf]
      %v2702 = vld [vmem:[%s273 + $0x48] sm:$0xf]
      %v2703 = vld [vmem:[%s273 + $0x4c] sm:$0xf]
      %v2704 = vld [vmem:[%s273 + $0x50] sm:$0xf]
      %v2705 = vld [vmem:[%s273 + $0x54] sm:$0xf]
      %v2706 = vld [vmem:[%s273 + $0x58] sm:$0xf]
      %v2707 = vld [vmem:[%s273 + $0x5c] sm:$0xf]
      %v2708 = vld [vmem:[%s273 + $0x60] sm:$0xf]
      %v2709 = vld [vmem:[%s273 + $0x64] sm:$0xf]
      %v2710 = vld [vmem:[%s273 + $0x68] sm:$0xf]
      %v2711 = vld [vmem:[%s273 + $0x6c] sm:$0xf]
      %v2712 = vld [vmem:[%s273 + $0x70] sm:$0xf]
      %v2713 = vld [vmem:[%s273 + $0x74] sm:$0xf]
      %v2714 = vld [vmem:[%s273 + $0x78] sm:$0xf]
      %v2715 = vld [vmem:[%s273 + $0x7c] sm:$0xf]
      %v2716 = vld [vmem:[%s273 + $0x80] sm:$0xf]
      %v2717 = vld [vmem:[%s273 + $0x84] sm:$0xf]
      %v2718 = vld [vmem:[%s273 + $0x88] sm:$0xf]
      %v2719 = vld [vmem:[%s273 + $0x8c] sm:$0xf]
      %v2720 = vld [vmem:[%s273 + $0x90] sm:$0xf]
      %v2721 = vld [vmem:[%s273 + $0x94] sm:$0xf]
      %v2722 = vld [vmem:[%s273 + $0x98] sm:$0xf]
      %v2723 = vld [vmem:[%s273 + $0x9c] sm:$0xf]
      %v2724 = vld [vmem:[%s273 + $0xa0] sm:$0x3]
      %s2725 = scalar_lea.vmem %s1, 384
      %v2726 = vld [vmem:[%s2725] sm:$0xf]
      %v2727 = vld [vmem:[%s2725 + $0x4] sm:$0xf]
      %v2728 = vld [vmem:[%s2725 + $0x8] sm:$0xf]
      %v2729 = vld [vmem:[%s2725 + $0xc] sm:$0xf]
      %v2730 = vld [vmem:[%s2725 + $0x10] sm:$0xf]
      %v2731 = vld [vmem:[%s2725 + $0x14] sm:$0xf]
      %v2732 = vld [vmem:[%s2725 + $0x18] sm:$0xf]
      %v2733 = vld [vmem:[%s2725 + $0x1c] sm:$0xf]
      %v2734 = vld [vmem:[%s2725 + $0x20] sm:$0xf]
      %v2735 = vld [vmem:[%s2725 + $0x24] sm:$0xf]
      %v2736 = vld [vmem:[%s2725 + $0x28] sm:$0xf]
      %v2737 = vld [vmem:[%s2725 + $0x2c] sm:$0xf]
      %v2738 = vld [vmem:[%s2725 + $0x30] sm:$0xf]
      %v2739 = vld [vmem:[%s2725 + $0x34] sm:$0xf]
      %v2740 = vld [vmem:[%s2725 + $0x38] sm:$0xf]
      %v2741 = vld [vmem:[%s2725 + $0x3c] sm:$0xf]
      %v2779 = vunpack.c.l.b16 %v2688
      %v2780 = vunpack.c.l.b16 %v2689
      %v2781 = vunpack.c.l.b16 %v2690
      %v2782 = vunpack.c.l.b16 %v2691
      %v2783 = vunpack.c.l.b16 %v2692
      %v2784 = vunpack.c.l.b16 %v2693
      %v2785 = vunpack.c.l.b16 %v2694
      %v2786 = vunpack.c.l.b16 %v2695
      %v2787 = vunpack.c.l.b16 %v2696
      %v2788 = vunpack.c.l.b16 %v2697
      %v2789 = vunpack.c.l.b16 %v2698
      %v2790 = vunpack.c.l.b16 %v2699
      %v2791 = vunpack.c.l.b16 %v2700
      %v2792 = vunpack.c.l.b16 %v2701
      %v2793 = vunpack.c.l.b16 %v2702
      %v2794 = vunpack.c.l.b16 %v2703
      %v2795 = vunpack.c.l.b16 %v2704
      %v2796 = vunpack.c.l.b16 %v2705
      %v2797 = vunpack.c.l.b16 %v2706
      %v2798 = vunpack.c.l.b16 %v2707
      %v2799 = vunpack.c.l.b16 %v2708
      %v2800 = vunpack.c.l.b16 %v2709
      %v2801 = vunpack.c.l.b16 %v2710
      %v2802 = vunpack.c.l.b16 %v2711
      %v2803 = vunpack.c.l.b16 %v2712
      %v2804 = vunpack.c.l.b16 %v2713
      %v2805 = vunpack.c.l.b16 %v2714
      %v2806 = vunpack.c.l.b16 %v2715
      %v2807 = vunpack.c.l.b16 %v2716
      %v2808 = vunpack.c.l.b16 %v2717
      %v2809 = vunpack.c.l.b16 %v2718
      %v2810 = vunpack.c.l.b16 %v2719
      %v2811 = vunpack.c.l.b16 %v2720
      %v2812 = vunpack.c.l.b16 %v2721
      %v2813 = vunpack.c.l.b16 %v2722
      %v2814 = vunpack.c.l.b16 %v2723
      %v2815 = vunpack.c.l.b16 %v2724
      %v2816 = vpack.c.b16 %v2780, %v2779
      %v2817 = vpack.c.b16 %v2782, %v2781
      %v2818 = vpack.c.b16 %v2784, %v2783
      %v2819 = vpack.c.b16 %v2786, %v2785
      %v2820 = vpack.c.b16 %v2788, %v2787
      %v2821 = vpack.c.b16 %v2790, %v2789
      %v2822 = vpack.c.b16 %v2792, %v2791
      %v2823 = vpack.c.b16 %v2794, %v2793
      %v2824 = vpack.c.b16 %v2796, %v2795
      %v2825 = vpack.c.b16 %v2798, %v2797
      %v2826 = vpack.c.b16 %v2800, %v2799
      %v2827 = vpack.c.b16 %v2802, %v2801
      %v2828 = vpack.c.b16 %v2804, %v2803
      %v2829 = vpack.c.b16 %v2806, %v2805
      %v2830 = vpack.c.b16 %v2808, %v2807
      %v2831 = vpack.c.b16 %v2810, %v2809
      %v2832 = vpack.c.b16 %v2812, %v2811
      %v2833 = vpack.c.b16 %v2814, %v2813
      %v2834 = vpack.c.b16 %v2815, %v2815
      %v2835 = vrot.slane %v2816, 2
      %v2836 = vrot.slane %v2817, 2
      %v2837 = vsel %vm2371, %v2835, %v2836
      %v2838 = vrot.slane %v2818, 2
      %v2839 = vsel %vm2371, %v2836, %v2838
      %v2840 = vrot.slane %v2819, 2
      %v2841 = vsel %vm2371, %v2838, %v2840
      %v2842 = vrot.slane %v2820, 2
      %v2843 = vsel %vm2371, %v2840, %v2842
      %v2844 = vrot.slane %v2821, 2
      %v2845 = vsel %vm2371, %v2842, %v2844
      %v2846 = vrot.slane %v2822, 2
      %v2847 = vsel %vm2371, %v2844, %v2846
      %v2848 = vrot.slane %v2823, 2
      %v2849 = vsel %vm2371, %v2846, %v2848
      %v2850 = vrot.slane %v2824, 2
      %v2851 = vsel %vm2371, %v2848, %v2850
      %v2852 = vrot.slane %v2825, 2
      %v2853 = vsel %vm2371, %v2850, %v2852
      %v2854 = vrot.slane %v2826, 2
      %v2855 = vsel %vm2371, %v2852, %v2854
      %v2856 = vrot.slane %v2827, 2
      %v2857 = vsel %vm2371, %v2854, %v2856
      %v2858 = vrot.slane %v2828, 2
      %v2859 = vsel %vm2371, %v2856, %v2858
      %v2860 = vrot.slane %v2829, 2
      %v2861 = vsel %vm2371, %v2858, %v2860
      %v2862 = vrot.slane %v2830, 2
      %v2863 = vsel %vm2371, %v2860, %v2862
      %v2864 = vrot.slane %v2831, 2
      %v2865 = vsel %vm2371, %v2862, %v2864
      %v2866 = vrot.slane %v2832, 2
      %v2867 = vsel %vm2371, %v2864, %v2866
      %v2868 = vrot.slane %v2833, 2
      %v2869 = vsel %vm2371, %v2866, %v2868
      %v2870 = vrot.slane %v2834, 2
      %v2871 = vsel %vm2371, %v2868, %v2870
      %v2906 = vunpack.c.l.b16 %v2726
      %v2907 = vunpack.c.l.b16 %v2727
      %v2908 = vunpack.c.l.b16 %v2728
      %v2909 = vunpack.c.l.b16 %v2729
      %v2910 = vunpack.c.l.b16 %v2730
      %v2911 = vunpack.c.l.b16 %v2731
      %v2912 = vunpack.c.l.b16 %v2732
      %v2913 = vunpack.c.l.b16 %v2733
      %v2914 = vunpack.c.l.b16 %v2734
      %v2915 = vunpack.c.l.b16 %v2735
      %v2916 = vunpack.c.l.b16 %v2736
      %v2917 = vunpack.c.l.b16 %v2737
      %v2918 = vunpack.c.l.b16 %v2738
      %v2919 = vunpack.c.l.b16 %v2739
      %v2920 = vunpack.c.l.b16 %v2740
      %v2921 = vunpack.c.l.b16 %v2741
      %v2922 = vpack.c.b16 %v2907, %v2906
      %v2923 = vpack.c.b16 %v2909, %v2908
      %v2924 = vpack.c.b16 %v2911, %v2910
      %v2925 = vpack.c.b16 %v2913, %v2912
      %v2926 = vpack.c.b16 %v2915, %v2914
      %v2927 = vpack.c.b16 %v2917, %v2916
      %v2928 = vpack.c.b16 %v2919, %v2918
      %v2929 = vpack.c.b16 %v2921, %v2920
      %2938 = vmatprep.subr.bf16.mxu0 0
      %2939 = vmatpush1.bf16.msra.mxu0 %v2929
      %2940 = vmatprep.subr.bf16.mxu0 0
      %2941 = vmatpush1.bf16.msra.mxu0 %v2928
      %2942 = vmatprep.subr.bf16.mxu0 0
      %2943 = vmatpush1.bf16.msra.mxu0 %v2927
      %2944 = vmatprep.subr.bf16.mxu0 0
      %2945 = vmatpush1.bf16.msra.mxu0 %v2926
      %2946 = vmatprep.subr.bf16.mxu0 0
      %2947 = vmatpush1.bf16.msra.mxu0 %v2925
      %2948 = vmatprep.subr.bf16.mxu0 0
      %2949 = vmatpush1.bf16.msra.mxu0 %v2924
      %2950 = vmatprep.subr.bf16.mxu0 0
      %2951 = vmatpush1.bf16.msra.mxu0 %v2923
      %2952 = vmatprep.subr.bf16.mxu0 0
      %2953 = vmatpush1.bf16.msra.mxu0 %v2922
      %2954 = vmatprep.subr.bf16.mxu0 0
      %2955 = vmatpush2.bf16.msra.mxu0 0
      %2956 = vmatprep.subr.bf16.mxu0 0
      %2957 = vmatpush2.bf16.msra.mxu0 0
      %2958 = vmatprep.subr.bf16.mxu0 0
      %2959 = vmatpush2.bf16.msra.mxu0 0
      %2960 = vmatprep.subr.bf16.mxu0 0
      %2961 = vmatpush2.bf16.msra.mxu0 0
      %2962 = vmatprep.subr.bf16.mxu0 0
      %2963 = vmatpush2.bf16.msra.mxu0 0
      %2964 = vmatprep.subr.bf16.mxu0 0
      %2965 = vmatpush2.bf16.msra.mxu0 0
      %2966 = vmatprep.subr.bf16.mxu0 0
      %2967 = vmatpush2.bf16.msra.mxu0 0
      %2968 = vmatprep.subr.bf16.mxu0 0
      %2969 = vmatpush2.bf16.msra.mxu0 0
      %2970 = vmatprep.mubr.bf16.mxu0 0
      %2971 = vmatmul.mubr.bf16.gmra.mxu0 %v2837
      %v2972 = vpop.f32.mrf.mxu0
      %v2973 = vadd.f32 0.0, %v2972
      %v2974 = vpop.f32.mrf.mxu0
      %v2975 = vpop.f32.mrf.mxu0
      %v2976 = vadd.f32 0.0, %v2975
      %v2977 = vpop.f32.mrf.mxu0
      %2978 = vmatprep.mubr.bf16.mxu0 0
      %2979 = vmatmul.mubr.bf16.gmra.mxu0 %v2839
      %v2980 = vpop.f32.mrf.mxu0
      %v2981 = vadd.f32 0.0, %v2980
      %v2982 = vpop.f32.mrf.mxu0
      %v2983 = vpop.f32.mrf.mxu0
      %v2984 = vadd.f32 0.0, %v2983
      %v2985 = vpop.f32.mrf.mxu0
      %2986 = vmatprep.mubr.bf16.mxu0 0
      %2987 = vmatmul.mubr.bf16.gmra.mxu0 %v2841
      %v2988 = vpop.f32.mrf.mxu0
      %v2989 = vadd.f32 0.0, %v2988
      %v2990 = vpop.f32.mrf.mxu0
      %v2991 = vpop.f32.mrf.mxu0
      %v2992 = vadd.f32 0.0, %v2991
      %v2993 = vpop.f32.mrf.mxu0
      %2994 = vmatprep.mubr.bf16.mxu0 0
      %2995 = vmatmul.mubr.bf16.gmra.mxu0 %v2843
      %v2996 = vpop.f32.mrf.mxu0
      %v2997 = vadd.f32 0.0, %v2996
      %v2998 = vpop.f32.mrf.mxu0
      %v2999 = vpop.f32.mrf.mxu0
      %v3000 = vadd.f32 0.0, %v2999
      %v3001 = vpop.f32.mrf.mxu0
      %3002 = vmatprep.mubr.bf16.mxu0 0
      %3003 = vmatmul.mubr.bf16.gmra.mxu0 %v2845
      %v3004 = vpop.f32.mrf.mxu0
      %v3005 = vadd.f32 0.0, %v3004
      %v3006 = vpop.f32.mrf.mxu0
      %v3007 = vpop.f32.mrf.mxu0
      %v3008 = vadd.f32 0.0, %v3007
      %v3009 = vpop.f32.mrf.mxu0
      %3010 = vmatprep.mubr.bf16.mxu0 0
      %3011 = vmatmul.mubr.bf16.gmra.mxu0 %v2847
      %v3012 = vpop.f32.mrf.mxu0
      %v3013 = vadd.f32 0.0, %v3012
      %v3014 = vpop.f32.mrf.mxu0
      %v3015 = vpop.f32.mrf.mxu0
      %v3016 = vadd.f32 0.0, %v3015
      %v3017 = vpop.f32.mrf.mxu0
      %3018 = vmatprep.mubr.bf16.mxu0 0
      %3019 = vmatmul.mubr.bf16.gmra.mxu0 %v2849
      %v3020 = vpop.f32.mrf.mxu0
      %v3021 = vadd.f32 0.0, %v3020
      %v3022 = vpop.f32.mrf.mxu0
      %v3023 = vpop.f32.mrf.mxu0
      %v3024 = vadd.f32 0.0, %v3023
      %v3025 = vpop.f32.mrf.mxu0
      %3026 = vmatprep.mubr.bf16.mxu0 0
      %3027 = vmatmul.mubr.bf16.gmra.mxu0 %v2851
      %v3028 = vpop.f32.mrf.mxu0
      %v3029 = vadd.f32 0.0, %v3028
      %v3030 = vpop.f32.mrf.mxu0
      %v3031 = vpop.f32.mrf.mxu0
      %v3032 = vadd.f32 0.0, %v3031
      %v3033 = vpop.f32.mrf.mxu0
      %3034 = vmatprep.mubr.bf16.mxu0 0
      %3035 = vmatmul.mubr.bf16.gmra.mxu0 %v2853
      %v3036 = vpop.f32.mrf.mxu0
      %v3037 = vadd.f32 0.0, %v3036
      %v3038 = vpop.f32.mrf.mxu0
      %v3039 = vpop.f32.mrf.mxu0
      %v3040 = vadd.f32 0.0, %v3039
      %v3041 = vpop.f32.mrf.mxu0
      %3042 = vmatprep.mubr.bf16.mxu0 0
      %3043 = vmatmul.mubr.bf16.gmra.mxu0 %v2855
      %v3044 = vpop.f32.mrf.mxu0
      %v3045 = vadd.f32 0.0, %v3044
      %v3046 = vpop.f32.mrf.mxu0
      %v3047 = vpop.f32.mrf.mxu0
      %v3048 = vadd.f32 0.0, %v3047
      %v3049 = vpop.f32.mrf.mxu0
      %3050 = vmatprep.mubr.bf16.mxu0 0
      %3051 = vmatmul.mubr.bf16.gmra.mxu0 %v2857
      %v3052 = vpop.f32.mrf.mxu0
      %v3053 = vadd.f32 0.0, %v3052
      %v3054 = vpop.f32.mrf.mxu0
      %v3055 = vpop.f32.mrf.mxu0
      %v3056 = vadd.f32 0.0, %v3055
      %v3057 = vpop.f32.mrf.mxu0
      %3058 = vmatprep.mubr.bf16.mxu0 0
      %3059 = vmatmul.mubr.bf16.gmra.mxu0 %v2859
      %v3060 = vpop.f32.mrf.mxu0
      %v3061 = vadd.f32 0.0, %v3060
      %v3062 = vpop.f32.mrf.mxu0
      %v3063 = vpop.f32.mrf.mxu0
      %v3064 = vadd.f32 0.0, %v3063
      %v3065 = vpop.f32.mrf.mxu0
      %3066 = vmatprep.mubr.bf16.mxu0 0
      %3067 = vmatmul.mubr.bf16.gmra.mxu0 %v2861
      %v3068 = vpop.f32.mrf.mxu0
      %v3069 = vadd.f32 0.0, %v3068
      %v3070 = vpop.f32.mrf.mxu0
      %v3071 = vpop.f32.mrf.mxu0
      %v3072 = vadd.f32 0.0, %v3071
      %v3073 = vpop.f32.mrf.mxu0
      %3074 = vmatprep.mubr.bf16.mxu0 0
      %3075 = vmatmul.mubr.bf16.gmra.mxu0 %v2863
      %v3076 = vpop.f32.mrf.mxu0
      %v3077 = vadd.f32 0.0, %v3076
      %v3078 = vpop.f32.mrf.mxu0
      %v3079 = vpop.f32.mrf.mxu0
      %v3080 = vadd.f32 0.0, %v3079
      %v3081 = vpop.f32.mrf.mxu0
      %3082 = vmatprep.mubr.bf16.mxu0 0
      %3083 = vmatmul.mubr.bf16.gmra.mxu0 %v2865
      %v3084 = vpop.f32.mrf.mxu0
      %v3085 = vadd.f32 0.0, %v3084
      %v3086 = vpop.f32.mrf.mxu0
      %v3087 = vpop.f32.mrf.mxu0
      %v3088 = vadd.f32 0.0, %v3087
      %v3089 = vpop.f32.mrf.mxu0
      %3090 = vmatprep.mubr.bf16.mxu0 0
      %3091 = vmatmul.mubr.bf16.gmra.mxu0 %v2867
      %v3092 = vpop.f32.mrf.mxu0
      %v3093 = vadd.f32 0.0, %v3092
      %v3094 = vpop.f32.mrf.mxu0
      %v3095 = vpop.f32.mrf.mxu0
      %v3096 = vadd.f32 0.0, %v3095
      %v3097 = vpop.f32.mrf.mxu0
      %3098 = vmatprep.mubr.bf16.mxu0 0
      %3099 = vmatmul.mubr.bf16.gmra.mxu0 %v2869
      %v3100 = vpop.f32.mrf.mxu0
      %v3101 = vadd.f32 0.0, %v3100
      %v3102 = vpop.f32.mrf.mxu0
      %v3103 = vpop.f32.mrf.mxu0
      %v3104 = vadd.f32 0.0, %v3103
      %v3105 = vpop.f32.mrf.mxu0
      %3106 = vmatprep.mubr.bf16.mxu0 0
      %3107 = vmatmul.mubr.bf16.gmra.mxu0 %v2871
      %v3108 = vpop.f32.mrf.mxu0
      %v3109 = vadd.f32 0.0, %v3108
      %v3110 = vpop.f32.mrf.mxu0
      %v3111 = vpop.f32.mrf.mxu0
      %v3112 = vadd.f32 0.0, %v3111
      %v3113 = vpop.f32.mrf.mxu0
      %3114 = vdwg.mxu0
      %v3115 = vadd.f32 %v2652, %v2973
      %v3116 = vadd.f32 %v2653, %v2976
      %v3117 = vadd.f32 %v2654, %v2981
      %v3118 = vadd.f32 %v2655, %v2984
      %v3119 = vadd.f32 %v2656, %v2989
      %v3120 = vadd.f32 %v2657, %v2992
      %v3121 = vadd.f32 %v2658, %v2997
      %v3122 = vadd.f32 %v2659, %v3000
      %v3123 = vadd.f32 %v2660, %v3005
      %v3124 = vadd.f32 %v2661, %v3008
      %v3125 = vadd.f32 %v2662, %v3013
      %v3126 = vadd.f32 %v2663, %v3016
      %v3127 = vadd.f32 %v2664, %v3021
      %v3128 = vadd.f32 %v2665, %v3024
      %v3129 = vadd.f32 %v2666, %v3029
      %v3130 = vadd.f32 %v2667, %v3032
      %v3131 = vadd.f32 %v2668, %v3037
      %v3132 = vadd.f32 %v2669, %v3040
      %v3133 = vadd.f32 %v2670, %v3045
      %v3134 = vadd.f32 %v2671, %v3048
      %v3135 = vadd.f32 %v2672, %v3053
      %v3136 = vadd.f32 %v2673, %v3056
      %v3137 = vadd.f32 %v2674, %v3061
      %v3138 = vadd.f32 %v2675, %v3064
      %v3139 = vadd.f32 %v2676, %v3069
      %v3140 = vadd.f32 %v2677, %v3072
      %v3141 = vadd.f32 %v2678, %v3077
      %v3142 = vadd.f32 %v2679, %v3080
      %v3143 = vadd.f32 %v2680, %v3085
      %v3144 = vadd.f32 %v2681, %v3088
      %v3145 = vadd.f32 %v2682, %v3093
      %v3146 = vadd.f32 %v2683, %v3096
      %v3147 = vadd.f32 %v2684, %v3101
      %v3148 = vadd.f32 %v2685, %v3104
      %v3149 = vadd.f32 %v2686, %v3109
      %v3150 = vadd.f32 %v2687, %v3112
      %v3151 = vld [vmem:[%s273 + $0xa0] sm:$0x7]
      %s3152 = scalar_lea.vmem %s1, 448
      %v3153 = vld [vmem:[%s3152] sm:$0xf]
      %v3154 = vld [vmem:[%s3152 + $0x4] sm:$0xf]
      %v3155 = vld [vmem:[%s3152 + $0x8] sm:$0xf]
      %v3156 = vld [vmem:[%s3152 + $0xc] sm:$0xf]
      %v3157 = vld [vmem:[%s3152 + $0x10] sm:$0xf]
      %v3158 = vld [vmem:[%s3152 + $0x14] sm:$0xf]
      %v3159 = vld [vmem:[%s3152 + $0x18] sm:$0xf]
      %v3160 = vld [vmem:[%s3152 + $0x1c] sm:$0xf]
      %v3161 = vld [vmem:[%s3152 + $0x20] sm:$0xf]
      %v3162 = vld [vmem:[%s3152 + $0x24] sm:$0xf]
      %v3163 = vld [vmem:[%s3152 + $0x28] sm:$0xf]
      %v3164 = vld [vmem:[%s3152 + $0x2c] sm:$0xf]
      %v3165 = vld [vmem:[%s3152 + $0x30] sm:$0xf]
      %v3166 = vld [vmem:[%s3152 + $0x34] sm:$0xf]
      %v3167 = vld [vmem:[%s3152 + $0x38] sm:$0xf]
      %v3168 = vld [vmem:[%s3152 + $0x3c] sm:$0xf]
      %v3170 = vunpack.c.l.b16 %v3151
      %v3171 = vpack.c.b16 %v3170, %v3170
      %vm3172 = vsmask.f32 5376
      %v3174 = vshrl.u32 %v2816, 16
      %v3176 = vrot.slane %v3174, 2
      %v3177 = vshll.u32 %v2816, 16
      %v3179 = vrot.slane %v3177, 3
      %v3180 = vor.u32 %v3176, %v3179
      %v3182 = vshrl.u32 %v2817, 16
      %v3184 = vrot.slane %v3182, 2
      %v3185 = vshll.u32 %v2817, 16
      %v3187 = vrot.slane %v3185, 3
      %v3188 = vor.u32 %v3184, %v3187
      %v3189 = vsel %vm3172, %v3180, %v3188
      %v3191 = vshrl.u32 %v2818, 16
      %v3193 = vrot.slane %v3191, 2
      %v3194 = vshll.u32 %v2818, 16
      %v3196 = vrot.slane %v3194, 3
      %v3197 = vor.u32 %v3193, %v3196
      %v3198 = vsel %vm3172, %v3188, %v3197
      %v3200 = vshrl.u32 %v2819, 16
      %v3202 = vrot.slane %v3200, 2
      %v3203 = vshll.u32 %v2819, 16
      %v3205 = vrot.slane %v3203, 3
      %v3206 = vor.u32 %v3202, %v3205
      %v3207 = vsel %vm3172, %v3197, %v3206
      %v3209 = vshrl.u32 %v2820, 16
      %v3211 = vrot.slane %v3209, 2
      %v3212 = vshll.u32 %v2820, 16
      %v3214 = vrot.slane %v3212, 3
      %v3215 = vor.u32 %v3211, %v3214
      %v3216 = vsel %vm3172, %v3206, %v3215
      %v3218 = vshrl.u32 %v2821, 16
      %v3220 = vrot.slane %v3218, 2
      %v3221 = vshll.u32 %v2821, 16
      %v3223 = vrot.slane %v3221, 3
      %v3224 = vor.u32 %v3220, %v3223
      %v3225 = vsel %vm3172, %v3215, %v3224
      %v3227 = vshrl.u32 %v2822, 16
      %v3229 = vrot.slane %v3227, 2
      %v3230 = vshll.u32 %v2822, 16
      %v3232 = vrot.slane %v3230, 3
      %v3233 = vor.u32 %v3229, %v3232
      %v3234 = vsel %vm3172, %v3224, %v3233
      %v3236 = vshrl.u32 %v2823, 16
      %v3238 = vrot.slane %v3236, 2
      %v3239 = vshll.u32 %v2823, 16
      %v3241 = vrot.slane %v3239, 3
      %v3242 = vor.u32 %v3238, %v3241
      %v3243 = vsel %vm3172, %v3233, %v3242
      %v3245 = vshrl.u32 %v2824, 16
      %v3247 = vrot.slane %v3245, 2
      %v3248 = vshll.u32 %v2824, 16
      %v3250 = vrot.slane %v3248, 3
      %v3251 = vor.u32 %v3247, %v3250
      %v3252 = vsel %vm3172, %v3242, %v3251
      %v3254 = vshrl.u32 %v2825, 16
      %v3256 = vrot.slane %v3254, 2
      %v3257 = vshll.u32 %v2825, 16
      %v3259 = vrot.slane %v3257, 3
      %v3260 = vor.u32 %v3256, %v3259
      %v3261 = vsel %vm3172, %v3251, %v3260
      %v3263 = vshrl.u32 %v2826, 16
      %v3265 = vrot.slane %v3263, 2
      %v3266 = vshll.u32 %v2826, 16
      %v3268 = vrot.slane %v3266, 3
      %v3269 = vor.u32 %v3265, %v3268
      %v3270 = vsel %vm3172, %v3260, %v3269
      %v3272 = vshrl.u32 %v2827, 16
      %v3274 = vrot.slane %v3272, 2
      %v3275 = vshll.u32 %v2827, 16
      %v3277 = vrot.slane %v3275, 3
      %v3278 = vor.u32 %v3274, %v3277
      %v3279 = vsel %vm3172, %v3269, %v3278
      %v3281 = vshrl.u32 %v2828, 16
      %v3283 = vrot.slane %v3281, 2
      %v3284 = vshll.u32 %v2828, 16
      %v3286 = vrot.slane %v3284, 3
      %v3287 = vor.u32 %v3283, %v3286
      %v3288 = vsel %vm3172, %v3278, %v3287
      %v3290 = vshrl.u32 %v2829, 16
      %v3292 = vrot.slane %v3290, 2
      %v3293 = vshll.u32 %v2829, 16
      %v3295 = vrot.slane %v3293, 3
      %v3296 = vor.u32 %v3292, %v3295
      %v3297 = vsel %vm3172, %v3287, %v3296
      %v3299 = vshrl.u32 %v2830, 16
      %v3301 = vrot.slane %v3299, 2
      %v3302 = vshll.u32 %v2830, 16
      %v3304 = vrot.slane %v3302, 3
      %v3305 = vor.u32 %v3301, %v3304
      %v3306 = vsel %vm3172, %v3296, %v3305
      %v3308 = vshrl.u32 %v2831, 16
      %v3310 = vrot.slane %v3308, 2
      %v3311 = vshll.u32 %v2831, 16
      %v3313 = vrot.slane %v3311, 3
      %v3314 = vor.u32 %v3310, %v3313
      %v3315 = vsel %vm3172, %v3305, %v3314
      %v3317 = vshrl.u32 %v2832, 16
      %v3319 = vrot.slane %v3317, 2
      %v3320 = vshll.u32 %v2832, 16
      %v3322 = vrot.slane %v3320, 3
      %v3323 = vor.u32 %v3319, %v3322
      %v3324 = vsel %vm3172, %v3314, %v3323
      %v3326 = vshrl.u32 %v2833, 16
      %v3328 = vrot.slane %v3326, 2
      %v3329 = vshll.u32 %v2833, 16
      %v3331 = vrot.slane %v3329, 3
      %v3332 = vor.u32 %v3328, %v3331
      %v3333 = vsel %vm3172, %v3323, %v3332
      %v3335 = vshrl.u32 %v3171, 16
      %v3337 = vrot.slane %v3335, 2
      %v3338 = vshll.u32 %v3171, 16
      %v3340 = vrot.slane %v3338, 3
      %v3341 = vor.u32 %v3337, %v3340
      %v3342 = vsel %vm3172, %v3332, %v3341
      %v3377 = vunpack.c.l.b16 %v3153
      %v3378 = vunpack.c.l.b16 %v3154
      %v3379 = vunpack.c.l.b16 %v3155
      %v3380 = vunpack.c.l.b16 %v3156
      %v3381 = vunpack.c.l.b16 %v3157
      %v3382 = vunpack.c.l.b16 %v3158
      %v3383 = vunpack.c.l.b16 %v3159
      %v3384 = vunpack.c.l.b16 %v3160
      %v3385 = vunpack.c.l.b16 %v3161
      %v3386 = vunpack.c.l.b16 %v3162
      %v3387 = vunpack.c.l.b16 %v3163
      %v3388 = vunpack.c.l.b16 %v3164
      %v3389 = vunpack.c.l.b16 %v3165
      %v3390 = vunpack.c.l.b16 %v3166
      %v3391 = vunpack.c.l.b16 %v3167
      %v3392 = vunpack.c.l.b16 %v3168
      %v3393 = vpack.c.b16 %v3378, %v3377
      %v3394 = vpack.c.b16 %v3380, %v3379
      %v3395 = vpack.c.b16 %v3382, %v3381
      %v3396 = vpack.c.b16 %v3384, %v3383
      %v3397 = vpack.c.b16 %v3386, %v3385
      %v3398 = vpack.c.b16 %v3388, %v3387
      %v3399 = vpack.c.b16 %v3390, %v3389
      %v3400 = vpack.c.b16 %v3392, %v3391
      %3409 = vmatprep.subr.bf16.mxu0 0
      %3410 = vmatpush1.bf16.msra.mxu0 %v3400
      %3411 = vmatprep.subr.bf16.mxu0 0
      %3412 = vmatpush1.bf16.msra.mxu0 %v3399
      %3413 = vmatprep.subr.bf16.mxu0 0
      %3414 = vmatpush1.bf16.msra.mxu0 %v3398
      %3415 = vmatprep.subr.bf16.mxu0 0
      %3416 = vmatpush1.bf16.msra.mxu0 %v3397
      %3417 = vmatprep.subr.bf16.mxu0 0
      %3418 = vmatpush1.bf16.msra.mxu0 %v3396
      %3419 = vmatprep.subr.bf16.mxu0 0
      %3420 = vmatpush1.bf16.msra.mxu0 %v3395
      %3421 = vmatprep.subr.bf16.mxu0 0
      %3422 = vmatpush1.bf16.msra.mxu0 %v3394
      %3423 = vmatprep.subr.bf16.mxu0 0
      %3424 = vmatpush1.bf16.msra.mxu0 %v3393
      %3425 = vmatprep.subr.bf16.mxu0 0
      %3426 = vmatpush2.bf16.msra.mxu0 0
      %3427 = vmatprep.subr.bf16.mxu0 0
      %3428 = vmatpush2.bf16.msra.mxu0 0
      %3429 = vmatprep.subr.bf16.mxu0 0
      %3430 = vmatpush2.bf16.msra.mxu0 0
      %3431 = vmatprep.subr.bf16.mxu0 0
      %3432 = vmatpush2.bf16.msra.mxu0 0
      %3433 = vmatprep.subr.bf16.mxu0 0
      %3434 = vmatpush2.bf16.msra.mxu0 0
      %3435 = vmatprep.subr.bf16.mxu0 0
      %3436 = vmatpush2.bf16.msra.mxu0 0
      %3437 = vmatprep.subr.bf16.mxu0 0
      %3438 = vmatpush2.bf16.msra.mxu0 0
      %3439 = vmatprep.subr.bf16.mxu0 0
      %3440 = vmatpush2.bf16.msra.mxu0 0
      %3441 = vmatprep.mubr.bf16.mxu0 0
      %3442 = vmatmul.mubr.bf16.gmra.mxu0 %v3189
      %v3443 = vpop.f32.mrf.mxu0
      %v3444 = vadd.f32 0.0, %v3443
      %v3445 = vpop.f32.mrf.mxu0
      %v3446 = vpop.f32.mrf.mxu0
      %v3447 = vadd.f32 0.0, %v3446
      %v3448 = vpop.f32.mrf.mxu0
      %3449 = vmatprep.mubr.bf16.mxu0 0
      %3450 = vmatmul.mubr.bf16.gmra.mxu0 %v3198
      %v3451 = vpop.f32.mrf.mxu0
      %v3452 = vadd.f32 0.0, %v3451
      %v3453 = vpop.f32.mrf.mxu0
      %v3454 = vpop.f32.mrf.mxu0
      %v3455 = vadd.f32 0.0, %v3454
      %v3456 = vpop.f32.mrf.mxu0
      %3457 = vmatprep.mubr.bf16.mxu0 0
      %3458 = vmatmul.mubr.bf16.gmra.mxu0 %v3207
      %v3459 = vpop.f32.mrf.mxu0
      %v3460 = vadd.f32 0.0, %v3459
      %v3461 = vpop.f32.mrf.mxu0
      %v3462 = vpop.f32.mrf.mxu0
      %v3463 = vadd.f32 0.0, %v3462
      %v3464 = vpop.f32.mrf.mxu0
      %3465 = vmatprep.mubr.bf16.mxu0 0
      %3466 = vmatmul.mubr.bf16.gmra.mxu0 %v3216
      %v3467 = vpop.f32.mrf.mxu0
      %v3468 = vadd.f32 0.0, %v3467
      %v3469 = vpop.f32.mrf.mxu0
      %v3470 = vpop.f32.mrf.mxu0
      %v3471 = vadd.f32 0.0, %v3470
      %v3472 = vpop.f32.mrf.mxu0
      %3473 = vmatprep.mubr.bf16.mxu0 0
      %3474 = vmatmul.mubr.bf16.gmra.mxu0 %v3225
      %v3475 = vpop.f32.mrf.mxu0
      %v3476 = vadd.f32 0.0, %v3475
      %v3477 = vpop.f32.mrf.mxu0
      %v3478 = vpop.f32.mrf.mxu0
      %v3479 = vadd.f32 0.0, %v3478
      %v3480 = vpop.f32.mrf.mxu0
      %3481 = vmatprep.mubr.bf16.mxu0 0
      %3482 = vmatmul.mubr.bf16.gmra.mxu0 %v3234
      %v3483 = vpop.f32.mrf.mxu0
      %v3484 = vadd.f32 0.0, %v3483
      %v3485 = vpop.f32.mrf.mxu0
      %v3486 = vpop.f32.mrf.mxu0
      %v3487 = vadd.f32 0.0, %v3486
      %v3488 = vpop.f32.mrf.mxu0
      %3489 = vmatprep.mubr.bf16.mxu0 0
      %3490 = vmatmul.mubr.bf16.gmra.mxu0 %v3243
      %v3491 = vpop.f32.mrf.mxu0
      %v3492 = vadd.f32 0.0, %v3491
      %v3493 = vpop.f32.mrf.mxu0
      %v3494 = vpop.f32.mrf.mxu0
      %v3495 = vadd.f32 0.0, %v3494
      %v3496 = vpop.f32.mrf.mxu0
      %3497 = vmatprep.mubr.bf16.mxu0 0
      %3498 = vmatmul.mubr.bf16.gmra.mxu0 %v3252
      %v3499 = vpop.f32.mrf.mxu0
      %v3500 = vadd.f32 0.0, %v3499
      %v3501 = vpop.f32.mrf.mxu0
      %v3502 = vpop.f32.mrf.mxu0
      %v3503 = vadd.f32 0.0, %v3502
      %v3504 = vpop.f32.mrf.mxu0
      %3505 = vmatprep.mubr.bf16.mxu0 0
      %3506 = vmatmul.mubr.bf16.gmra.mxu0 %v3261
      %v3507 = vpop.f32.mrf.mxu0
      %v3508 = vadd.f32 0.0, %v3507
      %v3509 = vpop.f32.mrf.mxu0
      %v3510 = vpop.f32.mrf.mxu0
      %v3511 = vadd.f32 0.0, %v3510
      %v3512 = vpop.f32.mrf.mxu0
      %3513 = vmatprep.mubr.bf16.mxu0 0
      %3514 = vmatmul.mubr.bf16.gmra.mxu0 %v3270
      %v3515 = vpop.f32.mrf.mxu0
      %v3516 = vadd.f32 0.0, %v3515
      %v3517 = vpop.f32.mrf.mxu0
      %v3518 = vpop.f32.mrf.mxu0
      %v3519 = vadd.f32 0.0, %v3518
      %v3520 = vpop.f32.mrf.mxu0
      %3521 = vmatprep.mubr.bf16.mxu0 0
      %3522 = vmatmul.mubr.bf16.gmra.mxu0 %v3279
      %v3523 = vpop.f32.mrf.mxu0
      %v3524 = vadd.f32 0.0, %v3523
      %v3525 = vpop.f32.mrf.mxu0
      %v3526 = vpop.f32.mrf.mxu0
      %v3527 = vadd.f32 0.0, %v3526
      %v3528 = vpop.f32.mrf.mxu0
      %3529 = vmatprep.mubr.bf16.mxu0 0
      %3530 = vmatmul.mubr.bf16.gmra.mxu0 %v3288
      %v3531 = vpop.f32.mrf.mxu0
      %v3532 = vadd.f32 0.0, %v3531
      %v3533 = vpop.f32.mrf.mxu0
      %v3534 = vpop.f32.mrf.mxu0
      %v3535 = vadd.f32 0.0, %v3534
      %v3536 = vpop.f32.mrf.mxu0
      %3537 = vmatprep.mubr.bf16.mxu0 0
      %3538 = vmatmul.mubr.bf16.gmra.mxu0 %v3297
      %v3539 = vpop.f32.mrf.mxu0
      %v3540 = vadd.f32 0.0, %v3539
      %v3541 = vpop.f32.mrf.mxu0
      %v3542 = vpop.f32.mrf.mxu0
      %v3543 = vadd.f32 0.0, %v3542
      %v3544 = vpop.f32.mrf.mxu0
      %3545 = vmatprep.mubr.bf16.mxu0 0
      %3546 = vmatmul.mubr.bf16.gmra.mxu0 %v3306
      %v3547 = vpop.f32.mrf.mxu0
      %v3548 = vadd.f32 0.0, %v3547
      %v3549 = vpop.f32.mrf.mxu0
      %v3550 = vpop.f32.mrf.mxu0
      %v3551 = vadd.f32 0.0, %v3550
      %v3552 = vpop.f32.mrf.mxu0
      %3553 = vmatprep.mubr.bf16.mxu0 0
      %3554 = vmatmul.mubr.bf16.gmra.mxu0 %v3315
      %v3555 = vpop.f32.mrf.mxu0
      %v3556 = vadd.f32 0.0, %v3555
      %v3557 = vpop.f32.mrf.mxu0
      %v3558 = vpop.f32.mrf.mxu0
      %v3559 = vadd.f32 0.0, %v3558
      %v3560 = vpop.f32.mrf.mxu0
      %3561 = vmatprep.mubr.bf16.mxu0 0
      %3562 = vmatmul.mubr.bf16.gmra.mxu0 %v3324
      %v3563 = vpop.f32.mrf.mxu0
      %v3564 = vadd.f32 0.0, %v3563
      %v3565 = vpop.f32.mrf.mxu0
      %v3566 = vpop.f32.mrf.mxu0
      %v3567 = vadd.f32 0.0, %v3566
      %v3568 = vpop.f32.mrf.mxu0
      %3569 = vmatprep.mubr.bf16.mxu0 0
      %3570 = vmatmul.mubr.bf16.gmra.mxu0 %v3333
      %v3571 = vpop.f32.mrf.mxu0
      %v3572 = vadd.f32 0.0, %v3571
      %v3573 = vpop.f32.mrf.mxu0
      %v3574 = vpop.f32.mrf.mxu0
      %v3575 = vadd.f32 0.0, %v3574
      %v3576 = vpop.f32.mrf.mxu0
      %3577 = vmatprep.mubr.bf16.mxu0 0
      %3578 = vmatmul.mubr.bf16.gmra.mxu0 %v3342
      %v3579 = vpop.f32.mrf.mxu0
      %v3580 = vadd.f32 0.0, %v3579
      %v3581 = vpop.f32.mrf.mxu0
      %v3582 = vpop.f32.mrf.mxu0
      %v3583 = vadd.f32 0.0, %v3582
      %v3584 = vpop.f32.mrf.mxu0
      %3585 = vdwg.mxu0
      %v3586 = vadd.f32 %v3115, %v3444
      %v3587 = vadd.f32 %v3116, %v3447
      %v3588 = vadd.f32 %v3117, %v3452
      %v3589 = vadd.f32 %v3118, %v3455
      %v3590 = vadd.f32 %v3119, %v3460
      %v3591 = vadd.f32 %v3120, %v3463
      %v3592 = vadd.f32 %v3121, %v3468
      %v3593 = vadd.f32 %v3122, %v3471
      %v3594 = vadd.f32 %v3123, %v3476
      %v3595 = vadd.f32 %v3124, %v3479
      %v3596 = vadd.f32 %v3125, %v3484
      %v3597 = vadd.f32 %v3126, %v3487
      %v3598 = vadd.f32 %v3127, %v3492
      %v3599 = vadd.f32 %v3128, %v3495
      %v3600 = vadd.f32 %v3129, %v3500
      %v3601 = vadd.f32 %v3130, %v3503
      %v3602 = vadd.f32 %v3131, %v3508
      %v3603 = vadd.f32 %v3132, %v3511
      %v3604 = vadd.f32 %v3133, %v3516
      %v3605 = vadd.f32 %v3134, %v3519
      %v3606 = vadd.f32 %v3135, %v3524
      %v3607 = vadd.f32 %v3136, %v3527
      %v3608 = vadd.f32 %v3137, %v3532
      %v3609 = vadd.f32 %v3138, %v3535
      %v3610 = vadd.f32 %v3139, %v3540
      %v3611 = vadd.f32 %v3140, %v3543
      %v3612 = vadd.f32 %v3141, %v3548
      %v3613 = vadd.f32 %v3142, %v3551
      %v3614 = vadd.f32 %v3143, %v3556
      %v3615 = vadd.f32 %v3144, %v3559
      %v3616 = vadd.f32 %v3145, %v3564
      %v3617 = vadd.f32 %v3146, %v3567
      %v3618 = vadd.f32 %v3147, %v3572
      %v3619 = vadd.f32 %v3148, %v3575
      %v3620 = vadd.f32 %v3149, %v3580
      %v3621 = vadd.f32 %v3150, %v3583
      %v3622 = vld [vmem:[%s273 + $0x10] sm:$0x8]
      %s3623 = scalar_lea.vmem %s1, 512
      %v3624 = vld [vmem:[%s3623] sm:$0xf]
      %v3625 = vld [vmem:[%s3623 + $0x4] sm:$0xf]
      %v3626 = vld [vmem:[%s3623 + $0x8] sm:$0xf]
      %v3627 = vld [vmem:[%s3623 + $0xc] sm:$0xf]
      %v3628 = vld [vmem:[%s3623 + $0x10] sm:$0xf]
      %v3629 = vld [vmem:[%s3623 + $0x14] sm:$0xf]
      %v3630 = vld [vmem:[%s3623 + $0x18] sm:$0xf]
      %v3631 = vld [vmem:[%s3623 + $0x1c] sm:$0xf]
      %v3632 = vld [vmem:[%s3623 + $0x20] sm:$0xf]
      %v3633 = vld [vmem:[%s3623 + $0x24] sm:$0xf]
      %v3634 = vld [vmem:[%s3623 + $0x28] sm:$0xf]
      %v3635 = vld [vmem:[%s3623 + $0x2c] sm:$0xf]
      %v3636 = vld [vmem:[%s3623 + $0x30] sm:$0xf]
      %v3637 = vld [vmem:[%s3623 + $0x34] sm:$0xf]
      %v3638 = vld [vmem:[%s3623 + $0x38] sm:$0xf]
      %v3639 = vld [vmem:[%s3623 + $0x3c] sm:$0xf]
      %v3641 = vunpack.c.l.b16 %v3622
      %v3642 = vpack.c.b16 %v2780, %v3641
      %vm3643 = vcmask 1044480
      %v3644 = vrot.slane %v3642, 3
      %v3645 = vrot.slane %v2817, 3
      %v3646 = vsel %vm3643, %v3644, %v3645
      %v3647 = vrot.slane %v2818, 3
      %v3648 = vsel %vm3643, %v3645, %v3647
      %v3649 = vrot.slane %v2819, 3
      %v3650 = vsel %vm3643, %v3647, %v3649
      %v3651 = vrot.slane %v2820, 3
      %v3652 = vsel %vm3643, %v3649, %v3651
      %v3653 = vrot.slane %v2821, 3
      %v3654 = vsel %vm3643, %v3651, %v3653
      %v3655 = vrot.slane %v2822, 3
      %v3656 = vsel %vm3643, %v3653, %v3655
      %v3657 = vrot.slane %v2823, 3
      %v3658 = vsel %vm3643, %v3655, %v3657
      %v3659 = vrot.slane %v2824, 3
      %v3660 = vsel %vm3643, %v3657, %v3659
      %v3661 = vrot.slane %v2825, 3
      %v3662 = vsel %vm3643, %v3659, %v3661
      %v3663 = vrot.slane %v2826, 3
      %v3664 = vsel %vm3643, %v3661, %v3663
      %v3665 = vrot.slane %v2827, 3
      %v3666 = vsel %vm3643, %v3663, %v3665
      %v3667 = vrot.slane %v2828, 3
      %v3668 = vsel %vm3643, %v3665, %v3667
      %v3669 = vrot.slane %v2829, 3
      %v3670 = vsel %vm3643, %v3667, %v3669
      %v3671 = vrot.slane %v2830, 3
      %v3672 = vsel %vm3643, %v3669, %v3671
      %v3673 = vrot.slane %v2831, 3
      %v3674 = vsel %vm3643, %v3671, %v3673
      %v3675 = vrot.slane %v2832, 3
      %v3676 = vsel %vm3643, %v3673, %v3675
      %v3677 = vrot.slane %v2833, 3
      %v3678 = vsel %vm3643, %v3675, %v3677
      %v3679 = vrot.slane %v3171, 3
      %v3680 = vsel %vm3643, %v3677, %v3679
      %v3715 = vunpack.c.l.b16 %v3624
      %v3716 = vunpack.c.l.b16 %v3625
      %v3717 = vunpack.c.l.b16 %v3626
      %v3718 = vunpack.c.l.b16 %v3627
      %v3719 = vunpack.c.l.b16 %v3628
      %v3720 = vunpack.c.l.b16 %v3629
      %v3721 = vunpack.c.l.b16 %v3630
      %v3722 = vunpack.c.l.b16 %v3631
      %v3723 = vunpack.c.l.b16 %v3632
      %v3724 = vunpack.c.l.b16 %v3633
      %v3725 = vunpack.c.l.b16 %v3634
      %v3726 = vunpack.c.l.b16 %v3635
      %v3727 = vunpack.c.l.b16 %v3636
      %v3728 = vunpack.c.l.b16 %v3637
      %v3729 = vunpack.c.l.b16 %v3638
      %v3730 = vunpack.c.l.b16 %v3639
      %v3731 = vpack.c.b16 %v3716, %v3715
      %v3732 = vpack.c.b16 %v3718, %v3717
      %v3733 = vpack.c.b16 %v3720, %v3719
      %v3734 = vpack.c.b16 %v3722, %v3721
      %v3735 = vpack.c.b16 %v3724, %v3723
      %v3736 = vpack.c.b16 %v3726, %v3725
      %v3737 = vpack.c.b16 %v3728, %v3727
      %v3738 = vpack.c.b16 %v3730, %v3729
      %3747 = vmatprep.subr.bf16.mxu0 0
      %3748 = vmatpush1.bf16.msra.mxu0 %v3738
      %3749 = vmatprep.subr.bf16.mxu0 0
      %3750 = vmatpush1.bf16.msra.mxu0 %v3737
      %3751 = vmatprep.subr.bf16.mxu0 0
      %3752 = vmatpush1.bf16.msra.mxu0 %v3736
      %3753 = vmatprep.subr.bf16.mxu0 0
      %3754 = vmatpush1.bf16.msra.mxu0 %v3735
      %3755 = vmatprep.subr.bf16.mxu0 0
      %3756 = vmatpush1.bf16.msra.mxu0 %v3734
      %3757 = vmatprep.subr.bf16.mxu0 0
      %3758 = vmatpush1.bf16.msra.mxu0 %v3733
      %3759 = vmatprep.subr.bf16.mxu0 0
      %3760 = vmatpush1.bf16.msra.mxu0 %v3732
      %3761 = vmatprep.subr.bf16.mxu0 0
      %3762 = vmatpush1.bf16.msra.mxu0 %v3731
      %3763 = vmatprep.subr.bf16.mxu0 0
      %3764 = vmatpush2.bf16.msra.mxu0 0
      %3765 = vmatprep.subr.bf16.mxu0 0
      %3766 = vmatpush2.bf16.msra.mxu0 0
      %3767 = vmatprep.subr.bf16.mxu0 0
      %3768 = vmatpush2.bf16.msra.mxu0 0
      %3769 = vmatprep.subr.bf16.mxu0 0
      %3770 = vmatpush2.bf16.msra.mxu0 0
      %3771 = vmatprep.subr.bf16.mxu0 0
      %3772 = vmatpush2.bf16.msra.mxu0 0
      %3773 = vmatprep.subr.bf16.mxu0 0
      %3774 = vmatpush2.bf16.msra.mxu0 0
      %3775 = vmatprep.subr.bf16.mxu0 0
      %3776 = vmatpush2.bf16.msra.mxu0 0
      %3777 = vmatprep.subr.bf16.mxu0 0
      %3778 = vmatpush2.bf16.msra.mxu0 0
      %3779 = vmatprep.mubr.bf16.mxu0 0
      %3780 = vmatmul.mubr.bf16.gmra.mxu0 %v3646
      %v3781 = vpop.f32.mrf.mxu0
      %v3782 = vadd.f32 0.0, %v3781
      %v3783 = vpop.f32.mrf.mxu0
      %v3784 = vpop.f32.mrf.mxu0
      %v3785 = vadd.f32 0.0, %v3784
      %v3786 = vpop.f32.mrf.mxu0
      %3787 = vmatprep.mubr.bf16.mxu0 0
      %3788 = vmatmul.mubr.bf16.gmra.mxu0 %v3648
      %v3789 = vpop.f32.mrf.mxu0
      %v3790 = vadd.f32 0.0, %v3789
      %v3791 = vpop.f32.mrf.mxu0
      %v3792 = vpop.f32.mrf.mxu0
      %v3793 = vadd.f32 0.0, %v3792
      %v3794 = vpop.f32.mrf.mxu0
      %3795 = vmatprep.mubr.bf16.mxu0 0
      %3796 = vmatmul.mubr.bf16.gmra.mxu0 %v3650
      %v3797 = vpop.f32.mrf.mxu0
      %v3798 = vadd.f32 0.0, %v3797
      %v3799 = vpop.f32.mrf.mxu0
      %v3800 = vpop.f32.mrf.mxu0
      %v3801 = vadd.f32 0.0, %v3800
      %v3802 = vpop.f32.mrf.mxu0
      %3803 = vmatprep.mubr.bf16.mxu0 0
      %3804 = vmatmul.mubr.bf16.gmra.mxu0 %v3652
      %v3805 = vpop.f32.mrf.mxu0
      %v3806 = vadd.f32 0.0, %v3805
      %v3807 = vpop.f32.mrf.mxu0
      %v3808 = vpop.f32.mrf.mxu0
      %v3809 = vadd.f32 0.0, %v3808
      %v3810 = vpop.f32.mrf.mxu0
      %3811 = vmatprep.mubr.bf16.mxu0 0
      %3812 = vmatmul.mubr.bf16.gmra.mxu0 %v3654
      %v3813 = vpop.f32.mrf.mxu0
      %v3814 = vadd.f32 0.0, %v3813
      %v3815 = vpop.f32.mrf.mxu0
      %v3816 = vpop.f32.mrf.mxu0
      %v3817 = vadd.f32 0.0, %v3816
      %v3818 = vpop.f32.mrf.mxu0
      %3819 = vmatprep.mubr.bf16.mxu0 0
      %3820 = vmatmul.mubr.bf16.gmra.mxu0 %v3656
      %v3821 = vpop.f32.mrf.mxu0
      %v3822 = vadd.f32 0.0, %v3821
      %v3823 = vpop.f32.mrf.mxu0
      %v3824 = vpop.f32.mrf.mxu0
      %v3825 = vadd.f32 0.0, %v3824
      %v3826 = vpop.f32.mrf.mxu0
      %3827 = vmatprep.mubr.bf16.mxu0 0
      %3828 = vmatmul.mubr.bf16.gmra.mxu0 %v3658
      %v3829 = vpop.f32.mrf.mxu0
      %v3830 = vadd.f32 0.0, %v3829
      %v3831 = vpop.f32.mrf.mxu0
      %v3832 = vpop.f32.mrf.mxu0
      %v3833 = vadd.f32 0.0, %v3832
      %v3834 = vpop.f32.mrf.mxu0
      %3835 = vmatprep.mubr.bf16.mxu0 0
      %3836 = vmatmul.mubr.bf16.gmra.mxu0 %v3660
      %v3837 = vpop.f32.mrf.mxu0
      %v3838 = vadd.f32 0.0, %v3837
      %v3839 = vpop.f32.mrf.mxu0
      %v3840 = vpop.f32.mrf.mxu0
      %v3841 = vadd.f32 0.0, %v3840
      %v3842 = vpop.f32.mrf.mxu0
      %3843 = vmatprep.mubr.bf16.mxu0 0
      %3844 = vmatmul.mubr.bf16.gmra.mxu0 %v3662
      %v3845 = vpop.f32.mrf.mxu0
      %v3846 = vadd.f32 0.0, %v3845
      %v3847 = vpop.f32.mrf.mxu0
      %v3848 = vpop.f32.mrf.mxu0
      %v3849 = vadd.f32 0.0, %v3848
      %v3850 = vpop.f32.mrf.mxu0
      %3851 = vmatprep.mubr.bf16.mxu0 0
      %3852 = vmatmul.mubr.bf16.gmra.mxu0 %v3664
      %v3853 = vpop.f32.mrf.mxu0
      %v3854 = vadd.f32 0.0, %v3853
      %v3855 = vpop.f32.mrf.mxu0
      %v3856 = vpop.f32.mrf.mxu0
      %v3857 = vadd.f32 0.0, %v3856
      %v3858 = vpop.f32.mrf.mxu0
      %3859 = vmatprep.mubr.bf16.mxu0 0
      %3860 = vmatmul.mubr.bf16.gmra.mxu0 %v3666
      %v3861 = vpop.f32.mrf.mxu0
      %v3862 = vadd.f32 0.0, %v3861
      %v3863 = vpop.f32.mrf.mxu0
      %v3864 = vpop.f32.mrf.mxu0
      %v3865 = vadd.f32 0.0, %v3864
      %v3866 = vpop.f32.mrf.mxu0
      %3867 = vmatprep.mubr.bf16.mxu0 0
      %3868 = vmatmul.mubr.bf16.gmra.mxu0 %v3668
      %v3869 = vpop.f32.mrf.mxu0
      %v3870 = vadd.f32 0.0, %v3869
      %v3871 = vpop.f32.mrf.mxu0
      %v3872 = vpop.f32.mrf.mxu0
      %v3873 = vadd.f32 0.0, %v3872
      %v3874 = vpop.f32.mrf.mxu0
      %3875 = vmatprep.mubr.bf16.mxu0 0
      %3876 = vmatmul.mubr.bf16.gmra.mxu0 %v3670
      %v3877 = vpop.f32.mrf.mxu0
      %v3878 = vadd.f32 0.0, %v3877
      %v3879 = vpop.f32.mrf.mxu0
      %v3880 = vpop.f32.mrf.mxu0
      %v3881 = vadd.f32 0.0, %v3880
      %v3882 = vpop.f32.mrf.mxu0
      %3883 = vmatprep.mubr.bf16.mxu0 0
      %3884 = vmatmul.mubr.bf16.gmra.mxu0 %v3672
      %v3885 = vpop.f32.mrf.mxu0
      %v3886 = vadd.f32 0.0, %v3885
      %v3887 = vpop.f32.mrf.mxu0
      %v3888 = vpop.f32.mrf.mxu0
      %v3889 = vadd.f32 0.0, %v3888
      %v3890 = vpop.f32.mrf.mxu0
      %3891 = vmatprep.mubr.bf16.mxu0 0
      %3892 = vmatmul.mubr.bf16.gmra.mxu0 %v3674
      %v3893 = vpop.f32.mrf.mxu0
      %v3894 = vadd.f32 0.0, %v3893
      %v3895 = vpop.f32.mrf.mxu0
      %v3896 = vpop.f32.mrf.mxu0
      %v3897 = vadd.f32 0.0, %v3896
      %v3898 = vpop.f32.mrf.mxu0
      %3899 = vmatprep.mubr.bf16.mxu0 0
      %3900 = vmatmul.mubr.bf16.gmra.mxu0 %v3676
      %v3901 = vpop.f32.mrf.mxu0
      %v3902 = vadd.f32 0.0, %v3901
      %v3903 = vpop.f32.mrf.mxu0
      %v3904 = vpop.f32.mrf.mxu0
      %v3905 = vadd.f32 0.0, %v3904
      %v3906 = vpop.f32.mrf.mxu0
      %3907 = vmatprep.mubr.bf16.mxu0 0
      %3908 = vmatmul.mubr.bf16.gmra.mxu0 %v3678
      %v3909 = vpop.f32.mrf.mxu0
      %v3910 = vadd.f32 0.0, %v3909
      %v3911 = vpop.f32.mrf.mxu0
      %v3912 = vpop.f32.mrf.mxu0
      %v3913 = vadd.f32 0.0, %v3912
      %v3914 = vpop.f32.mrf.mxu0
      %3915 = vmatprep.mubr.bf16.mxu0 0
      %3916 = vmatmul.mubr.bf16.gmra.mxu0 %v3680
      %v3917 = vpop.f32.mrf.mxu0
      %v3918 = vadd.f32 0.0, %v3917
      %v3919 = vpop.f32.mrf.mxu0
      %v3920 = vpop.f32.mrf.mxu0
      %v3921 = vadd.f32 0.0, %v3920
      %v3922 = vpop.f32.mrf.mxu0
      %3923 = vdwg.mxu0
      %v3924 = vadd.f32 %v3586, %v3782
      %v3925 = vadd.f32 %v3587, %v3785
      %v3926 = vadd.f32 %v3588, %v3790
      %v3927 = vadd.f32 %v3589, %v3793
      %v3928 = vadd.f32 %v3590, %v3798
      %v3929 = vadd.f32 %v3591, %v3801
      %v3930 = vadd.f32 %v3592, %v3806
      %v3931 = vadd.f32 %v3593, %v3809
      %v3932 = vadd.f32 %v3594, %v3814
      %v3933 = vadd.f32 %v3595, %v3817
      %v3934 = vadd.f32 %v3596, %v3822
      %v3935 = vadd.f32 %v3597, %v3825
      %v3936 = vadd.f32 %v3598, %v3830
      %v3937 = vadd.f32 %v3599, %v3833
      %v3938 = vadd.f32 %v3600, %v3838
      %v3939 = vadd.f32 %v3601, %v3841
      %v3940 = vadd.f32 %v3602, %v3846
      %v3941 = vadd.f32 %v3603, %v3849
      %v3942 = vadd.f32 %v3604, %v3854
      %v3943 = vadd.f32 %v3605, %v3857
      %v3944 = vadd.f32 %v3606, %v3862
      %v3945 = vadd.f32 %v3607, %v3865
      %v3946 = vadd.f32 %v3608, %v3870
      %v3947 = vadd.f32 %v3609, %v3873
      %v3948 = vadd.f32 %v3610, %v3878
      %v3949 = vadd.f32 %v3611, %v3881
      %v3950 = vadd.f32 %v3612, %v3886
      %v3951 = vadd.f32 %v3613, %v3889
      %v3952 = vadd.f32 %v3614, %v3894
      %v3953 = vadd.f32 %v3615, %v3897
      %v3954 = vadd.f32 %v3616, %v3902
      %v3955 = vadd.f32 %v3617, %v3905
      %v3956 = vadd.f32 %v3618, %v3910
      %v3957 = vadd.f32 %v3619, %v3913
      %v3958 = vadd.f32 %v3620, %v3918
      %v3959 = vadd.f32 %v3621, %v3921
      %v3960 = vld [vmem:[%s2] sm:$0x1]
      %v3962 = vlaneseq
      %v3963 = vshrl.u32 %v3962, 7
      %v3964 = vsub.s32 0, %v3963
      %v3965 = vrot.slane %v3960, %v3964
      %v3967 = vadd.f32 %v3924, %v3965
      %v3968 = vadd.f32 %v3925, %v3965
      %v3969 = vadd.f32 %v3926, %v3965
      %v3970 = vadd.f32 %v3927, %v3965
      %v3971 = vadd.f32 %v3928, %v3965
      %v3972 = vadd.f32 %v3929, %v3965
      %v3973 = vadd.f32 %v3930, %v3965
      %v3974 = vadd.f32 %v3931, %v3965
      %v3975 = vadd.f32 %v3932, %v3965
      %v3976 = vadd.f32 %v3933, %v3965
      %v3977 = vadd.f32 %v3934, %v3965
      %v3978 = vadd.f32 %v3935, %v3965
      %v3979 = vadd.f32 %v3936, %v3965
      %v3980 = vadd.f32 %v3937, %v3965
      %v3981 = vadd.f32 %v3938, %v3965
      %v3982 = vadd.f32 %v3939, %v3965
      %v3983 = vadd.f32 %v3940, %v3965
      %v3984 = vadd.f32 %v3941, %v3965
      %v3985 = vadd.f32 %v3942, %v3965
      %v3986 = vadd.f32 %v3943, %v3965
      %v3987 = vadd.f32 %v3944, %v3965
      %v3988 = vadd.f32 %v3945, %v3965
      %v3989 = vadd.f32 %v3946, %v3965
      %v3990 = vadd.f32 %v3947, %v3965
      %v3991 = vadd.f32 %v3948, %v3965
      %v3992 = vadd.f32 %v3949, %v3965
      %v3993 = vadd.f32 %v3950, %v3965
      %v3994 = vadd.f32 %v3951, %v3965
      %v3995 = vadd.f32 %v3952, %v3965
      %v3996 = vadd.f32 %v3953, %v3965
      %v3997 = vadd.f32 %v3954, %v3965
      %v3998 = vadd.f32 %v3955, %v3965
      %v3999 = vadd.f32 %v3956, %v3965
      %v4000 = vadd.f32 %v3957, %v3965
      %v4001 = vadd.f32 %v3958, %v3965
      %v4002 = vadd.f32 %v3959, %v3965
      %v4003 = vmax.f32 %v3967, 0.0
      %v4004 = vmax.f32 %v3968, 0.0
      %v4005 = vmax.f32 %v3969, 0.0
      %v4006 = vmax.f32 %v3970, 0.0
      %v4007 = vmax.f32 %v3971, 0.0
      %v4008 = vmax.f32 %v3972, 0.0
      %v4009 = vmax.f32 %v3973, 0.0
      %v4010 = vmax.f32 %v3974, 0.0
      %v4011 = vmax.f32 %v3975, 0.0
      %v4012 = vmax.f32 %v3976, 0.0
      %v4013 = vmax.f32 %v3977, 0.0
      %v4014 = vmax.f32 %v3978, 0.0
      %v4015 = vmax.f32 %v3979, 0.0
      %v4016 = vmax.f32 %v3980, 0.0
      %v4017 = vmax.f32 %v3981, 0.0
      %v4018 = vmax.f32 %v3982, 0.0
      %v4019 = vmax.f32 %v3983, 0.0
      %v4020 = vmax.f32 %v3984, 0.0
      %v4021 = vmax.f32 %v3985, 0.0
      %v4022 = vmax.f32 %v3986, 0.0
      %v4023 = vmax.f32 %v3987, 0.0
      %v4024 = vmax.f32 %v3988, 0.0
      %v4025 = vmax.f32 %v3989, 0.0
      %v4026 = vmax.f32 %v3990, 0.0
      %v4027 = vmax.f32 %v3991, 0.0
      %v4028 = vmax.f32 %v3992, 0.0
      %v4029 = vmax.f32 %v3993, 0.0
      %v4030 = vmax.f32 %v3994, 0.0
      %v4031 = vmax.f32 %v3995, 0.0
      %v4032 = vmax.f32 %v3996, 0.0
      %v4033 = vmax.f32 %v3997, 0.0
      %v4034 = vmax.f32 %v3998, 0.0
      %v4035 = vmax.f32 %v3999, 0.0
      %v4036 = vmax.f32 %v4000, 0.0
      %v4037 = vmax.f32 %v4001, 0.0
      %v4038 = vmax.f32 %v4002, 0.0
      %v4039 = vlaneseq
      %v4040 = vshrl.u32 %v4039, 7
      %v4041 = vadd.s32 %v4040, 8
      %v4042 = vadd.s32 %v4040, 16
      %v4043 = vadd.s32 %v4040, 24
      %v4044 = vadd.s32 %v4040, 32
      %v4045 = vadd.s32 %v4040, 40
      %v4046 = vadd.s32 %v4040, 48
      %v4047 = vadd.s32 %v4040, 56
      %v4048 = vadd.s32 %v4040, 64
      %v4049 = vadd.s32 %v4040, 72
      %v4050 = vadd.s32 %v4040, 80
      %v4051 = vadd.s32 %v4040, 88
      %v4052 = vadd.s32 %v4040, 96
      %v4053 = vadd.s32 %v4040, 104
      %v4054 = vadd.s32 %v4040, 112
      %v4055 = vadd.s32 %v4040, 120
      %v4056 = vadd.s32 %v4040, 128
      %v4057 = vadd.s32 %v4040, 136
      %v4058 = vadd.s32 %v4040, 144
      %v4059 = vadd.s32 %v4040, 152
      %v4060 = vadd.s32 %v4040, 160
      %v4061 = vadd.s32 %v4040, 168
      %v4062 = vadd.s32 %v4040, 176
      %v4063 = vadd.s32 %v4040, 184
      %v4064 = vadd.s32 %v4040, 192
      %v4065 = vadd.s32 %v4040, 200
      %v4066 = vadd.s32 %v4040, 208
      %v4067 = vadd.s32 %v4040, 216
      %v4068 = vadd.s32 %v4040, 224
      %v4069 = vadd.s32 %v4040, 232
      %v4070 = vadd.s32 %v4040, 240
      %v4071 = vadd.s32 %v4040, 248
      %v4072 = vadd.s32 %v4040, 256
      %v4073 = vadd.s32 %v4040, 264
      %v4074 = vadd.s32 %v4040, 272
      %v4075 = vadd.s32 %v4040, 280
      %vm4076 = vcmp.lt.s32.totalorder %v4040, 0
      %v4077 = vsub.s32 0, %v4040
      %v4078 = vsel %vm4076, %v4077, %v4040
      %v4079 = vmul.u32.u64.compose %v4078, 3817748708
      %v4080 = vextract.low.u32 %v4079
      %v4081 = vextract.high.u32 %v4079
      %v4082 = vshrl.u32 %v4081, 4
      %v4083 = vmul.u32 %v4082, 18
      %v4084 = vsub.s32 %v4078, %v4083
      %v4085 = vsub.s32 0, %v4084
      %v4086 = vsel %vm4076, %v4085, %v4084
      %vm4087 = vcmp.lt.s32.totalorder %v4041, 0
      %v4088 = vsub.s32 0, %v4041
      %v4089 = vsel %vm4087, %v4088, %v4041
      %v4090 = vmul.u32.u64.compose %v4089, 3817748708
      %v4091 = vextract.low.u32 %v4090
      %v4092 = vextract.high.u32 %v4090
      %v4093 = vshrl.u32 %v4092, 4
      %v4094 = vmul.u32 %v4093, 18
      %v4095 = vsub.s32 %v4089, %v4094
      %v4096 = vsub.s32 0, %v4095
      %v4097 = vsel %vm4087, %v4096, %v4095
      %vm4098 = vcmp.lt.s32.totalorder %v4042, 0
      %v4099 = vsub.s32 0, %v4042
      %v4100 = vsel %vm4098, %v4099, %v4042
      %v4101 = vmul.u32.u64.compose %v4100, 3817748708
      %v4102 = vextract.low.u32 %v4101
      %v4103 = vextract.high.u32 %v4101
      %v4104 = vshrl.u32 %v4103, 4
      %v4105 = vmul.u32 %v4104, 18
      %v4106 = vsub.s32 %v4100, %v4105
      %v4107 = vsub.s32 0, %v4106
      %v4108 = vsel %vm4098, %v4107, %v4106
      %vm4109 = vcmp.lt.s32.totalorder %v4043, 0
      %v4110 = vsub.s32 0, %v4043
      %v4111 = vsel %vm4109, %v4110, %v4043
      %v4112 = vmul.u32.u64.compose %v4111, 3817748708
      %v4113 = vextract.low.u32 %v4112
      %v4114 = vextract.high.u32 %v4112
      %v4115 = vshrl.u32 %v4114, 4
      %v4116 = vmul.u32 %v4115, 18
      %v4117 = vsub.s32 %v4111, %v4116
      %v4118 = vsub.s32 0, %v4117
      %v4119 = vsel %vm4109, %v4118, %v4117
      %vm4120 = vcmp.lt.s32.totalorder %v4044, 0
      %v4121 = vsub.s32 0, %v4044
      %v4122 = vsel %vm4120, %v4121, %v4044
      %v4123 = vmul.u32.u64.compose %v4122, 3817748708
      %v4124 = vextract.low.u32 %v4123
      %v4125 = vextract.high.u32 %v4123
      %v4126 = vshrl.u32 %v4125, 4
      %v4127 = vmul.u32 %v4126, 18
      %v4128 = vsub.s32 %v4122, %v4127
      %v4129 = vsub.s32 0, %v4128
      %v4130 = vsel %vm4120, %v4129, %v4128
      %vm4131 = vcmp.lt.s32.totalorder %v4045, 0
      %v4132 = vsub.s32 0, %v4045
      %v4133 = vsel %vm4131, %v4132, %v4045
      %v4134 = vmul.u32.u64.compose %v4133, 3817748708
      %v4135 = vextract.low.u32 %v4134
      %v4136 = vextract.high.u32 %v4134
      %v4137 = vshrl.u32 %v4136, 4
      %v4138 = vmul.u32 %v4137, 18
      %v4139 = vsub.s32 %v4133, %v4138
      %v4140 = vsub.s32 0, %v4139
      %v4141 = vsel %vm4131, %v4140, %v4139
      %vm4142 = vcmp.lt.s32.totalorder %v4046, 0
      %v4143 = vsub.s32 0, %v4046
      %v4144 = vsel %vm4142, %v4143, %v4046
      %v4145 = vmul.u32.u64.compose %v4144, 3817748708
      %v4146 = vextract.low.u32 %v4145
      %v4147 = vextract.high.u32 %v4145
      %v4148 = vshrl.u32 %v4147, 4
      %v4149 = vmul.u32 %v4148, 18
      %v4150 = vsub.s32 %v4144, %v4149
      %v4151 = vsub.s32 0, %v4150
      %v4152 = vsel %vm4142, %v4151, %v4150
      %vm4153 = vcmp.lt.s32.totalorder %v4047, 0
      %v4154 = vsub.s32 0, %v4047
      %v4155 = vsel %vm4153, %v4154, %v4047
      %v4156 = vmul.u32.u64.compose %v4155, 3817748708
      %v4157 = vextract.low.u32 %v4156
      %v4158 = vextract.high.u32 %v4156
      %v4159 = vshrl.u32 %v4158, 4
      %v4160 = vmul.u32 %v4159, 18
      %v4161 = vsub.s32 %v4155, %v4160
      %v4162 = vsub.s32 0, %v4161
      %v4163 = vsel %vm4153, %v4162, %v4161
      %vm4164 = vcmp.lt.s32.totalorder %v4048, 0
      %v4165 = vsub.s32 0, %v4048
      %v4166 = vsel %vm4164, %v4165, %v4048
      %v4167 = vmul.u32.u64.compose %v4166, 3817748708
      %v4168 = vextract.low.u32 %v4167
      %v4169 = vextract.high.u32 %v4167
      %v4170 = vshrl.u32 %v4169, 4
      %v4171 = vmul.u32 %v4170, 18
      %v4172 = vsub.s32 %v4166, %v4171
      %v4173 = vsub.s32 0, %v4172
      %v4174 = vsel %vm4164, %v4173, %v4172
      %vm4175 = vcmp.lt.s32.totalorder %v4049, 0
      %v4176 = vsub.s32 0, %v4049
      %v4177 = vsel %vm4175, %v4176, %v4049
      %v4178 = vmul.u32.u64.compose %v4177, 3817748708
      %v4179 = vextract.low.u32 %v4178
      %v4180 = vextract.high.u32 %v4178
      %v4181 = vshrl.u32 %v4180, 4
      %v4182 = vmul.u32 %v4181, 18
      %v4183 = vsub.s32 %v4177, %v4182
      %v4184 = vsub.s32 0, %v4183
      %v4185 = vsel %vm4175, %v4184, %v4183
      %vm4186 = vcmp.lt.s32.totalorder %v4050, 0
      %v4187 = vsub.s32 0, %v4050
      %v4188 = vsel %vm4186, %v4187, %v4050
      %v4189 = vmul.u32.u64.compose %v4188, 3817748708
      %v4190 = vextract.low.u32 %v4189
      %v4191 = vextract.high.u32 %v4189
      %v4192 = vshrl.u32 %v4191, 4
      %v4193 = vmul.u32 %v4192, 18
      %v4194 = vsub.s32 %v4188, %v4193
      %v4195 = vsub.s32 0, %v4194
      %v4196 = vsel %vm4186, %v4195, %v4194
      %vm4197 = vcmp.lt.s32.totalorder %v4051, 0
      %v4198 = vsub.s32 0, %v4051
      %v4199 = vsel %vm4197, %v4198, %v4051
      %v4200 = vmul.u32.u64.compose %v4199, 3817748708
      %v4201 = vextract.low.u32 %v4200
      %v4202 = vextract.high.u32 %v4200
      %v4203 = vshrl.u32 %v4202, 4
      %v4204 = vmul.u32 %v4203, 18
      %v4205 = vsub.s32 %v4199, %v4204
      %v4206 = vsub.s32 0, %v4205
      %v4207 = vsel %vm4197, %v4206, %v4205
      %vm4208 = vcmp.lt.s32.totalorder %v4052, 0
      %v4209 = vsub.s32 0, %v4052
      %v4210 = vsel %vm4208, %v4209, %v4052
      %v4211 = vmul.u32.u64.compose %v4210, 3817748708
      %v4212 = vextract.low.u32 %v4211
      %v4213 = vextract.high.u32 %v4211
      %v4214 = vshrl.u32 %v4213, 4
      %v4215 = vmul.u32 %v4214, 18
      %v4216 = vsub.s32 %v4210, %v4215
      %v4217 = vsub.s32 0, %v4216
      %v4218 = vsel %vm4208, %v4217, %v4216
      %vm4219 = vcmp.lt.s32.totalorder %v4053, 0
      %v4220 = vsub.s32 0, %v4053
      %v4221 = vsel %vm4219, %v4220, %v4053
      %v4222 = vmul.u32.u64.compose %v4221, 3817748708
      %v4223 = vextract.low.u32 %v4222
      %v4224 = vextract.high.u32 %v4222
      %v4225 = vshrl.u32 %v4224, 4
      %v4226 = vmul.u32 %v4225, 18
      %v4227 = vsub.s32 %v4221, %v4226
      %v4228 = vsub.s32 0, %v4227
      %v4229 = vsel %vm4219, %v4228, %v4227
      %vm4230 = vcmp.lt.s32.totalorder %v4054, 0
      %v4231 = vsub.s32 0, %v4054
      %v4232 = vsel %vm4230, %v4231, %v4054
      %v4233 = vmul.u32.u64.compose %v4232, 3817748708
      %v4234 = vextract.low.u32 %v4233
      %v4235 = vextract.high.u32 %v4233
      %v4236 = vshrl.u32 %v4235, 4
      %v4237 = vmul.u32 %v4236, 18
      %v4238 = vsub.s32 %v4232, %v4237
      %v4239 = vsub.s32 0, %v4238
      %v4240 = vsel %vm4230, %v4239, %v4238
      %vm4241 = vcmp.lt.s32.totalorder %v4055, 0
      %v4242 = vsub.s32 0, %v4055
      %v4243 = vsel %vm4241, %v4242, %v4055
      %v4244 = vmul.u32.u64.compose %v4243, 3817748708
      %v4245 = vextract.low.u32 %v4244
      %v4246 = vextract.high.u32 %v4244
      %v4247 = vshrl.u32 %v4246, 4
      %v4248 = vmul.u32 %v4247, 18
      %v4249 = vsub.s32 %v4243, %v4248
      %v4250 = vsub.s32 0, %v4249
      %v4251 = vsel %vm4241, %v4250, %v4249
      %vm4252 = vcmp.lt.s32.totalorder %v4056, 0
      %v4253 = vsub.s32 0, %v4056
      %v4254 = vsel %vm4252, %v4253, %v4056
      %v4255 = vmul.u32.u64.compose %v4254, 3817748708
      %v4256 = vextract.low.u32 %v4255
      %v4257 = vextract.high.u32 %v4255
      %v4258 = vshrl.u32 %v4257, 4
      %v4259 = vmul.u32 %v4258, 18
      %v4260 = vsub.s32 %v4254, %v4259
      %v4261 = vsub.s32 0, %v4260
      %v4262 = vsel %vm4252, %v4261, %v4260
      %vm4263 = vcmp.lt.s32.totalorder %v4057, 0
      %v4264 = vsub.s32 0, %v4057
      %v4265 = vsel %vm4263, %v4264, %v4057
      %v4266 = vmul.u32.u64.compose %v4265, 3817748708
      %v4267 = vextract.low.u32 %v4266
      %v4268 = vextract.high.u32 %v4266
      %v4269 = vshrl.u32 %v4268, 4
      %v4270 = vmul.u32 %v4269, 18
      %v4271 = vsub.s32 %v4265, %v4270
      %v4272 = vsub.s32 0, %v4271
      %v4273 = vsel %vm4263, %v4272, %v4271
      %vm4274 = vcmp.lt.s32.totalorder %v4058, 0
      %v4275 = vsub.s32 0, %v4058
      %v4276 = vsel %vm4274, %v4275, %v4058
      %v4277 = vmul.u32.u64.compose %v4276, 3817748708
      %v4278 = vextract.low.u32 %v4277
      %v4279 = vextract.high.u32 %v4277
      %v4280 = vshrl.u32 %v4279, 4
      %v4281 = vmul.u32 %v4280, 18
      %v4282 = vsub.s32 %v4276, %v4281
      %v4283 = vsub.s32 0, %v4282
      %v4284 = vsel %vm4274, %v4283, %v4282
      %vm4285 = vcmp.lt.s32.totalorder %v4059, 0
      %v4286 = vsub.s32 0, %v4059
      %v4287 = vsel %vm4285, %v4286, %v4059
      %v4288 = vmul.u32.u64.compose %v4287, 3817748708
      %v4289 = vextract.low.u32 %v4288
      %v4290 = vextract.high.u32 %v4288
      %v4291 = vshrl.u32 %v4290, 4
      %v4292 = vmul.u32 %v4291, 18
      %v4293 = vsub.s32 %v4287, %v4292
      %v4294 = vsub.s32 0, %v4293
      %v4295 = vsel %vm4285, %v4294, %v4293
      %vm4296 = vcmp.lt.s32.totalorder %v4060, 0
      %v4297 = vsub.s32 0, %v4060
      %v4298 = vsel %vm4296, %v4297, %v4060
      %v4299 = vmul.u32.u64.compose %v4298, 3817748708
      %v4300 = vextract.low.u32 %v4299
      %v4301 = vextract.high.u32 %v4299
      %v4302 = vshrl.u32 %v4301, 4
      %v4303 = vmul.u32 %v4302, 18
      %v4304 = vsub.s32 %v4298, %v4303
      %v4305 = vsub.s32 0, %v4304
      %v4306 = vsel %vm4296, %v4305, %v4304
      %vm4307 = vcmp.lt.s32.totalorder %v4061, 0
      %v4308 = vsub.s32 0, %v4061
      %v4309 = vsel %vm4307, %v4308, %v4061
      %v4310 = vmul.u32.u64.compose %v4309, 3817748708
      %v4311 = vextract.low.u32 %v4310
      %v4312 = vextract.high.u32 %v4310
      %v4313 = vshrl.u32 %v4312, 4
      %v4314 = vmul.u32 %v4313, 18
      %v4315 = vsub.s32 %v4309, %v4314
      %v4316 = vsub.s32 0, %v4315
      %v4317 = vsel %vm4307, %v4316, %v4315
      %vm4318 = vcmp.lt.s32.totalorder %v4062, 0
      %v4319 = vsub.s32 0, %v4062
      %v4320 = vsel %vm4318, %v4319, %v4062
      %v4321 = vmul.u32.u64.compose %v4320, 3817748708
      %v4322 = vextract.low.u32 %v4321
      %v4323 = vextract.high.u32 %v4321
      %v4324 = vshrl.u32 %v4323, 4
      %v4325 = vmul.u32 %v4324, 18
      %v4326 = vsub.s32 %v4320, %v4325
      %v4327 = vsub.s32 0, %v4326
      %v4328 = vsel %vm4318, %v4327, %v4326
      %vm4329 = vcmp.lt.s32.totalorder %v4063, 0
      %v4330 = vsub.s32 0, %v4063
      %v4331 = vsel %vm4329, %v4330, %v4063
      %v4332 = vmul.u32.u64.compose %v4331, 3817748708
      %v4333 = vextract.low.u32 %v4332
      %v4334 = vextract.high.u32 %v4332
      %v4335 = vshrl.u32 %v4334, 4
      %v4336 = vmul.u32 %v4335, 18
      %v4337 = vsub.s32 %v4331, %v4336
      %v4338 = vsub.s32 0, %v4337
      %v4339 = vsel %vm4329, %v4338, %v4337
      %vm4340 = vcmp.lt.s32.totalorder %v4064, 0
      %v4341 = vsub.s32 0, %v4064
      %v4342 = vsel %vm4340, %v4341, %v4064
      %v4343 = vmul.u32.u64.compose %v4342, 3817748708
      %v4344 = vextract.low.u32 %v4343
      %v4345 = vextract.high.u32 %v4343
      %v4346 = vshrl.u32 %v4345, 4
      %v4347 = vmul.u32 %v4346, 18
      %v4348 = vsub.s32 %v4342, %v4347
      %v4349 = vsub.s32 0, %v4348
      %v4350 = vsel %vm4340, %v4349, %v4348
      %vm4351 = vcmp.lt.s32.totalorder %v4065, 0
      %v4352 = vsub.s32 0, %v4065
      %v4353 = vsel %vm4351, %v4352, %v4065
      %v4354 = vmul.u32.u64.compose %v4353, 3817748708
      %v4355 = vextract.low.u32 %v4354
      %v4356 = vextract.high.u32 %v4354
      %v4357 = vshrl.u32 %v4356, 4
      %v4358 = vmul.u32 %v4357, 18
      %v4359 = vsub.s32 %v4353, %v4358
      %v4360 = vsub.s32 0, %v4359
      %v4361 = vsel %vm4351, %v4360, %v4359
      %vm4362 = vcmp.lt.s32.totalorder %v4066, 0
      %v4363 = vsub.s32 0, %v4066
      %v4364 = vsel %vm4362, %v4363, %v4066
      %v4365 = vmul.u32.u64.compose %v4364, 3817748708
      %v4366 = vextract.low.u32 %v4365
      %v4367 = vextract.high.u32 %v4365
      %v4368 = vshrl.u32 %v4367, 4
      %v4369 = vmul.u32 %v4368, 18
      %v4370 = vsub.s32 %v4364, %v4369
      %v4371 = vsub.s32 0, %v4370
      %v4372 = vsel %vm4362, %v4371, %v4370
      %vm4373 = vcmp.lt.s32.totalorder %v4067, 0
      %v4374 = vsub.s32 0, %v4067
      %v4375 = vsel %vm4373, %v4374, %v4067
      %v4376 = vmul.u32.u64.compose %v4375, 3817748708
      %v4377 = vextract.low.u32 %v4376
      %v4378 = vextract.high.u32 %v4376
      %v4379 = vshrl.u32 %v4378, 4
      %v4380 = vmul.u32 %v4379, 18
      %v4381 = vsub.s32 %v4375, %v4380
      %v4382 = vsub.s32 0, %v4381
      %v4383 = vsel %vm4373, %v4382, %v4381
      %vm4384 = vcmp.lt.s32.totalorder %v4068, 0
      %v4385 = vsub.s32 0, %v4068
      %v4386 = vsel %vm4384, %v4385, %v4068
      %v4387 = vmul.u32.u64.compose %v4386, 3817748708
      %v4388 = vextract.low.u32 %v4387
      %v4389 = vextract.high.u32 %v4387
      %v4390 = vshrl.u32 %v4389, 4
      %v4391 = vmul.u32 %v4390, 18
      %v4392 = vsub.s32 %v4386, %v4391
      %v4393 = vsub.s32 0, %v4392
      %v4394 = vsel %vm4384, %v4393, %v4392
      %vm4395 = vcmp.lt.s32.totalorder %v4069, 0
      %v4396 = vsub.s32 0, %v4069
      %v4397 = vsel %vm4395, %v4396, %v4069
      %v4398 = vmul.u32.u64.compose %v4397, 3817748708
      %v4399 = vextract.low.u32 %v4398
      %v4400 = vextract.high.u32 %v4398
      %v4401 = vshrl.u32 %v4400, 4
      %v4402 = vmul.u32 %v4401, 18
      %v4403 = vsub.s32 %v4397, %v4402
      %v4404 = vsub.s32 0, %v4403
      %v4405 = vsel %vm4395, %v4404, %v4403
      %vm4406 = vcmp.lt.s32.totalorder %v4070, 0
      %v4407 = vsub.s32 0, %v4070
      %v4408 = vsel %vm4406, %v4407, %v4070
      %v4409 = vmul.u32.u64.compose %v4408, 3817748708
      %v4410 = vextract.low.u32 %v4409
      %v4411 = vextract.high.u32 %v4409
      %v4412 = vshrl.u32 %v4411, 4
      %v4413 = vmul.u32 %v4412, 18
      %v4414 = vsub.s32 %v4408, %v4413
      %v4415 = vsub.s32 0, %v4414
      %v4416 = vsel %vm4406, %v4415, %v4414
      %vm4417 = vcmp.lt.s32.totalorder %v4071, 0
      %v4418 = vsub.s32 0, %v4071
      %v4419 = vsel %vm4417, %v4418, %v4071
      %v4420 = vmul.u32.u64.compose %v4419, 3817748708
      %v4421 = vextract.low.u32 %v4420
      %v4422 = vextract.high.u32 %v4420
      %v4423 = vshrl.u32 %v4422, 4
      %v4424 = vmul.u32 %v4423, 18
      %v4425 = vsub.s32 %v4419, %v4424
      %v4426 = vsub.s32 0, %v4425
      %v4427 = vsel %vm4417, %v4426, %v4425
      %vm4428 = vcmp.lt.s32.totalorder %v4072, 0
      %v4429 = vsub.s32 0, %v4072
      %v4430 = vsel %vm4428, %v4429, %v4072
      %v4431 = vmul.u32.u64.compose %v4430, 3817748708
      %v4432 = vextract.low.u32 %v4431
      %v4433 = vextract.high.u32 %v4431
      %v4434 = vshrl.u32 %v4433, 4
      %v4435 = vmul.u32 %v4434, 18
      %v4436 = vsub.s32 %v4430, %v4435
      %v4437 = vsub.s32 0, %v4436
      %v4438 = vsel %vm4428, %v4437, %v4436
      %vm4439 = vcmp.lt.s32.totalorder %v4073, 0
      %v4440 = vsub.s32 0, %v4073
      %v4441 = vsel %vm4439, %v4440, %v4073
      %v4442 = vmul.u32.u64.compose %v4441, 3817748708
      %v4443 = vextract.low.u32 %v4442
      %v4444 = vextract.high.u32 %v4442
      %v4445 = vshrl.u32 %v4444, 4
      %v4446 = vmul.u32 %v4445, 18
      %v4447 = vsub.s32 %v4441, %v4446
      %v4448 = vsub.s32 0, %v4447
      %v4449 = vsel %vm4439, %v4448, %v4447
      %vm4450 = vcmp.lt.s32.totalorder %v4074, 0
      %v4451 = vsub.s32 0, %v4074
      %v4452 = vsel %vm4450, %v4451, %v4074
      %v4453 = vmul.u32.u64.compose %v4452, 3817748708
      %v4454 = vextract.low.u32 %v4453
      %v4455 = vextract.high.u32 %v4453
      %v4456 = vshrl.u32 %v4455, 4
      %v4457 = vmul.u32 %v4456, 18
      %v4458 = vsub.s32 %v4452, %v4457
      %v4459 = vsub.s32 0, %v4458
      %v4460 = vsel %vm4450, %v4459, %v4458
      %vm4461 = vcmp.lt.s32.totalorder %v4075, 0
      %v4462 = vsub.s32 0, %v4075
      %v4463 = vsel %vm4461, %v4462, %v4075
      %v4464 = vmul.u32.u64.compose %v4463, 3817748708
      %v4465 = vextract.low.u32 %v4464
      %v4466 = vextract.high.u32 %v4464
      %v4467 = vshrl.u32 %v4466, 4
      %v4468 = vmul.u32 %v4467, 18
      %v4469 = vsub.s32 %v4463, %v4468
      %v4470 = vsub.s32 0, %v4469
      %v4471 = vsel %vm4461, %v4470, %v4469
      %vm4472 = vcmp.ne.s32.totalorder %v4086, 0
      %vm4473 = vcmp.ne.s32.totalorder %v4097, 0
      %vm4474 = vcmp.ne.s32.totalorder %v4108, 0
      %vm4475 = vcmp.ne.s32.totalorder %v4119, 0
      %vm4476 = vcmp.ne.s32.totalorder %v4130, 0
      %vm4477 = vcmp.ne.s32.totalorder %v4141, 0
      %vm4478 = vcmp.ne.s32.totalorder %v4152, 0
      %vm4479 = vcmp.ne.s32.totalorder %v4163, 0
      %vm4480 = vcmp.ne.s32.totalorder %v4174, 0
      %vm4481 = vcmp.ne.s32.totalorder %v4185, 0
      %vm4482 = vcmp.ne.s32.totalorder %v4196, 0
      %vm4483 = vcmp.ne.s32.totalorder %v4207, 0
      %vm4484 = vcmp.ne.s32.totalorder %v4218, 0
      %vm4485 = vcmp.ne.s32.totalorder %v4229, 0
      %vm4486 = vcmp.ne.s32.totalorder %v4240, 0
      %vm4487 = vcmp.ne.s32.totalorder %v4251, 0
      %vm4488 = vcmp.ne.s32.totalorder %v4262, 0
      %vm4489 = vcmp.ne.s32.totalorder %v4273, 0
      %vm4490 = vcmp.ne.s32.totalorder %v4284, 0
      %vm4491 = vcmp.ne.s32.totalorder %v4295, 0
      %vm4492 = vcmp.ne.s32.totalorder %v4306, 0
      %vm4493 = vcmp.ne.s32.totalorder %v4317, 0
      %vm4494 = vcmp.ne.s32.totalorder %v4328, 0
      %vm4495 = vcmp.ne.s32.totalorder %v4339, 0
      %vm4496 = vcmp.ne.s32.totalorder %v4350, 0
      %vm4497 = vcmp.ne.s32.totalorder %v4361, 0
      %vm4498 = vcmp.ne.s32.totalorder %v4372, 0
      %vm4499 = vcmp.ne.s32.totalorder %v4383, 0
      %vm4500 = vcmp.ne.s32.totalorder %v4394, 0
      %vm4501 = vcmp.ne.s32.totalorder %v4405, 0
      %vm4502 = vcmp.ne.s32.totalorder %v4416, 0
      %vm4503 = vcmp.ne.s32.totalorder %v4427, 0
      %vm4504 = vcmp.ne.s32.totalorder %v4438, 0
      %vm4505 = vcmp.ne.s32.totalorder %v4449, 0
      %vm4506 = vcmp.ne.s32.totalorder %v4460, 0
      %vm4507 = vcmp.ne.s32.totalorder %v4471, 0
      %vm4508 = vcmp.lt.s32.totalorder %v4086, 0
      %vm4509 = vcmp.lt.s32.totalorder %v4097, 0
      %vm4510 = vcmp.lt.s32.totalorder %v4108, 0
      %vm4511 = vcmp.lt.s32.totalorder %v4119, 0
      %vm4512 = vcmp.lt.s32.totalorder %v4130, 0
      %vm4513 = vcmp.lt.s32.totalorder %v4141, 0
      %vm4514 = vcmp.lt.s32.totalorder %v4152, 0
      %vm4515 = vcmp.lt.s32.totalorder %v4163, 0
      %vm4516 = vcmp.lt.s32.totalorder %v4174, 0
      %vm4517 = vcmp.lt.s32.totalorder %v4185, 0
      %vm4518 = vcmp.lt.s32.totalorder %v4196, 0
      %vm4519 = vcmp.lt.s32.totalorder %v4207, 0
      %vm4520 = vcmp.lt.s32.totalorder %v4218, 0
      %vm4521 = vcmp.lt.s32.totalorder %v4229, 0
      %vm4522 = vcmp.lt.s32.totalorder %v4240, 0
      %vm4523 = vcmp.lt.s32.totalorder %v4251, 0
      %vm4524 = vcmp.lt.s32.totalorder %v4262, 0
      %vm4525 = vcmp.lt.s32.totalorder %v4273, 0
      %vm4526 = vcmp.lt.s32.totalorder %v4284, 0
      %vm4527 = vcmp.lt.s32.totalorder %v4295, 0
      %vm4528 = vcmp.lt.s32.totalorder %v4306, 0
      %vm4529 = vcmp.lt.s32.totalorder %v4317, 0
      %vm4530 = vcmp.lt.s32.totalorder %v4328, 0
      %vm4531 = vcmp.lt.s32.totalorder %v4339, 0
      %vm4532 = vcmp.lt.s32.totalorder %v4350, 0
      %vm4533 = vcmp.lt.s32.totalorder %v4361, 0
      %vm4534 = vcmp.lt.s32.totalorder %v4372, 0
      %vm4535 = vcmp.lt.s32.totalorder %v4383, 0
      %vm4536 = vcmp.lt.s32.totalorder %v4394, 0
      %vm4537 = vcmp.lt.s32.totalorder %v4405, 0
      %vm4538 = vcmp.lt.s32.totalorder %v4416, 0
      %vm4539 = vcmp.lt.s32.totalorder %v4427, 0
      %vm4540 = vcmp.lt.s32.totalorder %v4438, 0
      %vm4541 = vcmp.lt.s32.totalorder %v4449, 0
      %vm4542 = vcmp.lt.s32.totalorder %v4460, 0
      %vm4543 = vcmp.lt.s32.totalorder %v4471, 0
      %vm4544 = vmand %vm4508, %vm4472
      %vm4545 = vmand %vm4509, %vm4473
      %vm4546 = vmand %vm4510, %vm4474
      %vm4547 = vmand %vm4511, %vm4475
      %vm4548 = vmand %vm4512, %vm4476
      %vm4549 = vmand %vm4513, %vm4477
      %vm4550 = vmand %vm4514, %vm4478
      %vm4551 = vmand %vm4515, %vm4479
      %vm4552 = vmand %vm4516, %vm4480
      %vm4553 = vmand %vm4517, %vm4481
      %vm4554 = vmand %vm4518, %vm4482
      %vm4555 = vmand %vm4519, %vm4483
      %vm4556 = vmand %vm4520, %vm4484
      %vm4557 = vmand %vm4521, %vm4485
      %vm4558 = vmand %vm4522, %vm4486
      %vm4559 = vmand %vm4523, %vm4487
      %vm4560 = vmand %vm4524, %vm4488
      %vm4561 = vmand %vm4525, %vm4489
      %vm4562 = vmand %vm4526, %vm4490
      %vm4563 = vmand %vm4527, %vm4491
      %vm4564 = vmand %vm4528, %vm4492
      %vm4565 = vmand %vm4529, %vm4493
      %vm4566 = vmand %vm4530, %vm4494
      %vm4567 = vmand %vm4531, %vm4495
      %vm4568 = vmand %vm4532, %vm4496
      %vm4569 = vmand %vm4533, %vm4497
      %vm4570 = vmand %vm4534, %vm4498
      %vm4571 = vmand %vm4535, %vm4499
      %vm4572 = vmand %vm4536, %vm4500
      %vm4573 = vmand %vm4537, %vm4501
      %vm4574 = vmand %vm4538, %vm4502
      %vm4575 = vmand %vm4539, %vm4503
      %vm4576 = vmand %vm4540, %vm4504
      %vm4577 = vmand %vm4541, %vm4505
      %vm4578 = vmand %vm4542, %vm4506
      %vm4579 = vmand %vm4543, %vm4507
      %v4580 = vadd.s32 %v4086, 18
      %v4581 = vadd.s32 %v4097, 18
      %v4582 = vadd.s32 %v4108, 18
      %v4583 = vadd.s32 %v4119, 18
      %v4584 = vadd.s32 %v4130, 18
      %v4585 = vadd.s32 %v4141, 18
      %v4586 = vadd.s32 %v4152, 18
      %v4587 = vadd.s32 %v4163, 18
      %v4588 = vadd.s32 %v4174, 18
      %v4589 = vadd.s32 %v4185, 18
      %v4590 = vadd.s32 %v4196, 18
      %v4591 = vadd.s32 %v4207, 18
      %v4592 = vadd.s32 %v4218, 18
      %v4593 = vadd.s32 %v4229, 18
      %v4594 = vadd.s32 %v4240, 18
      %v4595 = vadd.s32 %v4251, 18
      %v4596 = vadd.s32 %v4262, 18
      %v4597 = vadd.s32 %v4273, 18
      %v4598 = vadd.s32 %v4284, 18
      %v4599 = vadd.s32 %v4295, 18
      %v4600 = vadd.s32 %v4306, 18
      %v4601 = vadd.s32 %v4317, 18
      %v4602 = vadd.s32 %v4328, 18
      %v4603 = vadd.s32 %v4339, 18
      %v4604 = vadd.s32 %v4350, 18
      %v4605 = vadd.s32 %v4361, 18
      %v4606 = vadd.s32 %v4372, 18
      %v4607 = vadd.s32 %v4383, 18
      %v4608 = vadd.s32 %v4394, 18
      %v4609 = vadd.s32 %v4405, 18
      %v4610 = vadd.s32 %v4416, 18
      %v4611 = vadd.s32 %v4427, 18
      %v4612 = vadd.s32 %v4438, 18
      %v4613 = vadd.s32 %v4449, 18
      %v4614 = vadd.s32 %v4460, 18
      %v4615 = vadd.s32 %v4471, 18
      %v4616 = vsel %vm4544, %v4580, %v4086
      %v4617 = vsel %vm4545, %v4581, %v4097
      %v4618 = vsel %vm4546, %v4582, %v4108
      %v4619 = vsel %vm4547, %v4583, %v4119
      %v4620 = vsel %vm4548, %v4584, %v4130
      %v4621 = vsel %vm4549, %v4585, %v4141
      %v4622 = vsel %vm4550, %v4586, %v4152
      %v4623 = vsel %vm4551, %v4587, %v4163
      %v4624 = vsel %vm4552, %v4588, %v4174
      %v4625 = vsel %vm4553, %v4589, %v4185
      %v4626 = vsel %vm4554, %v4590, %v4196
      %v4627 = vsel %vm4555, %v4591, %v4207
      %v4628 = vsel %vm4556, %v4592, %v4218
      %v4629 = vsel %vm4557, %v4593, %v4229
      %v4630 = vsel %vm4558, %v4594, %v4240
      %v4631 = vsel %vm4559, %v4595, %v4251
      %v4632 = vsel %vm4560, %v4596, %v4262
      %v4633 = vsel %vm4561, %v4597, %v4273
      %v4634 = vsel %vm4562, %v4598, %v4284
      %v4635 = vsel %vm4563, %v4599, %v4295
      %v4636 = vsel %vm4564, %v4600, %v4306
      %v4637 = vsel %vm4565, %v4601, %v4317
      %v4638 = vsel %vm4566, %v4602, %v4328
      %v4639 = vsel %vm4567, %v4603, %v4339
      %v4640 = vsel %vm4568, %v4604, %v4350
      %v4641 = vsel %vm4569, %v4605, %v4361
      %v4642 = vsel %vm4570, %v4606, %v4372
      %v4643 = vsel %vm4571, %v4607, %v4383
      %v4644 = vsel %vm4572, %v4608, %v4394
      %v4645 = vsel %vm4573, %v4609, %v4405
      %v4646 = vsel %vm4574, %v4610, %v4416
      %v4647 = vsel %vm4575, %v4611, %v4427
      %v4648 = vsel %vm4576, %v4612, %v4438
      %v4649 = vsel %vm4577, %v4613, %v4449
      %v4650 = vsel %vm4578, %v4614, %v4460
      %v4651 = vsel %vm4579, %v4615, %v4471
      %vm4652 = vcmp.lt.s32.totalorder %v4616, 16
      %vm4653 = vcmp.lt.s32.totalorder %v4617, 16
      %vm4654 = vcmp.lt.s32.totalorder %v4618, 16
      %vm4655 = vcmp.lt.s32.totalorder %v4619, 16
      %vm4656 = vcmp.lt.s32.totalorder %v4620, 16
      %vm4657 = vcmp.lt.s32.totalorder %v4621, 16
      %vm4658 = vcmp.lt.s32.totalorder %v4622, 16
      %vm4659 = vcmp.lt.s32.totalorder %v4623, 16
      %vm4660 = vcmp.lt.s32.totalorder %v4624, 16
      %vm4661 = vcmp.lt.s32.totalorder %v4625, 16
      %vm4662 = vcmp.lt.s32.totalorder %v4626, 16
      %vm4663 = vcmp.lt.s32.totalorder %v4627, 16
      %vm4664 = vcmp.lt.s32.totalorder %v4628, 16
      %vm4665 = vcmp.lt.s32.totalorder %v4629, 16
      %vm4666 = vcmp.lt.s32.totalorder %v4630, 16
      %vm4667 = vcmp.lt.s32.totalorder %v4631, 16
      %vm4668 = vcmp.lt.s32.totalorder %v4632, 16
      %vm4669 = vcmp.lt.s32.totalorder %v4633, 16
      %vm4670 = vcmp.lt.s32.totalorder %v4634, 16
      %vm4671 = vcmp.lt.s32.totalorder %v4635, 16
      %vm4672 = vcmp.lt.s32.totalorder %v4636, 16
      %vm4673 = vcmp.lt.s32.totalorder %v4637, 16
      %vm4674 = vcmp.lt.s32.totalorder %v4638, 16
      %vm4675 = vcmp.lt.s32.totalorder %v4639, 16
      %vm4676 = vcmp.lt.s32.totalorder %v4640, 16
      %vm4677 = vcmp.lt.s32.totalorder %v4641, 16
      %vm4678 = vcmp.lt.s32.totalorder %v4642, 16
      %vm4679 = vcmp.lt.s32.totalorder %v4643, 16
      %vm4680 = vcmp.lt.s32.totalorder %v4644, 16
      %vm4681 = vcmp.lt.s32.totalorder %v4645, 16
      %vm4682 = vcmp.lt.s32.totalorder %v4646, 16
      %vm4683 = vcmp.lt.s32.totalorder %v4647, 16
      %vm4684 = vcmp.lt.s32.totalorder %v4648, 16
      %vm4685 = vcmp.lt.s32.totalorder %v4649, 16
      %vm4686 = vcmp.lt.s32.totalorder %v4650, 16
      %vm4687 = vcmp.lt.s32.totalorder %v4651, 16
      %v4688 = vsel %vm4652, 1, 0
      %v4689 = vsel %vm4653, 1, 0
      %v4690 = vsel %vm4654, 1, 0
      %v4691 = vsel %vm4655, 1, 0
      %v4692 = vsel %vm4656, 1, 0
      %v4693 = vsel %vm4657, 1, 0
      %v4694 = vsel %vm4658, 1, 0
      %v4695 = vsel %vm4659, 1, 0
      %v4696 = vsel %vm4660, 1, 0
      %v4697 = vsel %vm4661, 1, 0
      %v4698 = vsel %vm4662, 1, 0
      %v4699 = vsel %vm4663, 1, 0
      %v4700 = vsel %vm4664, 1, 0
      %v4701 = vsel %vm4665, 1, 0
      %v4702 = vsel %vm4666, 1, 0
      %v4703 = vsel %vm4667, 1, 0
      %v4704 = vsel %vm4668, 1, 0
      %v4705 = vsel %vm4669, 1, 0
      %v4706 = vsel %vm4670, 1, 0
      %v4707 = vsel %vm4671, 1, 0
      %v4708 = vsel %vm4672, 1, 0
      %v4709 = vsel %vm4673, 1, 0
      %v4710 = vsel %vm4674, 1, 0
      %v4711 = vsel %vm4675, 1, 0
      %v4712 = vsel %vm4676, 1, 0
      %v4713 = vsel %vm4677, 1, 0
      %v4714 = vsel %vm4678, 1, 0
      %v4715 = vsel %vm4679, 1, 0
      %v4716 = vsel %vm4680, 1, 0
      %v4717 = vsel %vm4681, 1, 0
      %v4718 = vsel %vm4682, 1, 0
      %v4719 = vsel %vm4683, 1, 0
      %v4720 = vsel %vm4684, 1, 0
      %v4721 = vsel %vm4685, 1, 0
      %v4722 = vsel %vm4686, 1, 0
      %v4723 = vsel %vm4687, 1, 0
      %vm4724 = vcmp.eq.s32.totalorder %v4688, 1
      %vm4725 = vcmp.eq.s32.totalorder %v4689, 1
      %vm4726 = vcmp.eq.s32.totalorder %v4690, 1
      %vm4727 = vcmp.eq.s32.totalorder %v4691, 1
      %vm4728 = vcmp.eq.s32.totalorder %v4692, 1
      %vm4729 = vcmp.eq.s32.totalorder %v4693, 1
      %vm4730 = vcmp.eq.s32.totalorder %v4694, 1
      %vm4731 = vcmp.eq.s32.totalorder %v4695, 1
      %vm4732 = vcmp.eq.s32.totalorder %v4696, 1
      %vm4733 = vcmp.eq.s32.totalorder %v4697, 1
      %vm4734 = vcmp.eq.s32.totalorder %v4698, 1
      %vm4735 = vcmp.eq.s32.totalorder %v4699, 1
      %vm4736 = vcmp.eq.s32.totalorder %v4700, 1
      %vm4737 = vcmp.eq.s32.totalorder %v4701, 1
      %vm4738 = vcmp.eq.s32.totalorder %v4702, 1
      %vm4739 = vcmp.eq.s32.totalorder %v4703, 1
      %vm4740 = vcmp.eq.s32.totalorder %v4704, 1
      %vm4741 = vcmp.eq.s32.totalorder %v4705, 1
      %vm4742 = vcmp.eq.s32.totalorder %v4706, 1
      %vm4743 = vcmp.eq.s32.totalorder %v4707, 1
      %vm4744 = vcmp.eq.s32.totalorder %v4708, 1
      %vm4745 = vcmp.eq.s32.totalorder %v4709, 1
      %vm4746 = vcmp.eq.s32.totalorder %v4710, 1
      %vm4747 = vcmp.eq.s32.totalorder %v4711, 1
      %vm4748 = vcmp.eq.s32.totalorder %v4712, 1
      %vm4749 = vcmp.eq.s32.totalorder %v4713, 1
      %vm4750 = vcmp.eq.s32.totalorder %v4714, 1
      %vm4751 = vcmp.eq.s32.totalorder %v4715, 1
      %vm4752 = vcmp.eq.s32.totalorder %v4716, 1
      %vm4753 = vcmp.eq.s32.totalorder %v4717, 1
      %vm4754 = vcmp.eq.s32.totalorder %v4718, 1
      %vm4755 = vcmp.eq.s32.totalorder %v4719, 1
      %vm4756 = vcmp.eq.s32.totalorder %v4720, 1
      %vm4757 = vcmp.eq.s32.totalorder %v4721, 1
      %vm4758 = vcmp.eq.s32.totalorder %v4722, 1
      %vm4759 = vcmp.eq.s32.totalorder %v4723, 1
      %v4760 = vsel %vm4724, %v4003, 0.0
      %v4761 = vsel %vm4725, %v4004, 0.0
      %v4762 = vsel %vm4726, %v4005, 0.0
      %v4763 = vsel %vm4727, %v4006, 0.0
      %v4764 = vsel %vm4728, %v4007, 0.0
      %v4765 = vsel %vm4729, %v4008, 0.0
      %v4766 = vsel %vm4730, %v4009, 0.0
      %v4767 = vsel %vm4731, %v4010, 0.0
      %v4768 = vsel %vm4732, %v4011, 0.0
      %v4769 = vsel %vm4733, %v4012, 0.0
      %v4770 = vsel %vm4734, %v4013, 0.0
      %v4771 = vsel %vm4735, %v4014, 0.0
      %v4772 = vsel %vm4736, %v4015, 0.0
      %v4773 = vsel %vm4737, %v4016, 0.0
      %v4774 = vsel %vm4738, %v4017, 0.0
      %v4775 = vsel %vm4739, %v4018, 0.0
      %v4776 = vsel %vm4740, %v4019, 0.0
      %v4777 = vsel %vm4741, %v4020, 0.0
      %v4778 = vsel %vm4742, %v4021, 0.0
      %v4779 = vsel %vm4743, %v4022, 0.0
      %v4780 = vsel %vm4744, %v4023, 0.0
      %v4781 = vsel %vm4745, %v4024, 0.0
      %v4782 = vsel %vm4746, %v4025, 0.0
      %v4783 = vsel %vm4747, %v4026, 0.0
      %v4784 = vsel %vm4748, %v4027, 0.0
      %v4785 = vsel %vm4749, %v4028, 0.0
      %v4786 = vsel %vm4750, %v4029, 0.0
      %v4787 = vsel %vm4751, %v4030, 0.0
      %v4788 = vsel %vm4752, %v4031, 0.0
      %v4789 = vsel %vm4753, %v4032, 0.0
      %v4790 = vsel %vm4754, %v4033, 0.0
      %v4791 = vsel %vm4755, %v4034, 0.0
      %v4792 = vsel %vm4756, %v4035, 0.0
      %v4793 = vsel %vm4757, %v4036, 0.0
      %v4794 = vsel %vm4758, %v4037, 0.0
      %v4795 = vsel %vm4759, %v4038, 0.0
      %v4796 = vpack.c.bf16 %v4761, %v4760
      %v4797 = vpack.c.bf16 %v4763, %v4762
      %v4798 = vpack.c.bf16 %v4765, %v4764
      %v4799 = vpack.c.bf16 %v4767, %v4766
      %v4800 = vpack.c.bf16 %v4769, %v4768
      %v4801 = vpack.c.bf16 %v4771, %v4770
      %v4802 = vpack.c.bf16 %v4773, %v4772
      %v4803 = vpack.c.bf16 %v4775, %v4774
      %v4804 = vpack.c.bf16 %v4777, %v4776
      %v4805 = vpack.c.bf16 %v4779, %v4778
      %v4806 = vpack.c.bf16 %v4781, %v4780
      %v4807 = vpack.c.bf16 %v4783, %v4782
      %v4808 = vpack.c.bf16 %v4785, %v4784
      %v4809 = vpack.c.bf16 %v4787, %v4786
      %v4810 = vpack.c.bf16 %v4789, %v4788
      %v4811 = vpack.c.bf16 %v4791, %v4790
      %v4812 = vpack.c.bf16 %v4793, %v4792
      %v4813 = vpack.c.bf16 %v4795, %v4794
      %4814 = vst [vmem:[#allocation2] sm:$0xf] 0
      %4815 = vst [vmem:[#allocation2 + $0x4] sm:$0xf] 0
      %4816 = vst [vmem:[#allocation2 + $0x8] sm:$0xf] 0
      %4817 = vst [vmem:[#allocation2 + $0xc] sm:$0xf] 0
      %4818 = vst [vmem:[#allocation2 + $0x10] sm:$0xf] 0
      %4819 = vst [vmem:[#allocation2 + $0x14] sm:$0xf] 0
      %4820 = vst [vmem:[#allocation2 + $0x18] sm:$0xf] 0
      %4821 = vst [vmem:[#allocation2 + $0x1c] sm:$0xf] 0
      %4822 = vst [vmem:[#allocation2 + $0x20] sm:$0xf] 0
      %4823 = vst [vmem:[#allocation2 + $0x24] sm:$0xf] 0
      %4824 = vst [vmem:[#allocation2 + $0x28] sm:$0xf] 0
      %4825 = vst [vmem:[#allocation2 + $0x2c] sm:$0xf] 0
      %4826 = vst [vmem:[#allocation2 + $0x30] sm:$0xf] 0
      %4827 = vst [vmem:[#allocation2 + $0x34] sm:$0xf] 0
      %4828 = vst [vmem:[#allocation2 + $0x38] sm:$0xf] 0
      %4829 = vst [vmem:[#allocation2 + $0x3c] sm:$0xf] 0
      %4830 = vst [vmem:[#allocation2 + $0x40] sm:$0xf] 0
      %4831 = vst [vmem:[#allocation2 + $0x44] sm:$0xf] 0
      %4832 = vst [vmem:[#allocation2 + $0x48] sm:$0xf] 0
      %4833 = vst [vmem:[#allocation2 + $0x4c] sm:$0xf] 0
      %4834 = vst [vmem:[#allocation2 + $0x50] sm:$0xf] 0
      %4835 = vst [vmem:[#allocation2 + $0x54] sm:$0xf] 0
      %4836 = vst [vmem:[#allocation2 + $0x58] sm:$0xf] 0
      %4837 = vst [vmem:[#allocation2 + $0x5c] sm:$0xf] 0
      %4838 = vst [vmem:[#allocation2 + $0x60] sm:$0xf] 0
      %4839 = vst [vmem:[#allocation2 + $0x64] sm:$0xf] 0
      %4840 = vst [vmem:[#allocation2 + $0x68] sm:$0xf] 0
      %4841 = vst [vmem:[#allocation2 + $0x6c] sm:$0xf] 0
      %4842 = vst [vmem:[#allocation2 + $0x70] sm:$0xf] 0
      %4843 = vst [vmem:[#allocation2 + $0x74] sm:$0xf] 0
      %4844 = vst [vmem:[#allocation2 + $0x78] sm:$0xf] 0
      %4845 = vst [vmem:[#allocation2 + $0x7c] sm:$0xf] 0
      %4846 = vst [vmem:[#allocation2 + $0x80] sm:$0xf] 0
      %4847 = vst [vmem:[#allocation2 + $0x84] sm:$0xf] 0
      %4848 = vst [vmem:[#allocation2 + $0x88] sm:$0xf] 0
      %4849 = vst [vmem:[#allocation2 + $0x8c] sm:$0xf] 0
      %4850 = vst [vmem:[#allocation2 + $0x90] sm:$0xf] 0
      %4851 = vst [vmem:[#allocation2 + $0x94] sm:$0xf] 0
      %4852 = vst [vmem:[#allocation2 + $0x98] sm:$0xf] 0
      %4853 = vst [vmem:[#allocation2 + $0x9c] sm:$0xf] 0
      %4854 = vst [vmem:[#allocation2 + $0xa0] sm:$0xf] 0
      %4855 = vst [vmem:[#allocation2 + $0xa4] sm:$0xf] 0
      %4856 = vst [vmem:[#allocation2 + $0xa8] sm:$0x7] 0
      %v4875 = vunpack.c.l.b16 %v4796
      %v4876 = vunpack.c.h.b16 %v4796
      %v4877 = vunpack.c.l.b16 %v4797
      %v4878 = vunpack.c.h.b16 %v4797
      %v4879 = vunpack.c.l.b16 %v4798
      %v4880 = vunpack.c.h.b16 %v4798
      %v4881 = vunpack.c.l.b16 %v4799
      %v4882 = vunpack.c.h.b16 %v4799
      %v4883 = vunpack.c.l.b16 %v4800
      %v4884 = vunpack.c.h.b16 %v4800
      %v4885 = vunpack.c.l.b16 %v4801
      %v4886 = vunpack.c.h.b16 %v4801
      %v4887 = vunpack.c.l.b16 %v4802
      %v4888 = vunpack.c.h.b16 %v4802
      %v4889 = vunpack.c.l.b16 %v4803
      %v4890 = vunpack.c.h.b16 %v4803
      %v4891 = vunpack.c.l.b16 %v4804
      %v4892 = vunpack.c.h.b16 %v4804
      %v4893 = vunpack.c.l.b16 %v4805
      %v4894 = vunpack.c.h.b16 %v4805
      %v4895 = vunpack.c.l.b16 %v4806
      %v4896 = vunpack.c.h.b16 %v4806
      %v4897 = vunpack.c.l.b16 %v4807
      %v4898 = vunpack.c.h.b16 %v4807
      %v4899 = vunpack.c.l.b16 %v4808
      %v4900 = vunpack.c.h.b16 %v4808
      %v4901 = vunpack.c.l.b16 %v4809
      %v4902 = vunpack.c.h.b16 %v4809
      %v4903 = vunpack.c.l.b16 %v4810
      %v4904 = vunpack.c.h.b16 %v4810
      %v4905 = vunpack.c.l.b16 %v4811
      %v4906 = vunpack.c.h.b16 %v4811
      %v4907 = vunpack.c.l.b16 %v4812
      %v4908 = vunpack.c.h.b16 %v4812
      %v4909 = vunpack.c.l.b16 %v4813
      %v4910 = vunpack.c.h.b16 %v4813
      %v4911 = vpack.c.b16 %v4875, %v4875
      %v4912 = vpack.c.b16 %v4876, %v4876
      %v4913 = vpack.c.b16 %v4877, %v4877
      %v4914 = vpack.c.b16 %v4878, %v4878
      %v4915 = vpack.c.b16 %v4879, %v4879
      %v4916 = vpack.c.b16 %v4880, %v4880
      %v4917 = vpack.c.b16 %v4881, %v4881
      %v4918 = vpack.c.b16 %v4882, %v4882
      %v4919 = vpack.c.b16 %v4883, %v4883
      %v4920 = vpack.c.b16 %v4884, %v4884
      %v4921 = vpack.c.b16 %v4885, %v4885
      %v4922 = vpack.c.b16 %v4886, %v4886
      %v4923 = vpack.c.b16 %v4887, %v4887
      %v4924 = vpack.c.b16 %v4888, %v4888
      %v4925 = vpack.c.b16 %v4889, %v4889
      %v4926 = vpack.c.b16 %v4890, %v4890
      %v4927 = vpack.c.b16 %v4891, %v4891
      %v4928 = vpack.c.b16 %v4892, %v4892
      %v4929 = vpack.c.b16 %v4893, %v4893
      %v4930 = vpack.c.b16 %v4894, %v4894
      %v4931 = vpack.c.b16 %v4895, %v4895
      %v4932 = vpack.c.b16 %v4896, %v4896
      %v4933 = vpack.c.b16 %v4897, %v4897
      %v4934 = vpack.c.b16 %v4898, %v4898
      %v4935 = vpack.c.b16 %v4899, %v4899
      %v4936 = vpack.c.b16 %v4900, %v4900
      %v4937 = vpack.c.b16 %v4901, %v4901
      %v4938 = vpack.c.b16 %v4902, %v4902
      %v4939 = vpack.c.b16 %v4903, %v4903
      %v4940 = vpack.c.b16 %v4904, %v4904
      %v4941 = vpack.c.b16 %v4905, %v4905
      %v4942 = vpack.c.b16 %v4906, %v4906
      %v4943 = vpack.c.b16 %v4907, %v4907
      %v4944 = vpack.c.b16 %v4908, %v4908
      %v4945 = vpack.c.b16 %v4909, %v4909
      %v4946 = vpack.c.b16 %v4910, %v4910
      %vm4947 = vsmask.f32 1280
      %vm4948 = vsmask.f32 5392
      %vm4949 = vmor %vm4947, %vm4948
      %v4951 = vshrl.u32 %v4911, 16
      %v4953 = vrot.slane %v4951, 6
      %v4954 = vshll.u32 %v4911, 16
      %v4956 = vrot.slane %v4954, 7
      %v4957 = vor.u32 %v4953, %v4956
      %v4958 = vrot.slane %v4957, 4
      %v4960 = vshrl.u32 %v4912, 16
      %v4962 = vrot.slane %v4960, 6
      %v4963 = vshll.u32 %v4912, 16
      %v4965 = vrot.slane %v4963, 7
      %v4966 = vor.u32 %v4962, %v4965
      %v4967 = vsel %vm4949, %v4958, %v4966
      %v4968 = vrot.slane %v4966, 4
      %v4970 = vshrl.u32 %v4913, 16
      %v4972 = vrot.slane %v4970, 6
      %v4973 = vshll.u32 %v4913, 16
      %v4975 = vrot.slane %v4973, 7
      %v4976 = vor.u32 %v4972, %v4975
      %v4977 = vsel %vm4949, %v4968, %v4976
      %v4978 = vrot.slane %v4976, 4
      %v4980 = vshrl.u32 %v4914, 16
      %v4982 = vrot.slane %v4980, 6
      %v4983 = vshll.u32 %v4914, 16
      %v4985 = vrot.slane %v4983, 7
      %v4986 = vor.u32 %v4982, %v4985
      %v4987 = vsel %vm4949, %v4978, %v4986
      %v4988 = vrot.slane %v4986, 4
      %v4990 = vshrl.u32 %v4915, 16
      %v4992 = vrot.slane %v4990, 6
      %v4993 = vshll.u32 %v4915, 16
      %v4995 = vrot.slane %v4993, 7
      %v4996 = vor.u32 %v4992, %v4995
      %v4997 = vsel %vm4949, %v4988, %v4996
      %v4998 = vrot.slane %v4996, 4
      %v5000 = vshrl.u32 %v4916, 16
      %v5002 = vrot.slane %v5000, 6
      %v5003 = vshll.u32 %v4916, 16
      %v5005 = vrot.slane %v5003, 7
      %v5006 = vor.u32 %v5002, %v5005
      %v5007 = vsel %vm4949, %v4998, %v5006
      %v5008 = vrot.slane %v5006, 4
      %v5010 = vshrl.u32 %v4917, 16
      %v5012 = vrot.slane %v5010, 6
      %v5013 = vshll.u32 %v4917, 16
      %v5015 = vrot.slane %v5013, 7
      %v5016 = vor.u32 %v5012, %v5015
      %v5017 = vsel %vm4949, %v5008, %v5016
      %v5018 = vrot.slane %v5016, 4
      %v5020 = vshrl.u32 %v4918, 16
      %v5022 = vrot.slane %v5020, 6
      %v5023 = vshll.u32 %v4918, 16
      %v5025 = vrot.slane %v5023, 7
      %v5026 = vor.u32 %v5022, %v5025
      %v5027 = vsel %vm4949, %v5018, %v5026
      %v5028 = vrot.slane %v5026, 4
      %v5030 = vshrl.u32 %v4919, 16
      %v5032 = vrot.slane %v5030, 6
      %v5033 = vshll.u32 %v4919, 16
      %v5035 = vrot.slane %v5033, 7
      %v5036 = vor.u32 %v5032, %v5035
      %v5037 = vsel %vm4949, %v5028, %v5036
      %v5038 = vrot.slane %v5036, 4
      %v5040 = vshrl.u32 %v4920, 16
      %v5042 = vrot.slane %v5040, 6
      %v5043 = vshll.u32 %v4920, 16
      %v5045 = vrot.slane %v5043, 7
      %v5046 = vor.u32 %v5042, %v5045
      %v5047 = vsel %vm4949, %v5038, %v5046
      %v5048 = vrot.slane %v5046, 4
      %v5050 = vshrl.u32 %v4921, 16
      %v5052 = vrot.slane %v5050, 6
      %v5053 = vshll.u32 %v4921, 16
      %v5055 = vrot.slane %v5053, 7
      %v5056 = vor.u32 %v5052, %v5055
      %v5057 = vsel %vm4949, %v5048, %v5056
      %v5058 = vrot.slane %v5056, 4
      %v5060 = vshrl.u32 %v4922, 16
      %v5062 = vrot.slane %v5060, 6
      %v5063 = vshll.u32 %v4922, 16
      %v5065 = vrot.slane %v5063, 7
      %v5066 = vor.u32 %v5062, %v5065
      %v5067 = vsel %vm4949, %v5058, %v5066
      %v5068 = vrot.slane %v5066, 4
      %v5070 = vshrl.u32 %v4923, 16
      %v5072 = vrot.slane %v5070, 6
      %v5073 = vshll.u32 %v4923, 16
      %v5075 = vrot.slane %v5073, 7
      %v5076 = vor.u32 %v5072, %v5075
      %v5077 = vsel %vm4949, %v5068, %v5076
      %v5078 = vrot.slane %v5076, 4
      %v5080 = vshrl.u32 %v4924, 16
      %v5082 = vrot.slane %v5080, 6
      %v5083 = vshll.u32 %v4924, 16
      %v5085 = vrot.slane %v5083, 7
      %v5086 = vor.u32 %v5082, %v5085
      %v5087 = vsel %vm4949, %v5078, %v5086
      %v5088 = vrot.slane %v5086, 4
      %v5090 = vshrl.u32 %v4925, 16
      %v5092 = vrot.slane %v5090, 6
      %v5093 = vshll.u32 %v4925, 16
      %v5095 = vrot.slane %v5093, 7
      %v5096 = vor.u32 %v5092, %v5095
      %v5097 = vsel %vm4949, %v5088, %v5096
      %v5098 = vrot.slane %v5096, 4
      %v5100 = vshrl.u32 %v4926, 16
      %v5102 = vrot.slane %v5100, 6
      %v5103 = vshll.u32 %v4926, 16
      %v5105 = vrot.slane %v5103, 7
      %v5106 = vor.u32 %v5102, %v5105
      %v5107 = vsel %vm4949, %v5098, %v5106
      %v5108 = vrot.slane %v5106, 4
      %v5110 = vshrl.u32 %v4927, 16
      %v5112 = vrot.slane %v5110, 6
      %v5113 = vshll.u32 %v4927, 16
      %v5115 = vrot.slane %v5113, 7
      %v5116 = vor.u32 %v5112, %v5115
      %v5117 = vsel %vm4949, %v5108, %v5116
      %v5118 = vrot.slane %v5116, 4
      %v5120 = vshrl.u32 %v4928, 16
      %v5122 = vrot.slane %v5120, 6
      %v5123 = vshll.u32 %v4928, 16
      %v5125 = vrot.slane %v5123, 7
      %v5126 = vor.u32 %v5122, %v5125
      %v5127 = vsel %vm4949, %v5118, %v5126
      %v5128 = vrot.slane %v5126, 4
      %v5130 = vshrl.u32 %v4929, 16
      %v5132 = vrot.slane %v5130, 6
      %v5133 = vshll.u32 %v4929, 16
      %v5135 = vrot.slane %v5133, 7
      %v5136 = vor.u32 %v5132, %v5135
      %v5137 = vsel %vm4949, %v5128, %v5136
      %v5138 = vrot.slane %v5136, 4
      %v5140 = vshrl.u32 %v4930, 16
      %v5142 = vrot.slane %v5140, 6
      %v5143 = vshll.u32 %v4930, 16
      %v5145 = vrot.slane %v5143, 7
      %v5146 = vor.u32 %v5142, %v5145
      %v5147 = vsel %vm4949, %v5138, %v5146
      %v5148 = vrot.slane %v5146, 4
      %v5150 = vshrl.u32 %v4931, 16
      %v5152 = vrot.slane %v5150, 6
      %v5153 = vshll.u32 %v4931, 16
      %v5155 = vrot.slane %v5153, 7
      %v5156 = vor.u32 %v5152, %v5155
      %v5157 = vsel %vm4949, %v5148, %v5156
      %v5158 = vrot.slane %v5156, 4
      %v5160 = vshrl.u32 %v4932, 16
      %v5162 = vrot.slane %v5160, 6
      %v5163 = vshll.u32 %v4932, 16
      %v5165 = vrot.slane %v5163, 7
      %v5166 = vor.u32 %v5162, %v5165
      %v5167 = vsel %vm4949, %v5158, %v5166
      %v5168 = vrot.slane %v5166, 4
      %v5170 = vshrl.u32 %v4933, 16
      %v5172 = vrot.slane %v5170, 6
      %v5173 = vshll.u32 %v4933, 16
      %v5175 = vrot.slane %v5173, 7
      %v5176 = vor.u32 %v5172, %v5175
      %v5177 = vsel %vm4949, %v5168, %v5176
      %v5178 = vrot.slane %v5176, 4
      %v5180 = vshrl.u32 %v4934, 16
      %v5182 = vrot.slane %v5180, 6
      %v5183 = vshll.u32 %v4934, 16
      %v5185 = vrot.slane %v5183, 7
      %v5186 = vor.u32 %v5182, %v5185
      %v5187 = vsel %vm4949, %v5178, %v5186
      %v5188 = vrot.slane %v5186, 4
      %v5190 = vshrl.u32 %v4935, 16
      %v5192 = vrot.slane %v5190, 6
      %v5193 = vshll.u32 %v4935, 16
      %v5195 = vrot.slane %v5193, 7
      %v5196 = vor.u32 %v5192, %v5195
      %v5197 = vsel %vm4949, %v5188, %v5196
      %v5198 = vrot.slane %v5196, 4
      %v5200 = vshrl.u32 %v4936, 16
      %v5202 = vrot.slane %v5200, 6
      %v5203 = vshll.u32 %v4936, 16
      %v5205 = vrot.slane %v5203, 7
      %v5206 = vor.u32 %v5202, %v5205
      %v5207 = vsel %vm4949, %v5198, %v5206
      %v5208 = vrot.slane %v5206, 4
      %v5210 = vshrl.u32 %v4937, 16
      %v5212 = vrot.slane %v5210, 6
      %v5213 = vshll.u32 %v4937, 16
      %v5215 = vrot.slane %v5213, 7
      %v5216 = vor.u32 %v5212, %v5215
      %v5217 = vsel %vm4949, %v5208, %v5216
      %v5218 = vrot.slane %v5216, 4
      %v5220 = vshrl.u32 %v4938, 16
      %v5222 = vrot.slane %v5220, 6
      %v5223 = vshll.u32 %v4938, 16
      %v5225 = vrot.slane %v5223, 7
      %v5226 = vor.u32 %v5222, %v5225
      %v5227 = vsel %vm4949, %v5218, %v5226
      %v5228 = vrot.slane %v5226, 4
      %v5230 = vshrl.u32 %v4939, 16
      %v5232 = vrot.slane %v5230, 6
      %v5233 = vshll.u32 %v4939, 16
      %v5235 = vrot.slane %v5233, 7
      %v5236 = vor.u32 %v5232, %v5235
      %v5237 = vsel %vm4949, %v5228, %v5236
      %v5238 = vrot.slane %v5236, 4
      %v5240 = vshrl.u32 %v4940, 16
      %v5242 = vrot.slane %v5240, 6
      %v5243 = vshll.u32 %v4940, 16
      %v5245 = vrot.slane %v5243, 7
      %v5246 = vor.u32 %v5242, %v5245
      %v5247 = vsel %vm4949, %v5238, %v5246
      %v5248 = vrot.slane %v5246, 4
      %v5250 = vshrl.u32 %v4941, 16
      %v5252 = vrot.slane %v5250, 6
      %v5253 = vshll.u32 %v4941, 16
      %v5255 = vrot.slane %v5253, 7
      %v5256 = vor.u32 %v5252, %v5255
      %v5257 = vsel %vm4949, %v5248, %v5256
      %v5258 = vrot.slane %v5256, 4
      %v5260 = vshrl.u32 %v4942, 16
      %v5262 = vrot.slane %v5260, 6
      %v5263 = vshll.u32 %v4942, 16
      %v5265 = vrot.slane %v5263, 7
      %v5266 = vor.u32 %v5262, %v5265
      %v5267 = vsel %vm4949, %v5258, %v5266
      %v5268 = vrot.slane %v5266, 4
      %v5270 = vshrl.u32 %v4943, 16
      %v5272 = vrot.slane %v5270, 6
      %v5273 = vshll.u32 %v4943, 16
      %v5275 = vrot.slane %v5273, 7
      %v5276 = vor.u32 %v5272, %v5275
      %v5277 = vsel %vm4949, %v5268, %v5276
      %v5278 = vrot.slane %v5276, 4
      %v5280 = vshrl.u32 %v4944, 16
      %v5282 = vrot.slane %v5280, 6
      %v5283 = vshll.u32 %v4944, 16
      %v5285 = vrot.slane %v5283, 7
      %v5286 = vor.u32 %v5282, %v5285
      %v5287 = vsel %vm4949, %v5278, %v5286
      %v5288 = vrot.slane %v5286, 4
      %v5290 = vshrl.u32 %v4945, 16
      %v5292 = vrot.slane %v5290, 6
      %v5293 = vshll.u32 %v4945, 16
      %v5295 = vrot.slane %v5293, 7
      %v5296 = vor.u32 %v5292, %v5295
      %v5297 = vsel %vm4949, %v5288, %v5296
      %v5298 = vrot.slane %v5296, 4
      %v5300 = vshrl.u32 %v4946, 16
      %v5302 = vrot.slane %v5300, 6
      %v5303 = vshll.u32 %v4946, 16
      %v5305 = vrot.slane %v5303, 7
      %v5306 = vor.u32 %v5302, %v5305
      %v5307 = vsel %vm4949, %v5298, %v5306
      %v5308 = vrot.slane %v5306, 4
      %vm5346 = vcmask 1043457
      %vm5347 = vsmask.f32 7942
      %vm5348 = vmand %vm5346, %vm5347
      %v5349 = vld [vmem:[#allocation2 + $0x8] sm:$0xe]
      %v5350 = vsel %vm5348, %v4957, %v5349
      %5351 = vst [vmem:[#allocation2 + $0x8] sm:$0xe] %v5350
      %5352 = vst [vmem:[#allocation2 + $0xc] sm:$0xf] %v4967
      %5353 = vst [vmem:[#allocation2 + $0x10] sm:$0xf] %v4977
      %5354 = vst [vmem:[#allocation2 + $0x14] sm:$0xf] %v4987
      %5355 = vst [vmem:[#allocation2 + $0x18] sm:$0xf] %v4997
      %5356 = vst [vmem:[#allocation2 + $0x1c] sm:$0xf] %v5007
      %5357 = vst [vmem:[#allocation2 + $0x20] sm:$0xf] %v5017
      %5358 = vst [vmem:[#allocation2 + $0x24] sm:$0xf] %v5027
      %5359 = vst [vmem:[#allocation2 + $0x28] sm:$0xf] %v5037
      %5360 = vst [vmem:[#allocation2 + $0x2c] sm:$0xf] %v5047
      %5361 = vst [vmem:[#allocation2 + $0x30] sm:$0xf] %v5057
      %5362 = vst [vmem:[#allocation2 + $0x34] sm:$0xf] %v5067
      %5363 = vst [vmem:[#allocation2 + $0x38] sm:$0xf] %v5077
      %5364 = vst [vmem:[#allocation2 + $0x3c] sm:$0xf] %v5087
      %5365 = vst [vmem:[#allocation2 + $0x40] sm:$0xf] %v5097
      %5366 = vst [vmem:[#allocation2 + $0x44] sm:$0xf] %v5107
      %5367 = vst [vmem:[#allocation2 + $0x48] sm:$0xf] %v5117
      %5368 = vst [vmem:[#allocation2 + $0x4c] sm:$0xf] %v5127
      %5369 = vst [vmem:[#allocation2 + $0x50] sm:$0xf] %v5137
      %5370 = vst [vmem:[#allocation2 + $0x54] sm:$0xf] %v5147
      %5371 = vst [vmem:[#allocation2 + $0x58] sm:$0xf] %v5157
      %5372 = vst [vmem:[#allocation2 + $0x5c] sm:$0xf] %v5167
      %5373 = vst [vmem:[#allocation2 + $0x60] sm:$0xf] %v5177
      %5374 = vst [vmem:[#allocation2 + $0x64] sm:$0xf] %v5187
      %5375 = vst [vmem:[#allocation2 + $0x68] sm:$0xf] %v5197
      %5376 = vst [vmem:[#allocation2 + $0x6c] sm:$0xf] %v5207
      %5377 = vst [vmem:[#allocation2 + $0x70] sm:$0xf] %v5217
      %5378 = vst [vmem:[#allocation2 + $0x74] sm:$0xf] %v5227
      %5379 = vst [vmem:[#allocation2 + $0x78] sm:$0xf] %v5237
      %5380 = vst [vmem:[#allocation2 + $0x7c] sm:$0xf] %v5247
      %5381 = vst [vmem:[#allocation2 + $0x80] sm:$0xf] %v5257
      %5382 = vst [vmem:[#allocation2 + $0x84] sm:$0xf] %v5267
      %5383 = vst [vmem:[#allocation2 + $0x88] sm:$0xf] %v5277
      %5384 = vst [vmem:[#allocation2 + $0x8c] sm:$0xf] %v5287
      %5385 = vst [vmem:[#allocation2 + $0x90] sm:$0xf] %v5297
      %5386 = vst [vmem:[#allocation2 + $0x94] sm:$0xf] %v5307
      %vm5387 = vcmask 1041408
      %vm5388 = vmand %vm5387, %vm4947
      %v5389 = vld [vmem:[#allocation2 + $0x98] sm:$0x3]
      %v5390 = vsel %vm5388, %v5308, %v5389
      %5391 = vst [vmem:[#allocation2 + $0x98] sm:$0x3] %v5390
      %v5392 = vld [vmem:[#allocation2] sm:$0xf]
      %v5393 = vld [vmem:[#allocation2 + $0x4] sm:$0xf]
      %v5394 = vld [vmem:[#allocation2 + $0x8] sm:$0xf]
      %v5395 = vld [vmem:[#allocation2 + $0xc] sm:$0xf]
      %v5396 = vld [vmem:[#allocation2 + $0x10] sm:$0xf]
      %v5397 = vld [vmem:[#allocation2 + $0x14] sm:$0xf]
      %v5398 = vld [vmem:[#allocation2 + $0x18] sm:$0xf]
      %v5399 = vld [vmem:[#allocation2 + $0x1c] sm:$0xf]
      %v5400 = vld [vmem:[#allocation2 + $0x20] sm:$0xf]
      %v5401 = vld [vmem:[#allocation2 + $0x24] sm:$0xf]
      %v5402 = vld [vmem:[#allocation2 + $0x28] sm:$0xf]
      %v5403 = vld [vmem:[#allocation2 + $0x2c] sm:$0xf]
      %v5404 = vld [vmem:[#allocation2 + $0x30] sm:$0xf]
      %v5405 = vld [vmem:[#allocation2 + $0x34] sm:$0xf]
      %v5406 = vld [vmem:[#allocation2 + $0x38] sm:$0xf]
      %v5407 = vld [vmem:[#allocation2 + $0x3c] sm:$0xf]
      %v5408 = vld [vmem:[#allocation2 + $0x40] sm:$0xf]
      %v5409 = vld [vmem:[#allocation2 + $0x44] sm:$0xf]
      %v5410 = vld [vmem:[#allocation2 + $0x48] sm:$0xf]
      %v5411 = vld [vmem:[#allocation2 + $0x4c] sm:$0xf]
      %v5412 = vld [vmem:[#allocation2 + $0x50] sm:$0xf]
      %v5413 = vld [vmem:[#allocation2 + $0x54] sm:$0xf]
      %v5414 = vld [vmem:[#allocation2 + $0x58] sm:$0xf]
      %v5415 = vld [vmem:[#allocation2 + $0x5c] sm:$0xf]
      %v5416 = vld [vmem:[#allocation2 + $0x60] sm:$0xf]
      %v5417 = vld [vmem:[#allocation2 + $0x64] sm:$0xf]
      %v5418 = vld [vmem:[#allocation2 + $0x68] sm:$0xf]
      %v5419 = vld [vmem:[#allocation2 + $0x6c] sm:$0xf]
      %v5420 = vld [vmem:[#allocation2 + $0x70] sm:$0xf]
      %v5421 = vld [vmem:[#allocation2 + $0x74] sm:$0xf]
      %v5422 = vld [vmem:[#allocation2 + $0x78] sm:$0xf]
      %v5423 = vld [vmem:[#allocation2 + $0x7c] sm:$0xf]
      %v5424 = vld [vmem:[#allocation2 + $0x80] sm:$0xf]
      %v5425 = vld [vmem:[#allocation2 + $0x84] sm:$0xf]
      %v5426 = vld [vmem:[#allocation2 + $0x88] sm:$0xf]
      %v5427 = vld [vmem:[#allocation2 + $0x8c] sm:$0xf]
      %v5428 = vld [vmem:[%s3] sm:$0xf]
      %v5429 = vld [vmem:[%s3 + $0x4] sm:$0xf]
      %v5430 = vld [vmem:[%s3 + $0x8] sm:$0xf]
      %v5431 = vld [vmem:[%s3 + $0xc] sm:$0xf]
      %v5432 = vld [vmem:[%s3 + $0x10] sm:$0xf]
      %v5433 = vld [vmem:[%s3 + $0x14] sm:$0xf]
      %v5434 = vld [vmem:[%s3 + $0x18] sm:$0xf]
      %v5435 = vld [vmem:[%s3 + $0x1c] sm:$0xf]
      %v5436 = vld [vmem:[%s3 + $0x20] sm:$0xf]
      %v5437 = vld [vmem:[%s3 + $0x24] sm:$0xf]
      %v5438 = vld [vmem:[%s3 + $0x28] sm:$0xf]
      %v5439 = vld [vmem:[%s3 + $0x2c] sm:$0xf]
      %v5440 = vld [vmem:[%s3 + $0x30] sm:$0xf]
      %v5441 = vld [vmem:[%s3 + $0x34] sm:$0xf]
      %v5442 = vld [vmem:[%s3 + $0x38] sm:$0xf]
      %v5443 = vld [vmem:[%s3 + $0x3c] sm:$0xf]
      %v5444 = vld [vmem:[#allocation2 + $0x90] sm:$0x1]
      %s5445 = scalar_lea.vmem %s3, 64
      %v5446 = vld [vmem:[%s5445] sm:$0xf]
      %v5447 = vld [vmem:[%s5445 + $0x4] sm:$0xf]
      %v5448 = vld [vmem:[%s5445 + $0x8] sm:$0xf]
      %v5449 = vld [vmem:[%s5445 + $0xc] sm:$0xf]
      %v5450 = vld [vmem:[%s5445 + $0x10] sm:$0xf]
      %v5451 = vld [vmem:[%s5445 + $0x14] sm:$0xf]
      %v5452 = vld [vmem:[%s5445 + $0x18] sm:$0xf]
      %v5453 = vld [vmem:[%s5445 + $0x1c] sm:$0xf]
      %v5454 = vld [vmem:[%s5445 + $0x20] sm:$0xf]
      %v5455 = vld [vmem:[%s5445 + $0x24] sm:$0xf]
      %v5456 = vld [vmem:[%s5445 + $0x28] sm:$0xf]
      %v5457 = vld [vmem:[%s5445 + $0x2c] sm:$0xf]
      %v5458 = vld [vmem:[%s5445 + $0x30] sm:$0xf]
      %v5459 = vld [vmem:[%s5445 + $0x34] sm:$0xf]
      %v5460 = vld [vmem:[%s5445 + $0x38] sm:$0xf]
      %v5461 = vld [vmem:[%s5445 + $0x3c] sm:$0xf]
      %v5499 = vunpack.c.l.b16 %v5392
      %v5500 = vunpack.c.l.b16 %v5393
      %v5501 = vunpack.c.l.b16 %v5394
      %v5502 = vunpack.c.l.b16 %v5395
      %v5503 = vunpack.c.l.b16 %v5396
      %v5504 = vunpack.c.l.b16 %v5397
      %v5505 = vunpack.c.l.b16 %v5398
      %v5506 = vunpack.c.l.b16 %v5399
      %v5507 = vunpack.c.l.b16 %v5400
      %v5508 = vunpack.c.l.b16 %v5401
      %v5509 = vunpack.c.l.b16 %v5402
      %v5510 = vunpack.c.l.b16 %v5403
      %v5511 = vunpack.c.l.b16 %v5404
      %v5512 = vunpack.c.l.b16 %v5405
      %v5513 = vunpack.c.l.b16 %v5406
      %v5514 = vunpack.c.l.b16 %v5407
      %v5515 = vunpack.c.l.b16 %v5408
      %v5516 = vunpack.c.l.b16 %v5409
      %v5517 = vunpack.c.l.b16 %v5410
      %v5518 = vunpack.c.l.b16 %v5411
      %v5519 = vunpack.c.l.b16 %v5412
      %v5520 = vunpack.c.l.b16 %v5413
      %v5521 = vunpack.c.l.b16 %v5414
      %v5522 = vunpack.c.l.b16 %v5415
      %v5523 = vunpack.c.l.b16 %v5416
      %v5524 = vunpack.c.l.b16 %v5417
      %v5525 = vunpack.c.l.b16 %v5418
      %v5526 = vunpack.c.l.b16 %v5419
      %v5527 = vunpack.c.l.b16 %v5420
      %v5528 = vunpack.c.l.b16 %v5421
      %v5529 = vunpack.c.l.b16 %v5422
      %v5530 = vunpack.c.l.b16 %v5423
      %v5531 = vunpack.c.l.b16 %v5424
      %v5532 = vunpack.c.l.b16 %v5425
      %v5533 = vunpack.c.l.b16 %v5426
      %v5534 = vunpack.c.l.b16 %v5427
      %v5535 = vunpack.c.l.b16 %v5444
      %v5536 = vpack.c.b16 %v5500, %v5499
      %v5537 = vpack.c.b16 %v5502, %v5501
      %v5538 = vpack.c.b16 %v5504, %v5503
      %v5539 = vpack.c.b16 %v5506, %v5505
      %v5540 = vpack.c.b16 %v5508, %v5507
      %v5541 = vpack.c.b16 %v5510, %v5509
      %v5542 = vpack.c.b16 %v5512, %v5511
      %v5543 = vpack.c.b16 %v5514, %v5513
      %v5544 = vpack.c.b16 %v5516, %v5515
      %v5545 = vpack.c.b16 %v5518, %v5517
      %v5546 = vpack.c.b16 %v5520, %v5519
      %v5547 = vpack.c.b16 %v5522, %v5521
      %v5548 = vpack.c.b16 %v5524, %v5523
      %v5549 = vpack.c.b16 %v5526, %v5525
      %v5550 = vpack.c.b16 %v5528, %v5527
      %v5551 = vpack.c.b16 %v5530, %v5529
      %v5552 = vpack.c.b16 %v5532, %v5531
      %v5553 = vpack.c.b16 %v5534, %v5533
      %v5554 = vpack.c.b16 %v5535, %v5535
      %v5556 = vshrl.u32 %v5536, 16
      %v5558 = vshll.u32 %v5536, 16
      %v5560 = vrot.slane %v5558, 1
      %v5561 = vor.u32 %v5556, %v5560
      %v5563 = vshll.u32 %v5537, 16
      %v5565 = vrot.slane %v5563, 1
      %v5566 = vsel %vm443, %v5561, %v5565
      %v5567 = vshrl.u32 %v5537, 16
      %v5569 = vor.u32 %v5567, %v5565
      %v5571 = vshll.u32 %v5538, 16
      %v5573 = vrot.slane %v5571, 1
      %v5574 = vsel %vm443, %v5569, %v5573
      %v5575 = vshrl.u32 %v5538, 16
      %v5577 = vor.u32 %v5575, %v5573
      %v5579 = vshll.u32 %v5539, 16
      %v5581 = vrot.slane %v5579, 1
      %v5582 = vsel %vm443, %v5577, %v5581
      %v5583 = vshrl.u32 %v5539, 16
      %v5585 = vor.u32 %v5583, %v5581
      %v5587 = vshll.u32 %v5540, 16
      %v5589 = vrot.slane %v5587, 1
      %v5590 = vsel %vm443, %v5585, %v5589
      %v5591 = vshrl.u32 %v5540, 16
      %v5593 = vor.u32 %v5591, %v5589
      %v5595 = vshll.u32 %v5541, 16
      %v5597 = vrot.slane %v5595, 1
      %v5598 = vsel %vm443, %v5593, %v5597
      %v5599 = vshrl.u32 %v5541, 16
      %v5601 = vor.u32 %v5599, %v5597
      %v5603 = vshll.u32 %v5542, 16
      %v5605 = vrot.slane %v5603, 1
      %v5606 = vsel %vm443, %v5601, %v5605
      %v5607 = vshrl.u32 %v5542, 16
      %v5609 = vor.u32 %v5607, %v5605
      %v5611 = vshll.u32 %v5543, 16
      %v5613 = vrot.slane %v5611, 1
      %v5614 = vsel %vm443, %v5609, %v5613
      %v5615 = vshrl.u32 %v5543, 16
      %v5617 = vor.u32 %v5615, %v5613
      %v5619 = vshll.u32 %v5544, 16
      %v5621 = vrot.slane %v5619, 1
      %v5622 = vsel %vm443, %v5617, %v5621
      %v5623 = vshrl.u32 %v5544, 16
      %v5625 = vor.u32 %v5623, %v5621
      %v5627 = vshll.u32 %v5545, 16
      %v5629 = vrot.slane %v5627, 1
      %v5630 = vsel %vm443, %v5625, %v5629
      %v5631 = vshrl.u32 %v5545, 16
      %v5633 = vor.u32 %v5631, %v5629
      %v5635 = vshll.u32 %v5546, 16
      %v5637 = vrot.slane %v5635, 1
      %v5638 = vsel %vm443, %v5633, %v5637
      %v5639 = vshrl.u32 %v5546, 16
      %v5641 = vor.u32 %v5639, %v5637
      %v5643 = vshll.u32 %v5547, 16
      %v5645 = vrot.slane %v5643, 1
      %v5646 = vsel %vm443, %v5641, %v5645
      %v5647 = vshrl.u32 %v5547, 16
      %v5649 = vor.u32 %v5647, %v5645
      %v5651 = vshll.u32 %v5548, 16
      %v5653 = vrot.slane %v5651, 1
      %v5654 = vsel %vm443, %v5649, %v5653
      %v5655 = vshrl.u32 %v5548, 16
      %v5657 = vor.u32 %v5655, %v5653
      %v5659 = vshll.u32 %v5549, 16
      %v5661 = vrot.slane %v5659, 1
      %v5662 = vsel %vm443, %v5657, %v5661
      %v5663 = vshrl.u32 %v5549, 16
      %v5665 = vor.u32 %v5663, %v5661
      %v5667 = vshll.u32 %v5550, 16
      %v5669 = vrot.slane %v5667, 1
      %v5670 = vsel %vm443, %v5665, %v5669
      %v5671 = vshrl.u32 %v5550, 16
      %v5673 = vor.u32 %v5671, %v5669
      %v5675 = vshll.u32 %v5551, 16
      %v5677 = vrot.slane %v5675, 1
      %v5678 = vsel %vm443, %v5673, %v5677
      %v5679 = vshrl.u32 %v5551, 16
      %v5681 = vor.u32 %v5679, %v5677
      %v5683 = vshll.u32 %v5552, 16
      %v5685 = vrot.slane %v5683, 1
      %v5686 = vsel %vm443, %v5681, %v5685
      %v5687 = vshrl.u32 %v5552, 16
      %v5689 = vor.u32 %v5687, %v5685
      %v5691 = vshll.u32 %v5553, 16
      %v5693 = vrot.slane %v5691, 1
      %v5694 = vsel %vm443, %v5689, %v5693
      %v5695 = vshrl.u32 %v5553, 16
      %v5697 = vor.u32 %v5695, %v5693
      %v5699 = vshll.u32 %v5554, 16
      %v5701 = vrot.slane %v5699, 1
      %v5702 = vsel %vm443, %v5697, %v5701
      %v5737 = vunpack.c.l.b16 %v5446
      %v5738 = vunpack.c.l.b16 %v5447
      %v5739 = vunpack.c.l.b16 %v5448
      %v5740 = vunpack.c.l.b16 %v5449
      %v5741 = vunpack.c.l.b16 %v5450
      %v5742 = vunpack.c.l.b16 %v5451
      %v5743 = vunpack.c.l.b16 %v5452
      %v5744 = vunpack.c.l.b16 %v5453
      %v5745 = vunpack.c.l.b16 %v5454
      %v5746 = vunpack.c.l.b16 %v5455
      %v5747 = vunpack.c.l.b16 %v5456
      %v5748 = vunpack.c.l.b16 %v5457
      %v5749 = vunpack.c.l.b16 %v5458
      %v5750 = vunpack.c.l.b16 %v5459
      %v5751 = vunpack.c.l.b16 %v5460
      %v5752 = vunpack.c.l.b16 %v5461
      %v5753 = vpack.c.b16 %v5738, %v5737
      %v5754 = vpack.c.b16 %v5740, %v5739
      %v5755 = vpack.c.b16 %v5742, %v5741
      %v5756 = vpack.c.b16 %v5744, %v5743
      %v5757 = vpack.c.b16 %v5746, %v5745
      %v5758 = vpack.c.b16 %v5748, %v5747
      %v5759 = vpack.c.b16 %v5750, %v5749
      %v5760 = vpack.c.b16 %v5752, %v5751
      %5769 = vmatprep.subr.bf16.mxu0 0
      %5770 = vmatpush1.bf16.msra.mxu0 %v5760
      %5771 = vmatprep.subr.bf16.mxu0 0
      %5772 = vmatpush1.bf16.msra.mxu0 %v5759
      %5773 = vmatprep.subr.bf16.mxu0 0
      %5774 = vmatpush1.bf16.msra.mxu0 %v5758
      %5775 = vmatprep.subr.bf16.mxu0 0
      %5776 = vmatpush1.bf16.msra.mxu0 %v5757
      %5777 = vmatprep.subr.bf16.mxu0 0
      %5778 = vmatpush1.bf16.msra.mxu0 %v5756
      %5779 = vmatprep.subr.bf16.mxu0 0
      %5780 = vmatpush1.bf16.msra.mxu0 %v5755
      %5781 = vmatprep.subr.bf16.mxu0 0
      %5782 = vmatpush1.bf16.msra.mxu0 %v5754
      %5783 = vmatprep.subr.bf16.mxu0 0
      %5784 = vmatpush1.bf16.msra.mxu0 %v5753
      %5785 = vmatprep.subr.bf16.mxu0 0
      %5786 = vmatpush2.bf16.msra.mxu0 0
      %5787 = vmatprep.subr.bf16.mxu0 0
      %5788 = vmatpush2.bf16.msra.mxu0 0
      %5789 = vmatprep.subr.bf16.mxu0 0
      %5790 = vmatpush2.bf16.msra.mxu0 0
      %5791 = vmatprep.subr.bf16.mxu0 0
      %5792 = vmatpush2.bf16.msra.mxu0 0
      %5793 = vmatprep.subr.bf16.mxu0 0
      %5794 = vmatpush2.bf16.msra.mxu0 0
      %5795 = vmatprep.subr.bf16.mxu0 0
      %5796 = vmatpush2.bf16.msra.mxu0 0
      %5797 = vmatprep.subr.bf16.mxu0 0
      %5798 = vmatpush2.bf16.msra.mxu0 0
      %5799 = vmatprep.subr.bf16.mxu0 0
      %5800 = vmatpush2.bf16.msra.mxu0 0
      %5801 = vmatprep.mubr.bf16.mxu0 0
      %5802 = vmatmul.mubr.bf16.gmra.mxu0 %v5566
      %v5803 = vpop.f32.mrf.mxu0
      %v5804 = vadd.f32 0.0, %v5803
      %v5805 = vpop.f32.mrf.mxu0
      %v5806 = vpop.f32.mrf.mxu0
      %v5807 = vadd.f32 0.0, %v5806
      %v5808 = vpop.f32.mrf.mxu0
      %5809 = vmatprep.mubr.bf16.mxu0 0
      %5810 = vmatmul.mubr.bf16.gmra.mxu0 %v5574
      %v5811 = vpop.f32.mrf.mxu0
      %v5812 = vadd.f32 0.0, %v5811
      %v5813 = vpop.f32.mrf.mxu0
      %v5814 = vpop.f32.mrf.mxu0
      %v5815 = vadd.f32 0.0, %v5814
      %v5816 = vpop.f32.mrf.mxu0
      %5817 = vmatprep.mubr.bf16.mxu0 0
      %5818 = vmatmul.mubr.bf16.gmra.mxu0 %v5582
      %v5819 = vpop.f32.mrf.mxu0
      %v5820 = vadd.f32 0.0, %v5819
      %v5821 = vpop.f32.mrf.mxu0
      %v5822 = vpop.f32.mrf.mxu0
      %v5823 = vadd.f32 0.0, %v5822
      %v5824 = vpop.f32.mrf.mxu0
      %5825 = vmatprep.mubr.bf16.mxu0 0
      %5826 = vmatmul.mubr.bf16.gmra.mxu0 %v5590
      %v5827 = vpop.f32.mrf.mxu0
      %v5828 = vadd.f32 0.0, %v5827
      %v5829 = vpop.f32.mrf.mxu0
      %v5830 = vpop.f32.mrf.mxu0
      %v5831 = vadd.f32 0.0, %v5830
      %v5832 = vpop.f32.mrf.mxu0
      %5833 = vmatprep.mubr.bf16.mxu0 0
      %5834 = vmatmul.mubr.bf16.gmra.mxu0 %v5598
      %v5835 = vpop.f32.mrf.mxu0
      %v5836 = vadd.f32 0.0, %v5835
      %v5837 = vpop.f32.mrf.mxu0
      %v5838 = vpop.f32.mrf.mxu0
      %v5839 = vadd.f32 0.0, %v5838
      %v5840 = vpop.f32.mrf.mxu0
      %5841 = vmatprep.mubr.bf16.mxu0 0
      %5842 = vmatmul.mubr.bf16.gmra.mxu0 %v5606
      %v5843 = vpop.f32.mrf.mxu0
      %v5844 = vadd.f32 0.0, %v5843
      %v5845 = vpop.f32.mrf.mxu0
      %v5846 = vpop.f32.mrf.mxu0
      %v5847 = vadd.f32 0.0, %v5846
      %v5848 = vpop.f32.mrf.mxu0
      %5849 = vmatprep.mubr.bf16.mxu0 0
      %5850 = vmatmul.mubr.bf16.gmra.mxu0 %v5614
      %v5851 = vpop.f32.mrf.mxu0
      %v5852 = vadd.f32 0.0, %v5851
      %v5853 = vpop.f32.mrf.mxu0
      %v5854 = vpop.f32.mrf.mxu0
      %v5855 = vadd.f32 0.0, %v5854
      %v5856 = vpop.f32.mrf.mxu0
      %5857 = vmatprep.mubr.bf16.mxu0 0
      %5858 = vmatmul.mubr.bf16.gmra.mxu0 %v5622
      %v5859 = vpop.f32.mrf.mxu0
      %v5860 = vadd.f32 0.0, %v5859
      %v5861 = vpop.f32.mrf.mxu0
      %v5862 = vpop.f32.mrf.mxu0
      %v5863 = vadd.f32 0.0, %v5862
      %v5864 = vpop.f32.mrf.mxu0
      %5865 = vmatprep.mubr.bf16.mxu0 0
      %5866 = vmatmul.mubr.bf16.gmra.mxu0 %v5630
      %v5867 = vpop.f32.mrf.mxu0
      %v5868 = vadd.f32 0.0, %v5867
      %v5869 = vpop.f32.mrf.mxu0
      %v5870 = vpop.f32.mrf.mxu0
      %v5871 = vadd.f32 0.0, %v5870
      %v5872 = vpop.f32.mrf.mxu0
      %5873 = vmatprep.mubr.bf16.mxu0 0
      %5874 = vmatmul.mubr.bf16.gmra.mxu0 %v5638
      %v5875 = vpop.f32.mrf.mxu0
      %v5876 = vadd.f32 0.0, %v5875
      %v5877 = vpop.f32.mrf.mxu0
      %v5878 = vpop.f32.mrf.mxu0
      %v5879 = vadd.f32 0.0, %v5878
      %v5880 = vpop.f32.mrf.mxu0
      %5881 = vmatprep.mubr.bf16.mxu0 0
      %5882 = vmatmul.mubr.bf16.gmra.mxu0 %v5646
      %v5883 = vpop.f32.mrf.mxu0
      %v5884 = vadd.f32 0.0, %v5883
      %v5885 = vpop.f32.mrf.mxu0
      %v5886 = vpop.f32.mrf.mxu0
      %v5887 = vadd.f32 0.0, %v5886
      %v5888 = vpop.f32.mrf.mxu0
      %5889 = vmatprep.mubr.bf16.mxu0 0
      %5890 = vmatmul.mubr.bf16.gmra.mxu0 %v5654
      %v5891 = vpop.f32.mrf.mxu0
      %v5892 = vadd.f32 0.0, %v5891
      %v5893 = vpop.f32.mrf.mxu0
      %v5894 = vpop.f32.mrf.mxu0
      %v5895 = vadd.f32 0.0, %v5894
      %v5896 = vpop.f32.mrf.mxu0
      %5897 = vmatprep.mubr.bf16.mxu0 0
      %5898 = vmatmul.mubr.bf16.gmra.mxu0 %v5662
      %v5899 = vpop.f32.mrf.mxu0
      %v5900 = vadd.f32 0.0, %v5899
      %v5901 = vpop.f32.mrf.mxu0
      %v5902 = vpop.f32.mrf.mxu0
      %v5903 = vadd.f32 0.0, %v5902
      %v5904 = vpop.f32.mrf.mxu0
      %5905 = vmatprep.mubr.bf16.mxu0 0
      %5906 = vmatmul.mubr.bf16.gmra.mxu0 %v5670
      %v5907 = vpop.f32.mrf.mxu0
      %v5908 = vadd.f32 0.0, %v5907
      %v5909 = vpop.f32.mrf.mxu0
      %v5910 = vpop.f32.mrf.mxu0
      %v5911 = vadd.f32 0.0, %v5910
      %v5912 = vpop.f32.mrf.mxu0
      %5913 = vmatprep.mubr.bf16.mxu0 0
      %5914 = vmatmul.mubr.bf16.gmra.mxu0 %v5678
      %v5915 = vpop.f32.mrf.mxu0
      %v5916 = vadd.f32 0.0, %v5915
      %v5917 = vpop.f32.mrf.mxu0
      %v5918 = vpop.f32.mrf.mxu0
      %v5919 = vadd.f32 0.0, %v5918
      %v5920 = vpop.f32.mrf.mxu0
      %5921 = vmatprep.mubr.bf16.mxu0 0
      %5922 = vmatmul.mubr.bf16.gmra.mxu0 %v5686
      %v5923 = vpop.f32.mrf.mxu0
      %v5924 = vadd.f32 0.0, %v5923
      %v5925 = vpop.f32.mrf.mxu0
      %v5926 = vpop.f32.mrf.mxu0
      %v5927 = vadd.f32 0.0, %v5926
      %v5928 = vpop.f32.mrf.mxu0
      %5929 = vmatprep.mubr.bf16.mxu0 0
      %5930 = vmatmul.mubr.bf16.gmra.mxu0 %v5694
      %v5931 = vpop.f32.mrf.mxu0
      %v5932 = vadd.f32 0.0, %v5931
      %v5933 = vpop.f32.mrf.mxu0
      %v5934 = vpop.f32.mrf.mxu0
      %v5935 = vadd.f32 0.0, %v5934
      %v5936 = vpop.f32.mrf.mxu0
      %5937 = vmatprep.mubr.bf16.mxu0 0
      %5938 = vmatmul.mubr.bf16.gmra.mxu0 %v5702
      %v5939 = vpop.f32.mrf.mxu0
      %v5940 = vadd.f32 0.0, %v5939
      %v5941 = vpop.f32.mrf.mxu0
      %v5942 = vpop.f32.mrf.mxu0
      %v5943 = vadd.f32 0.0, %v5942
      %v5944 = vpop.f32.mrf.mxu0
      %5945 = vdwg.mxu0
      %v5980 = vunpack.c.l.b16 %v5428
      %v5981 = vunpack.c.l.b16 %v5429
      %v5982 = vunpack.c.l.b16 %v5430
      %v5983 = vunpack.c.l.b16 %v5431
      %v5984 = vunpack.c.l.b16 %v5432
      %v5985 = vunpack.c.l.b16 %v5433
      %v5986 = vunpack.c.l.b16 %v5434
      %v5987 = vunpack.c.l.b16 %v5435
      %v5988 = vunpack.c.l.b16 %v5436
      %v5989 = vunpack.c.l.b16 %v5437
      %v5990 = vunpack.c.l.b16 %v5438
      %v5991 = vunpack.c.l.b16 %v5439
      %v5992 = vunpack.c.l.b16 %v5440
      %v5993 = vunpack.c.l.b16 %v5441
      %v5994 = vunpack.c.l.b16 %v5442
      %v5995 = vunpack.c.l.b16 %v5443
      %v5996 = vpack.c.b16 %v5981, %v5980
      %v5997 = vpack.c.b16 %v5983, %v5982
      %v5998 = vpack.c.b16 %v5985, %v5984
      %v5999 = vpack.c.b16 %v5987, %v5986
      %v6000 = vpack.c.b16 %v5989, %v5988
      %v6001 = vpack.c.b16 %v5991, %v5990
      %v6002 = vpack.c.b16 %v5993, %v5992
      %v6003 = vpack.c.b16 %v5995, %v5994
      %6012 = vmatprep.subr.bf16.mxu0 0
      %6013 = vmatpush1.bf16.msra.mxu0 %v6003
      %6014 = vmatprep.subr.bf16.mxu0 0
      %6015 = vmatpush1.bf16.msra.mxu0 %v6002
      %6016 = vmatprep.subr.bf16.mxu0 0
      %6017 = vmatpush1.bf16.msra.mxu0 %v6001
      %6018 = vmatprep.subr.bf16.mxu0 0
      %6019 = vmatpush1.bf16.msra.mxu0 %v6000
      %6020 = vmatprep.subr.bf16.mxu0 0
      %6021 = vmatpush1.bf16.msra.mxu0 %v5999
      %6022 = vmatprep.subr.bf16.mxu0 0
      %6023 = vmatpush1.bf16.msra.mxu0 %v5998
      %6024 = vmatprep.subr.bf16.mxu0 0
      %6025 = vmatpush1.bf16.msra.mxu0 %v5997
      %6026 = vmatprep.subr.bf16.mxu0 0
      %6027 = vmatpush1.bf16.msra.mxu0 %v5996
      %6028 = vmatprep.subr.bf16.mxu0 0
      %6029 = vmatpush2.bf16.msra.mxu0 0
      %6030 = vmatprep.subr.bf16.mxu0 0
      %6031 = vmatpush2.bf16.msra.mxu0 0
      %6032 = vmatprep.subr.bf16.mxu0 0
      %6033 = vmatpush2.bf16.msra.mxu0 0
      %6034 = vmatprep.subr.bf16.mxu0 0
      %6035 = vmatpush2.bf16.msra.mxu0 0
      %6036 = vmatprep.subr.bf16.mxu0 0
      %6037 = vmatpush2.bf16.msra.mxu0 0
      %6038 = vmatprep.subr.bf16.mxu0 0
      %6039 = vmatpush2.bf16.msra.mxu0 0
      %6040 = vmatprep.subr.bf16.mxu0 0
      %6041 = vmatpush2.bf16.msra.mxu0 0
      %6042 = vmatprep.subr.bf16.mxu0 0
      %6043 = vmatpush2.bf16.msra.mxu0 0
      %6044 = vmatprep.mubr.bf16.mxu0 0
      %6045 = vmatmul.mubr.bf16.gmra.mxu0 %v5536
      %v6046 = vpop.f32.mrf.mxu0
      %v6047 = vadd.f32 %v5804, %v6046
      %v6048 = vpop.f32.mrf.mxu0
      %v6049 = vpop.f32.mrf.mxu0
      %v6050 = vadd.f32 %v5807, %v6049
      %v6051 = vpop.f32.mrf.mxu0
      %6052 = vmatprep.mubr.bf16.mxu0 0
      %6053 = vmatmul.mubr.bf16.gmra.mxu0 %v5537
      %v6054 = vpop.f32.mrf.mxu0
      %v6055 = vadd.f32 %v5812, %v6054
      %v6056 = vpop.f32.mrf.mxu0
      %v6057 = vpop.f32.mrf.mxu0
      %v6058 = vadd.f32 %v5815, %v6057
      %v6059 = vpop.f32.mrf.mxu0
      %6060 = vmatprep.mubr.bf16.mxu0 0
      %6061 = vmatmul.mubr.bf16.gmra.mxu0 %v5538
      %v6062 = vpop.f32.mrf.mxu0
      %v6063 = vadd.f32 %v5820, %v6062
      %v6064 = vpop.f32.mrf.mxu0
      %v6065 = vpop.f32.mrf.mxu0
      %v6066 = vadd.f32 %v5823, %v6065
      %v6067 = vpop.f32.mrf.mxu0
      %6068 = vmatprep.mubr.bf16.mxu0 0
      %6069 = vmatmul.mubr.bf16.gmra.mxu0 %v5539
      %v6070 = vpop.f32.mrf.mxu0
      %v6071 = vadd.f32 %v5828, %v6070
      %v6072 = vpop.f32.mrf.mxu0
      %v6073 = vpop.f32.mrf.mxu0
      %v6074 = vadd.f32 %v5831, %v6073
      %v6075 = vpop.f32.mrf.mxu0
      %6076 = vmatprep.mubr.bf16.mxu0 0
      %6077 = vmatmul.mubr.bf16.gmra.mxu0 %v5540
      %v6078 = vpop.f32.mrf.mxu0
      %v6079 = vadd.f32 %v5836, %v6078
      %v6080 = vpop.f32.mrf.mxu0
      %v6081 = vpop.f32.mrf.mxu0
      %v6082 = vadd.f32 %v5839, %v6081
      %v6083 = vpop.f32.mrf.mxu0
      %6084 = vmatprep.mubr.bf16.mxu0 0
      %6085 = vmatmul.mubr.bf16.gmra.mxu0 %v5541
      %v6086 = vpop.f32.mrf.mxu0
      %v6087 = vadd.f32 %v5844, %v6086
      %v6088 = vpop.f32.mrf.mxu0
      %v6089 = vpop.f32.mrf.mxu0
      %v6090 = vadd.f32 %v5847, %v6089
      %v6091 = vpop.f32.mrf.mxu0
      %6092 = vmatprep.mubr.bf16.mxu0 0
      %6093 = vmatmul.mubr.bf16.gmra.mxu0 %v5542
      %v6094 = vpop.f32.mrf.mxu0
      %v6095 = vadd.f32 %v5852, %v6094
      %v6096 = vpop.f32.mrf.mxu0
      %v6097 = vpop.f32.mrf.mxu0
      %v6098 = vadd.f32 %v5855, %v6097
      %v6099 = vpop.f32.mrf.mxu0
      %6100 = vmatprep.mubr.bf16.mxu0 0
      %6101 = vmatmul.mubr.bf16.gmra.mxu0 %v5543
      %v6102 = vpop.f32.mrf.mxu0
      %v6103 = vadd.f32 %v5860, %v6102
      %v6104 = vpop.f32.mrf.mxu0
      %v6105 = vpop.f32.mrf.mxu0
      %v6106 = vadd.f32 %v5863, %v6105
      %v6107 = vpop.f32.mrf.mxu0
      %6108 = vmatprep.mubr.bf16.mxu0 0
      %6109 = vmatmul.mubr.bf16.gmra.mxu0 %v5544
      %v6110 = vpop.f32.mrf.mxu0
      %v6111 = vadd.f32 %v5868, %v6110
      %v6112 = vpop.f32.mrf.mxu0
      %v6113 = vpop.f32.mrf.mxu0
      %v6114 = vadd.f32 %v5871, %v6113
      %v6115 = vpop.f32.mrf.mxu0
      %6116 = vmatprep.mubr.bf16.mxu0 0
      %6117 = vmatmul.mubr.bf16.gmra.mxu0 %v5545
      %v6118 = vpop.f32.mrf.mxu0
      %v6119 = vadd.f32 %v5876, %v6118
      %v6120 = vpop.f32.mrf.mxu0
      %v6121 = vpop.f32.mrf.mxu0
      %v6122 = vadd.f32 %v5879, %v6121
      %v6123 = vpop.f32.mrf.mxu0
      %6124 = vmatprep.mubr.bf16.mxu0 0
      %6125 = vmatmul.mubr.bf16.gmra.mxu0 %v5546
      %v6126 = vpop.f32.mrf.mxu0
      %v6127 = vadd.f32 %v5884, %v6126
      %v6128 = vpop.f32.mrf.mxu0
      %v6129 = vpop.f32.mrf.mxu0
      %v6130 = vadd.f32 %v5887, %v6129
      %v6131 = vpop.f32.mrf.mxu0
      %6132 = vmatprep.mubr.bf16.mxu0 0
      %6133 = vmatmul.mubr.bf16.gmra.mxu0 %v5547
      %v6134 = vpop.f32.mrf.mxu0
      %v6135 = vadd.f32 %v5892, %v6134
      %v6136 = vpop.f32.mrf.mxu0
      %v6137 = vpop.f32.mrf.mxu0
      %v6138 = vadd.f32 %v5895, %v6137
      %v6139 = vpop.f32.mrf.mxu0
      %6140 = vmatprep.mubr.bf16.mxu0 0
      %6141 = vmatmul.mubr.bf16.gmra.mxu0 %v5548
      %v6142 = vpop.f32.mrf.mxu0
      %v6143 = vadd.f32 %v5900, %v6142
      %v6144 = vpop.f32.mrf.mxu0
      %v6145 = vpop.f32.mrf.mxu0
      %v6146 = vadd.f32 %v5903, %v6145
      %v6147 = vpop.f32.mrf.mxu0
      %6148 = vmatprep.mubr.bf16.mxu0 0
      %6149 = vmatmul.mubr.bf16.gmra.mxu0 %v5549
      %v6150 = vpop.f32.mrf.mxu0
      %v6151 = vadd.f32 %v5908, %v6150
      %v6152 = vpop.f32.mrf.mxu0
      %v6153 = vpop.f32.mrf.mxu0
      %v6154 = vadd.f32 %v5911, %v6153
      %v6155 = vpop.f32.mrf.mxu0
      %6156 = vmatprep.mubr.bf16.mxu0 0
      %6157 = vmatmul.mubr.bf16.gmra.mxu0 %v5550
      %v6158 = vpop.f32.mrf.mxu0
      %v6159 = vadd.f32 %v5916, %v6158
      %v6160 = vpop.f32.mrf.mxu0
      %v6161 = vpop.f32.mrf.mxu0
      %v6162 = vadd.f32 %v5919, %v6161
      %v6163 = vpop.f32.mrf.mxu0
      %6164 = vmatprep.mubr.bf16.mxu0 0
      %6165 = vmatmul.mubr.bf16.gmra.mxu0 %v5551
      %v6166 = vpop.f32.mrf.mxu0
      %v6167 = vadd.f32 %v5924, %v6166
      %v6168 = vpop.f32.mrf.mxu0
      %v6169 = vpop.f32.mrf.mxu0
      %v6170 = vadd.f32 %v5927, %v6169
      %v6171 = vpop.f32.mrf.mxu0
      %6172 = vmatprep.mubr.bf16.mxu0 0
      %6173 = vmatmul.mubr.bf16.gmra.mxu0 %v5552
      %v6174 = vpop.f32.mrf.mxu0
      %v6175 = vadd.f32 %v5932, %v6174
      %v6176 = vpop.f32.mrf.mxu0
      %v6177 = vpop.f32.mrf.mxu0
      %v6178 = vadd.f32 %v5935, %v6177
      %v6179 = vpop.f32.mrf.mxu0
      %6180 = vmatprep.mubr.bf16.mxu0 0
      %6181 = vmatmul.mubr.bf16.gmra.mxu0 %v5553
      %v6182 = vpop.f32.mrf.mxu0
      %v6183 = vadd.f32 %v5940, %v6182
      %v6184 = vpop.f32.mrf.mxu0
      %v6185 = vpop.f32.mrf.mxu0
      %v6186 = vadd.f32 %v5943, %v6185
      %v6187 = vpop.f32.mrf.mxu0
      %6188 = vdwg.mxu0
      %v6189 = vld [vmem:[#allocation2] sm:$0xe]
      %s6190 = scalar_lea.vmem %s3, 128
      %v6191 = vld [vmem:[%s6190] sm:$0xf]
      %v6192 = vld [vmem:[%s6190 + $0x4] sm:$0xf]
      %v6193 = vld [vmem:[%s6190 + $0x8] sm:$0xf]
      %v6194 = vld [vmem:[%s6190 + $0xc] sm:$0xf]
      %v6195 = vld [vmem:[%s6190 + $0x10] sm:$0xf]
      %v6196 = vld [vmem:[%s6190 + $0x14] sm:$0xf]
      %v6197 = vld [vmem:[%s6190 + $0x18] sm:$0xf]
      %v6198 = vld [vmem:[%s6190 + $0x1c] sm:$0xf]
      %v6199 = vld [vmem:[%s6190 + $0x20] sm:$0xf]
      %v6200 = vld [vmem:[%s6190 + $0x24] sm:$0xf]
      %v6201 = vld [vmem:[%s6190 + $0x28] sm:$0xf]
      %v6202 = vld [vmem:[%s6190 + $0x2c] sm:$0xf]
      %v6203 = vld [vmem:[%s6190 + $0x30] sm:$0xf]
      %v6204 = vld [vmem:[%s6190 + $0x34] sm:$0xf]
      %v6205 = vld [vmem:[%s6190 + $0x38] sm:$0xf]
      %v6206 = vld [vmem:[%s6190 + $0x3c] sm:$0xf]
      %v6208 = vunpack.c.l.b16 %v6189
      %v6209 = vpack.c.b16 %v5500, %v6208
      %v6210 = vrot.slane %v6209, 1
      %v6211 = vrot.slane %v5537, 1
      %v6212 = vsel %vm1099, %v6210, %v6211
      %v6213 = vrot.slane %v5538, 1
      %v6214 = vsel %vm1099, %v6211, %v6213
      %v6215 = vrot.slane %v5539, 1
      %v6216 = vsel %vm1099, %v6213, %v6215
      %v6217 = vrot.slane %v5540, 1
      %v6218 = vsel %vm1099, %v6215, %v6217
      %v6219 = vrot.slane %v5541, 1
      %v6220 = vsel %vm1099, %v6217, %v6219
      %v6221 = vrot.slane %v5542, 1
      %v6222 = vsel %vm1099, %v6219, %v6221
      %v6223 = vrot.slane %v5543, 1
      %v6224 = vsel %vm1099, %v6221, %v6223
      %v6225 = vrot.slane %v5544, 1
      %v6226 = vsel %vm1099, %v6223, %v6225
      %v6227 = vrot.slane %v5545, 1
      %v6228 = vsel %vm1099, %v6225, %v6227
      %v6229 = vrot.slane %v5546, 1
      %v6230 = vsel %vm1099, %v6227, %v6229
      %v6231 = vrot.slane %v5547, 1
      %v6232 = vsel %vm1099, %v6229, %v6231
      %v6233 = vrot.slane %v5548, 1
      %v6234 = vsel %vm1099, %v6231, %v6233
      %v6235 = vrot.slane %v5549, 1
      %v6236 = vsel %vm1099, %v6233, %v6235
      %v6237 = vrot.slane %v5550, 1
      %v6238 = vsel %vm1099, %v6235, %v6237
      %v6239 = vrot.slane %v5551, 1
      %v6240 = vsel %vm1099, %v6237, %v6239
      %v6241 = vrot.slane %v5552, 1
      %v6242 = vsel %vm1099, %v6239, %v6241
      %v6243 = vrot.slane %v5553, 1
      %v6244 = vsel %vm1099, %v6241, %v6243
      %v6245 = vrot.slane %v5554, 1
      %v6246 = vsel %vm1099, %v6243, %v6245
      %v6281 = vunpack.c.l.b16 %v6191
      %v6282 = vunpack.c.l.b16 %v6192
      %v6283 = vunpack.c.l.b16 %v6193
      %v6284 = vunpack.c.l.b16 %v6194
      %v6285 = vunpack.c.l.b16 %v6195
      %v6286 = vunpack.c.l.b16 %v6196
      %v6287 = vunpack.c.l.b16 %v6197
      %v6288 = vunpack.c.l.b16 %v6198
      %v6289 = vunpack.c.l.b16 %v6199
      %v6290 = vunpack.c.l.b16 %v6200
      %v6291 = vunpack.c.l.b16 %v6201
      %v6292 = vunpack.c.l.b16 %v6202
      %v6293 = vunpack.c.l.b16 %v6203
      %v6294 = vunpack.c.l.b16 %v6204
      %v6295 = vunpack.c.l.b16 %v6205
      %v6296 = vunpack.c.l.b16 %v6206
      %v6297 = vpack.c.b16 %v6282, %v6281
      %v6298 = vpack.c.b16 %v6284, %v6283
      %v6299 = vpack.c.b16 %v6286, %v6285
      %v6300 = vpack.c.b16 %v6288, %v6287
      %v6301 = vpack.c.b16 %v6290, %v6289
      %v6302 = vpack.c.b16 %v6292, %v6291
      %v6303 = vpack.c.b16 %v6294, %v6293
      %v6304 = vpack.c.b16 %v6296, %v6295
      %6313 = vmatprep.subr.bf16.mxu0 0
      %6314 = vmatpush1.bf16.msra.mxu0 %v6304
      %6315 = vmatprep.subr.bf16.mxu0 0
      %6316 = vmatpush1.bf16.msra.mxu0 %v6303
      %6317 = vmatprep.subr.bf16.mxu0 0
      %6318 = vmatpush1.bf16.msra.mxu0 %v6302
      %6319 = vmatprep.subr.bf16.mxu0 0
      %6320 = vmatpush1.bf16.msra.mxu0 %v6301
      %6321 = vmatprep.subr.bf16.mxu0 0
      %6322 = vmatpush1.bf16.msra.mxu0 %v6300
      %6323 = vmatprep.subr.bf16.mxu0 0
      %6324 = vmatpush1.bf16.msra.mxu0 %v6299
      %6325 = vmatprep.subr.bf16.mxu0 0
      %6326 = vmatpush1.bf16.msra.mxu0 %v6298
      %6327 = vmatprep.subr.bf16.mxu0 0
      %6328 = vmatpush1.bf16.msra.mxu0 %v6297
      %6329 = vmatprep.subr.bf16.mxu0 0
      %6330 = vmatpush2.bf16.msra.mxu0 0
      %6331 = vmatprep.subr.bf16.mxu0 0
      %6332 = vmatpush2.bf16.msra.mxu0 0
      %6333 = vmatprep.subr.bf16.mxu0 0
      %6334 = vmatpush2.bf16.msra.mxu0 0
      %6335 = vmatprep.subr.bf16.mxu0 0
      %6336 = vmatpush2.bf16.msra.mxu0 0
      %6337 = vmatprep.subr.bf16.mxu0 0
      %6338 = vmatpush2.bf16.msra.mxu0 0
      %6339 = vmatprep.subr.bf16.mxu0 0
      %6340 = vmatpush2.bf16.msra.mxu0 0
      %6341 = vmatprep.subr.bf16.mxu0 0
      %6342 = vmatpush2.bf16.msra.mxu0 0
      %6343 = vmatprep.subr.bf16.mxu0 0
      %6344 = vmatpush2.bf16.msra.mxu0 0
      %6345 = vmatprep.mubr.bf16.mxu0 0
      %6346 = vmatmul.mubr.bf16.gmra.mxu0 %v6212
      %v6347 = vpop.f32.mrf.mxu0
      %v6348 = vadd.f32 0.0, %v6347
      %v6349 = vpop.f32.mrf.mxu0
      %v6350 = vpop.f32.mrf.mxu0
      %v6351 = vadd.f32 0.0, %v6350
      %v6352 = vpop.f32.mrf.mxu0
      %6353 = vmatprep.mubr.bf16.mxu0 0
      %6354 = vmatmul.mubr.bf16.gmra.mxu0 %v6214
      %v6355 = vpop.f32.mrf.mxu0
      %v6356 = vadd.f32 0.0, %v6355
      %v6357 = vpop.f32.mrf.mxu0
      %v6358 = vpop.f32.mrf.mxu0
      %v6359 = vadd.f32 0.0, %v6358
      %v6360 = vpop.f32.mrf.mxu0
      %6361 = vmatprep.mubr.bf16.mxu0 0
      %6362 = vmatmul.mubr.bf16.gmra.mxu0 %v6216
      %v6363 = vpop.f32.mrf.mxu0
      %v6364 = vadd.f32 0.0, %v6363
      %v6365 = vpop.f32.mrf.mxu0
      %v6366 = vpop.f32.mrf.mxu0
      %v6367 = vadd.f32 0.0, %v6366
      %v6368 = vpop.f32.mrf.mxu0
      %6369 = vmatprep.mubr.bf16.mxu0 0
      %6370 = vmatmul.mubr.bf16.gmra.mxu0 %v6218
      %v6371 = vpop.f32.mrf.mxu0
      %v6372 = vadd.f32 0.0, %v6371
      %v6373 = vpop.f32.mrf.mxu0
      %v6374 = vpop.f32.mrf.mxu0
      %v6375 = vadd.f32 0.0, %v6374
      %v6376 = vpop.f32.mrf.mxu0
      %6377 = vmatprep.mubr.bf16.mxu0 0
      %6378 = vmatmul.mubr.bf16.gmra.mxu0 %v6220
      %v6379 = vpop.f32.mrf.mxu0
      %v6380 = vadd.f32 0.0, %v6379
      %v6381 = vpop.f32.mrf.mxu0
      %v6382 = vpop.f32.mrf.mxu0
      %v6383 = vadd.f32 0.0, %v6382
      %v6384 = vpop.f32.mrf.mxu0
      %6385 = vmatprep.mubr.bf16.mxu0 0
      %6386 = vmatmul.mubr.bf16.gmra.mxu0 %v6222
      %v6387 = vpop.f32.mrf.mxu0
      %v6388 = vadd.f32 0.0, %v6387
      %v6389 = vpop.f32.mrf.mxu0
      %v6390 = vpop.f32.mrf.mxu0
      %v6391 = vadd.f32 0.0, %v6390
      %v6392 = vpop.f32.mrf.mxu0
      %6393 = vmatprep.mubr.bf16.mxu0 0
      %6394 = vmatmul.mubr.bf16.gmra.mxu0 %v6224
      %v6395 = vpop.f32.mrf.mxu0
      %v6396 = vadd.f32 0.0, %v6395
      %v6397 = vpop.f32.mrf.mxu0
      %v6398 = vpop.f32.mrf.mxu0
      %v6399 = vadd.f32 0.0, %v6398
      %v6400 = vpop.f32.mrf.mxu0
      %6401 = vmatprep.mubr.bf16.mxu0 0
      %6402 = vmatmul.mubr.bf16.gmra.mxu0 %v6226
      %v6403 = vpop.f32.mrf.mxu0
      %v6404 = vadd.f32 0.0, %v6403
      %v6405 = vpop.f32.mrf.mxu0
      %v6406 = vpop.f32.mrf.mxu0
      %v6407 = vadd.f32 0.0, %v6406
      %v6408 = vpop.f32.mrf.mxu0
      %6409 = vmatprep.mubr.bf16.mxu0 0
      %6410 = vmatmul.mubr.bf16.gmra.mxu0 %v6228
      %v6411 = vpop.f32.mrf.mxu0
      %v6412 = vadd.f32 0.0, %v6411
      %v6413 = vpop.f32.mrf.mxu0
      %v6414 = vpop.f32.mrf.mxu0
      %v6415 = vadd.f32 0.0, %v6414
      %v6416 = vpop.f32.mrf.mxu0
      %6417 = vmatprep.mubr.bf16.mxu0 0
      %6418 = vmatmul.mubr.bf16.gmra.mxu0 %v6230
      %v6419 = vpop.f32.mrf.mxu0
      %v6420 = vadd.f32 0.0, %v6419
      %v6421 = vpop.f32.mrf.mxu0
      %v6422 = vpop.f32.mrf.mxu0
      %v6423 = vadd.f32 0.0, %v6422
      %v6424 = vpop.f32.mrf.mxu0
      %6425 = vmatprep.mubr.bf16.mxu0 0
      %6426 = vmatmul.mubr.bf16.gmra.mxu0 %v6232
      %v6427 = vpop.f32.mrf.mxu0
      %v6428 = vadd.f32 0.0, %v6427
      %v6429 = vpop.f32.mrf.mxu0
      %v6430 = vpop.f32.mrf.mxu0
      %v6431 = vadd.f32 0.0, %v6430
      %v6432 = vpop.f32.mrf.mxu0
      %6433 = vmatprep.mubr.bf16.mxu0 0
      %6434 = vmatmul.mubr.bf16.gmra.mxu0 %v6234
      %v6435 = vpop.f32.mrf.mxu0
      %v6436 = vadd.f32 0.0, %v6435
      %v6437 = vpop.f32.mrf.mxu0
      %v6438 = vpop.f32.mrf.mxu0
      %v6439 = vadd.f32 0.0, %v6438
      %v6440 = vpop.f32.mrf.mxu0
      %6441 = vmatprep.mubr.bf16.mxu0 0
      %6442 = vmatmul.mubr.bf16.gmra.mxu0 %v6236
      %v6443 = vpop.f32.mrf.mxu0
      %v6444 = vadd.f32 0.0, %v6443
      %v6445 = vpop.f32.mrf.mxu0
      %v6446 = vpop.f32.mrf.mxu0
      %v6447 = vadd.f32 0.0, %v6446
      %v6448 = vpop.f32.mrf.mxu0
      %6449 = vmatprep.mubr.bf16.mxu0 0
      %6450 = vmatmul.mubr.bf16.gmra.mxu0 %v6238
      %v6451 = vpop.f32.mrf.mxu0
      %v6452 = vadd.f32 0.0, %v6451
      %v6453 = vpop.f32.mrf.mxu0
      %v6454 = vpop.f32.mrf.mxu0
      %v6455 = vadd.f32 0.0, %v6454
      %v6456 = vpop.f32.mrf.mxu0
      %6457 = vmatprep.mubr.bf16.mxu0 0
      %6458 = vmatmul.mubr.bf16.gmra.mxu0 %v6240
      %v6459 = vpop.f32.mrf.mxu0
      %v6460 = vadd.f32 0.0, %v6459
      %v6461 = vpop.f32.mrf.mxu0
      %v6462 = vpop.f32.mrf.mxu0
      %v6463 = vadd.f32 0.0, %v6462
      %v6464 = vpop.f32.mrf.mxu0
      %6465 = vmatprep.mubr.bf16.mxu0 0
      %6466 = vmatmul.mubr.bf16.gmra.mxu0 %v6242
      %v6467 = vpop.f32.mrf.mxu0
      %v6468 = vadd.f32 0.0, %v6467
      %v6469 = vpop.f32.mrf.mxu0
      %v6470 = vpop.f32.mrf.mxu0
      %v6471 = vadd.f32 0.0, %v6470
      %v6472 = vpop.f32.mrf.mxu0
      %6473 = vmatprep.mubr.bf16.mxu0 0
      %6474 = vmatmul.mubr.bf16.gmra.mxu0 %v6244
      %v6475 = vpop.f32.mrf.mxu0
      %v6476 = vadd.f32 0.0, %v6475
      %v6477 = vpop.f32.mrf.mxu0
      %v6478 = vpop.f32.mrf.mxu0
      %v6479 = vadd.f32 0.0, %v6478
      %v6480 = vpop.f32.mrf.mxu0
      %6481 = vmatprep.mubr.bf16.mxu0 0
      %6482 = vmatmul.mubr.bf16.gmra.mxu0 %v6246
      %v6483 = vpop.f32.mrf.mxu0
      %v6484 = vadd.f32 0.0, %v6483
      %v6485 = vpop.f32.mrf.mxu0
      %v6486 = vpop.f32.mrf.mxu0
      %v6487 = vadd.f32 0.0, %v6486
      %v6488 = vpop.f32.mrf.mxu0
      %6489 = vdwg.mxu0
      %v6490 = vadd.f32 %v6047, %v6348
      %v6491 = vadd.f32 %v6050, %v6351
      %v6492 = vadd.f32 %v6055, %v6356
      %v6493 = vadd.f32 %v6058, %v6359
      %v6494 = vadd.f32 %v6063, %v6364
      %v6495 = vadd.f32 %v6066, %v6367
      %v6496 = vadd.f32 %v6071, %v6372
      %v6497 = vadd.f32 %v6074, %v6375
      %v6498 = vadd.f32 %v6079, %v6380
      %v6499 = vadd.f32 %v6082, %v6383
      %v6500 = vadd.f32 %v6087, %v6388
      %v6501 = vadd.f32 %v6090, %v6391
      %v6502 = vadd.f32 %v6095, %v6396
      %v6503 = vadd.f32 %v6098, %v6399
      %v6504 = vadd.f32 %v6103, %v6404
      %v6505 = vadd.f32 %v6106, %v6407
      %v6506 = vadd.f32 %v6111, %v6412
      %v6507 = vadd.f32 %v6114, %v6415
      %v6508 = vadd.f32 %v6119, %v6420
      %v6509 = vadd.f32 %v6122, %v6423
      %v6510 = vadd.f32 %v6127, %v6428
      %v6511 = vadd.f32 %v6130, %v6431
      %v6512 = vadd.f32 %v6135, %v6436
      %v6513 = vadd.f32 %v6138, %v6439
      %v6514 = vadd.f32 %v6143, %v6444
      %v6515 = vadd.f32 %v6146, %v6447
      %v6516 = vadd.f32 %v6151, %v6452
      %v6517 = vadd.f32 %v6154, %v6455
      %v6518 = vadd.f32 %v6159, %v6460
      %v6519 = vadd.f32 %v6162, %v6463
      %v6520 = vadd.f32 %v6167, %v6468
      %v6521 = vadd.f32 %v6170, %v6471
      %v6522 = vadd.f32 %v6175, %v6476
      %v6523 = vadd.f32 %v6178, %v6479
      %v6524 = vadd.f32 %v6183, %v6484
      %v6525 = vadd.f32 %v6186, %v6487
      %v6526 = vld [vmem:[#allocation2 + $0x8] sm:$0xe]
      %v6527 = vld [vmem:[#allocation2 + $0xc] sm:$0xf]
      %v6528 = vld [vmem:[#allocation2 + $0x10] sm:$0xf]
      %v6529 = vld [vmem:[#allocation2 + $0x14] sm:$0xf]
      %v6530 = vld [vmem:[#allocation2 + $0x18] sm:$0xf]
      %v6531 = vld [vmem:[#allocation2 + $0x1c] sm:$0xf]
      %v6532 = vld [vmem:[#allocation2 + $0x20] sm:$0xf]
      %v6533 = vld [vmem:[#allocation2 + $0x24] sm:$0xf]
      %v6534 = vld [vmem:[#allocation2 + $0x28] sm:$0xf]
      %v6535 = vld [vmem:[#allocation2 + $0x2c] sm:$0xf]
      %v6536 = vld [vmem:[#allocation2 + $0x30] sm:$0xf]
      %v6537 = vld [vmem:[#allocation2 + $0x34] sm:$0xf]
      %v6538 = vld [vmem:[#allocation2 + $0x38] sm:$0xf]
      %v6539 = vld [vmem:[#allocation2 + $0x3c] sm:$0xf]
      %v6540 = vld [vmem:[#allocation2 + $0x40] sm:$0xf]
      %v6541 = vld [vmem:[#allocation2 + $0x44] sm:$0xf]
      %v6542 = vld [vmem:[#allocation2 + $0x48] sm:$0xf]
      %v6543 = vld [vmem:[#allocation2 + $0x4c] sm:$0xf]
      %v6544 = vld [vmem:[#allocation2 + $0x50] sm:$0xf]
      %v6545 = vld [vmem:[#allocation2 + $0x54] sm:$0xf]
      %v6546 = vld [vmem:[#allocation2 + $0x58] sm:$0xf]
      %v6547 = vld [vmem:[#allocation2 + $0x5c] sm:$0xf]
      %v6548 = vld [vmem:[#allocation2 + $0x60] sm:$0xf]
      %v6549 = vld [vmem:[#allocation2 + $0x64] sm:$0xf]
      %v6550 = vld [vmem:[#allocation2 + $0x68] sm:$0xf]
      %v6551 = vld [vmem:[#allocation2 + $0x6c] sm:$0xf]
      %v6552 = vld [vmem:[#allocation2 + $0x70] sm:$0xf]
      %v6553 = vld [vmem:[#allocation2 + $0x74] sm:$0xf]
      %v6554 = vld [vmem:[#allocation2 + $0x78] sm:$0xf]
      %v6555 = vld [vmem:[#allocation2 + $0x7c] sm:$0xf]
      %v6556 = vld [vmem:[#allocation2 + $0x80] sm:$0xf]
      %v6557 = vld [vmem:[#allocation2 + $0x84] sm:$0xf]
      %v6558 = vld [vmem:[#allocation2 + $0x88] sm:$0xf]
      %v6559 = vld [vmem:[#allocation2 + $0x8c] sm:$0xf]
      %v6560 = vld [vmem:[#allocation2 + $0x90] sm:$0xf]
      %v6561 = vld [vmem:[#allocation2 + $0x94] sm:$0xf]
      %v6562 = vld [vmem:[#allocation2 + $0x98] sm:$0x1]
      %s6563 = scalar_lea.vmem %s3, 192
      %v6564 = vld [vmem:[%s6563] sm:$0xf]
      %v6565 = vld [vmem:[%s6563 + $0x4] sm:$0xf]
      %v6566 = vld [vmem:[%s6563 + $0x8] sm:$0xf]
      %v6567 = vld [vmem:[%s6563 + $0xc] sm:$0xf]
      %v6568 = vld [vmem:[%s6563 + $0x10] sm:$0xf]
      %v6569 = vld [vmem:[%s6563 + $0x14] sm:$0xf]
      %v6570 = vld [vmem:[%s6563 + $0x18] sm:$0xf]
      %v6571 = vld [vmem:[%s6563 + $0x1c] sm:$0xf]
      %v6572 = vld [vmem:[%s6563 + $0x20] sm:$0xf]
      %v6573 = vld [vmem:[%s6563 + $0x24] sm:$0xf]
      %v6574 = vld [vmem:[%s6563 + $0x28] sm:$0xf]
      %v6575 = vld [vmem:[%s6563 + $0x2c] sm:$0xf]
      %v6576 = vld [vmem:[%s6563 + $0x30] sm:$0xf]
      %v6577 = vld [vmem:[%s6563 + $0x34] sm:$0xf]
      %v6578 = vld [vmem:[%s6563 + $0x38] sm:$0xf]
      %v6579 = vld [vmem:[%s6563 + $0x3c] sm:$0xf]
      %v6617 = vunpack.c.l.b16 %v6526
      %v6618 = vunpack.c.l.b16 %v6527
      %v6619 = vunpack.c.l.b16 %v6528
      %v6620 = vunpack.c.l.b16 %v6529
      %v6621 = vunpack.c.l.b16 %v6530
      %v6622 = vunpack.c.l.b16 %v6531
      %v6623 = vunpack.c.l.b16 %v6532
      %v6624 = vunpack.c.l.b16 %v6533
      %v6625 = vunpack.c.l.b16 %v6534
      %v6626 = vunpack.c.l.b16 %v6535
      %v6627 = vunpack.c.l.b16 %v6536
      %v6628 = vunpack.c.l.b16 %v6537
      %v6629 = vunpack.c.l.b16 %v6538
      %v6630 = vunpack.c.l.b16 %v6539
      %v6631 = vunpack.c.l.b16 %v6540
      %v6632 = vunpack.c.l.b16 %v6541
      %v6633 = vunpack.c.l.b16 %v6542
      %v6634 = vunpack.c.l.b16 %v6543
      %v6635 = vunpack.c.l.b16 %v6544
      %v6636 = vunpack.c.l.b16 %v6545
      %v6637 = vunpack.c.l.b16 %v6546
      %v6638 = vunpack.c.l.b16 %v6547
      %v6639 = vunpack.c.l.b16 %v6548
      %v6640 = vunpack.c.l.b16 %v6549
      %v6641 = vunpack.c.l.b16 %v6550
      %v6642 = vunpack.c.l.b16 %v6551
      %v6643 = vunpack.c.l.b16 %v6552
      %v6644 = vunpack.c.l.b16 %v6553
      %v6645 = vunpack.c.l.b16 %v6554
      %v6646 = vunpack.c.l.b16 %v6555
      %v6647 = vunpack.c.l.b16 %v6556
      %v6648 = vunpack.c.l.b16 %v6557
      %v6649 = vunpack.c.l.b16 %v6558
      %v6650 = vunpack.c.l.b16 %v6559
      %v6651 = vunpack.c.l.b16 %v6560
      %v6652 = vunpack.c.l.b16 %v6561
      %v6653 = vunpack.c.l.b16 %v6562
      %v6654 = vpack.c.b16 %v6618, %v6617
      %v6655 = vpack.c.b16 %v6620, %v6619
      %v6656 = vpack.c.b16 %v6622, %v6621
      %v6657 = vpack.c.b16 %v6624, %v6623
      %v6658 = vpack.c.b16 %v6626, %v6625
      %v6659 = vpack.c.b16 %v6628, %v6627
      %v6660 = vpack.c.b16 %v6630, %v6629
      %v6661 = vpack.c.b16 %v6632, %v6631
      %v6662 = vpack.c.b16 %v6634, %v6633
      %v6663 = vpack.c.b16 %v6636, %v6635
      %v6664 = vpack.c.b16 %v6638, %v6637
      %v6665 = vpack.c.b16 %v6640, %v6639
      %v6666 = vpack.c.b16 %v6642, %v6641
      %v6667 = vpack.c.b16 %v6644, %v6643
      %v6668 = vpack.c.b16 %v6646, %v6645
      %v6669 = vpack.c.b16 %v6648, %v6647
      %v6670 = vpack.c.b16 %v6650, %v6649
      %v6671 = vpack.c.b16 %v6652, %v6651
      %v6672 = vpack.c.b16 %v6653, %v6653
      %v6673 = vrot.slane %v6654, 1
      %v6674 = vrot.slane %v6655, 1
      %v6675 = vsel %vm1099, %v6673, %v6674
      %v6676 = vrot.slane %v6656, 1
      %v6677 = vsel %vm1099, %v6674, %v6676
      %v6678 = vrot.slane %v6657, 1
      %v6679 = vsel %vm1099, %v6676, %v6678
      %v6680 = vrot.slane %v6658, 1
      %v6681 = vsel %vm1099, %v6678, %v6680
      %v6682 = vrot.slane %v6659, 1
      %v6683 = vsel %vm1099, %v6680, %v6682
      %v6684 = vrot.slane %v6660, 1
      %v6685 = vsel %vm1099, %v6682, %v6684
      %v6686 = vrot.slane %v6661, 1
      %v6687 = vsel %vm1099, %v6684, %v6686
      %v6688 = vrot.slane %v6662, 1
      %v6689 = vsel %vm1099, %v6686, %v6688
      %v6690 = vrot.slane %v6663, 1
      %v6691 = vsel %vm1099, %v6688, %v6690
      %v6692 = vrot.slane %v6664, 1
      %v6693 = vsel %vm1099, %v6690, %v6692
      %v6694 = vrot.slane %v6665, 1
      %v6695 = vsel %vm1099, %v6692, %v6694
      %v6696 = vrot.slane %v6666, 1
      %v6697 = vsel %vm1099, %v6694, %v6696
      %v6698 = vrot.slane %v6667, 1
      %v6699 = vsel %vm1099, %v6696, %v6698
      %v6700 = vrot.slane %v6668, 1
      %v6701 = vsel %vm1099, %v6698, %v6700
      %v6702 = vrot.slane %v6669, 1
      %v6703 = vsel %vm1099, %v6700, %v6702
      %v6704 = vrot.slane %v6670, 1
      %v6705 = vsel %vm1099, %v6702, %v6704
      %v6706 = vrot.slane %v6671, 1
      %v6707 = vsel %vm1099, %v6704, %v6706
      %v6708 = vrot.slane %v6672, 1
      %v6709 = vsel %vm1099, %v6706, %v6708
      %v6744 = vunpack.c.l.b16 %v6564
      %v6745 = vunpack.c.l.b16 %v6565
      %v6746 = vunpack.c.l.b16 %v6566
      %v6747 = vunpack.c.l.b16 %v6567
      %v6748 = vunpack.c.l.b16 %v6568
      %v6749 = vunpack.c.l.b16 %v6569
      %v6750 = vunpack.c.l.b16 %v6570
      %v6751 = vunpack.c.l.b16 %v6571
      %v6752 = vunpack.c.l.b16 %v6572
      %v6753 = vunpack.c.l.b16 %v6573
      %v6754 = vunpack.c.l.b16 %v6574
      %v6755 = vunpack.c.l.b16 %v6575
      %v6756 = vunpack.c.l.b16 %v6576
      %v6757 = vunpack.c.l.b16 %v6577
      %v6758 = vunpack.c.l.b16 %v6578
      %v6759 = vunpack.c.l.b16 %v6579
      %v6760 = vpack.c.b16 %v6745, %v6744
      %v6761 = vpack.c.b16 %v6747, %v6746
      %v6762 = vpack.c.b16 %v6749, %v6748
      %v6763 = vpack.c.b16 %v6751, %v6750
      %v6764 = vpack.c.b16 %v6753, %v6752
      %v6765 = vpack.c.b16 %v6755, %v6754
      %v6766 = vpack.c.b16 %v6757, %v6756
      %v6767 = vpack.c.b16 %v6759, %v6758
      %6776 = vmatprep.subr.bf16.mxu0 0
      %6777 = vmatpush1.bf16.msra.mxu0 %v6767
      %6778 = vmatprep.subr.bf16.mxu0 0
      %6779 = vmatpush1.bf16.msra.mxu0 %v6766
      %6780 = vmatprep.subr.bf16.mxu0 0
      %6781 = vmatpush1.bf16.msra.mxu0 %v6765
      %6782 = vmatprep.subr.bf16.mxu0 0
      %6783 = vmatpush1.bf16.msra.mxu0 %v6764
      %6784 = vmatprep.subr.bf16.mxu0 0
      %6785 = vmatpush1.bf16.msra.mxu0 %v6763
      %6786 = vmatprep.subr.bf16.mxu0 0
      %6787 = vmatpush1.bf16.msra.mxu0 %v6762
      %6788 = vmatprep.subr.bf16.mxu0 0
      %6789 = vmatpush1.bf16.msra.mxu0 %v6761
      %6790 = vmatprep.subr.bf16.mxu0 0
      %6791 = vmatpush1.bf16.msra.mxu0 %v6760
      %6792 = vmatprep.subr.bf16.mxu0 0
      %6793 = vmatpush2.bf16.msra.mxu0 0
      %6794 = vmatprep.subr.bf16.mxu0 0
      %6795 = vmatpush2.bf16.msra.mxu0 0
      %6796 = vmatprep.subr.bf16.mxu0 0
      %6797 = vmatpush2.bf16.msra.mxu0 0
      %6798 = vmatprep.subr.bf16.mxu0 0
      %6799 = vmatpush2.bf16.msra.mxu0 0
      %6800 = vmatprep.subr.bf16.mxu0 0
      %6801 = vmatpush2.bf16.msra.mxu0 0
      %6802 = vmatprep.subr.bf16.mxu0 0
      %6803 = vmatpush2.bf16.msra.mxu0 0
      %6804 = vmatprep.subr.bf16.mxu0 0
      %6805 = vmatpush2.bf16.msra.mxu0 0
      %6806 = vmatprep.subr.bf16.mxu0 0
      %6807 = vmatpush2.bf16.msra.mxu0 0
      %6808 = vmatprep.mubr.bf16.mxu0 0
      %6809 = vmatmul.mubr.bf16.gmra.mxu0 %v6675
      %v6810 = vpop.f32.mrf.mxu0
      %v6811 = vadd.f32 0.0, %v6810
      %v6812 = vpop.f32.mrf.mxu0
      %v6813 = vpop.f32.mrf.mxu0
      %v6814 = vadd.f32 0.0, %v6813
      %v6815 = vpop.f32.mrf.mxu0
      %6816 = vmatprep.mubr.bf16.mxu0 0
      %6817 = vmatmul.mubr.bf16.gmra.mxu0 %v6677
      %v6818 = vpop.f32.mrf.mxu0
      %v6819 = vadd.f32 0.0, %v6818
      %v6820 = vpop.f32.mrf.mxu0
      %v6821 = vpop.f32.mrf.mxu0
      %v6822 = vadd.f32 0.0, %v6821
      %v6823 = vpop.f32.mrf.mxu0
      %6824 = vmatprep.mubr.bf16.mxu0 0
      %6825 = vmatmul.mubr.bf16.gmra.mxu0 %v6679
      %v6826 = vpop.f32.mrf.mxu0
      %v6827 = vadd.f32 0.0, %v6826
      %v6828 = vpop.f32.mrf.mxu0
      %v6829 = vpop.f32.mrf.mxu0
      %v6830 = vadd.f32 0.0, %v6829
      %v6831 = vpop.f32.mrf.mxu0
      %6832 = vmatprep.mubr.bf16.mxu0 0
      %6833 = vmatmul.mubr.bf16.gmra.mxu0 %v6681
      %v6834 = vpop.f32.mrf.mxu0
      %v6835 = vadd.f32 0.0, %v6834
      %v6836 = vpop.f32.mrf.mxu0
      %v6837 = vpop.f32.mrf.mxu0
      %v6838 = vadd.f32 0.0, %v6837
      %v6839 = vpop.f32.mrf.mxu0
      %6840 = vmatprep.mubr.bf16.mxu0 0
      %6841 = vmatmul.mubr.bf16.gmra.mxu0 %v6683
      %v6842 = vpop.f32.mrf.mxu0
      %v6843 = vadd.f32 0.0, %v6842
      %v6844 = vpop.f32.mrf.mxu0
      %v6845 = vpop.f32.mrf.mxu0
      %v6846 = vadd.f32 0.0, %v6845
      %v6847 = vpop.f32.mrf.mxu0
      %6848 = vmatprep.mubr.bf16.mxu0 0
      %6849 = vmatmul.mubr.bf16.gmra.mxu0 %v6685
      %v6850 = vpop.f32.mrf.mxu0
      %v6851 = vadd.f32 0.0, %v6850
      %v6852 = vpop.f32.mrf.mxu0
      %v6853 = vpop.f32.mrf.mxu0
      %v6854 = vadd.f32 0.0, %v6853
      %v6855 = vpop.f32.mrf.mxu0
      %6856 = vmatprep.mubr.bf16.mxu0 0
      %6857 = vmatmul.mubr.bf16.gmra.mxu0 %v6687
      %v6858 = vpop.f32.mrf.mxu0
      %v6859 = vadd.f32 0.0, %v6858
      %v6860 = vpop.f32.mrf.mxu0
      %v6861 = vpop.f32.mrf.mxu0
      %v6862 = vadd.f32 0.0, %v6861
      %v6863 = vpop.f32.mrf.mxu0
      %6864 = vmatprep.mubr.bf16.mxu0 0
      %6865 = vmatmul.mubr.bf16.gmra.mxu0 %v6689
      %v6866 = vpop.f32.mrf.mxu0
      %v6867 = vadd.f32 0.0, %v6866
      %v6868 = vpop.f32.mrf.mxu0
      %v6869 = vpop.f32.mrf.mxu0
      %v6870 = vadd.f32 0.0, %v6869
      %v6871 = vpop.f32.mrf.mxu0
      %6872 = vmatprep.mubr.bf16.mxu0 0
      %6873 = vmatmul.mubr.bf16.gmra.mxu0 %v6691
      %v6874 = vpop.f32.mrf.mxu0
      %v6875 = vadd.f32 0.0, %v6874
      %v6876 = vpop.f32.mrf.mxu0
      %v6877 = vpop.f32.mrf.mxu0
      %v6878 = vadd.f32 0.0, %v6877
      %v6879 = vpop.f32.mrf.mxu0
      %6880 = vmatprep.mubr.bf16.mxu0 0
      %6881 = vmatmul.mubr.bf16.gmra.mxu0 %v6693
      %v6882 = vpop.f32.mrf.mxu0
      %v6883 = vadd.f32 0.0, %v6882
      %v6884 = vpop.f32.mrf.mxu0
      %v6885 = vpop.f32.mrf.mxu0
      %v6886 = vadd.f32 0.0, %v6885
      %v6887 = vpop.f32.mrf.mxu0
      %6888 = vmatprep.mubr.bf16.mxu0 0
      %6889 = vmatmul.mubr.bf16.gmra.mxu0 %v6695
      %v6890 = vpop.f32.mrf.mxu0
      %v6891 = vadd.f32 0.0, %v6890
      %v6892 = vpop.f32.mrf.mxu0
      %v6893 = vpop.f32.mrf.mxu0
      %v6894 = vadd.f32 0.0, %v6893
      %v6895 = vpop.f32.mrf.mxu0
      %6896 = vmatprep.mubr.bf16.mxu0 0
      %6897 = vmatmul.mubr.bf16.gmra.mxu0 %v6697
      %v6898 = vpop.f32.mrf.mxu0
      %v6899 = vadd.f32 0.0, %v6898
      %v6900 = vpop.f32.mrf.mxu0
      %v6901 = vpop.f32.mrf.mxu0
      %v6902 = vadd.f32 0.0, %v6901
      %v6903 = vpop.f32.mrf.mxu0
      %6904 = vmatprep.mubr.bf16.mxu0 0
      %6905 = vmatmul.mubr.bf16.gmra.mxu0 %v6699
      %v6906 = vpop.f32.mrf.mxu0
      %v6907 = vadd.f32 0.0, %v6906
      %v6908 = vpop.f32.mrf.mxu0
      %v6909 = vpop.f32.mrf.mxu0
      %v6910 = vadd.f32 0.0, %v6909
      %v6911 = vpop.f32.mrf.mxu0
      %6912 = vmatprep.mubr.bf16.mxu0 0
      %6913 = vmatmul.mubr.bf16.gmra.mxu0 %v6701
      %v6914 = vpop.f32.mrf.mxu0
      %v6915 = vadd.f32 0.0, %v6914
      %v6916 = vpop.f32.mrf.mxu0
      %v6917 = vpop.f32.mrf.mxu0
      %v6918 = vadd.f32 0.0, %v6917
      %v6919 = vpop.f32.mrf.mxu0
      %6920 = vmatprep.mubr.bf16.mxu0 0
      %6921 = vmatmul.mubr.bf16.gmra.mxu0 %v6703
      %v6922 = vpop.f32.mrf.mxu0
      %v6923 = vadd.f32 0.0, %v6922
      %v6924 = vpop.f32.mrf.mxu0
      %v6925 = vpop.f32.mrf.mxu0
      %v6926 = vadd.f32 0.0, %v6925
      %v6927 = vpop.f32.mrf.mxu0
      %6928 = vmatprep.mubr.bf16.mxu0 0
      %6929 = vmatmul.mubr.bf16.gmra.mxu0 %v6705
      %v6930 = vpop.f32.mrf.mxu0
      %v6931 = vadd.f32 0.0, %v6930
      %v6932 = vpop.f32.mrf.mxu0
      %v6933 = vpop.f32.mrf.mxu0
      %v6934 = vadd.f32 0.0, %v6933
      %v6935 = vpop.f32.mrf.mxu0
      %6936 = vmatprep.mubr.bf16.mxu0 0
      %6937 = vmatmul.mubr.bf16.gmra.mxu0 %v6707
      %v6938 = vpop.f32.mrf.mxu0
      %v6939 = vadd.f32 0.0, %v6938
      %v6940 = vpop.f32.mrf.mxu0
      %v6941 = vpop.f32.mrf.mxu0
      %v6942 = vadd.f32 0.0, %v6941
      %v6943 = vpop.f32.mrf.mxu0
      %6944 = vmatprep.mubr.bf16.mxu0 0
      %6945 = vmatmul.mubr.bf16.gmra.mxu0 %v6709
      %v6946 = vpop.f32.mrf.mxu0
      %v6947 = vadd.f32 0.0, %v6946
      %v6948 = vpop.f32.mrf.mxu0
      %v6949 = vpop.f32.mrf.mxu0
      %v6950 = vadd.f32 0.0, %v6949
      %v6951 = vpop.f32.mrf.mxu0
      %6952 = vdwg.mxu0
      %v6953 = vadd.f32 %v6490, %v6811
      %v6954 = vadd.f32 %v6491, %v6814
      %v6955 = vadd.f32 %v6492, %v6819
      %v6956 = vadd.f32 %v6493, %v6822
      %v6957 = vadd.f32 %v6494, %v6827
      %v6958 = vadd.f32 %v6495, %v6830
      %v6959 = vadd.f32 %v6496, %v6835
      %v6960 = vadd.f32 %v6497, %v6838
      %v6961 = vadd.f32 %v6498, %v6843
      %v6962 = vadd.f32 %v6499, %v6846
      %v6963 = vadd.f32 %v6500, %v6851
      %v6964 = vadd.f32 %v6501, %v6854
      %v6965 = vadd.f32 %v6502, %v6859
      %v6966 = vadd.f32 %v6503, %v6862
      %v6967 = vadd.f32 %v6504, %v6867
      %v6968 = vadd.f32 %v6505, %v6870
      %v6969 = vadd.f32 %v6506, %v6875
      %v6970 = vadd.f32 %v6507, %v6878
      %v6971 = vadd.f32 %v6508, %v6883
      %v6972 = vadd.f32 %v6509, %v6886
      %v6973 = vadd.f32 %v6510, %v6891
      %v6974 = vadd.f32 %v6511, %v6894
      %v6975 = vadd.f32 %v6512, %v6899
      %v6976 = vadd.f32 %v6513, %v6902
      %v6977 = vadd.f32 %v6514, %v6907
      %v6978 = vadd.f32 %v6515, %v6910
      %v6979 = vadd.f32 %v6516, %v6915
      %v6980 = vadd.f32 %v6517, %v6918
      %v6981 = vadd.f32 %v6518, %v6923
      %v6982 = vadd.f32 %v6519, %v6926
      %v6983 = vadd.f32 %v6520, %v6931
      %v6984 = vadd.f32 %v6521, %v6934
      %v6985 = vadd.f32 %v6522, %v6939
      %v6986 = vadd.f32 %v6523, %v6942
      %v6987 = vadd.f32 %v6524, %v6947
      %v6988 = vadd.f32 %v6525, %v6950
      %v6989 = vld [vmem:[#allocation2 + $0x98] sm:$0x3]
      %s6990 = scalar_lea.vmem %s3, 256
      %v6991 = vld [vmem:[%s6990] sm:$0xf]
      %v6992 = vld [vmem:[%s6990 + $0x4] sm:$0xf]
      %v6993 = vld [vmem:[%s6990 + $0x8] sm:$0xf]
      %v6994 = vld [vmem:[%s6990 + $0xc] sm:$0xf]
      %v6995 = vld [vmem:[%s6990 + $0x10] sm:$0xf]
      %v6996 = vld [vmem:[%s6990 + $0x14] sm:$0xf]
      %v6997 = vld [vmem:[%s6990 + $0x18] sm:$0xf]
      %v6998 = vld [vmem:[%s6990 + $0x1c] sm:$0xf]
      %v6999 = vld [vmem:[%s6990 + $0x20] sm:$0xf]
      %v7000 = vld [vmem:[%s6990 + $0x24] sm:$0xf]
      %v7001 = vld [vmem:[%s6990 + $0x28] sm:$0xf]
      %v7002 = vld [vmem:[%s6990 + $0x2c] sm:$0xf]
      %v7003 = vld [vmem:[%s6990 + $0x30] sm:$0xf]
      %v7004 = vld [vmem:[%s6990 + $0x34] sm:$0xf]
      %v7005 = vld [vmem:[%s6990 + $0x38] sm:$0xf]
      %v7006 = vld [vmem:[%s6990 + $0x3c] sm:$0xf]
      %v7008 = vunpack.c.l.b16 %v6989
      %v7009 = vpack.c.b16 %v7008, %v7008
      %v7011 = vshrl.u32 %v6654, 16
      %v7013 = vrot.slane %v7011, 1
      %v7014 = vshll.u32 %v6654, 16
      %v7016 = vrot.slane %v7014, 2
      %v7017 = vor.u32 %v7013, %v7016
      %v7019 = vshrl.u32 %v6655, 16
      %v7021 = vrot.slane %v7019, 1
      %v7022 = vshll.u32 %v6655, 16
      %v7024 = vrot.slane %v7022, 2
      %v7025 = vor.u32 %v7021, %v7024
      %v7026 = vsel %vm1900, %v7017, %v7025
      %v7028 = vshrl.u32 %v6656, 16
      %v7030 = vrot.slane %v7028, 1
      %v7031 = vshll.u32 %v6656, 16
      %v7033 = vrot.slane %v7031, 2
      %v7034 = vor.u32 %v7030, %v7033
      %v7035 = vsel %vm1900, %v7025, %v7034
      %v7037 = vshrl.u32 %v6657, 16
      %v7039 = vrot.slane %v7037, 1
      %v7040 = vshll.u32 %v6657, 16
      %v7042 = vrot.slane %v7040, 2
      %v7043 = vor.u32 %v7039, %v7042
      %v7044 = vsel %vm1900, %v7034, %v7043
      %v7046 = vshrl.u32 %v6658, 16
      %v7048 = vrot.slane %v7046, 1
      %v7049 = vshll.u32 %v6658, 16
      %v7051 = vrot.slane %v7049, 2
      %v7052 = vor.u32 %v7048, %v7051
      %v7053 = vsel %vm1900, %v7043, %v7052
      %v7055 = vshrl.u32 %v6659, 16
      %v7057 = vrot.slane %v7055, 1
      %v7058 = vshll.u32 %v6659, 16
      %v7060 = vrot.slane %v7058, 2
      %v7061 = vor.u32 %v7057, %v7060
      %v7062 = vsel %vm1900, %v7052, %v7061
      %v7064 = vshrl.u32 %v6660, 16
      %v7066 = vrot.slane %v7064, 1
      %v7067 = vshll.u32 %v6660, 16
      %v7069 = vrot.slane %v7067, 2
      %v7070 = vor.u32 %v7066, %v7069
      %v7071 = vsel %vm1900, %v7061, %v7070
      %v7073 = vshrl.u32 %v6661, 16
      %v7075 = vrot.slane %v7073, 1
      %v7076 = vshll.u32 %v6661, 16
      %v7078 = vrot.slane %v7076, 2
      %v7079 = vor.u32 %v7075, %v7078
      %v7080 = vsel %vm1900, %v7070, %v7079
      %v7082 = vshrl.u32 %v6662, 16
      %v7084 = vrot.slane %v7082, 1
      %v7085 = vshll.u32 %v6662, 16
      %v7087 = vrot.slane %v7085, 2
      %v7088 = vor.u32 %v7084, %v7087
      %v7089 = vsel %vm1900, %v7079, %v7088
      %v7091 = vshrl.u32 %v6663, 16
      %v7093 = vrot.slane %v7091, 1
      %v7094 = vshll.u32 %v6663, 16
      %v7096 = vrot.slane %v7094, 2
      %v7097 = vor.u32 %v7093, %v7096
      %v7098 = vsel %vm1900, %v7088, %v7097
      %v7100 = vshrl.u32 %v6664, 16
      %v7102 = vrot.slane %v7100, 1
      %v7103 = vshll.u32 %v6664, 16
      %v7105 = vrot.slane %v7103, 2
      %v7106 = vor.u32 %v7102, %v7105
      %v7107 = vsel %vm1900, %v7097, %v7106
      %v7109 = vshrl.u32 %v6665, 16
      %v7111 = vrot.slane %v7109, 1
      %v7112 = vshll.u32 %v6665, 16
      %v7114 = vrot.slane %v7112, 2
      %v7115 = vor.u32 %v7111, %v7114
      %v7116 = vsel %vm1900, %v7106, %v7115
      %v7118 = vshrl.u32 %v6666, 16
      %v7120 = vrot.slane %v7118, 1
      %v7121 = vshll.u32 %v6666, 16
      %v7123 = vrot.slane %v7121, 2
      %v7124 = vor.u32 %v7120, %v7123
      %v7125 = vsel %vm1900, %v7115, %v7124
      %v7127 = vshrl.u32 %v6667, 16
      %v7129 = vrot.slane %v7127, 1
      %v7130 = vshll.u32 %v6667, 16
      %v7132 = vrot.slane %v7130, 2
      %v7133 = vor.u32 %v7129, %v7132
      %v7134 = vsel %vm1900, %v7124, %v7133
      %v7136 = vshrl.u32 %v6668, 16
      %v7138 = vrot.slane %v7136, 1
      %v7139 = vshll.u32 %v6668, 16
      %v7141 = vrot.slane %v7139, 2
      %v7142 = vor.u32 %v7138, %v7141
      %v7143 = vsel %vm1900, %v7133, %v7142
      %v7145 = vshrl.u32 %v6669, 16
      %v7147 = vrot.slane %v7145, 1
      %v7148 = vshll.u32 %v6669, 16
      %v7150 = vrot.slane %v7148, 2
      %v7151 = vor.u32 %v7147, %v7150
      %v7152 = vsel %vm1900, %v7142, %v7151
      %v7154 = vshrl.u32 %v6670, 16
      %v7156 = vrot.slane %v7154, 1
      %v7157 = vshll.u32 %v6670, 16
      %v7159 = vrot.slane %v7157, 2
      %v7160 = vor.u32 %v7156, %v7159
      %v7161 = vsel %vm1900, %v7151, %v7160
      %v7163 = vshrl.u32 %v6671, 16
      %v7165 = vrot.slane %v7163, 1
      %v7166 = vshll.u32 %v6671, 16
      %v7168 = vrot.slane %v7166, 2
      %v7169 = vor.u32 %v7165, %v7168
      %v7170 = vsel %vm1900, %v7160, %v7169
      %v7172 = vshrl.u32 %v7009, 16
      %v7174 = vrot.slane %v7172, 1
      %v7175 = vshll.u32 %v7009, 16
      %v7177 = vrot.slane %v7175, 2
      %v7178 = vor.u32 %v7174, %v7177
      %v7179 = vsel %vm1900, %v7169, %v7178
      %v7214 = vunpack.c.l.b16 %v6991
      %v7215 = vunpack.c.l.b16 %v6992
      %v7216 = vunpack.c.l.b16 %v6993
      %v7217 = vunpack.c.l.b16 %v6994
      %v7218 = vunpack.c.l.b16 %v6995
      %v7219 = vunpack.c.l.b16 %v6996
      %v7220 = vunpack.c.l.b16 %v6997
      %v7221 = vunpack.c.l.b16 %v6998
      %v7222 = vunpack.c.l.b16 %v6999
      %v7223 = vunpack.c.l.b16 %v7000
      %v7224 = vunpack.c.l.b16 %v7001
      %v7225 = vunpack.c.l.b16 %v7002
      %v7226 = vunpack.c.l.b16 %v7003
      %v7227 = vunpack.c.l.b16 %v7004
      %v7228 = vunpack.c.l.b16 %v7005
      %v7229 = vunpack.c.l.b16 %v7006
      %v7230 = vpack.c.b16 %v7215, %v7214
      %v7231 = vpack.c.b16 %v7217, %v7216
      %v7232 = vpack.c.b16 %v7219, %v7218
      %v7233 = vpack.c.b16 %v7221, %v7220
      %v7234 = vpack.c.b16 %v7223, %v7222
      %v7235 = vpack.c.b16 %v7225, %v7224
      %v7236 = vpack.c.b16 %v7227, %v7226
      %v7237 = vpack.c.b16 %v7229, %v7228
      %7246 = vmatprep.subr.bf16.mxu0 0
      %7247 = vmatpush1.bf16.msra.mxu0 %v7237
      %7248 = vmatprep.subr.bf16.mxu0 0
      %7249 = vmatpush1.bf16.msra.mxu0 %v7236
      %7250 = vmatprep.subr.bf16.mxu0 0
      %7251 = vmatpush1.bf16.msra.mxu0 %v7235
      %7252 = vmatprep.subr.bf16.mxu0 0
      %7253 = vmatpush1.bf16.msra.mxu0 %v7234
      %7254 = vmatprep.subr.bf16.mxu0 0
      %7255 = vmatpush1.bf16.msra.mxu0 %v7233
      %7256 = vmatprep.subr.bf16.mxu0 0
      %7257 = vmatpush1.bf16.msra.mxu0 %v7232
      %7258 = vmatprep.subr.bf16.mxu0 0
      %7259 = vmatpush1.bf16.msra.mxu0 %v7231
      %7260 = vmatprep.subr.bf16.mxu0 0
      %7261 = vmatpush1.bf16.msra.mxu0 %v7230
      %7262 = vmatprep.subr.bf16.mxu0 0
      %7263 = vmatpush2.bf16.msra.mxu0 0
      %7264 = vmatprep.subr.bf16.mxu0 0
      %7265 = vmatpush2.bf16.msra.mxu0 0
      %7266 = vmatprep.subr.bf16.mxu0 0
      %7267 = vmatpush2.bf16.msra.mxu0 0
      %7268 = vmatprep.subr.bf16.mxu0 0
      %7269 = vmatpush2.bf16.msra.mxu0 0
      %7270 = vmatprep.subr.bf16.mxu0 0
      %7271 = vmatpush2.bf16.msra.mxu0 0
      %7272 = vmatprep.subr.bf16.mxu0 0
      %7273 = vmatpush2.bf16.msra.mxu0 0
      %7274 = vmatprep.subr.bf16.mxu0 0
      %7275 = vmatpush2.bf16.msra.mxu0 0
      %7276 = vmatprep.subr.bf16.mxu0 0
      %7277 = vmatpush2.bf16.msra.mxu0 0
      %7278 = vmatprep.mubr.bf16.mxu0 0
      %7279 = vmatmul.mubr.bf16.gmra.mxu0 %v7026
      %v7280 = vpop.f32.mrf.mxu0
      %v7281 = vadd.f32 0.0, %v7280
      %v7282 = vpop.f32.mrf.mxu0
      %v7283 = vpop.f32.mrf.mxu0
      %v7284 = vadd.f32 0.0, %v7283
      %v7285 = vpop.f32.mrf.mxu0
      %7286 = vmatprep.mubr.bf16.mxu0 0
      %7287 = vmatmul.mubr.bf16.gmra.mxu0 %v7035
      %v7288 = vpop.f32.mrf.mxu0
      %v7289 = vadd.f32 0.0, %v7288
      %v7290 = vpop.f32.mrf.mxu0
      %v7291 = vpop.f32.mrf.mxu0
      %v7292 = vadd.f32 0.0, %v7291
      %v7293 = vpop.f32.mrf.mxu0
      %7294 = vmatprep.mubr.bf16.mxu0 0
      %7295 = vmatmul.mubr.bf16.gmra.mxu0 %v7044
      %v7296 = vpop.f32.mrf.mxu0
      %v7297 = vadd.f32 0.0, %v7296
      %v7298 = vpop.f32.mrf.mxu0
      %v7299 = vpop.f32.mrf.mxu0
      %v7300 = vadd.f32 0.0, %v7299
      %v7301 = vpop.f32.mrf.mxu0
      %7302 = vmatprep.mubr.bf16.mxu0 0
      %7303 = vmatmul.mubr.bf16.gmra.mxu0 %v7053
      %v7304 = vpop.f32.mrf.mxu0
      %v7305 = vadd.f32 0.0, %v7304
      %v7306 = vpop.f32.mrf.mxu0
      %v7307 = vpop.f32.mrf.mxu0
      %v7308 = vadd.f32 0.0, %v7307
      %v7309 = vpop.f32.mrf.mxu0
      %7310 = vmatprep.mubr.bf16.mxu0 0
      %7311 = vmatmul.mubr.bf16.gmra.mxu0 %v7062
      %v7312 = vpop.f32.mrf.mxu0
      %v7313 = vadd.f32 0.0, %v7312
      %v7314 = vpop.f32.mrf.mxu0
      %v7315 = vpop.f32.mrf.mxu0
      %v7316 = vadd.f32 0.0, %v7315
      %v7317 = vpop.f32.mrf.mxu0
      %7318 = vmatprep.mubr.bf16.mxu0 0
      %7319 = vmatmul.mubr.bf16.gmra.mxu0 %v7071
      %v7320 = vpop.f32.mrf.mxu0
      %v7321 = vadd.f32 0.0, %v7320
      %v7322 = vpop.f32.mrf.mxu0
      %v7323 = vpop.f32.mrf.mxu0
      %v7324 = vadd.f32 0.0, %v7323
      %v7325 = vpop.f32.mrf.mxu0
      %7326 = vmatprep.mubr.bf16.mxu0 0
      %7327 = vmatmul.mubr.bf16.gmra.mxu0 %v7080
      %v7328 = vpop.f32.mrf.mxu0
      %v7329 = vadd.f32 0.0, %v7328
      %v7330 = vpop.f32.mrf.mxu0
      %v7331 = vpop.f32.mrf.mxu0
      %v7332 = vadd.f32 0.0, %v7331
      %v7333 = vpop.f32.mrf.mxu0
      %7334 = vmatprep.mubr.bf16.mxu0 0
      %7335 = vmatmul.mubr.bf16.gmra.mxu0 %v7089
      %v7336 = vpop.f32.mrf.mxu0
      %v7337 = vadd.f32 0.0, %v7336
      %v7338 = vpop.f32.mrf.mxu0
      %v7339 = vpop.f32.mrf.mxu0
      %v7340 = vadd.f32 0.0, %v7339
      %v7341 = vpop.f32.mrf.mxu0
      %7342 = vmatprep.mubr.bf16.mxu0 0
      %7343 = vmatmul.mubr.bf16.gmra.mxu0 %v7098
      %v7344 = vpop.f32.mrf.mxu0
      %v7345 = vadd.f32 0.0, %v7344
      %v7346 = vpop.f32.mrf.mxu0
      %v7347 = vpop.f32.mrf.mxu0
      %v7348 = vadd.f32 0.0, %v7347
      %v7349 = vpop.f32.mrf.mxu0
      %7350 = vmatprep.mubr.bf16.mxu0 0
      %7351 = vmatmul.mubr.bf16.gmra.mxu0 %v7107
      %v7352 = vpop.f32.mrf.mxu0
      %v7353 = vadd.f32 0.0, %v7352
      %v7354 = vpop.f32.mrf.mxu0
      %v7355 = vpop.f32.mrf.mxu0
      %v7356 = vadd.f32 0.0, %v7355
      %v7357 = vpop.f32.mrf.mxu0
      %7358 = vmatprep.mubr.bf16.mxu0 0
      %7359 = vmatmul.mubr.bf16.gmra.mxu0 %v7116
      %v7360 = vpop.f32.mrf.mxu0
      %v7361 = vadd.f32 0.0, %v7360
      %v7362 = vpop.f32.mrf.mxu0
      %v7363 = vpop.f32.mrf.mxu0
      %v7364 = vadd.f32 0.0, %v7363
      %v7365 = vpop.f32.mrf.mxu0
      %7366 = vmatprep.mubr.bf16.mxu0 0
      %7367 = vmatmul.mubr.bf16.gmra.mxu0 %v7125
      %v7368 = vpop.f32.mrf.mxu0
      %v7369 = vadd.f32 0.0, %v7368
      %v7370 = vpop.f32.mrf.mxu0
      %v7371 = vpop.f32.mrf.mxu0
      %v7372 = vadd.f32 0.0, %v7371
      %v7373 = vpop.f32.mrf.mxu0
      %7374 = vmatprep.mubr.bf16.mxu0 0
      %7375 = vmatmul.mubr.bf16.gmra.mxu0 %v7134
      %v7376 = vpop.f32.mrf.mxu0
      %v7377 = vadd.f32 0.0, %v7376
      %v7378 = vpop.f32.mrf.mxu0
      %v7379 = vpop.f32.mrf.mxu0
      %v7380 = vadd.f32 0.0, %v7379
      %v7381 = vpop.f32.mrf.mxu0
      %7382 = vmatprep.mubr.bf16.mxu0 0
      %7383 = vmatmul.mubr.bf16.gmra.mxu0 %v7143
      %v7384 = vpop.f32.mrf.mxu0
      %v7385 = vadd.f32 0.0, %v7384
      %v7386 = vpop.f32.mrf.mxu0
      %v7387 = vpop.f32.mrf.mxu0
      %v7388 = vadd.f32 0.0, %v7387
      %v7389 = vpop.f32.mrf.mxu0
      %7390 = vmatprep.mubr.bf16.mxu0 0
      %7391 = vmatmul.mubr.bf16.gmra.mxu0 %v7152
      %v7392 = vpop.f32.mrf.mxu0
      %v7393 = vadd.f32 0.0, %v7392
      %v7394 = vpop.f32.mrf.mxu0
      %v7395 = vpop.f32.mrf.mxu0
      %v7396 = vadd.f32 0.0, %v7395
      %v7397 = vpop.f32.mrf.mxu0
      %7398 = vmatprep.mubr.bf16.mxu0 0
      %7399 = vmatmul.mubr.bf16.gmra.mxu0 %v7161
      %v7400 = vpop.f32.mrf.mxu0
      %v7401 = vadd.f32 0.0, %v7400
      %v7402 = vpop.f32.mrf.mxu0
      %v7403 = vpop.f32.mrf.mxu0
      %v7404 = vadd.f32 0.0, %v7403
      %v7405 = vpop.f32.mrf.mxu0
      %7406 = vmatprep.mubr.bf16.mxu0 0
      %7407 = vmatmul.mubr.bf16.gmra.mxu0 %v7170
      %v7408 = vpop.f32.mrf.mxu0
      %v7409 = vadd.f32 0.0, %v7408
      %v7410 = vpop.f32.mrf.mxu0
      %v7411 = vpop.f32.mrf.mxu0
      %v7412 = vadd.f32 0.0, %v7411
      %v7413 = vpop.f32.mrf.mxu0
      %7414 = vmatprep.mubr.bf16.mxu0 0
      %7415 = vmatmul.mubr.bf16.gmra.mxu0 %v7179
      %v7416 = vpop.f32.mrf.mxu0
      %v7417 = vadd.f32 0.0, %v7416
      %v7418 = vpop.f32.mrf.mxu0
      %v7419 = vpop.f32.mrf.mxu0
      %v7420 = vadd.f32 0.0, %v7419
      %v7421 = vpop.f32.mrf.mxu0
      %7422 = vdwg.mxu0
      %v7423 = vadd.f32 %v6953, %v7281
      %v7424 = vadd.f32 %v6954, %v7284
      %v7425 = vadd.f32 %v6955, %v7289
      %v7426 = vadd.f32 %v6956, %v7292
      %v7427 = vadd.f32 %v6957, %v7297
      %v7428 = vadd.f32 %v6958, %v7300
      %v7429 = vadd.f32 %v6959, %v7305
      %v7430 = vadd.f32 %v6960, %v7308
      %v7431 = vadd.f32 %v6961, %v7313
      %v7432 = vadd.f32 %v6962, %v7316
      %v7433 = vadd.f32 %v6963, %v7321
      %v7434 = vadd.f32 %v6964, %v7324
      %v7435 = vadd.f32 %v6965, %v7329
      %v7436 = vadd.f32 %v6966, %v7332
      %v7437 = vadd.f32 %v6967, %v7337
      %v7438 = vadd.f32 %v6968, %v7340
      %v7439 = vadd.f32 %v6969, %v7345
      %v7440 = vadd.f32 %v6970, %v7348
      %v7441 = vadd.f32 %v6971, %v7353
      %v7442 = vadd.f32 %v6972, %v7356
      %v7443 = vadd.f32 %v6973, %v7361
      %v7444 = vadd.f32 %v6974, %v7364
      %v7445 = vadd.f32 %v6975, %v7369
      %v7446 = vadd.f32 %v6976, %v7372
      %v7447 = vadd.f32 %v6977, %v7377
      %v7448 = vadd.f32 %v6978, %v7380
      %v7449 = vadd.f32 %v6979, %v7385
      %v7450 = vadd.f32 %v6980, %v7388
      %v7451 = vadd.f32 %v6981, %v7393
      %v7452 = vadd.f32 %v6982, %v7396
      %v7453 = vadd.f32 %v6983, %v7401
      %v7454 = vadd.f32 %v6984, %v7404
      %v7455 = vadd.f32 %v6985, %v7409
      %v7456 = vadd.f32 %v6986, %v7412
      %v7457 = vadd.f32 %v6987, %v7417
      %v7458 = vadd.f32 %v6988, %v7420
      %v7459 = vld [vmem:[#allocation2 + $0x8] sm:$0xc]
      %s7460 = scalar_lea.vmem %s3, 320
      %v7461 = vld [vmem:[%s7460] sm:$0xf]
      %v7462 = vld [vmem:[%s7460 + $0x4] sm:$0xf]
      %v7463 = vld [vmem:[%s7460 + $0x8] sm:$0xf]
      %v7464 = vld [vmem:[%s7460 + $0xc] sm:$0xf]
      %v7465 = vld [vmem:[%s7460 + $0x10] sm:$0xf]
      %v7466 = vld [vmem:[%s7460 + $0x14] sm:$0xf]
      %v7467 = vld [vmem:[%s7460 + $0x18] sm:$0xf]
      %v7468 = vld [vmem:[%s7460 + $0x1c] sm:$0xf]
      %v7469 = vld [vmem:[%s7460 + $0x20] sm:$0xf]
      %v7470 = vld [vmem:[%s7460 + $0x24] sm:$0xf]
      %v7471 = vld [vmem:[%s7460 + $0x28] sm:$0xf]
      %v7472 = vld [vmem:[%s7460 + $0x2c] sm:$0xf]
      %v7473 = vld [vmem:[%s7460 + $0x30] sm:$0xf]
      %v7474 = vld [vmem:[%s7460 + $0x34] sm:$0xf]
      %v7475 = vld [vmem:[%s7460 + $0x38] sm:$0xf]
      %v7476 = vld [vmem:[%s7460 + $0x3c] sm:$0xf]
      %v7478 = vunpack.c.l.b16 %v7459
      %v7479 = vpack.c.b16 %v6618, %v7478
      %v7480 = vrot.slane %v7479, 2
      %v7481 = vrot.slane %v6655, 2
      %v7482 = vsel %vm2371, %v7480, %v7481
      %v7483 = vrot.slane %v6656, 2
      %v7484 = vsel %vm2371, %v7481, %v7483
      %v7485 = vrot.slane %v6657, 2
      %v7486 = vsel %vm2371, %v7483, %v7485
      %v7487 = vrot.slane %v6658, 2
      %v7488 = vsel %vm2371, %v7485, %v7487
      %v7489 = vrot.slane %v6659, 2
      %v7490 = vsel %vm2371, %v7487, %v7489
      %v7491 = vrot.slane %v6660, 2
      %v7492 = vsel %vm2371, %v7489, %v7491
      %v7493 = vrot.slane %v6661, 2
      %v7494 = vsel %vm2371, %v7491, %v7493
      %v7495 = vrot.slane %v6662, 2
      %v7496 = vsel %vm2371, %v7493, %v7495
      %v7497 = vrot.slane %v6663, 2
      %v7498 = vsel %vm2371, %v7495, %v7497
      %v7499 = vrot.slane %v6664, 2
      %v7500 = vsel %vm2371, %v7497, %v7499
      %v7501 = vrot.slane %v6665, 2
      %v7502 = vsel %vm2371, %v7499, %v7501
      %v7503 = vrot.slane %v6666, 2
      %v7504 = vsel %vm2371, %v7501, %v7503
      %v7505 = vrot.slane %v6667, 2
      %v7506 = vsel %vm2371, %v7503, %v7505
      %v7507 = vrot.slane %v6668, 2
      %v7508 = vsel %vm2371, %v7505, %v7507
      %v7509 = vrot.slane %v6669, 2
      %v7510 = vsel %vm2371, %v7507, %v7509
      %v7511 = vrot.slane %v6670, 2
      %v7512 = vsel %vm2371, %v7509, %v7511
      %v7513 = vrot.slane %v6671, 2
      %v7514 = vsel %vm2371, %v7511, %v7513
      %v7515 = vrot.slane %v7009, 2
      %v7516 = vsel %vm2371, %v7513, %v7515
      %v7551 = vunpack.c.l.b16 %v7461
      %v7552 = vunpack.c.l.b16 %v7462
      %v7553 = vunpack.c.l.b16 %v7463
      %v7554 = vunpack.c.l.b16 %v7464
      %v7555 = vunpack.c.l.b16 %v7465
      %v7556 = vunpack.c.l.b16 %v7466
      %v7557 = vunpack.c.l.b16 %v7467
      %v7558 = vunpack.c.l.b16 %v7468
      %v7559 = vunpack.c.l.b16 %v7469
      %v7560 = vunpack.c.l.b16 %v7470
      %v7561 = vunpack.c.l.b16 %v7471
      %v7562 = vunpack.c.l.b16 %v7472
      %v7563 = vunpack.c.l.b16 %v7473
      %v7564 = vunpack.c.l.b16 %v7474
      %v7565 = vunpack.c.l.b16 %v7475
      %v7566 = vunpack.c.l.b16 %v7476
      %v7567 = vpack.c.b16 %v7552, %v7551
      %v7568 = vpack.c.b16 %v7554, %v7553
      %v7569 = vpack.c.b16 %v7556, %v7555
      %v7570 = vpack.c.b16 %v7558, %v7557
      %v7571 = vpack.c.b16 %v7560, %v7559
      %v7572 = vpack.c.b16 %v7562, %v7561
      %v7573 = vpack.c.b16 %v7564, %v7563
      %v7574 = vpack.c.b16 %v7566, %v7565
      %7583 = vmatprep.subr.bf16.mxu0 0
      %7584 = vmatpush1.bf16.msra.mxu0 %v7574
      %7585 = vmatprep.subr.bf16.mxu0 0
      %7586 = vmatpush1.bf16.msra.mxu0 %v7573
      %7587 = vmatprep.subr.bf16.mxu0 0
      %7588 = vmatpush1.bf16.msra.mxu0 %v7572
      %7589 = vmatprep.subr.bf16.mxu0 0
      %7590 = vmatpush1.bf16.msra.mxu0 %v7571
      %7591 = vmatprep.subr.bf16.mxu0 0
      %7592 = vmatpush1.bf16.msra.mxu0 %v7570
      %7593 = vmatprep.subr.bf16.mxu0 0
      %7594 = vmatpush1.bf16.msra.mxu0 %v7569
      %7595 = vmatprep.subr.bf16.mxu0 0
      %7596 = vmatpush1.bf16.msra.mxu0 %v7568
      %7597 = vmatprep.subr.bf16.mxu0 0
      %7598 = vmatpush1.bf16.msra.mxu0 %v7567
      %7599 = vmatprep.subr.bf16.mxu0 0
      %7600 = vmatpush2.bf16.msra.mxu0 0
      %7601 = vmatprep.subr.bf16.mxu0 0
      %7602 = vmatpush2.bf16.msra.mxu0 0
      %7603 = vmatprep.subr.bf16.mxu0 0
      %7604 = vmatpush2.bf16.msra.mxu0 0
      %7605 = vmatprep.subr.bf16.mxu0 0
      %7606 = vmatpush2.bf16.msra.mxu0 0
      %7607 = vmatprep.subr.bf16.mxu0 0
      %7608 = vmatpush2.bf16.msra.mxu0 0
      %7609 = vmatprep.subr.bf16.mxu0 0
      %7610 = vmatpush2.bf16.msra.mxu0 0
      %7611 = vmatprep.subr.bf16.mxu0 0
      %7612 = vmatpush2.bf16.msra.mxu0 0
      %7613 = vmatprep.subr.bf16.mxu0 0
      %7614 = vmatpush2.bf16.msra.mxu0 0
      %7615 = vmatprep.mubr.bf16.mxu0 0
      %7616 = vmatmul.mubr.bf16.gmra.mxu0 %v7482
      %v7617 = vpop.f32.mrf.mxu0
      %v7618 = vadd.f32 0.0, %v7617
      %v7619 = vpop.f32.mrf.mxu0
      %v7620 = vpop.f32.mrf.mxu0
      %v7621 = vadd.f32 0.0, %v7620
      %v7622 = vpop.f32.mrf.mxu0
      %7623 = vmatprep.mubr.bf16.mxu0 0
      %7624 = vmatmul.mubr.bf16.gmra.mxu0 %v7484
      %v7625 = vpop.f32.mrf.mxu0
      %v7626 = vadd.f32 0.0, %v7625
      %v7627 = vpop.f32.mrf.mxu0
      %v7628 = vpop.f32.mrf.mxu0
      %v7629 = vadd.f32 0.0, %v7628
      %v7630 = vpop.f32.mrf.mxu0
      %7631 = vmatprep.mubr.bf16.mxu0 0
      %7632 = vmatmul.mubr.bf16.gmra.mxu0 %v7486
      %v7633 = vpop.f32.mrf.mxu0
      %v7634 = vadd.f32 0.0, %v7633
      %v7635 = vpop.f32.mrf.mxu0
      %v7636 = vpop.f32.mrf.mxu0
      %v7637 = vadd.f32 0.0, %v7636
      %v7638 = vpop.f32.mrf.mxu0
      %7639 = vmatprep.mubr.bf16.mxu0 0
      %7640 = vmatmul.mubr.bf16.gmra.mxu0 %v7488
      %v7641 = vpop.f32.mrf.mxu0
      %v7642 = vadd.f32 0.0, %v7641
      %v7643 = vpop.f32.mrf.mxu0
      %v7644 = vpop.f32.mrf.mxu0
      %v7645 = vadd.f32 0.0, %v7644
      %v7646 = vpop.f32.mrf.mxu0
      %7647 = vmatprep.mubr.bf16.mxu0 0
      %7648 = vmatmul.mubr.bf16.gmra.mxu0 %v7490
      %v7649 = vpop.f32.mrf.mxu0
      %v7650 = vadd.f32 0.0, %v7649
      %v7651 = vpop.f32.mrf.mxu0
      %v7652 = vpop.f32.mrf.mxu0
      %v7653 = vadd.f32 0.0, %v7652
      %v7654 = vpop.f32.mrf.mxu0
      %7655 = vmatprep.mubr.bf16.mxu0 0
      %7656 = vmatmul.mubr.bf16.gmra.mxu0 %v7492
      %v7657 = vpop.f32.mrf.mxu0
      %v7658 = vadd.f32 0.0, %v7657
      %v7659 = vpop.f32.mrf.mxu0
      %v7660 = vpop.f32.mrf.mxu0
      %v7661 = vadd.f32 0.0, %v7660
      %v7662 = vpop.f32.mrf.mxu0
      %7663 = vmatprep.mubr.bf16.mxu0 0
      %7664 = vmatmul.mubr.bf16.gmra.mxu0 %v7494
      %v7665 = vpop.f32.mrf.mxu0
      %v7666 = vadd.f32 0.0, %v7665
      %v7667 = vpop.f32.mrf.mxu0
      %v7668 = vpop.f32.mrf.mxu0
      %v7669 = vadd.f32 0.0, %v7668
      %v7670 = vpop.f32.mrf.mxu0
      %7671 = vmatprep.mubr.bf16.mxu0 0
      %7672 = vmatmul.mubr.bf16.gmra.mxu0 %v7496
      %v7673 = vpop.f32.mrf.mxu0
      %v7674 = vadd.f32 0.0, %v7673
      %v7675 = vpop.f32.mrf.mxu0
      %v7676 = vpop.f32.mrf.mxu0
      %v7677 = vadd.f32 0.0, %v7676
      %v7678 = vpop.f32.mrf.mxu0
      %7679 = vmatprep.mubr.bf16.mxu0 0
      %7680 = vmatmul.mubr.bf16.gmra.mxu0 %v7498
      %v7681 = vpop.f32.mrf.mxu0
      %v7682 = vadd.f32 0.0, %v7681
      %v7683 = vpop.f32.mrf.mxu0
      %v7684 = vpop.f32.mrf.mxu0
      %v7685 = vadd.f32 0.0, %v7684
      %v7686 = vpop.f32.mrf.mxu0
      %7687 = vmatprep.mubr.bf16.mxu0 0
      %7688 = vmatmul.mubr.bf16.gmra.mxu0 %v7500
      %v7689 = vpop.f32.mrf.mxu0
      %v7690 = vadd.f32 0.0, %v7689
      %v7691 = vpop.f32.mrf.mxu0
      %v7692 = vpop.f32.mrf.mxu0
      %v7693 = vadd.f32 0.0, %v7692
      %v7694 = vpop.f32.mrf.mxu0
      %7695 = vmatprep.mubr.bf16.mxu0 0
      %7696 = vmatmul.mubr.bf16.gmra.mxu0 %v7502
      %v7697 = vpop.f32.mrf.mxu0
      %v7698 = vadd.f32 0.0, %v7697
      %v7699 = vpop.f32.mrf.mxu0
      %v7700 = vpop.f32.mrf.mxu0
      %v7701 = vadd.f32 0.0, %v7700
      %v7702 = vpop.f32.mrf.mxu0
      %7703 = vmatprep.mubr.bf16.mxu0 0
      %7704 = vmatmul.mubr.bf16.gmra.mxu0 %v7504
      %v7705 = vpop.f32.mrf.mxu0
      %v7706 = vadd.f32 0.0, %v7705
      %v7707 = vpop.f32.mrf.mxu0
      %v7708 = vpop.f32.mrf.mxu0
      %v7709 = vadd.f32 0.0, %v7708
      %v7710 = vpop.f32.mrf.mxu0
      %7711 = vmatprep.mubr.bf16.mxu0 0
      %7712 = vmatmul.mubr.bf16.gmra.mxu0 %v7506
      %v7713 = vpop.f32.mrf.mxu0
      %v7714 = vadd.f32 0.0, %v7713
      %v7715 = vpop.f32.mrf.mxu0
      %v7716 = vpop.f32.mrf.mxu0
      %v7717 = vadd.f32 0.0, %v7716
      %v7718 = vpop.f32.mrf.mxu0
      %7719 = vmatprep.mubr.bf16.mxu0 0
      %7720 = vmatmul.mubr.bf16.gmra.mxu0 %v7508
      %v7721 = vpop.f32.mrf.mxu0
      %v7722 = vadd.f32 0.0, %v7721
      %v7723 = vpop.f32.mrf.mxu0
      %v7724 = vpop.f32.mrf.mxu0
      %v7725 = vadd.f32 0.0, %v7724
      %v7726 = vpop.f32.mrf.mxu0
      %7727 = vmatprep.mubr.bf16.mxu0 0
      %7728 = vmatmul.mubr.bf16.gmra.mxu0 %v7510
      %v7729 = vpop.f32.mrf.mxu0
      %v7730 = vadd.f32 0.0, %v7729
      %v7731 = vpop.f32.mrf.mxu0
      %v7732 = vpop.f32.mrf.mxu0
      %v7733 = vadd.f32 0.0, %v7732
      %v7734 = vpop.f32.mrf.mxu0
      %7735 = vmatprep.mubr.bf16.mxu0 0
      %7736 = vmatmul.mubr.bf16.gmra.mxu0 %v7512
      %v7737 = vpop.f32.mrf.mxu0
      %v7738 = vadd.f32 0.0, %v7737
      %v7739 = vpop.f32.mrf.mxu0
      %v7740 = vpop.f32.mrf.mxu0
      %v7741 = vadd.f32 0.0, %v7740
      %v7742 = vpop.f32.mrf.mxu0
      %7743 = vmatprep.mubr.bf16.mxu0 0
      %7744 = vmatmul.mubr.bf16.gmra.mxu0 %v7514
      %v7745 = vpop.f32.mrf.mxu0
      %v7746 = vadd.f32 0.0, %v7745
      %v7747 = vpop.f32.mrf.mxu0
      %v7748 = vpop.f32.mrf.mxu0
      %v7749 = vadd.f32 0.0, %v7748
      %v7750 = vpop.f32.mrf.mxu0
      %7751 = vmatprep.mubr.bf16.mxu0 0
      %7752 = vmatmul.mubr.bf16.gmra.mxu0 %v7516
      %v7753 = vpop.f32.mrf.mxu0
      %v7754 = vadd.f32 0.0, %v7753
      %v7755 = vpop.f32.mrf.mxu0
      %v7756 = vpop.f32.mrf.mxu0
      %v7757 = vadd.f32 0.0, %v7756
      %v7758 = vpop.f32.mrf.mxu0
      %7759 = vdwg.mxu0
      %v7760 = vadd.f32 %v7423, %v7618
      %v7761 = vadd.f32 %v7424, %v7621
      %v7762 = vadd.f32 %v7425, %v7626
      %v7763 = vadd.f32 %v7426, %v7629
      %v7764 = vadd.f32 %v7427, %v7634
      %v7765 = vadd.f32 %v7428, %v7637
      %v7766 = vadd.f32 %v7429, %v7642
      %v7767 = vadd.f32 %v7430, %v7645
      %v7768 = vadd.f32 %v7431, %v7650
      %v7769 = vadd.f32 %v7432, %v7653
      %v7770 = vadd.f32 %v7433, %v7658
      %v7771 = vadd.f32 %v7434, %v7661
      %v7772 = vadd.f32 %v7435, %v7666
      %v7773 = vadd.f32 %v7436, %v7669
      %v7774 = vadd.f32 %v7437, %v7674
      %v7775 = vadd.f32 %v7438, %v7677
      %v7776 = vadd.f32 %v7439, %v7682
      %v7777 = vadd.f32 %v7440, %v7685
      %v7778 = vadd.f32 %v7441, %v7690
      %v7779 = vadd.f32 %v7442, %v7693
      %v7780 = vadd.f32 %v7443, %v7698
      %v7781 = vadd.f32 %v7444, %v7701
      %v7782 = vadd.f32 %v7445, %v7706
      %v7783 = vadd.f32 %v7446, %v7709
      %v7784 = vadd.f32 %v7447, %v7714
      %v7785 = vadd.f32 %v7448, %v7717
      %v7786 = vadd.f32 %v7449, %v7722
      %v7787 = vadd.f32 %v7450, %v7725
      %v7788 = vadd.f32 %v7451, %v7730
      %v7789 = vadd.f32 %v7452, %v7733
      %v7790 = vadd.f32 %v7453, %v7738
      %v7791 = vadd.f32 %v7454, %v7741
      %v7792 = vadd.f32 %v7455, %v7746
      %v7793 = vadd.f32 %v7456, %v7749
      %v7794 = vadd.f32 %v7457, %v7754
      %v7795 = vadd.f32 %v7458, %v7757
      %v7796 = vld [vmem:[#allocation2 + $0x10] sm:$0xc]
      %v7797 = vld [vmem:[#allocation2 + $0x14] sm:$0xf]
      %v7798 = vld [vmem:[#allocation2 + $0x18] sm:$0xf]
      %v7799 = vld [vmem:[#allocation2 + $0x1c] sm:$0xf]
      %v7800 = vld [vmem:[#allocation2 + $0x20] sm:$0xf]
      %v7801 = vld [vmem:[#allocation2 + $0x24] sm:$0xf]
      %v7802 = vld [vmem:[#allocation2 + $0x28] sm:$0xf]
      %v7803 = vld [vmem:[#allocation2 + $0x2c] sm:$0xf]
      %v7804 = vld [vmem:[#allocation2 + $0x30] sm:$0xf]
      %v7805 = vld [vmem:[#allocation2 + $0x34] sm:$0xf]
      %v7806 = vld [vmem:[#allocation2 + $0x38] sm:$0xf]
      %v7807 = vld [vmem:[#allocation2 + $0x3c] sm:$0xf]
      %v7808 = vld [vmem:[#allocation2 + $0x40] sm:$0xf]
      %v7809 = vld [vmem:[#allocation2 + $0x44] sm:$0xf]
      %v7810 = vld [vmem:[#allocation2 + $0x48] sm:$0xf]
      %v7811 = vld [vmem:[#allocation2 + $0x4c] sm:$0xf]
      %v7812 = vld [vmem:[#allocation2 + $0x50] sm:$0xf]
      %v7813 = vld [vmem:[#allocation2 + $0x54] sm:$0xf]
      %v7814 = vld [vmem:[#allocation2 + $0x58] sm:$0xf]
      %v7815 = vld [vmem:[#allocation2 + $0x5c] sm:$0xf]
      %v7816 = vld [vmem:[#allocation2 + $0x60] sm:$0xf]
      %v7817 = vld [vmem:[#allocation2 + $0x64] sm:$0xf]
      %v7818 = vld [vmem:[#allocation2 + $0x68] sm:$0xf]
      %v7819 = vld [vmem:[#allocation2 + $0x6c] sm:$0xf]
      %v7820 = vld [vmem:[#allocation2 + $0x70] sm:$0xf]
      %v7821 = vld [vmem:[#allocation2 + $0x74] sm:$0xf]
      %v7822 = vld [vmem:[#allocation2 + $0x78] sm:$0xf]
      %v7823 = vld [vmem:[#allocation2 + $0x7c] sm:$0xf]
      %v7824 = vld [vmem:[#allocation2 + $0x80] sm:$0xf]
      %v7825 = vld [vmem:[#allocation2 + $0x84] sm:$0xf]
      %v7826 = vld [vmem:[#allocation2 + $0x88] sm:$0xf]
      %v7827 = vld [vmem:[#allocation2 + $0x8c] sm:$0xf]
      %v7828 = vld [vmem:[#allocation2 + $0x90] sm:$0xf]
      %v7829 = vld [vmem:[#allocation2 + $0x94] sm:$0xf]
      %v7830 = vld [vmem:[#allocation2 + $0x98] sm:$0xf]
      %v7831 = vld [vmem:[#allocation2 + $0x9c] sm:$0xf]
      %v7832 = vld [vmem:[#allocation2 + $0xa0] sm:$0x3]
      %s7833 = scalar_lea.vmem %s3, 384
      %v7834 = vld [vmem:[%s7833] sm:$0xf]
      %v7835 = vld [vmem:[%s7833 + $0x4] sm:$0xf]
      %v7836 = vld [vmem:[%s7833 + $0x8] sm:$0xf]
      %v7837 = vld [vmem:[%s7833 + $0xc] sm:$0xf]
      %v7838 = vld [vmem:[%s7833 + $0x10] sm:$0xf]
      %v7839 = vld [vmem:[%s7833 + $0x14] sm:$0xf]
      %v7840 = vld [vmem:[%s7833 + $0x18] sm:$0xf]
      %v7841 = vld [vmem:[%s7833 + $0x1c] sm:$0xf]
      %v7842 = vld [vmem:[%s7833 + $0x20] sm:$0xf]
      %v7843 = vld [vmem:[%s7833 + $0x24] sm:$0xf]
      %v7844 = vld [vmem:[%s7833 + $0x28] sm:$0xf]
      %v7845 = vld [vmem:[%s7833 + $0x2c] sm:$0xf]
      %v7846 = vld [vmem:[%s7833 + $0x30] sm:$0xf]
      %v7847 = vld [vmem:[%s7833 + $0x34] sm:$0xf]
      %v7848 = vld [vmem:[%s7833 + $0x38] sm:$0xf]
      %v7849 = vld [vmem:[%s7833 + $0x3c] sm:$0xf]
      %v7887 = vunpack.c.l.b16 %v7796
      %v7888 = vunpack.c.l.b16 %v7797
      %v7889 = vunpack.c.l.b16 %v7798
      %v7890 = vunpack.c.l.b16 %v7799
      %v7891 = vunpack.c.l.b16 %v7800
      %v7892 = vunpack.c.l.b16 %v7801
      %v7893 = vunpack.c.l.b16 %v7802
      %v7894 = vunpack.c.l.b16 %v7803
      %v7895 = vunpack.c.l.b16 %v7804
      %v7896 = vunpack.c.l.b16 %v7805
      %v7897 = vunpack.c.l.b16 %v7806
      %v7898 = vunpack.c.l.b16 %v7807
      %v7899 = vunpack.c.l.b16 %v7808
      %v7900 = vunpack.c.l.b16 %v7809
      %v7901 = vunpack.c.l.b16 %v7810
      %v7902 = vunpack.c.l.b16 %v7811
      %v7903 = vunpack.c.l.b16 %v7812
      %v7904 = vunpack.c.l.b16 %v7813
      %v7905 = vunpack.c.l.b16 %v7814
      %v7906 = vunpack.c.l.b16 %v7815
      %v7907 = vunpack.c.l.b16 %v7816
      %v7908 = vunpack.c.l.b16 %v7817
      %v7909 = vunpack.c.l.b16 %v7818
      %v7910 = vunpack.c.l.b16 %v7819
      %v7911 = vunpack.c.l.b16 %v7820
      %v7912 = vunpack.c.l.b16 %v7821
      %v7913 = vunpack.c.l.b16 %v7822
      %v7914 = vunpack.c.l.b16 %v7823
      %v7915 = vunpack.c.l.b16 %v7824
      %v7916 = vunpack.c.l.b16 %v7825
      %v7917 = vunpack.c.l.b16 %v7826
      %v7918 = vunpack.c.l.b16 %v7827
      %v7919 = vunpack.c.l.b16 %v7828
      %v7920 = vunpack.c.l.b16 %v7829
      %v7921 = vunpack.c.l.b16 %v7830
      %v7922 = vunpack.c.l.b16 %v7831
      %v7923 = vunpack.c.l.b16 %v7832
      %v7924 = vpack.c.b16 %v7888, %v7887
      %v7925 = vpack.c.b16 %v7890, %v7889
      %v7926 = vpack.c.b16 %v7892, %v7891
      %v7927 = vpack.c.b16 %v7894, %v7893
      %v7928 = vpack.c.b16 %v7896, %v7895
      %v7929 = vpack.c.b16 %v7898, %v7897
      %v7930 = vpack.c.b16 %v7900, %v7899
      %v7931 = vpack.c.b16 %v7902, %v7901
      %v7932 = vpack.c.b16 %v7904, %v7903
      %v7933 = vpack.c.b16 %v7906, %v7905
      %v7934 = vpack.c.b16 %v7908, %v7907
      %v7935 = vpack.c.b16 %v7910, %v7909
      %v7936 = vpack.c.b16 %v7912, %v7911
      %v7937 = vpack.c.b16 %v7914, %v7913
      %v7938 = vpack.c.b16 %v7916, %v7915
      %v7939 = vpack.c.b16 %v7918, %v7917
      %v7940 = vpack.c.b16 %v7920, %v7919
      %v7941 = vpack.c.b16 %v7922, %v7921
      %v7942 = vpack.c.b16 %v7923, %v7923
      %v7943 = vrot.slane %v7924, 2
      %v7944 = vrot.slane %v7925, 2
      %v7945 = vsel %vm2371, %v7943, %v7944
      %v7946 = vrot.slane %v7926, 2
      %v7947 = vsel %vm2371, %v7944, %v7946
      %v7948 = vrot.slane %v7927, 2
      %v7949 = vsel %vm2371, %v7946, %v7948
      %v7950 = vrot.slane %v7928, 2
      %v7951 = vsel %vm2371, %v7948, %v7950
      %v7952 = vrot.slane %v7929, 2
      %v7953 = vsel %vm2371, %v7950, %v7952
      %v7954 = vrot.slane %v7930, 2
      %v7955 = vsel %vm2371, %v7952, %v7954
      %v7956 = vrot.slane %v7931, 2
      %v7957 = vsel %vm2371, %v7954, %v7956
      %v7958 = vrot.slane %v7932, 2
      %v7959 = vsel %vm2371, %v7956, %v7958
      %v7960 = vrot.slane %v7933, 2
      %v7961 = vsel %vm2371, %v7958, %v7960
      %v7962 = vrot.slane %v7934, 2
      %v7963 = vsel %vm2371, %v7960, %v7962
      %v7964 = vrot.slane %v7935, 2
      %v7965 = vsel %vm2371, %v7962, %v7964
      %v7966 = vrot.slane %v7936, 2
      %v7967 = vsel %vm2371, %v7964, %v7966
      %v7968 = vrot.slane %v7937, 2
      %v7969 = vsel %vm2371, %v7966, %v7968
      %v7970 = vrot.slane %v7938, 2
      %v7971 = vsel %vm2371, %v7968, %v7970
      %v7972 = vrot.slane %v7939, 2
      %v7973 = vsel %vm2371, %v7970, %v7972
      %v7974 = vrot.slane %v7940, 2
      %v7975 = vsel %vm2371, %v7972, %v7974
      %v7976 = vrot.slane %v7941, 2
      %v7977 = vsel %vm2371, %v7974, %v7976
      %v7978 = vrot.slane %v7942, 2
      %v7979 = vsel %vm2371, %v7976, %v7978
      %v8014 = vunpack.c.l.b16 %v7834
      %v8015 = vunpack.c.l.b16 %v7835
      %v8016 = vunpack.c.l.b16 %v7836
      %v8017 = vunpack.c.l.b16 %v7837
      %v8018 = vunpack.c.l.b16 %v7838
      %v8019 = vunpack.c.l.b16 %v7839
      %v8020 = vunpack.c.l.b16 %v7840
      %v8021 = vunpack.c.l.b16 %v7841
      %v8022 = vunpack.c.l.b16 %v7842
      %v8023 = vunpack.c.l.b16 %v7843
      %v8024 = vunpack.c.l.b16 %v7844
      %v8025 = vunpack.c.l.b16 %v7845
      %v8026 = vunpack.c.l.b16 %v7846
      %v8027 = vunpack.c.l.b16 %v7847
      %v8028 = vunpack.c.l.b16 %v7848
      %v8029 = vunpack.c.l.b16 %v7849
      %v8030 = vpack.c.b16 %v8015, %v8014
      %v8031 = vpack.c.b16 %v8017, %v8016
      %v8032 = vpack.c.b16 %v8019, %v8018
      %v8033 = vpack.c.b16 %v8021, %v8020
      %v8034 = vpack.c.b16 %v8023, %v8022
      %v8035 = vpack.c.b16 %v8025, %v8024
      %v8036 = vpack.c.b16 %v8027, %v8026
      %v8037 = vpack.c.b16 %v8029, %v8028
      %8046 = vmatprep.subr.bf16.mxu0 0
      %8047 = vmatpush1.bf16.msra.mxu0 %v8037
      %8048 = vmatprep.subr.bf16.mxu0 0
      %8049 = vmatpush1.bf16.msra.mxu0 %v8036
      %8050 = vmatprep.subr.bf16.mxu0 0
      %8051 = vmatpush1.bf16.msra.mxu0 %v8035
      %8052 = vmatprep.subr.bf16.mxu0 0
      %8053 = vmatpush1.bf16.msra.mxu0 %v8034
      %8054 = vmatprep.subr.bf16.mxu0 0
      %8055 = vmatpush1.bf16.msra.mxu0 %v8033
      %8056 = vmatprep.subr.bf16.mxu0 0
      %8057 = vmatpush1.bf16.msra.mxu0 %v8032
      %8058 = vmatprep.subr.bf16.mxu0 0
      %8059 = vmatpush1.bf16.msra.mxu0 %v8031
      %8060 = vmatprep.subr.bf16.mxu0 0
      %8061 = vmatpush1.bf16.msra.mxu0 %v8030
      %8062 = vmatprep.subr.bf16.mxu0 0
      %8063 = vmatpush2.bf16.msra.mxu0 0
      %8064 = vmatprep.subr.bf16.mxu0 0
      %8065 = vmatpush2.bf16.msra.mxu0 0
      %8066 = vmatprep.subr.bf16.mxu0 0
      %8067 = vmatpush2.bf16.msra.mxu0 0
      %8068 = vmatprep.subr.bf16.mxu0 0
      %8069 = vmatpush2.bf16.msra.mxu0 0
      %8070 = vmatprep.subr.bf16.mxu0 0
      %8071 = vmatpush2.bf16.msra.mxu0 0
      %8072 = vmatprep.subr.bf16.mxu0 0
      %8073 = vmatpush2.bf16.msra.mxu0 0
      %8074 = vmatprep.subr.bf16.mxu0 0
      %8075 = vmatpush2.bf16.msra.mxu0 0
      %8076 = vmatprep.subr.bf16.mxu0 0
      %8077 = vmatpush2.bf16.msra.mxu0 0
      %8078 = vmatprep.mubr.bf16.mxu0 0
      %8079 = vmatmul.mubr.bf16.gmra.mxu0 %v7945
      %v8080 = vpop.f32.mrf.mxu0
      %v8081 = vadd.f32 0.0, %v8080
      %v8082 = vpop.f32.mrf.mxu0
      %v8083 = vpop.f32.mrf.mxu0
      %v8084 = vadd.f32 0.0, %v8083
      %v8085 = vpop.f32.mrf.mxu0
      %8086 = vmatprep.mubr.bf16.mxu0 0
      %8087 = vmatmul.mubr.bf16.gmra.mxu0 %v7947
      %v8088 = vpop.f32.mrf.mxu0
      %v8089 = vadd.f32 0.0, %v8088
      %v8090 = vpop.f32.mrf.mxu0
      %v8091 = vpop.f32.mrf.mxu0
      %v8092 = vadd.f32 0.0, %v8091
      %v8093 = vpop.f32.mrf.mxu0
      %8094 = vmatprep.mubr.bf16.mxu0 0
      %8095 = vmatmul.mubr.bf16.gmra.mxu0 %v7949
      %v8096 = vpop.f32.mrf.mxu0
      %v8097 = vadd.f32 0.0, %v8096
      %v8098 = vpop.f32.mrf.mxu0
      %v8099 = vpop.f32.mrf.mxu0
      %v8100 = vadd.f32 0.0, %v8099
      %v8101 = vpop.f32.mrf.mxu0
      %8102 = vmatprep.mubr.bf16.mxu0 0
      %8103 = vmatmul.mubr.bf16.gmra.mxu0 %v7951
      %v8104 = vpop.f32.mrf.mxu0
      %v8105 = vadd.f32 0.0, %v8104
      %v8106 = vpop.f32.mrf.mxu0
      %v8107 = vpop.f32.mrf.mxu0
      %v8108 = vadd.f32 0.0, %v8107
      %v8109 = vpop.f32.mrf.mxu0
      %8110 = vmatprep.mubr.bf16.mxu0 0
      %8111 = vmatmul.mubr.bf16.gmra.mxu0 %v7953
      %v8112 = vpop.f32.mrf.mxu0
      %v8113 = vadd.f32 0.0, %v8112
      %v8114 = vpop.f32.mrf.mxu0
      %v8115 = vpop.f32.mrf.mxu0
      %v8116 = vadd.f32 0.0, %v8115
      %v8117 = vpop.f32.mrf.mxu0
      %8118 = vmatprep.mubr.bf16.mxu0 0
      %8119 = vmatmul.mubr.bf16.gmra.mxu0 %v7955
      %v8120 = vpop.f32.mrf.mxu0
      %v8121 = vadd.f32 0.0, %v8120
      %v8122 = vpop.f32.mrf.mxu0
      %v8123 = vpop.f32.mrf.mxu0
      %v8124 = vadd.f32 0.0, %v8123
      %v8125 = vpop.f32.mrf.mxu0
      %8126 = vmatprep.mubr.bf16.mxu0 0
      %8127 = vmatmul.mubr.bf16.gmra.mxu0 %v7957
      %v8128 = vpop.f32.mrf.mxu0
      %v8129 = vadd.f32 0.0, %v8128
      %v8130 = vpop.f32.mrf.mxu0
      %v8131 = vpop.f32.mrf.mxu0
      %v8132 = vadd.f32 0.0, %v8131
      %v8133 = vpop.f32.mrf.mxu0
      %8134 = vmatprep.mubr.bf16.mxu0 0
      %8135 = vmatmul.mubr.bf16.gmra.mxu0 %v7959
      %v8136 = vpop.f32.mrf.mxu0
      %v8137 = vadd.f32 0.0, %v8136
      %v8138 = vpop.f32.mrf.mxu0
      %v8139 = vpop.f32.mrf.mxu0
      %v8140 = vadd.f32 0.0, %v8139
      %v8141 = vpop.f32.mrf.mxu0
      %8142 = vmatprep.mubr.bf16.mxu0 0
      %8143 = vmatmul.mubr.bf16.gmra.mxu0 %v7961
      %v8144 = vpop.f32.mrf.mxu0
      %v8145 = vadd.f32 0.0, %v8144
      %v8146 = vpop.f32.mrf.mxu0
      %v8147 = vpop.f32.mrf.mxu0
      %v8148 = vadd.f32 0.0, %v8147
      %v8149 = vpop.f32.mrf.mxu0
      %8150 = vmatprep.mubr.bf16.mxu0 0
      %8151 = vmatmul.mubr.bf16.gmra.mxu0 %v7963
      %v8152 = vpop.f32.mrf.mxu0
      %v8153 = vadd.f32 0.0, %v8152
      %v8154 = vpop.f32.mrf.mxu0
      %v8155 = vpop.f32.mrf.mxu0
      %v8156 = vadd.f32 0.0, %v8155
      %v8157 = vpop.f32.mrf.mxu0
      %8158 = vmatprep.mubr.bf16.mxu0 0
      %8159 = vmatmul.mubr.bf16.gmra.mxu0 %v7965
      %v8160 = vpop.f32.mrf.mxu0
      %v8161 = vadd.f32 0.0, %v8160
      %v8162 = vpop.f32.mrf.mxu0
      %v8163 = vpop.f32.mrf.mxu0
      %v8164 = vadd.f32 0.0, %v8163
      %v8165 = vpop.f32.mrf.mxu0
      %8166 = vmatprep.mubr.bf16.mxu0 0
      %8167 = vmatmul.mubr.bf16.gmra.mxu0 %v7967
      %v8168 = vpop.f32.mrf.mxu0
      %v8169 = vadd.f32 0.0, %v8168
      %v8170 = vpop.f32.mrf.mxu0
      %v8171 = vpop.f32.mrf.mxu0
      %v8172 = vadd.f32 0.0, %v8171
      %v8173 = vpop.f32.mrf.mxu0
      %8174 = vmatprep.mubr.bf16.mxu0 0
      %8175 = vmatmul.mubr.bf16.gmra.mxu0 %v7969
      %v8176 = vpop.f32.mrf.mxu0
      %v8177 = vadd.f32 0.0, %v8176
      %v8178 = vpop.f32.mrf.mxu0
      %v8179 = vpop.f32.mrf.mxu0
      %v8180 = vadd.f32 0.0, %v8179
      %v8181 = vpop.f32.mrf.mxu0
      %8182 = vmatprep.mubr.bf16.mxu0 0
      %8183 = vmatmul.mubr.bf16.gmra.mxu0 %v7971
      %v8184 = vpop.f32.mrf.mxu0
      %v8185 = vadd.f32 0.0, %v8184
      %v8186 = vpop.f32.mrf.mxu0
      %v8187 = vpop.f32.mrf.mxu0
      %v8188 = vadd.f32 0.0, %v8187
      %v8189 = vpop.f32.mrf.mxu0
      %8190 = vmatprep.mubr.bf16.mxu0 0
      %8191 = vmatmul.mubr.bf16.gmra.mxu0 %v7973
      %v8192 = vpop.f32.mrf.mxu0
      %v8193 = vadd.f32 0.0, %v8192
      %v8194 = vpop.f32.mrf.mxu0
      %v8195 = vpop.f32.mrf.mxu0
      %v8196 = vadd.f32 0.0, %v8195
      %v8197 = vpop.f32.mrf.mxu0
      %8198 = vmatprep.mubr.bf16.mxu0 0
      %8199 = vmatmul.mubr.bf16.gmra.mxu0 %v7975
      %v8200 = vpop.f32.mrf.mxu0
      %v8201 = vadd.f32 0.0, %v8200
      %v8202 = vpop.f32.mrf.mxu0
      %v8203 = vpop.f32.mrf.mxu0
      %v8204 = vadd.f32 0.0, %v8203
      %v8205 = vpop.f32.mrf.mxu0
      %8206 = vmatprep.mubr.bf16.mxu0 0
      %8207 = vmatmul.mubr.bf16.gmra.mxu0 %v7977
      %v8208 = vpop.f32.mrf.mxu0
      %v8209 = vadd.f32 0.0, %v8208
      %v8210 = vpop.f32.mrf.mxu0
      %v8211 = vpop.f32.mrf.mxu0
      %v8212 = vadd.f32 0.0, %v8211
      %v8213 = vpop.f32.mrf.mxu0
      %8214 = vmatprep.mubr.bf16.mxu0 0
      %8215 = vmatmul.mubr.bf16.gmra.mxu0 %v7979
      %v8216 = vpop.f32.mrf.mxu0
      %v8217 = vadd.f32 0.0, %v8216
      %v8218 = vpop.f32.mrf.mxu0
      %v8219 = vpop.f32.mrf.mxu0
      %v8220 = vadd.f32 0.0, %v8219
      %v8221 = vpop.f32.mrf.mxu0
      %8222 = vdwg.mxu0
      %v8223 = vadd.f32 %v7760, %v8081
      %v8224 = vadd.f32 %v7761, %v8084
      %v8225 = vadd.f32 %v7762, %v8089
      %v8226 = vadd.f32 %v7763, %v8092
      %v8227 = vadd.f32 %v7764, %v8097
      %v8228 = vadd.f32 %v7765, %v8100
      %v8229 = vadd.f32 %v7766, %v8105
      %v8230 = vadd.f32 %v7767, %v8108
      %v8231 = vadd.f32 %v7768, %v8113
      %v8232 = vadd.f32 %v7769, %v8116
      %v8233 = vadd.f32 %v7770, %v8121
      %v8234 = vadd.f32 %v7771, %v8124
      %v8235 = vadd.f32 %v7772, %v8129
      %v8236 = vadd.f32 %v7773, %v8132
      %v8237 = vadd.f32 %v7774, %v8137
      %v8238 = vadd.f32 %v7775, %v8140
      %v8239 = vadd.f32 %v7776, %v8145
      %v8240 = vadd.f32 %v7777, %v8148
      %v8241 = vadd.f32 %v7778, %v8153
      %v8242 = vadd.f32 %v7779, %v8156
      %v8243 = vadd.f32 %v7780, %v8161
      %v8244 = vadd.f32 %v7781, %v8164
      %v8245 = vadd.f32 %v7782, %v8169
      %v8246 = vadd.f32 %v7783, %v8172
      %v8247 = vadd.f32 %v7784, %v8177
      %v8248 = vadd.f32 %v7785, %v8180
      %v8249 = vadd.f32 %v7786, %v8185
      %v8250 = vadd.f32 %v7787, %v8188
      %v8251 = vadd.f32 %v7788, %v8193
      %v8252 = vadd.f32 %v7789, %v8196
      %v8253 = vadd.f32 %v7790, %v8201
      %v8254 = vadd.f32 %v7791, %v8204
      %v8255 = vadd.f32 %v7792, %v8209
      %v8256 = vadd.f32 %v7793, %v8212
      %v8257 = vadd.f32 %v7794, %v8217
      %v8258 = vadd.f32 %v7795, %v8220
      %v8259 = vld [vmem:[#allocation2 + $0xa0] sm:$0x7]
      %s8260 = scalar_lea.vmem %s3, 448
      %v8261 = vld [vmem:[%s8260] sm:$0xf]
      %v8262 = vld [vmem:[%s8260 + $0x4] sm:$0xf]
      %v8263 = vld [vmem:[%s8260 + $0x8] sm:$0xf]
      %v8264 = vld [vmem:[%s8260 + $0xc] sm:$0xf]
      %v8265 = vld [vmem:[%s8260 + $0x10] sm:$0xf]
      %v8266 = vld [vmem:[%s8260 + $0x14] sm:$0xf]
      %v8267 = vld [vmem:[%s8260 + $0x18] sm:$0xf]
      %v8268 = vld [vmem:[%s8260 + $0x1c] sm:$0xf]
      %v8269 = vld [vmem:[%s8260 + $0x20] sm:$0xf]
      %v8270 = vld [vmem:[%s8260 + $0x24] sm:$0xf]
      %v8271 = vld [vmem:[%s8260 + $0x28] sm:$0xf]
      %v8272 = vld [vmem:[%s8260 + $0x2c] sm:$0xf]
      %v8273 = vld [vmem:[%s8260 + $0x30] sm:$0xf]
      %v8274 = vld [vmem:[%s8260 + $0x34] sm:$0xf]
      %v8275 = vld [vmem:[%s8260 + $0x38] sm:$0xf]
      %v8276 = vld [vmem:[%s8260 + $0x3c] sm:$0xf]
      %v8278 = vunpack.c.l.b16 %v8259
      %v8279 = vpack.c.b16 %v8278, %v8278
      %v8281 = vshrl.u32 %v7924, 16
      %v8283 = vrot.slane %v8281, 2
      %v8284 = vshll.u32 %v7924, 16
      %v8286 = vrot.slane %v8284, 3
      %v8287 = vor.u32 %v8283, %v8286
      %v8289 = vshrl.u32 %v7925, 16
      %v8291 = vrot.slane %v8289, 2
      %v8292 = vshll.u32 %v7925, 16
      %v8294 = vrot.slane %v8292, 3
      %v8295 = vor.u32 %v8291, %v8294
      %v8296 = vsel %vm3172, %v8287, %v8295
      %v8298 = vshrl.u32 %v7926, 16
      %v8300 = vrot.slane %v8298, 2
      %v8301 = vshll.u32 %v7926, 16
      %v8303 = vrot.slane %v8301, 3
      %v8304 = vor.u32 %v8300, %v8303
      %v8305 = vsel %vm3172, %v8295, %v8304
      %v8307 = vshrl.u32 %v7927, 16
      %v8309 = vrot.slane %v8307, 2
      %v8310 = vshll.u32 %v7927, 16
      %v8312 = vrot.slane %v8310, 3
      %v8313 = vor.u32 %v8309, %v8312
      %v8314 = vsel %vm3172, %v8304, %v8313
      %v8316 = vshrl.u32 %v7928, 16
      %v8318 = vrot.slane %v8316, 2
      %v8319 = vshll.u32 %v7928, 16
      %v8321 = vrot.slane %v8319, 3
      %v8322 = vor.u32 %v8318, %v8321
      %v8323 = vsel %vm3172, %v8313, %v8322
      %v8325 = vshrl.u32 %v7929, 16
      %v8327 = vrot.slane %v8325, 2
      %v8328 = vshll.u32 %v7929, 16
      %v8330 = vrot.slane %v8328, 3
      %v8331 = vor.u32 %v8327, %v8330
      %v8332 = vsel %vm3172, %v8322, %v8331
      %v8334 = vshrl.u32 %v7930, 16
      %v8336 = vrot.slane %v8334, 2
      %v8337 = vshll.u32 %v7930, 16
      %v8339 = vrot.slane %v8337, 3
      %v8340 = vor.u32 %v8336, %v8339
      %v8341 = vsel %vm3172, %v8331, %v8340
      %v8343 = vshrl.u32 %v7931, 16
      %v8345 = vrot.slane %v8343, 2
      %v8346 = vshll.u32 %v7931, 16
      %v8348 = vrot.slane %v8346, 3
      %v8349 = vor.u32 %v8345, %v8348
      %v8350 = vsel %vm3172, %v8340, %v8349
      %v8352 = vshrl.u32 %v7932, 16
      %v8354 = vrot.slane %v8352, 2
      %v8355 = vshll.u32 %v7932, 16
      %v8357 = vrot.slane %v8355, 3
      %v8358 = vor.u32 %v8354, %v8357
      %v8359 = vsel %vm3172, %v8349, %v8358
      %v8361 = vshrl.u32 %v7933, 16
      %v8363 = vrot.slane %v8361, 2
      %v8364 = vshll.u32 %v7933, 16
      %v8366 = vrot.slane %v8364, 3
      %v8367 = vor.u32 %v8363, %v8366
      %v8368 = vsel %vm3172, %v8358, %v8367
      %v8370 = vshrl.u32 %v7934, 16
      %v8372 = vrot.slane %v8370, 2
      %v8373 = vshll.u32 %v7934, 16
      %v8375 = vrot.slane %v8373, 3
      %v8376 = vor.u32 %v8372, %v8375
      %v8377 = vsel %vm3172, %v8367, %v8376
      %v8379 = vshrl.u32 %v7935, 16
      %v8381 = vrot.slane %v8379, 2
      %v8382 = vshll.u32 %v7935, 16
      %v8384 = vrot.slane %v8382, 3
      %v8385 = vor.u32 %v8381, %v8384
      %v8386 = vsel %vm3172, %v8376, %v8385
      %v8388 = vshrl.u32 %v7936, 16
      %v8390 = vrot.slane %v8388, 2
      %v8391 = vshll.u32 %v7936, 16
      %v8393 = vrot.slane %v8391, 3
      %v8394 = vor.u32 %v8390, %v8393
      %v8395 = vsel %vm3172, %v8385, %v8394
      %v8397 = vshrl.u32 %v7937, 16
      %v8399 = vrot.slane %v8397, 2
      %v8400 = vshll.u32 %v7937, 16
      %v8402 = vrot.slane %v8400, 3
      %v8403 = vor.u32 %v8399, %v8402
      %v8404 = vsel %vm3172, %v8394, %v8403
      %v8406 = vshrl.u32 %v7938, 16
      %v8408 = vrot.slane %v8406, 2
      %v8409 = vshll.u32 %v7938, 16
      %v8411 = vrot.slane %v8409, 3
      %v8412 = vor.u32 %v8408, %v8411
      %v8413 = vsel %vm3172, %v8403, %v8412
      %v8415 = vshrl.u32 %v7939, 16
      %v8417 = vrot.slane %v8415, 2
      %v8418 = vshll.u32 %v7939, 16
      %v8420 = vrot.slane %v8418, 3
      %v8421 = vor.u32 %v8417, %v8420
      %v8422 = vsel %vm3172, %v8412, %v8421
      %v8424 = vshrl.u32 %v7940, 16
      %v8426 = vrot.slane %v8424, 2
      %v8427 = vshll.u32 %v7940, 16
      %v8429 = vrot.slane %v8427, 3
      %v8430 = vor.u32 %v8426, %v8429
      %v8431 = vsel %vm3172, %v8421, %v8430
      %v8433 = vshrl.u32 %v7941, 16
      %v8435 = vrot.slane %v8433, 2
      %v8436 = vshll.u32 %v7941, 16
      %v8438 = vrot.slane %v8436, 3
      %v8439 = vor.u32 %v8435, %v8438
      %v8440 = vsel %vm3172, %v8430, %v8439
      %v8442 = vshrl.u32 %v8279, 16
      %v8444 = vrot.slane %v8442, 2
      %v8445 = vshll.u32 %v8279, 16
      %v8447 = vrot.slane %v8445, 3
      %v8448 = vor.u32 %v8444, %v8447
      %v8449 = vsel %vm3172, %v8439, %v8448
      %v8484 = vunpack.c.l.b16 %v8261
      %v8485 = vunpack.c.l.b16 %v8262
      %v8486 = vunpack.c.l.b16 %v8263
      %v8487 = vunpack.c.l.b16 %v8264
      %v8488 = vunpack.c.l.b16 %v8265
      %v8489 = vunpack.c.l.b16 %v8266
      %v8490 = vunpack.c.l.b16 %v8267
      %v8491 = vunpack.c.l.b16 %v8268
      %v8492 = vunpack.c.l.b16 %v8269
      %v8493 = vunpack.c.l.b16 %v8270
      %v8494 = vunpack.c.l.b16 %v8271
      %v8495 = vunpack.c.l.b16 %v8272
      %v8496 = vunpack.c.l.b16 %v8273
      %v8497 = vunpack.c.l.b16 %v8274
      %v8498 = vunpack.c.l.b16 %v8275
      %v8499 = vunpack.c.l.b16 %v8276
      %v8500 = vpack.c.b16 %v8485, %v8484
      %v8501 = vpack.c.b16 %v8487, %v8486
      %v8502 = vpack.c.b16 %v8489, %v8488
      %v8503 = vpack.c.b16 %v8491, %v8490
      %v8504 = vpack.c.b16 %v8493, %v8492
      %v8505 = vpack.c.b16 %v8495, %v8494
      %v8506 = vpack.c.b16 %v8497, %v8496
      %v8507 = vpack.c.b16 %v8499, %v8498
      %8516 = vmatprep.subr.bf16.mxu0 0
      %8517 = vmatpush1.bf16.msra.mxu0 %v8507
      %8518 = vmatprep.subr.bf16.mxu0 0
      %8519 = vmatpush1.bf16.msra.mxu0 %v8506
      %8520 = vmatprep.subr.bf16.mxu0 0
      %8521 = vmatpush1.bf16.msra.mxu0 %v8505
      %8522 = vmatprep.subr.bf16.mxu0 0
      %8523 = vmatpush1.bf16.msra.mxu0 %v8504
      %8524 = vmatprep.subr.bf16.mxu0 0
      %8525 = vmatpush1.bf16.msra.mxu0 %v8503
      %8526 = vmatprep.subr.bf16.mxu0 0
      %8527 = vmatpush1.bf16.msra.mxu0 %v8502
      %8528 = vmatprep.subr.bf16.mxu0 0
      %8529 = vmatpush1.bf16.msra.mxu0 %v8501
      %8530 = vmatprep.subr.bf16.mxu0 0
      %8531 = vmatpush1.bf16.msra.mxu0 %v8500
      %8532 = vmatprep.subr.bf16.mxu0 0
      %8533 = vmatpush2.bf16.msra.mxu0 0
      %8534 = vmatprep.subr.bf16.mxu0 0
      %8535 = vmatpush2.bf16.msra.mxu0 0
      %8536 = vmatprep.subr.bf16.mxu0 0
      %8537 = vmatpush2.bf16.msra.mxu0 0
      %8538 = vmatprep.subr.bf16.mxu0 0
      %8539 = vmatpush2.bf16.msra.mxu0 0
      %8540 = vmatprep.subr.bf16.mxu0 0
      %8541 = vmatpush2.bf16.msra.mxu0 0
      %8542 = vmatprep.subr.bf16.mxu0 0
      %8543 = vmatpush2.bf16.msra.mxu0 0
      %8544 = vmatprep.subr.bf16.mxu0 0
      %8545 = vmatpush2.bf16.msra.mxu0 0
      %8546 = vmatprep.subr.bf16.mxu0 0
      %8547 = vmatpush2.bf16.msra.mxu0 0
      %8548 = vmatprep.mubr.bf16.mxu0 0
      %8549 = vmatmul.mubr.bf16.gmra.mxu0 %v8296
      %v8550 = vpop.f32.mrf.mxu0
      %v8551 = vadd.f32 0.0, %v8550
      %v8552 = vpop.f32.mrf.mxu0
      %v8553 = vpop.f32.mrf.mxu0
      %v8554 = vadd.f32 0.0, %v8553
      %v8555 = vpop.f32.mrf.mxu0
      %8556 = vmatprep.mubr.bf16.mxu0 0
      %8557 = vmatmul.mubr.bf16.gmra.mxu0 %v8305
      %v8558 = vpop.f32.mrf.mxu0
      %v8559 = vadd.f32 0.0, %v8558
      %v8560 = vpop.f32.mrf.mxu0
      %v8561 = vpop.f32.mrf.mxu0
      %v8562 = vadd.f32 0.0, %v8561
      %v8563 = vpop.f32.mrf.mxu0
      %8564 = vmatprep.mubr.bf16.mxu0 0
      %8565 = vmatmul.mubr.bf16.gmra.mxu0 %v8314
      %v8566 = vpop.f32.mrf.mxu0
      %v8567 = vadd.f32 0.0, %v8566
      %v8568 = vpop.f32.mrf.mxu0
      %v8569 = vpop.f32.mrf.mxu0
      %v8570 = vadd.f32 0.0, %v8569
      %v8571 = vpop.f32.mrf.mxu0
      %8572 = vmatprep.mubr.bf16.mxu0 0
      %8573 = vmatmul.mubr.bf16.gmra.mxu0 %v8323
      %v8574 = vpop.f32.mrf.mxu0
      %v8575 = vadd.f32 0.0, %v8574
      %v8576 = vpop.f32.mrf.mxu0
      %v8577 = vpop.f32.mrf.mxu0
      %v8578 = vadd.f32 0.0, %v8577
      %v8579 = vpop.f32.mrf.mxu0
      %8580 = vmatprep.mubr.bf16.mxu0 0
      %8581 = vmatmul.mubr.bf16.gmra.mxu0 %v8332
      %v8582 = vpop.f32.mrf.mxu0
      %v8583 = vadd.f32 0.0, %v8582
      %v8584 = vpop.f32.mrf.mxu0
      %v8585 = vpop.f32.mrf.mxu0
      %v8586 = vadd.f32 0.0, %v8585
      %v8587 = vpop.f32.mrf.mxu0
      %8588 = vmatprep.mubr.bf16.mxu0 0
      %8589 = vmatmul.mubr.bf16.gmra.mxu0 %v8341
      %v8590 = vpop.f32.mrf.mxu0
      %v8591 = vadd.f32 0.0, %v8590
      %v8592 = vpop.f32.mrf.mxu0
      %v8593 = vpop.f32.mrf.mxu0
      %v8594 = vadd.f32 0.0, %v8593
      %v8595 = vpop.f32.mrf.mxu0
      %8596 = vmatprep.mubr.bf16.mxu0 0
      %8597 = vmatmul.mubr.bf16.gmra.mxu0 %v8350
      %v8598 = vpop.f32.mrf.mxu0
      %v8599 = vadd.f32 0.0, %v8598
      %v8600 = vpop.f32.mrf.mxu0
      %v8601 = vpop.f32.mrf.mxu0
      %v8602 = vadd.f32 0.0, %v8601
      %v8603 = vpop.f32.mrf.mxu0
      %8604 = vmatprep.mubr.bf16.mxu0 0
      %8605 = vmatmul.mubr.bf16.gmra.mxu0 %v8359
      %v8606 = vpop.f32.mrf.mxu0
      %v8607 = vadd.f32 0.0, %v8606
      %v8608 = vpop.f32.mrf.mxu0
      %v8609 = vpop.f32.mrf.mxu0
      %v8610 = vadd.f32 0.0, %v8609
      %v8611 = vpop.f32.mrf.mxu0
      %8612 = vmatprep.mubr.bf16.mxu0 0
      %8613 = vmatmul.mubr.bf16.gmra.mxu0 %v8368
      %v8614 = vpop.f32.mrf.mxu0
      %v8615 = vadd.f32 0.0, %v8614
      %v8616 = vpop.f32.mrf.mxu0
      %v8617 = vpop.f32.mrf.mxu0
      %v8618 = vadd.f32 0.0, %v8617
      %v8619 = vpop.f32.mrf.mxu0
      %8620 = vmatprep.mubr.bf16.mxu0 0
      %8621 = vmatmul.mubr.bf16.gmra.mxu0 %v8377
      %v8622 = vpop.f32.mrf.mxu0
      %v8623 = vadd.f32 0.0, %v8622
      %v8624 = vpop.f32.mrf.mxu0
      %v8625 = vpop.f32.mrf.mxu0
      %v8626 = vadd.f32 0.0, %v8625
      %v8627 = vpop.f32.mrf.mxu0
      %8628 = vmatprep.mubr.bf16.mxu0 0
      %8629 = vmatmul.mubr.bf16.gmra.mxu0 %v8386
      %v8630 = vpop.f32.mrf.mxu0
      %v8631 = vadd.f32 0.0, %v8630
      %v8632 = vpop.f32.mrf.mxu0
      %v8633 = vpop.f32.mrf.mxu0
      %v8634 = vadd.f32 0.0, %v8633
      %v8635 = vpop.f32.mrf.mxu0
      %8636 = vmatprep.mubr.bf16.mxu0 0
      %8637 = vmatmul.mubr.bf16.gmra.mxu0 %v8395
      %v8638 = vpop.f32.mrf.mxu0
      %v8639 = vadd.f32 0.0, %v8638
      %v8640 = vpop.f32.mrf.mxu0
      %v8641 = vpop.f32.mrf.mxu0
      %v8642 = vadd.f32 0.0, %v8641
      %v8643 = vpop.f32.mrf.mxu0
      %8644 = vmatprep.mubr.bf16.mxu0 0
      %8645 = vmatmul.mubr.bf16.gmra.mxu0 %v8404
      %v8646 = vpop.f32.mrf.mxu0
      %v8647 = vadd.f32 0.0, %v8646
      %v8648 = vpop.f32.mrf.mxu0
      %v8649 = vpop.f32.mrf.mxu0
      %v8650 = vadd.f32 0.0, %v8649
      %v8651 = vpop.f32.mrf.mxu0
      %8652 = vmatprep.mubr.bf16.mxu0 0
      %8653 = vmatmul.mubr.bf16.gmra.mxu0 %v8413
      %v8654 = vpop.f32.mrf.mxu0
      %v8655 = vadd.f32 0.0, %v8654
      %v8656 = vpop.f32.mrf.mxu0
      %v8657 = vpop.f32.mrf.mxu0
      %v8658 = vadd.f32 0.0, %v8657
      %v8659 = vpop.f32.mrf.mxu0
      %8660 = vmatprep.mubr.bf16.mxu0 0
      %8661 = vmatmul.mubr.bf16.gmra.mxu0 %v8422
      %v8662 = vpop.f32.mrf.mxu0
      %v8663 = vadd.f32 0.0, %v8662
      %v8664 = vpop.f32.mrf.mxu0
      %v8665 = vpop.f32.mrf.mxu0
      %v8666 = vadd.f32 0.0, %v8665
      %v8667 = vpop.f32.mrf.mxu0
      %8668 = vmatprep.mubr.bf16.mxu0 0
      %8669 = vmatmul.mubr.bf16.gmra.mxu0 %v8431
      %v8670 = vpop.f32.mrf.mxu0
      %v8671 = vadd.f32 0.0, %v8670
      %v8672 = vpop.f32.mrf.mxu0
      %v8673 = vpop.f32.mrf.mxu0
      %v8674 = vadd.f32 0.0, %v8673
      %v8675 = vpop.f32.mrf.mxu0
      %8676 = vmatprep.mubr.bf16.mxu0 0
      %8677 = vmatmul.mubr.bf16.gmra.mxu0 %v8440
      %v8678 = vpop.f32.mrf.mxu0
      %v8679 = vadd.f32 0.0, %v8678
      %v8680 = vpop.f32.mrf.mxu0
      %v8681 = vpop.f32.mrf.mxu0
      %v8682 = vadd.f32 0.0, %v8681
      %v8683 = vpop.f32.mrf.mxu0
      %8684 = vmatprep.mubr.bf16.mxu0 0
      %8685 = vmatmul.mubr.bf16.gmra.mxu0 %v8449
      %v8686 = vpop.f32.mrf.mxu0
      %v8687 = vadd.f32 0.0, %v8686
      %v8688 = vpop.f32.mrf.mxu0
      %v8689 = vpop.f32.mrf.mxu0
      %v8690 = vadd.f32 0.0, %v8689
      %v8691 = vpop.f32.mrf.mxu0
      %8692 = vdwg.mxu0
      %v8693 = vadd.f32 %v8223, %v8551
      %v8694 = vadd.f32 %v8224, %v8554
      %v8695 = vadd.f32 %v8225, %v8559
      %v8696 = vadd.f32 %v8226, %v8562
      %v8697 = vadd.f32 %v8227, %v8567
      %v8698 = vadd.f32 %v8228, %v8570
      %v8699 = vadd.f32 %v8229, %v8575
      %v8700 = vadd.f32 %v8230, %v8578
      %v8701 = vadd.f32 %v8231, %v8583
      %v8702 = vadd.f32 %v8232, %v8586
      %v8703 = vadd.f32 %v8233, %v8591
      %v8704 = vadd.f32 %v8234, %v8594
      %v8705 = vadd.f32 %v8235, %v8599
      %v8706 = vadd.f32 %v8236, %v8602
      %v8707 = vadd.f32 %v8237, %v8607
      %v8708 = vadd.f32 %v8238, %v8610
      %v8709 = vadd.f32 %v8239, %v8615
      %v8710 = vadd.f32 %v8240, %v8618
      %v8711 = vadd.f32 %v8241, %v8623
      %v8712 = vadd.f32 %v8242, %v8626
      %v8713 = vadd.f32 %v8243, %v8631
      %v8714 = vadd.f32 %v8244, %v8634
      %v8715 = vadd.f32 %v8245, %v8639
      %v8716 = vadd.f32 %v8246, %v8642
      %v8717 = vadd.f32 %v8247, %v8647
      %v8718 = vadd.f32 %v8248, %v8650
      %v8719 = vadd.f32 %v8249, %v8655
      %v8720 = vadd.f32 %v8250, %v8658
      %v8721 = vadd.f32 %v8251, %v8663
      %v8722 = vadd.f32 %v8252, %v8666
      %v8723 = vadd.f32 %v8253, %v8671
      %v8724 = vadd.f32 %v8254, %v8674
      %v8725 = vadd.f32 %v8255, %v8679
      %v8726 = vadd.f32 %v8256, %v8682
      %v8727 = vadd.f32 %v8257, %v8687
      %v8728 = vadd.f32 %v8258, %v8690
      %v8729 = vld [vmem:[#allocation2 + $0x10] sm:$0x8]
      %s8730 = scalar_lea.vmem %s3, 512
      %v8731 = vld [vmem:[%s8730] sm:$0xf]
      %v8732 = vld [vmem:[%s8730 + $0x4] sm:$0xf]
      %v8733 = vld [vmem:[%s8730 + $0x8] sm:$0xf]
      %v8734 = vld [vmem:[%s8730 + $0xc] sm:$0xf]
      %v8735 = vld [vmem:[%s8730 + $0x10] sm:$0xf]
      %v8736 = vld [vmem:[%s8730 + $0x14] sm:$0xf]
      %v8737 = vld [vmem:[%s8730 + $0x18] sm:$0xf]
      %v8738 = vld [vmem:[%s8730 + $0x1c] sm:$0xf]
      %v8739 = vld [vmem:[%s8730 + $0x20] sm:$0xf]
      %v8740 = vld [vmem:[%s8730 + $0x24] sm:$0xf]
      %v8741 = vld [vmem:[%s8730 + $0x28] sm:$0xf]
      %v8742 = vld [vmem:[%s8730 + $0x2c] sm:$0xf]
      %v8743 = vld [vmem:[%s8730 + $0x30] sm:$0xf]
      %v8744 = vld [vmem:[%s8730 + $0x34] sm:$0xf]
      %v8745 = vld [vmem:[%s8730 + $0x38] sm:$0xf]
      %v8746 = vld [vmem:[%s8730 + $0x3c] sm:$0xf]
      %v8748 = vunpack.c.l.b16 %v8729
      %v8749 = vpack.c.b16 %v7888, %v8748
      %v8750 = vrot.slane %v8749, 3
      %v8751 = vrot.slane %v7925, 3
      %v8752 = vsel %vm3643, %v8750, %v8751
      %v8753 = vrot.slane %v7926, 3
      %v8754 = vsel %vm3643, %v8751, %v8753
      %v8755 = vrot.slane %v7927, 3
      %v8756 = vsel %vm3643, %v8753, %v8755
      %v8757 = vrot.slane %v7928, 3
      %v8758 = vsel %vm3643, %v8755, %v8757
      %v8759 = vrot.slane %v7929, 3
      %v8760 = vsel %vm3643, %v8757, %v8759
      %v8761 = vrot.slane %v7930, 3
      %v8762 = vsel %vm3643, %v8759, %v8761
      %v8763 = vrot.slane %v7931, 3
      %v8764 = vsel %vm3643, %v8761, %v8763
      %v8765 = vrot.slane %v7932, 3
      %v8766 = vsel %vm3643, %v8763, %v8765
      %v8767 = vrot.slane %v7933, 3
      %v8768 = vsel %vm3643, %v8765, %v8767
      %v8769 = vrot.slane %v7934, 3
      %v8770 = vsel %vm3643, %v8767, %v8769
      %v8771 = vrot.slane %v7935, 3
      %v8772 = vsel %vm3643, %v8769, %v8771
      %v8773 = vrot.slane %v7936, 3
      %v8774 = vsel %vm3643, %v8771, %v8773
      %v8775 = vrot.slane %v7937, 3
      %v8776 = vsel %vm3643, %v8773, %v8775
      %v8777 = vrot.slane %v7938, 3
      %v8778 = vsel %vm3643, %v8775, %v8777
      %v8779 = vrot.slane %v7939, 3
      %v8780 = vsel %vm3643, %v8777, %v8779
      %v8781 = vrot.slane %v7940, 3
      %v8782 = vsel %vm3643, %v8779, %v8781
      %v8783 = vrot.slane %v7941, 3
      %v8784 = vsel %vm3643, %v8781, %v8783
      %v8785 = vrot.slane %v8279, 3
      %v8786 = vsel %vm3643, %v8783, %v8785
      %v8821 = vunpack.c.l.b16 %v8731
      %v8822 = vunpack.c.l.b16 %v8732
      %v8823 = vunpack.c.l.b16 %v8733
      %v8824 = vunpack.c.l.b16 %v8734
      %v8825 = vunpack.c.l.b16 %v8735
      %v8826 = vunpack.c.l.b16 %v8736
      %v8827 = vunpack.c.l.b16 %v8737
      %v8828 = vunpack.c.l.b16 %v8738
      %v8829 = vunpack.c.l.b16 %v8739
      %v8830 = vunpack.c.l.b16 %v8740
      %v8831 = vunpack.c.l.b16 %v8741
      %v8832 = vunpack.c.l.b16 %v8742
      %v8833 = vunpack.c.l.b16 %v8743
      %v8834 = vunpack.c.l.b16 %v8744
      %v8835 = vunpack.c.l.b16 %v8745
      %v8836 = vunpack.c.l.b16 %v8746
      %v8837 = vpack.c.b16 %v8822, %v8821
      %v8838 = vpack.c.b16 %v8824, %v8823
      %v8839 = vpack.c.b16 %v8826, %v8825
      %v8840 = vpack.c.b16 %v8828, %v8827
      %v8841 = vpack.c.b16 %v8830, %v8829
      %v8842 = vpack.c.b16 %v8832, %v8831
      %v8843 = vpack.c.b16 %v8834, %v8833
      %v8844 = vpack.c.b16 %v8836, %v8835
      %8853 = vmatprep.subr.bf16.mxu0 0
      %8854 = vmatpush1.bf16.msra.mxu0 %v8844
      %8855 = vmatprep.subr.bf16.mxu0 0
      %8856 = vmatpush1.bf16.msra.mxu0 %v8843
      %8857 = vmatprep.subr.bf16.mxu0 0
      %8858 = vmatpush1.bf16.msra.mxu0 %v8842
      %8859 = vmatprep.subr.bf16.mxu0 0
      %8860 = vmatpush1.bf16.msra.mxu0 %v8841
      %8861 = vmatprep.subr.bf16.mxu0 0
      %8862 = vmatpush1.bf16.msra.mxu0 %v8840
      %8863 = vmatprep.subr.bf16.mxu0 0
      %8864 = vmatpush1.bf16.msra.mxu0 %v8839
      %8865 = vmatprep.subr.bf16.mxu0 0
      %8866 = vmatpush1.bf16.msra.mxu0 %v8838
      %8867 = vmatprep.subr.bf16.mxu0 0
      %8868 = vmatpush1.bf16.msra.mxu0 %v8837
      %8869 = vmatprep.subr.bf16.mxu0 0
      %8870 = vmatpush2.bf16.msra.mxu0 0
      %8871 = vmatprep.subr.bf16.mxu0 0
      %8872 = vmatpush2.bf16.msra.mxu0 0
      %8873 = vmatprep.subr.bf16.mxu0 0
      %8874 = vmatpush2.bf16.msra.mxu0 0
      %8875 = vmatprep.subr.bf16.mxu0 0
      %8876 = vmatpush2.bf16.msra.mxu0 0
      %8877 = vmatprep.subr.bf16.mxu0 0
      %8878 = vmatpush2.bf16.msra.mxu0 0
      %8879 = vmatprep.subr.bf16.mxu0 0
      %8880 = vmatpush2.bf16.msra.mxu0 0
      %8881 = vmatprep.subr.bf16.mxu0 0
      %8882 = vmatpush2.bf16.msra.mxu0 0
      %8883 = vmatprep.subr.bf16.mxu0 0
      %8884 = vmatpush2.bf16.msra.mxu0 0
      %8885 = vmatprep.mubr.bf16.mxu0 0
      %8886 = vmatmul.mubr.bf16.gmra.mxu0 %v8752
      %v8887 = vpop.f32.mrf.mxu0
      %v8888 = vadd.f32 0.0, %v8887
      %v8889 = vpop.f32.mrf.mxu0
      %v8890 = vpop.f32.mrf.mxu0
      %v8891 = vadd.f32 0.0, %v8890
      %v8892 = vpop.f32.mrf.mxu0
      %8893 = vmatprep.mubr.bf16.mxu0 0
      %8894 = vmatmul.mubr.bf16.gmra.mxu0 %v8754
      %v8895 = vpop.f32.mrf.mxu0
      %v8896 = vadd.f32 0.0, %v8895
      %v8897 = vpop.f32.mrf.mxu0
      %v8898 = vpop.f32.mrf.mxu0
      %v8899 = vadd.f32 0.0, %v8898
      %v8900 = vpop.f32.mrf.mxu0
      %8901 = vmatprep.mubr.bf16.mxu0 0
      %8902 = vmatmul.mubr.bf16.gmra.mxu0 %v8756
      %v8903 = vpop.f32.mrf.mxu0
      %v8904 = vadd.f32 0.0, %v8903
      %v8905 = vpop.f32.mrf.mxu0
      %v8906 = vpop.f32.mrf.mxu0
      %v8907 = vadd.f32 0.0, %v8906
      %v8908 = vpop.f32.mrf.mxu0
      %8909 = vmatprep.mubr.bf16.mxu0 0
      %8910 = vmatmul.mubr.bf16.gmra.mxu0 %v8758
      %v8911 = vpop.f32.mrf.mxu0
      %v8912 = vadd.f32 0.0, %v8911
      %v8913 = vpop.f32.mrf.mxu0
      %v8914 = vpop.f32.mrf.mxu0
      %v8915 = vadd.f32 0.0, %v8914
      %v8916 = vpop.f32.mrf.mxu0
      %8917 = vmatprep.mubr.bf16.mxu0 0
      %8918 = vmatmul.mubr.bf16.gmra.mxu0 %v8760
      %v8919 = vpop.f32.mrf.mxu0
      %v8920 = vadd.f32 0.0, %v8919
      %v8921 = vpop.f32.mrf.mxu0
      %v8922 = vpop.f32.mrf.mxu0
      %v8923 = vadd.f32 0.0, %v8922
      %v8924 = vpop.f32.mrf.mxu0
      %8925 = vmatprep.mubr.bf16.mxu0 0
      %8926 = vmatmul.mubr.bf16.gmra.mxu0 %v8762
      %v8927 = vpop.f32.mrf.mxu0
      %v8928 = vadd.f32 0.0, %v8927
      %v8929 = vpop.f32.mrf.mxu0
      %v8930 = vpop.f32.mrf.mxu0
      %v8931 = vadd.f32 0.0, %v8930
      %v8932 = vpop.f32.mrf.mxu0
      %8933 = vmatprep.mubr.bf16.mxu0 0
      %8934 = vmatmul.mubr.bf16.gmra.mxu0 %v8764
      %v8935 = vpop.f32.mrf.mxu0
      %v8936 = vadd.f32 0.0, %v8935
      %v8937 = vpop.f32.mrf.mxu0
      %v8938 = vpop.f32.mrf.mxu0
      %v8939 = vadd.f32 0.0, %v8938
      %v8940 = vpop.f32.mrf.mxu0
      %8941 = vmatprep.mubr.bf16.mxu0 0
      %8942 = vmatmul.mubr.bf16.gmra.mxu0 %v8766
      %v8943 = vpop.f32.mrf.mxu0
      %v8944 = vadd.f32 0.0, %v8943
      %v8945 = vpop.f32.mrf.mxu0
      %v8946 = vpop.f32.mrf.mxu0
      %v8947 = vadd.f32 0.0, %v8946
      %v8948 = vpop.f32.mrf.mxu0
      %8949 = vmatprep.mubr.bf16.mxu0 0
      %8950 = vmatmul.mubr.bf16.gmra.mxu0 %v8768
      %v8951 = vpop.f32.mrf.mxu0
      %v8952 = vadd.f32 0.0, %v8951
      %v8953 = vpop.f32.mrf.mxu0
      %v8954 = vpop.f32.mrf.mxu0
      %v8955 = vadd.f32 0.0, %v8954
      %v8956 = vpop.f32.mrf.mxu0
      %8957 = vmatprep.mubr.bf16.mxu0 0
      %8958 = vmatmul.mubr.bf16.gmra.mxu0 %v8770
      %v8959 = vpop.f32.mrf.mxu0
      %v8960 = vadd.f32 0.0, %v8959
      %v8961 = vpop.f32.mrf.mxu0
      %v8962 = vpop.f32.mrf.mxu0
      %v8963 = vadd.f32 0.0, %v8962
      %v8964 = vpop.f32.mrf.mxu0
      %8965 = vmatprep.mubr.bf16.mxu0 0
      %8966 = vmatmul.mubr.bf16.gmra.mxu0 %v8772
      %v8967 = vpop.f32.mrf.mxu0
      %v8968 = vadd.f32 0.0, %v8967
      %v8969 = vpop.f32.mrf.mxu0
      %v8970 = vpop.f32.mrf.mxu0
      %v8971 = vadd.f32 0.0, %v8970
      %v8972 = vpop.f32.mrf.mxu0
      %8973 = vmatprep.mubr.bf16.mxu0 0
      %8974 = vmatmul.mubr.bf16.gmra.mxu0 %v8774
      %v8975 = vpop.f32.mrf.mxu0
      %v8976 = vadd.f32 0.0, %v8975
      %v8977 = vpop.f32.mrf.mxu0
      %v8978 = vpop.f32.mrf.mxu0
      %v8979 = vadd.f32 0.0, %v8978
      %v8980 = vpop.f32.mrf.mxu0
      %8981 = vmatprep.mubr.bf16.mxu0 0
      %8982 = vmatmul.mubr.bf16.gmra.mxu0 %v8776
      %v8983 = vpop.f32.mrf.mxu0
      %v8984 = vadd.f32 0.0, %v8983
      %v8985 = vpop.f32.mrf.mxu0
      %v8986 = vpop.f32.mrf.mxu0
      %v8987 = vadd.f32 0.0, %v8986
      %v8988 = vpop.f32.mrf.mxu0
      %8989 = vmatprep.mubr.bf16.mxu0 0
      %8990 = vmatmul.mubr.bf16.gmra.mxu0 %v8778
      %v8991 = vpop.f32.mrf.mxu0
      %v8992 = vadd.f32 0.0, %v8991
      %v8993 = vpop.f32.mrf.mxu0
      %v8994 = vpop.f32.mrf.mxu0
      %v8995 = vadd.f32 0.0, %v8994
      %v8996 = vpop.f32.mrf.mxu0
      %8997 = vmatprep.mubr.bf16.mxu0 0
      %8998 = vmatmul.mubr.bf16.gmra.mxu0 %v8780
      %v8999 = vpop.f32.mrf.mxu0
      %v9000 = vadd.f32 0.0, %v8999
      %v9001 = vpop.f32.mrf.mxu0
      %v9002 = vpop.f32.mrf.mxu0
      %v9003 = vadd.f32 0.0, %v9002
      %v9004 = vpop.f32.mrf.mxu0
      %9005 = vmatprep.mubr.bf16.mxu0 0
      %9006 = vmatmul.mubr.bf16.gmra.mxu0 %v8782
      %v9007 = vpop.f32.mrf.mxu0
      %v9008 = vadd.f32 0.0, %v9007
      %v9009 = vpop.f32.mrf.mxu0
      %v9010 = vpop.f32.mrf.mxu0
      %v9011 = vadd.f32 0.0, %v9010
      %v9012 = vpop.f32.mrf.mxu0
      %9013 = vmatprep.mubr.bf16.mxu0 0
      %9014 = vmatmul.mubr.bf16.gmra.mxu0 %v8784
      %v9015 = vpop.f32.mrf.mxu0
      %v9016 = vadd.f32 0.0, %v9015
      %v9017 = vpop.f32.mrf.mxu0
      %v9018 = vpop.f32.mrf.mxu0
      %v9019 = vadd.f32 0.0, %v9018
      %v9020 = vpop.f32.mrf.mxu0
      %9021 = vmatprep.mubr.bf16.mxu0 0
      %9022 = vmatmul.mubr.bf16.gmra.mxu0 %v8786
      %v9023 = vpop.f32.mrf.mxu0
      %v9024 = vadd.f32 0.0, %v9023
      %v9025 = vpop.f32.mrf.mxu0
      %v9026 = vpop.f32.mrf.mxu0
      %v9027 = vadd.f32 0.0, %v9026
      %v9028 = vpop.f32.mrf.mxu0
      %9029 = vdwg.mxu0
      %v9030 = vadd.f32 %v8693, %v8888
      %v9031 = vadd.f32 %v8694, %v8891
      %v9032 = vadd.f32 %v8695, %v8896
      %v9033 = vadd.f32 %v8696, %v8899
      %v9034 = vadd.f32 %v8697, %v8904
      %v9035 = vadd.f32 %v8698, %v8907
      %v9036 = vadd.f32 %v8699, %v8912
      %v9037 = vadd.f32 %v8700, %v8915
      %v9038 = vadd.f32 %v8701, %v8920
      %v9039 = vadd.f32 %v8702, %v8923
      %v9040 = vadd.f32 %v8703, %v8928
      %v9041 = vadd.f32 %v8704, %v8931
      %v9042 = vadd.f32 %v8705, %v8936
      %v9043 = vadd.f32 %v8706, %v8939
      %v9044 = vadd.f32 %v8707, %v8944
      %v9045 = vadd.f32 %v8708, %v8947
      %v9046 = vadd.f32 %v8709, %v8952
      %v9047 = vadd.f32 %v8710, %v8955
      %v9048 = vadd.f32 %v8711, %v8960
      %v9049 = vadd.f32 %v8712, %v8963
      %v9050 = vadd.f32 %v8713, %v8968
      %v9051 = vadd.f32 %v8714, %v8971
      %v9052 = vadd.f32 %v8715, %v8976
      %v9053 = vadd.f32 %v8716, %v8979
      %v9054 = vadd.f32 %v8717, %v8984
      %v9055 = vadd.f32 %v8718, %v8987
      %v9056 = vadd.f32 %v8719, %v8992
      %v9057 = vadd.f32 %v8720, %v8995
      %v9058 = vadd.f32 %v8721, %v9000
      %v9059 = vadd.f32 %v8722, %v9003
      %v9060 = vadd.f32 %v8723, %v9008
      %v9061 = vadd.f32 %v8724, %v9011
      %v9062 = vadd.f32 %v8725, %v9016
      %v9063 = vadd.f32 %v8726, %v9019
      %v9064 = vadd.f32 %v8727, %v9024
      %v9065 = vadd.f32 %v8728, %v9027
      %v9066 = vld [vmem:[%s4] sm:$0x1]
      %v9068 = vlaneseq
      %v9069 = vshrl.u32 %v9068, 7
      %v9070 = vsub.s32 0, %v9069
      %v9071 = vrot.slane %v9066, %v9070
      %v9073 = vadd.f32 %v9030, %v9071
      %v9074 = vadd.f32 %v9031, %v9071
      %v9075 = vadd.f32 %v9032, %v9071
      %v9076 = vadd.f32 %v9033, %v9071
      %v9077 = vadd.f32 %v9034, %v9071
      %v9078 = vadd.f32 %v9035, %v9071
      %v9079 = vadd.f32 %v9036, %v9071
      %v9080 = vadd.f32 %v9037, %v9071
      %v9081 = vadd.f32 %v9038, %v9071
      %v9082 = vadd.f32 %v9039, %v9071
      %v9083 = vadd.f32 %v9040, %v9071
      %v9084 = vadd.f32 %v9041, %v9071
      %v9085 = vadd.f32 %v9042, %v9071
      %v9086 = vadd.f32 %v9043, %v9071
      %v9087 = vadd.f32 %v9044, %v9071
      %v9088 = vadd.f32 %v9045, %v9071
      %v9089 = vadd.f32 %v9046, %v9071
      %v9090 = vadd.f32 %v9047, %v9071
      %v9091 = vadd.f32 %v9048, %v9071
      %v9092 = vadd.f32 %v9049, %v9071
      %v9093 = vadd.f32 %v9050, %v9071
      %v9094 = vadd.f32 %v9051, %v9071
      %v9095 = vadd.f32 %v9052, %v9071
      %v9096 = vadd.f32 %v9053, %v9071
      %v9097 = vadd.f32 %v9054, %v9071
      %v9098 = vadd.f32 %v9055, %v9071
      %v9099 = vadd.f32 %v9056, %v9071
      %v9100 = vadd.f32 %v9057, %v9071
      %v9101 = vadd.f32 %v9058, %v9071
      %v9102 = vadd.f32 %v9059, %v9071
      %v9103 = vadd.f32 %v9060, %v9071
      %v9104 = vadd.f32 %v9061, %v9071
      %v9105 = vadd.f32 %v9062, %v9071
      %v9106 = vadd.f32 %v9063, %v9071
      %v9107 = vadd.f32 %v9064, %v9071
      %v9108 = vadd.f32 %v9065, %v9071
      %v9109 = vld [vmem:[%s273 + $0x8] sm:$0xe]
      %v9110 = vld [vmem:[%s273 + $0xc] sm:$0xf]
      %v9111 = vld [vmem:[%s273 + $0x10] sm:$0xf]
      %v9112 = vld [vmem:[%s273 + $0x14] sm:$0xf]
      %v9113 = vld [vmem:[%s273 + $0x18] sm:$0xf]
      %v9114 = vld [vmem:[%s273 + $0x1c] sm:$0xf]
      %v9115 = vld [vmem:[%s273 + $0x20] sm:$0xf]
      %v9116 = vld [vmem:[%s273 + $0x24] sm:$0xf]
      %v9117 = vld [vmem:[%s273 + $0x28] sm:$0xf]
      %v9118 = vld [vmem:[%s273 + $0x2c] sm:$0xf]
      %v9119 = vld [vmem:[%s273 + $0x30] sm:$0xf]
      %v9120 = vld [vmem:[%s273 + $0x34] sm:$0xf]
      %v9121 = vld [vmem:[%s273 + $0x38] sm:$0xf]
      %v9122 = vld [vmem:[%s273 + $0x3c] sm:$0xf]
      %v9123 = vld [vmem:[%s273 + $0x40] sm:$0xf]
      %v9124 = vld [vmem:[%s273 + $0x44] sm:$0xf]
      %v9125 = vld [vmem:[%s273 + $0x48] sm:$0xf]
      %v9126 = vld [vmem:[%s273 + $0x4c] sm:$0xf]
      %v9127 = vld [vmem:[%s273 + $0x50] sm:$0xf]
      %v9128 = vld [vmem:[%s273 + $0x54] sm:$0xf]
      %v9129 = vld [vmem:[%s273 + $0x58] sm:$0xf]
      %v9130 = vld [vmem:[%s273 + $0x5c] sm:$0xf]
      %v9131 = vld [vmem:[%s273 + $0x60] sm:$0xf]
      %v9132 = vld [vmem:[%s273 + $0x64] sm:$0xf]
      %v9133 = vld [vmem:[%s273 + $0x68] sm:$0xf]
      %v9134 = vld [vmem:[%s273 + $0x6c] sm:$0xf]
      %v9135 = vld [vmem:[%s273 + $0x70] sm:$0xf]
      %v9136 = vld [vmem:[%s273 + $0x74] sm:$0xf]
      %v9137 = vld [vmem:[%s273 + $0x78] sm:$0xf]
      %v9138 = vld [vmem:[%s273 + $0x7c] sm:$0xf]
      %v9139 = vld [vmem:[%s273 + $0x80] sm:$0xf]
      %v9140 = vld [vmem:[%s273 + $0x84] sm:$0xf]
      %v9141 = vld [vmem:[%s273 + $0x88] sm:$0xf]
      %v9142 = vld [vmem:[%s273 + $0x8c] sm:$0xf]
      %v9143 = vld [vmem:[%s273 + $0x90] sm:$0xf]
      %v9144 = vld [vmem:[%s273 + $0x94] sm:$0xf]
      %v9145 = vld [vmem:[%s273 + $0x98] sm:$0x3]
      %v9146 = vld [vmem:[%s5] sm:$0xf]
      %v9147 = vld [vmem:[%s5 + $0x4] sm:$0xf]
      %v9148 = vld [vmem:[%s5 + $0x8] sm:$0xf]
      %v9149 = vld [vmem:[%s5 + $0xc] sm:$0xf]
      %v9150 = vld [vmem:[%s5 + $0x10] sm:$0xf]
      %v9151 = vld [vmem:[%s5 + $0x14] sm:$0xf]
      %v9152 = vld [vmem:[%s5 + $0x18] sm:$0xf]
      %v9153 = vld [vmem:[%s5 + $0x1c] sm:$0xf]
      %v9154 = vld [vmem:[%s5 + $0x20] sm:$0xf]
      %v9155 = vld [vmem:[%s5 + $0x24] sm:$0xf]
      %v9156 = vld [vmem:[%s5 + $0x28] sm:$0xf]
      %v9157 = vld [vmem:[%s5 + $0x2c] sm:$0xf]
      %v9158 = vld [vmem:[%s5 + $0x30] sm:$0xf]
      %v9159 = vld [vmem:[%s5 + $0x34] sm:$0xf]
      %v9160 = vld [vmem:[%s5 + $0x38] sm:$0xf]
      %v9161 = vld [vmem:[%s5 + $0x3c] sm:$0xf]
      %v9199 = vunpack.c.l.b16 %v9109
      %v9200 = vunpack.c.l.b16 %v9110
      %v9201 = vunpack.c.l.b16 %v9111
      %v9202 = vunpack.c.l.b16 %v9112
      %v9203 = vunpack.c.l.b16 %v9113
      %v9204 = vunpack.c.l.b16 %v9114
      %v9205 = vunpack.c.l.b16 %v9115
      %v9206 = vunpack.c.l.b16 %v9116
      %v9207 = vunpack.c.l.b16 %v9117
      %v9208 = vunpack.c.l.b16 %v9118
      %v9209 = vunpack.c.l.b16 %v9119
      %v9210 = vunpack.c.l.b16 %v9120
      %v9211 = vunpack.c.l.b16 %v9121
      %v9212 = vunpack.c.l.b16 %v9122
      %v9213 = vunpack.c.l.b16 %v9123
      %v9214 = vunpack.c.l.b16 %v9124
      %v9215 = vunpack.c.l.b16 %v9125
      %v9216 = vunpack.c.l.b16 %v9126
      %v9217 = vunpack.c.l.b16 %v9127
      %v9218 = vunpack.c.l.b16 %v9128
      %v9219 = vunpack.c.l.b16 %v9129
      %v9220 = vunpack.c.l.b16 %v9130
      %v9221 = vunpack.c.l.b16 %v9131
      %v9222 = vunpack.c.l.b16 %v9132
      %v9223 = vunpack.c.l.b16 %v9133
      %v9224 = vunpack.c.l.b16 %v9134
      %v9225 = vunpack.c.l.b16 %v9135
      %v9226 = vunpack.c.l.b16 %v9136
      %v9227 = vunpack.c.l.b16 %v9137
      %v9228 = vunpack.c.l.b16 %v9138
      %v9229 = vunpack.c.l.b16 %v9139
      %v9230 = vunpack.c.l.b16 %v9140
      %v9231 = vunpack.c.l.b16 %v9141
      %v9232 = vunpack.c.l.b16 %v9142
      %v9233 = vunpack.c.l.b16 %v9143
      %v9234 = vunpack.c.l.b16 %v9144
      %v9235 = vunpack.c.l.b16 %v9145
      %v9236 = vpack.c.b16 %v9200, %v9199
      %v9237 = vpack.c.b16 %v9202, %v9201
      %v9238 = vpack.c.b16 %v9204, %v9203
      %v9239 = vpack.c.b16 %v9206, %v9205
      %v9240 = vpack.c.b16 %v9208, %v9207
      %v9241 = vpack.c.b16 %v9210, %v9209
      %v9242 = vpack.c.b16 %v9212, %v9211
      %v9243 = vpack.c.b16 %v9214, %v9213
      %v9244 = vpack.c.b16 %v9216, %v9215
      %v9245 = vpack.c.b16 %v9218, %v9217
      %v9246 = vpack.c.b16 %v9220, %v9219
      %v9247 = vpack.c.b16 %v9222, %v9221
      %v9248 = vpack.c.b16 %v9224, %v9223
      %v9249 = vpack.c.b16 %v9226, %v9225
      %v9250 = vpack.c.b16 %v9228, %v9227
      %v9251 = vpack.c.b16 %v9230, %v9229
      %v9252 = vpack.c.b16 %v9232, %v9231
      %v9253 = vpack.c.b16 %v9234, %v9233
      %v9254 = vpack.c.b16 %v9235, %v9235
      %v9256 = vshrl.u32 %v9236, 16
      %v9258 = vrot.slane %v9256, 1
      %v9259 = vshll.u32 %v9236, 16
      %v9261 = vrot.slane %v9259, 2
      %v9262 = vor.u32 %v9258, %v9261
      %v9264 = vshrl.u32 %v9237, 16
      %v9266 = vrot.slane %v9264, 1
      %v9267 = vshll.u32 %v9237, 16
      %v9269 = vrot.slane %v9267, 2
      %v9270 = vor.u32 %v9266, %v9269
      %v9271 = vsel %vm1900, %v9262, %v9270
      %v9273 = vshrl.u32 %v9238, 16
      %v9275 = vrot.slane %v9273, 1
      %v9276 = vshll.u32 %v9238, 16
      %v9278 = vrot.slane %v9276, 2
      %v9279 = vor.u32 %v9275, %v9278
      %v9280 = vsel %vm1900, %v9270, %v9279
      %v9282 = vshrl.u32 %v9239, 16
      %v9284 = vrot.slane %v9282, 1
      %v9285 = vshll.u32 %v9239, 16
      %v9287 = vrot.slane %v9285, 2
      %v9288 = vor.u32 %v9284, %v9287
      %v9289 = vsel %vm1900, %v9279, %v9288
      %v9291 = vshrl.u32 %v9240, 16
      %v9293 = vrot.slane %v9291, 1
      %v9294 = vshll.u32 %v9240, 16
      %v9296 = vrot.slane %v9294, 2
      %v9297 = vor.u32 %v9293, %v9296
      %v9298 = vsel %vm1900, %v9288, %v9297
      %v9300 = vshrl.u32 %v9241, 16
      %v9302 = vrot.slane %v9300, 1
      %v9303 = vshll.u32 %v9241, 16
      %v9305 = vrot.slane %v9303, 2
      %v9306 = vor.u32 %v9302, %v9305
      %v9307 = vsel %vm1900, %v9297, %v9306
      %v9309 = vshrl.u32 %v9242, 16
      %v9311 = vrot.slane %v9309, 1
      %v9312 = vshll.u32 %v9242, 16
      %v9314 = vrot.slane %v9312, 2
      %v9315 = vor.u32 %v9311, %v9314
      %v9316 = vsel %vm1900, %v9306, %v9315
      %v9318 = vshrl.u32 %v9243, 16
      %v9320 = vrot.slane %v9318, 1
      %v9321 = vshll.u32 %v9243, 16
      %v9323 = vrot.slane %v9321, 2
      %v9324 = vor.u32 %v9320, %v9323
      %v9325 = vsel %vm1900, %v9315, %v9324
      %v9327 = vshrl.u32 %v9244, 16
      %v9329 = vrot.slane %v9327, 1
      %v9330 = vshll.u32 %v9244, 16
      %v9332 = vrot.slane %v9330, 2
      %v9333 = vor.u32 %v9329, %v9332
      %v9334 = vsel %vm1900, %v9324, %v9333
      %v9336 = vshrl.u32 %v9245, 16
      %v9338 = vrot.slane %v9336, 1
      %v9339 = vshll.u32 %v9245, 16
      %v9341 = vrot.slane %v9339, 2
      %v9342 = vor.u32 %v9338, %v9341
      %v9343 = vsel %vm1900, %v9333, %v9342
      %v9345 = vshrl.u32 %v9246, 16
      %v9347 = vrot.slane %v9345, 1
      %v9348 = vshll.u32 %v9246, 16
      %v9350 = vrot.slane %v9348, 2
      %v9351 = vor.u32 %v9347, %v9350
      %v9352 = vsel %vm1900, %v9342, %v9351
      %v9354 = vshrl.u32 %v9247, 16
      %v9356 = vrot.slane %v9354, 1
      %v9357 = vshll.u32 %v9247, 16
      %v9359 = vrot.slane %v9357, 2
      %v9360 = vor.u32 %v9356, %v9359
      %v9361 = vsel %vm1900, %v9351, %v9360
      %v9363 = vshrl.u32 %v9248, 16
      %v9365 = vrot.slane %v9363, 1
      %v9366 = vshll.u32 %v9248, 16
      %v9368 = vrot.slane %v9366, 2
      %v9369 = vor.u32 %v9365, %v9368
      %v9370 = vsel %vm1900, %v9360, %v9369
      %v9372 = vshrl.u32 %v9249, 16
      %v9374 = vrot.slane %v9372, 1
      %v9375 = vshll.u32 %v9249, 16
      %v9377 = vrot.slane %v9375, 2
      %v9378 = vor.u32 %v9374, %v9377
      %v9379 = vsel %vm1900, %v9369, %v9378
      %v9381 = vshrl.u32 %v9250, 16
      %v9383 = vrot.slane %v9381, 1
      %v9384 = vshll.u32 %v9250, 16
      %v9386 = vrot.slane %v9384, 2
      %v9387 = vor.u32 %v9383, %v9386
      %v9388 = vsel %vm1900, %v9378, %v9387
      %v9390 = vshrl.u32 %v9251, 16
      %v9392 = vrot.slane %v9390, 1
      %v9393 = vshll.u32 %v9251, 16
      %v9395 = vrot.slane %v9393, 2
      %v9396 = vor.u32 %v9392, %v9395
      %v9397 = vsel %vm1900, %v9387, %v9396
      %v9399 = vshrl.u32 %v9252, 16
      %v9401 = vrot.slane %v9399, 1
      %v9402 = vshll.u32 %v9252, 16
      %v9404 = vrot.slane %v9402, 2
      %v9405 = vor.u32 %v9401, %v9404
      %v9406 = vsel %vm1900, %v9396, %v9405
      %v9408 = vshrl.u32 %v9253, 16
      %v9410 = vrot.slane %v9408, 1
      %v9411 = vshll.u32 %v9253, 16
      %v9413 = vrot.slane %v9411, 2
      %v9414 = vor.u32 %v9410, %v9413
      %v9415 = vsel %vm1900, %v9405, %v9414
      %v9417 = vshrl.u32 %v9254, 16
      %v9419 = vrot.slane %v9417, 1
      %v9420 = vshll.u32 %v9254, 16
      %v9422 = vrot.slane %v9420, 2
      %v9423 = vor.u32 %v9419, %v9422
      %v9424 = vsel %vm1900, %v9414, %v9423
      %v9459 = vunpack.c.l.b16 %v9146
      %v9460 = vunpack.c.l.b16 %v9147
      %v9461 = vunpack.c.l.b16 %v9148
      %v9462 = vunpack.c.l.b16 %v9149
      %v9463 = vunpack.c.l.b16 %v9150
      %v9464 = vunpack.c.l.b16 %v9151
      %v9465 = vunpack.c.l.b16 %v9152
      %v9466 = vunpack.c.l.b16 %v9153
      %v9467 = vunpack.c.l.b16 %v9154
      %v9468 = vunpack.c.l.b16 %v9155
      %v9469 = vunpack.c.l.b16 %v9156
      %v9470 = vunpack.c.l.b16 %v9157
      %v9471 = vunpack.c.l.b16 %v9158
      %v9472 = vunpack.c.l.b16 %v9159
      %v9473 = vunpack.c.l.b16 %v9160
      %v9474 = vunpack.c.l.b16 %v9161
      %v9475 = vpack.c.b16 %v9460, %v9459
      %v9476 = vpack.c.b16 %v9462, %v9461
      %v9477 = vpack.c.b16 %v9464, %v9463
      %v9478 = vpack.c.b16 %v9466, %v9465
      %v9479 = vpack.c.b16 %v9468, %v9467
      %v9480 = vpack.c.b16 %v9470, %v9469
      %v9481 = vpack.c.b16 %v9472, %v9471
      %v9482 = vpack.c.b16 %v9474, %v9473
      %9491 = vmatprep.subr.bf16.mxu0 0
      %9492 = vmatpush1.bf16.msra.mxu0 %v9482
      %9493 = vmatprep.subr.bf16.mxu0 0
      %9494 = vmatpush1.bf16.msra.mxu0 %v9481
      %9495 = vmatprep.subr.bf16.mxu0 0
      %9496 = vmatpush1.bf16.msra.mxu0 %v9480
      %9497 = vmatprep.subr.bf16.mxu0 0
      %9498 = vmatpush1.bf16.msra.mxu0 %v9479
      %9499 = vmatprep.subr.bf16.mxu0 0
      %9500 = vmatpush1.bf16.msra.mxu0 %v9478
      %9501 = vmatprep.subr.bf16.mxu0 0
      %9502 = vmatpush1.bf16.msra.mxu0 %v9477
      %9503 = vmatprep.subr.bf16.mxu0 0
      %9504 = vmatpush1.bf16.msra.mxu0 %v9476
      %9505 = vmatprep.subr.bf16.mxu0 0
      %9506 = vmatpush1.bf16.msra.mxu0 %v9475
      %9507 = vmatprep.subr.bf16.mxu0 0
      %9508 = vmatpush2.bf16.msra.mxu0 0
      %9509 = vmatprep.subr.bf16.mxu0 0
      %9510 = vmatpush2.bf16.msra.mxu0 0
      %9511 = vmatprep.subr.bf16.mxu0 0
      %9512 = vmatpush2.bf16.msra.mxu0 0
      %9513 = vmatprep.subr.bf16.mxu0 0
      %9514 = vmatpush2.bf16.msra.mxu0 0
      %9515 = vmatprep.subr.bf16.mxu0 0
      %9516 = vmatpush2.bf16.msra.mxu0 0
      %9517 = vmatprep.subr.bf16.mxu0 0
      %9518 = vmatpush2.bf16.msra.mxu0 0
      %9519 = vmatprep.subr.bf16.mxu0 0
      %9520 = vmatpush2.bf16.msra.mxu0 0
      %9521 = vmatprep.subr.bf16.mxu0 0
      %9522 = vmatpush2.bf16.msra.mxu0 0
      %9523 = vmatprep.mubr.bf16.mxu0 0
      %9524 = vmatmul.mubr.bf16.gmra.mxu0 %v9271
      %v9525 = vpop.f32.mrf.mxu0
      %v9526 = vadd.f32 0.0, %v9525
      %v9527 = vpop.f32.mrf.mxu0
      %v9528 = vpop.f32.mrf.mxu0
      %v9529 = vadd.f32 0.0, %v9528
      %v9530 = vpop.f32.mrf.mxu0
      %9531 = vmatprep.mubr.bf16.mxu0 0
      %9532 = vmatmul.mubr.bf16.gmra.mxu0 %v9280
      %v9533 = vpop.f32.mrf.mxu0
      %v9534 = vadd.f32 0.0, %v9533
      %v9535 = vpop.f32.mrf.mxu0
      %v9536 = vpop.f32.mrf.mxu0
      %v9537 = vadd.f32 0.0, %v9536
      %v9538 = vpop.f32.mrf.mxu0
      %9539 = vmatprep.mubr.bf16.mxu0 0
      %9540 = vmatmul.mubr.bf16.gmra.mxu0 %v9289
      %v9541 = vpop.f32.mrf.mxu0
      %v9542 = vadd.f32 0.0, %v9541
      %v9543 = vpop.f32.mrf.mxu0
      %v9544 = vpop.f32.mrf.mxu0
      %v9545 = vadd.f32 0.0, %v9544
      %v9546 = vpop.f32.mrf.mxu0
      %9547 = vmatprep.mubr.bf16.mxu0 0
      %9548 = vmatmul.mubr.bf16.gmra.mxu0 %v9298
      %v9549 = vpop.f32.mrf.mxu0
      %v9550 = vadd.f32 0.0, %v9549
      %v9551 = vpop.f32.mrf.mxu0
      %v9552 = vpop.f32.mrf.mxu0
      %v9553 = vadd.f32 0.0, %v9552
      %v9554 = vpop.f32.mrf.mxu0
      %9555 = vmatprep.mubr.bf16.mxu0 0
      %9556 = vmatmul.mubr.bf16.gmra.mxu0 %v9307
      %v9557 = vpop.f32.mrf.mxu0
      %v9558 = vadd.f32 0.0, %v9557
      %v9559 = vpop.f32.mrf.mxu0
      %v9560 = vpop.f32.mrf.mxu0
      %v9561 = vadd.f32 0.0, %v9560
      %v9562 = vpop.f32.mrf.mxu0
      %9563 = vmatprep.mubr.bf16.mxu0 0
      %9564 = vmatmul.mubr.bf16.gmra.mxu0 %v9316
      %v9565 = vpop.f32.mrf.mxu0
      %v9566 = vadd.f32 0.0, %v9565
      %v9567 = vpop.f32.mrf.mxu0
      %v9568 = vpop.f32.mrf.mxu0
      %v9569 = vadd.f32 0.0, %v9568
      %v9570 = vpop.f32.mrf.mxu0
      %9571 = vmatprep.mubr.bf16.mxu0 0
      %9572 = vmatmul.mubr.bf16.gmra.mxu0 %v9325
      %v9573 = vpop.f32.mrf.mxu0
      %v9574 = vadd.f32 0.0, %v9573
      %v9575 = vpop.f32.mrf.mxu0
      %v9576 = vpop.f32.mrf.mxu0
      %v9577 = vadd.f32 0.0, %v9576
      %v9578 = vpop.f32.mrf.mxu0
      %9579 = vmatprep.mubr.bf16.mxu0 0
      %9580 = vmatmul.mubr.bf16.gmra.mxu0 %v9334
      %v9581 = vpop.f32.mrf.mxu0
      %v9582 = vadd.f32 0.0, %v9581
      %v9583 = vpop.f32.mrf.mxu0
      %v9584 = vpop.f32.mrf.mxu0
      %v9585 = vadd.f32 0.0, %v9584
      %v9586 = vpop.f32.mrf.mxu0
      %9587 = vmatprep.mubr.bf16.mxu0 0
      %9588 = vmatmul.mubr.bf16.gmra.mxu0 %v9343
      %v9589 = vpop.f32.mrf.mxu0
      %v9590 = vadd.f32 0.0, %v9589
      %v9591 = vpop.f32.mrf.mxu0
      %v9592 = vpop.f32.mrf.mxu0
      %v9593 = vadd.f32 0.0, %v9592
      %v9594 = vpop.f32.mrf.mxu0
      %9595 = vmatprep.mubr.bf16.mxu0 0
      %9596 = vmatmul.mubr.bf16.gmra.mxu0 %v9352
      %v9597 = vpop.f32.mrf.mxu0
      %v9598 = vadd.f32 0.0, %v9597
      %v9599 = vpop.f32.mrf.mxu0
      %v9600 = vpop.f32.mrf.mxu0
      %v9601 = vadd.f32 0.0, %v9600
      %v9602 = vpop.f32.mrf.mxu0
      %9603 = vmatprep.mubr.bf16.mxu0 0
      %9604 = vmatmul.mubr.bf16.gmra.mxu0 %v9361
      %v9605 = vpop.f32.mrf.mxu0
      %v9606 = vadd.f32 0.0, %v9605
      %v9607 = vpop.f32.mrf.mxu0
      %v9608 = vpop.f32.mrf.mxu0
      %v9609 = vadd.f32 0.0, %v9608
      %v9610 = vpop.f32.mrf.mxu0
      %9611 = vmatprep.mubr.bf16.mxu0 0
      %9612 = vmatmul.mubr.bf16.gmra.mxu0 %v9370
      %v9613 = vpop.f32.mrf.mxu0
      %v9614 = vadd.f32 0.0, %v9613
      %v9615 = vpop.f32.mrf.mxu0
      %v9616 = vpop.f32.mrf.mxu0
      %v9617 = vadd.f32 0.0, %v9616
      %v9618 = vpop.f32.mrf.mxu0
      %9619 = vmatprep.mubr.bf16.mxu0 0
      %9620 = vmatmul.mubr.bf16.gmra.mxu0 %v9379
      %v9621 = vpop.f32.mrf.mxu0
      %v9622 = vadd.f32 0.0, %v9621
      %v9623 = vpop.f32.mrf.mxu0
      %v9624 = vpop.f32.mrf.mxu0
      %v9625 = vadd.f32 0.0, %v9624
      %v9626 = vpop.f32.mrf.mxu0
      %9627 = vmatprep.mubr.bf16.mxu0 0
      %9628 = vmatmul.mubr.bf16.gmra.mxu0 %v9388
      %v9629 = vpop.f32.mrf.mxu0
      %v9630 = vadd.f32 0.0, %v9629
      %v9631 = vpop.f32.mrf.mxu0
      %v9632 = vpop.f32.mrf.mxu0
      %v9633 = vadd.f32 0.0, %v9632
      %v9634 = vpop.f32.mrf.mxu0
      %9635 = vmatprep.mubr.bf16.mxu0 0
      %9636 = vmatmul.mubr.bf16.gmra.mxu0 %v9397
      %v9637 = vpop.f32.mrf.mxu0
      %v9638 = vadd.f32 0.0, %v9637
      %v9639 = vpop.f32.mrf.mxu0
      %v9640 = vpop.f32.mrf.mxu0
      %v9641 = vadd.f32 0.0, %v9640
      %v9642 = vpop.f32.mrf.mxu0
      %9643 = vmatprep.mubr.bf16.mxu0 0
      %9644 = vmatmul.mubr.bf16.gmra.mxu0 %v9406
      %v9645 = vpop.f32.mrf.mxu0
      %v9646 = vadd.f32 0.0, %v9645
      %v9647 = vpop.f32.mrf.mxu0
      %v9648 = vpop.f32.mrf.mxu0
      %v9649 = vadd.f32 0.0, %v9648
      %v9650 = vpop.f32.mrf.mxu0
      %9651 = vmatprep.mubr.bf16.mxu0 0
      %9652 = vmatmul.mubr.bf16.gmra.mxu0 %v9415
      %v9653 = vpop.f32.mrf.mxu0
      %v9654 = vadd.f32 0.0, %v9653
      %v9655 = vpop.f32.mrf.mxu0
      %v9656 = vpop.f32.mrf.mxu0
      %v9657 = vadd.f32 0.0, %v9656
      %v9658 = vpop.f32.mrf.mxu0
      %9659 = vmatprep.mubr.bf16.mxu0 0
      %9660 = vmatmul.mubr.bf16.gmra.mxu0 %v9424
      %v9661 = vpop.f32.mrf.mxu0
      %v9662 = vadd.f32 0.0, %v9661
      %v9663 = vpop.f32.mrf.mxu0
      %v9664 = vpop.f32.mrf.mxu0
      %v9665 = vadd.f32 0.0, %v9664
      %v9666 = vpop.f32.mrf.mxu0
      %9667 = vdwg.mxu0
      %v9668 = vadd.f32 %v9073, %v9526
      %v9669 = vadd.f32 %v9074, %v9529
      %v9670 = vadd.f32 %v9075, %v9534
      %v9671 = vadd.f32 %v9076, %v9537
      %v9672 = vadd.f32 %v9077, %v9542
      %v9673 = vadd.f32 %v9078, %v9545
      %v9674 = vadd.f32 %v9079, %v9550
      %v9675 = vadd.f32 %v9080, %v9553
      %v9676 = vadd.f32 %v9081, %v9558
      %v9677 = vadd.f32 %v9082, %v9561
      %v9678 = vadd.f32 %v9083, %v9566
      %v9679 = vadd.f32 %v9084, %v9569
      %v9680 = vadd.f32 %v9085, %v9574
      %v9681 = vadd.f32 %v9086, %v9577
      %v9682 = vadd.f32 %v9087, %v9582
      %v9683 = vadd.f32 %v9088, %v9585
      %v9684 = vadd.f32 %v9089, %v9590
      %v9685 = vadd.f32 %v9090, %v9593
      %v9686 = vadd.f32 %v9091, %v9598
      %v9687 = vadd.f32 %v9092, %v9601
      %v9688 = vadd.f32 %v9093, %v9606
      %v9689 = vadd.f32 %v9094, %v9609
      %v9690 = vadd.f32 %v9095, %v9614
      %v9691 = vadd.f32 %v9096, %v9617
      %v9692 = vadd.f32 %v9097, %v9622
      %v9693 = vadd.f32 %v9098, %v9625
      %v9694 = vadd.f32 %v9099, %v9630
      %v9695 = vadd.f32 %v9100, %v9633
      %v9696 = vadd.f32 %v9101, %v9638
      %v9697 = vadd.f32 %v9102, %v9641
      %v9698 = vadd.f32 %v9103, %v9646
      %v9699 = vadd.f32 %v9104, %v9649
      %v9700 = vadd.f32 %v9105, %v9654
      %v9701 = vadd.f32 %v9106, %v9657
      %v9702 = vadd.f32 %v9107, %v9662
      %v9703 = vadd.f32 %v9108, %v9665
      %v9704 = vld [vmem:[%s6] sm:$0x1]
      %v9706 = vlaneseq
      %v9707 = vshrl.u32 %v9706, 7
      %v9708 = vsub.s32 0, %v9707
      %v9709 = vrot.slane %v9704, %v9708
      %v9711 = vadd.f32 %v9668, %v9709
      %v9712 = vadd.f32 %v9669, %v9709
      %v9713 = vadd.f32 %v9670, %v9709
      %v9714 = vadd.f32 %v9671, %v9709
      %v9715 = vadd.f32 %v9672, %v9709
      %v9716 = vadd.f32 %v9673, %v9709
      %v9717 = vadd.f32 %v9674, %v9709
      %v9718 = vadd.f32 %v9675, %v9709
      %v9719 = vadd.f32 %v9676, %v9709
      %v9720 = vadd.f32 %v9677, %v9709
      %v9721 = vadd.f32 %v9678, %v9709
      %v9722 = vadd.f32 %v9679, %v9709
      %v9723 = vadd.f32 %v9680, %v9709
      %v9724 = vadd.f32 %v9681, %v9709
      %v9725 = vadd.f32 %v9682, %v9709
      %v9726 = vadd.f32 %v9683, %v9709
      %v9727 = vadd.f32 %v9684, %v9709
      %v9728 = vadd.f32 %v9685, %v9709
      %v9729 = vadd.f32 %v9686, %v9709
      %v9730 = vadd.f32 %v9687, %v9709
      %v9731 = vadd.f32 %v9688, %v9709
      %v9732 = vadd.f32 %v9689, %v9709
      %v9733 = vadd.f32 %v9690, %v9709
      %v9734 = vadd.f32 %v9691, %v9709
      %v9735 = vadd.f32 %v9692, %v9709
      %v9736 = vadd.f32 %v9693, %v9709
      %v9737 = vadd.f32 %v9694, %v9709
      %v9738 = vadd.f32 %v9695, %v9709
      %v9739 = vadd.f32 %v9696, %v9709
      %v9740 = vadd.f32 %v9697, %v9709
      %v9741 = vadd.f32 %v9698, %v9709
      %v9742 = vadd.f32 %v9699, %v9709
      %v9743 = vadd.f32 %v9700, %v9709
      %v9744 = vadd.f32 %v9701, %v9709
      %v9745 = vadd.f32 %v9702, %v9709
      %v9746 = vadd.f32 %v9703, %v9709
      %v9747 = vmax.f32 %v9711, 0.0
      %v9748 = vmax.f32 %v9712, 0.0
      %v9749 = vmax.f32 %v9713, 0.0
      %v9750 = vmax.f32 %v9714, 0.0
      %v9751 = vmax.f32 %v9715, 0.0
      %v9752 = vmax.f32 %v9716, 0.0
      %v9753 = vmax.f32 %v9717, 0.0
      %v9754 = vmax.f32 %v9718, 0.0
      %v9755 = vmax.f32 %v9719, 0.0
      %v9756 = vmax.f32 %v9720, 0.0
      %v9757 = vmax.f32 %v9721, 0.0
      %v9758 = vmax.f32 %v9722, 0.0
      %v9759 = vmax.f32 %v9723, 0.0
      %v9760 = vmax.f32 %v9724, 0.0
      %v9761 = vmax.f32 %v9725, 0.0
      %v9762 = vmax.f32 %v9726, 0.0
      %v9763 = vmax.f32 %v9727, 0.0
      %v9764 = vmax.f32 %v9728, 0.0
      %v9765 = vmax.f32 %v9729, 0.0
      %v9766 = vmax.f32 %v9730, 0.0
      %v9767 = vmax.f32 %v9731, 0.0
      %v9768 = vmax.f32 %v9732, 0.0
      %v9769 = vmax.f32 %v9733, 0.0
      %v9770 = vmax.f32 %v9734, 0.0
      %v9771 = vmax.f32 %v9735, 0.0
      %v9772 = vmax.f32 %v9736, 0.0
      %v9773 = vmax.f32 %v9737, 0.0
      %v9774 = vmax.f32 %v9738, 0.0
      %v9775 = vmax.f32 %v9739, 0.0
      %v9776 = vmax.f32 %v9740, 0.0
      %v9777 = vmax.f32 %v9741, 0.0
      %v9778 = vmax.f32 %v9742, 0.0
      %v9779 = vmax.f32 %v9743, 0.0
      %v9780 = vmax.f32 %v9744, 0.0
      %v9781 = vmax.f32 %v9745, 0.0
      %v9782 = vmax.f32 %v9746, 0.0
      %v9783 = vpack.c.bf16 %v9748, %v9747
      %v9784 = vpack.c.bf16 %v9750, %v9749
      %v9785 = vpack.c.bf16 %v9752, %v9751
      %v9786 = vpack.c.bf16 %v9754, %v9753
      %v9787 = vpack.c.bf16 %v9756, %v9755
      %v9788 = vpack.c.bf16 %v9758, %v9757
      %v9789 = vpack.c.bf16 %v9760, %v9759
      %v9790 = vpack.c.bf16 %v9762, %v9761
      %v9791 = vpack.c.bf16 %v9764, %v9763
      %v9792 = vpack.c.bf16 %v9766, %v9765
      %v9793 = vpack.c.bf16 %v9768, %v9767
      %v9794 = vpack.c.bf16 %v9770, %v9769
      %v9795 = vpack.c.bf16 %v9772, %v9771
      %v9796 = vpack.c.bf16 %v9774, %v9773
      %v9797 = vpack.c.bf16 %v9776, %v9775
      %v9798 = vpack.c.bf16 %v9778, %v9777
      %v9799 = vpack.c.bf16 %v9780, %v9779
      %v9800 = vpack.c.bf16 %v9782, %v9781
      %v9819 = vunpack.c.l.b16 %v9783
      %v9820 = vunpack.c.h.b16 %v9783
      %v9821 = vunpack.c.l.b16 %v9784
      %v9822 = vunpack.c.h.b16 %v9784
      %v9823 = vunpack.c.l.b16 %v9785
      %v9824 = vunpack.c.h.b16 %v9785
      %v9825 = vunpack.c.l.b16 %v9786
      %v9826 = vunpack.c.h.b16 %v9786
      %v9827 = vunpack.c.l.b16 %v9787
      %v9828 = vunpack.c.h.b16 %v9787
      %v9829 = vunpack.c.l.b16 %v9788
      %v9830 = vunpack.c.h.b16 %v9788
      %v9831 = vunpack.c.l.b16 %v9789
      %v9832 = vunpack.c.h.b16 %v9789
      %v9833 = vunpack.c.l.b16 %v9790
      %v9834 = vunpack.c.h.b16 %v9790
      %v9835 = vunpack.c.l.b16 %v9791
      %v9836 = vunpack.c.h.b16 %v9791
      %v9837 = vunpack.c.l.b16 %v9792
      %v9838 = vunpack.c.h.b16 %v9792
      %v9839 = vunpack.c.l.b16 %v9793
      %v9840 = vunpack.c.h.b16 %v9793
      %v9841 = vunpack.c.l.b16 %v9794
      %v9842 = vunpack.c.h.b16 %v9794
      %v9843 = vunpack.c.l.b16 %v9795
      %v9844 = vunpack.c.h.b16 %v9795
      %v9845 = vunpack.c.l.b16 %v9796
      %v9846 = vunpack.c.h.b16 %v9796
      %v9847 = vunpack.c.l.b16 %v9797
      %v9848 = vunpack.c.h.b16 %v9797
      %v9849 = vunpack.c.l.b16 %v9798
      %v9850 = vunpack.c.h.b16 %v9798
      %v9851 = vunpack.c.l.b16 %v9799
      %v9852 = vunpack.c.h.b16 %v9799
      %v9853 = vunpack.c.l.b16 %v9800
      %v9854 = vunpack.c.h.b16 %v9800
      %v9855 = vpack.c.b16 %v9819, %v9819
      %v9856 = vpack.c.b16 %v9820, %v9820
      %v9857 = vpack.c.b16 %v9821, %v9821
      %v9858 = vpack.c.b16 %v9822, %v9822
      %v9859 = vpack.c.b16 %v9823, %v9823
      %v9860 = vpack.c.b16 %v9824, %v9824
      %v9861 = vpack.c.b16 %v9825, %v9825
      %v9862 = vpack.c.b16 %v9826, %v9826
      %v9863 = vpack.c.b16 %v9827, %v9827
      %v9864 = vpack.c.b16 %v9828, %v9828
      %v9865 = vpack.c.b16 %v9829, %v9829
      %v9866 = vpack.c.b16 %v9830, %v9830
      %v9867 = vpack.c.b16 %v9831, %v9831
      %v9868 = vpack.c.b16 %v9832, %v9832
      %v9869 = vpack.c.b16 %v9833, %v9833
      %v9870 = vpack.c.b16 %v9834, %v9834
      %v9871 = vpack.c.b16 %v9835, %v9835
      %v9872 = vpack.c.b16 %v9836, %v9836
      %v9873 = vpack.c.b16 %v9837, %v9837
      %v9874 = vpack.c.b16 %v9838, %v9838
      %v9875 = vpack.c.b16 %v9839, %v9839
      %v9876 = vpack.c.b16 %v9840, %v9840
      %v9877 = vpack.c.b16 %v9841, %v9841
      %v9878 = vpack.c.b16 %v9842, %v9842
      %v9879 = vpack.c.b16 %v9843, %v9843
      %v9880 = vpack.c.b16 %v9844, %v9844
      %v9881 = vpack.c.b16 %v9845, %v9845
      %v9882 = vpack.c.b16 %v9846, %v9846
      %v9883 = vpack.c.b16 %v9847, %v9847
      %v9884 = vpack.c.b16 %v9848, %v9848
      %v9885 = vpack.c.b16 %v9849, %v9849
      %v9886 = vpack.c.b16 %v9850, %v9850
      %v9887 = vpack.c.b16 %v9851, %v9851
      %v9888 = vpack.c.b16 %v9852, %v9852
      %v9889 = vpack.c.b16 %v9853, %v9853
      %v9890 = vpack.c.b16 %v9854, %v9854
      %9927 = vst [vmem:[%s278] sm:$0xf] %v9855
      %9928 = vst [vmem:[%s278 + $0x4] sm:$0xf] %v9856
      %9929 = vst [vmem:[%s278 + $0x8] sm:$0xf] %v9857
      %9930 = vst [vmem:[%s278 + $0xc] sm:$0xf] %v9858
      %9931 = vst [vmem:[%s278 + $0x10] sm:$0xf] %v9859
      %9932 = vst [vmem:[%s278 + $0x14] sm:$0xf] %v9860
      %9933 = vst [vmem:[%s278 + $0x18] sm:$0xf] %v9861
      %9934 = vst [vmem:[%s278 + $0x1c] sm:$0xf] %v9862
      %9935 = vst [vmem:[%s278 + $0x20] sm:$0xf] %v9863
      %9936 = vst [vmem:[%s278 + $0x24] sm:$0xf] %v9864
      %9937 = vst [vmem:[%s278 + $0x28] sm:$0xf] %v9865
      %9938 = vst [vmem:[%s278 + $0x2c] sm:$0xf] %v9866
      %9939 = vst [vmem:[%s278 + $0x30] sm:$0xf] %v9867
      %9940 = vst [vmem:[%s278 + $0x34] sm:$0xf] %v9868
      %9941 = vst [vmem:[%s278 + $0x38] sm:$0xf] %v9869
      %9942 = vst [vmem:[%s278 + $0x3c] sm:$0xf] %v9870
      %9943 = vst [vmem:[%s278 + $0x40] sm:$0xf] %v9871
      %9944 = vst [vmem:[%s278 + $0x44] sm:$0xf] %v9872
      %9945 = vst [vmem:[%s278 + $0x48] sm:$0xf] %v9873
      %9946 = vst [vmem:[%s278 + $0x4c] sm:$0xf] %v9874
      %9947 = vst [vmem:[%s278 + $0x50] sm:$0xf] %v9875
      %9948 = vst [vmem:[%s278 + $0x54] sm:$0xf] %v9876
      %9949 = vst [vmem:[%s278 + $0x58] sm:$0xf] %v9877
      %9950 = vst [vmem:[%s278 + $0x5c] sm:$0xf] %v9878
      %9951 = vst [vmem:[%s278 + $0x60] sm:$0xf] %v9879
      %9952 = vst [vmem:[%s278 + $0x64] sm:$0xf] %v9880
      %9953 = vst [vmem:[%s278 + $0x68] sm:$0xf] %v9881
      %9954 = vst [vmem:[%s278 + $0x6c] sm:$0xf] %v9882
      %9955 = vst [vmem:[%s278 + $0x70] sm:$0xf] %v9883
      %9956 = vst [vmem:[%s278 + $0x74] sm:$0xf] %v9884
      %9957 = vst [vmem:[%s278 + $0x78] sm:$0xf] %v9885
      %9958 = vst [vmem:[%s278 + $0x7c] sm:$0xf] %v9886
      %9959 = vst [vmem:[%s278 + $0x80] sm:$0xf] %v9887
      %9960 = vst [vmem:[%s278 + $0x84] sm:$0xf] %v9888
      %9961 = vst [vmem:[%s278 + $0x88] sm:$0xf] %v9889
      %9962 = vst [vmem:[%s278 + $0x8c] sm:$0xf] %v9890
      %p9963 = scmp.lt.s32.totalorder %s18, 1
      %s9964 = scalar_select %p9963, %s18, 1
      %s9965 = smul.addr %s9964, 36
      %s9966 = smul.addr %s9965, 4
      %s9967 = scalar_lea.vmem %s7, %s9966
      // Predicated region
      $region49: #{resnet_basic_block_forward.1} parent=47 // pred_check
        %p9968 = pneg %p188
      $region50: #{resnet_basic_block_forward.1} parent=47 // pred_check_branch
        %9970 = sbr.rel (%p9968) target = $region52
      $region51: #{resnet_basic_block_forward.1} parent=47 // pred_region
        _
      $region52: #{resnet_basic_block_forward.1} parent=47 // pred_fallthru
        _
    $region48: #{resnet_basic_block_forward.1} parent=5 // pred_fallthru
      _
    %p9971 = scmp.le.s32.totalorder 2, %s13
    // Predicated region
    $region53: #{resnet_basic_block_forward.1} parent=5 // pred_check
      %p9972 = pneg %p9971
    $region54: #{resnet_basic_block_forward.1} parent=5 // pred_check_branch
      %9974 = sbr.rel (%p9972) target = $region56
    $region55: #{resnet_basic_block_forward.1} parent=5 // pred_region
      %s9975 = ssub.s32 %s13, 2
      // Predicated region
      $region57: #{resnet_basic_block_forward.1} parent=55 // pred_check
        %p9976 = pneg %p194
      $region58: #{resnet_basic_block_forward.1} parent=55 // pred_check_branch
        %9978 = sbr.rel (%p9976) target = $region60
      $region59: #{resnet_basic_block_forward.1} parent=55 // pred_region
        %p9979 = scmp.lt.s32.totalorder %s19, 1
        %s9980 = scalar_select %p9979, %s19, 1
        %s9981 = smul.addr %s9980, 36
        %s9982 = smul.addr %s9981, 4
        %s9983 = scalar_lea.vmem %s7, %s9982
      $region60: #{resnet_basic_block_forward.1} parent=55 // pred_fallthru
        _
    $region56: #{resnet_basic_block_forward.1} parent=5 // pred_fallthru
      _
  $region6: #{resnet_basic_block_forward.1} parent=0 // loop_footer
    %s17 = sadd.s32 1, %s13
  $region7: #{resnet_basic_block_forward.1} parent=0 // loop_footer_branch
    %12 = sbr.rel target = $region3
  $region8: #{resnet_basic_block_forward.1} parent=0 // loop_exit
    _

</llo_original>
